<compile_context>
chip_gen: v5e
topology: v5e:2x2
jax: 0.10.0
libtpu: 0.0.40
codegen_flags: <defaults>
</compile_context>

<pallas_src>
import functools

import jax
import jax.numpy as jnp
from jax import lax
from jax import ops as jax_ops
from jax.experimental import pallas as pl
from jax.experimental.pallas import tpu as pltpu

_BIG = 1e9
_SPACE_DIM = 4      # GravNetConv space_dimensions
_PROP_DIM = 22      # GravNetConv propagate_dimensions
_PROP_PAD = 64      # propagate dims zero-padded so [mean|max] output is 128 lanes
_INT32_MAX = 2147483647


def _row_tile(n, target=512):
    """Largest row tile <= target that is a multiple of 8 (or the full array) and
    leaves >= 2 grid steps so both v7x TensorCores get work."""
    if n <= 16:
        return n
    half = (((n + 1) // 2) + 7) // 8 * 8
    return max(8, min(target, half))


def _agg_tile(n):
    """Query tile for the aggregation kernel: target 256 rows (full MXU M dim on
    v6e), shrunk until the ~5 live (T,N) 32-bit temporaries stay under ~20 MiB so
    the kernel fits v7x's 64 MiB physical VMEM with headroom."""
    t = _row_tile(n, 256)
    while t > 8 and 5 * 4 * t * n > (20 << 20):
        t = max(8, ((t // 2) + 7) // 8 * 8)
    return t


def _parallel(**kw):
    return pltpu.CompilerParams(dimension_semantics=("parallel",), **kw)


# ----------------------------- Pallas kernels ------------------------------

def _linear_kernel(x_ref, *rest, activation, has_norm):
    """[optional BN affine] -> x @ W + b -> [optional tanh/relu] for one row tile."""
    if has_norm:
        sc_ref, sh_ref, w_ref, b_ref, o_ref = rest
        x = x_ref[...] * sc_ref[...] + sh_ref[...]
    else:
        w_ref, b_ref, o_ref = rest
        x = x_ref[...]
    y = jnp.dot(x.astype(jnp.bfloat16), w_ref[...],
                preferred_element_type=jnp.float32) + b_ref[...]
    if activation == "tanh":
        y = jnp.tanh(y)
    elif activation == "relu":
        y = jnp.maximum(y, 0.0)
    o_ref[...] = y


def linear(x, p, activation=None, norm=None, tile=512):
    n, fin = x.shape
    fout = p["w"].shape[1]
    t = _row_tile(n, tile)
    row = lambda f: pl.BlockSpec((t, f), lambda i: (i, 0))
    full = lambda s: pl.BlockSpec(s, lambda i: (0, 0))
    args, in_specs = [x], [row(fin)]
    if norm is not None:
        args += [norm[0], norm[1]]
        in_specs += [full((1, fin)), full((1, fin))]
    args += [p["w"].astype(jnp.bfloat16), p["b"]]
    in_specs += [full((fin, fout)), full((1, fout))]
    cost = pl.CostEstimate(
        flops=int(2 * n * fin * fout),
        transcendentals=int(n * fout if activation == "tanh" else 0),
        bytes_accessed=int(4 * (n * fin + n * fout) + 2 * fin * fout))
    return pl.pallas_call(
        functools.partial(_linear_kernel, activation=activation,
                          has_norm=norm is not None),
        out_shape=jax.ShapeDtypeStruct((n, fout), jnp.float32),
        grid=(pl.cdiv(n, t),),
        in_specs=in_specs,
        out_specs=row(fout),
        compiler_params=_parallel(),
        cost_estimate=cost,
    )(*args)


def _linear2_kernel(a_ref, x_ref, wa_ref, wx_ref, b_ref, o_ref, *, activation):
    """Split-K linear: concat([a, x]) @ W  ==  a @ W[:ka] + x @ W[ka:] (no HBM concat)."""
    y = jnp.dot(a_ref[...].astype(jnp.bfloat16), wa_ref[...],
                preferred_element_type=jnp.float32)
    y = y + jnp.dot(x_ref[...].astype(jnp.bfloat16), wx_ref[...],
                    preferred_element_type=jnp.float32)
    y = y + b_ref[...]
    if activation == "tanh":
        y = jnp.tanh(y)
    elif activation == "relu":
        y = jnp.maximum(y, 0.0)
    o_ref[...] = y


def linear2(a, x, wa, wx, b, activation=None, tile=512):
    n, fa = a.shape
    fx = x.shape[1]
    fout = wa.shape[1]
    t = _row_tile(n, tile)
    row = lambda f: pl.BlockSpec((t, f), lambda i: (i, 0))
    full = lambda s: pl.BlockSpec(s, lambda i: (0, 0))
    cost = pl.CostEstimate(
        flops=int(2 * n * (fa + fx) * fout),
        transcendentals=0,
        bytes_accessed=int(4 * (n * (fa + fx) + n * fout) + 2 * (fa + fx) * fout))
    return pl.pallas_call(
        functools.partial(_linear2_kernel, activation=activation),
        out_shape=jax.ShapeDtypeStruct((n, fout), jnp.float32),
        grid=(pl.cdiv(n, t),),
        in_specs=[row(fa), row(fx), full((fa, fout)), full((fx, fout)),
                  full((1, fout))],
        out_specs=row(fout),
        compiler_params=_parallel(),
        cost_estimate=cost,
    )(a, x, wa.astype(jnp.bfloat16), wx.astype(jnp.bfloat16), b)


def _ge_linear_kernel(x_ref, bq_ref, p_ref, w_ref, b_ref, o_ref, *,
                      activation, num_events):
    """global_exchange + Linear fused:
         out = onehot(batch) @ (stats @ W_stats)  +  x @ W_x  +  b   [+ activation]
       `p_ref` holds the per-event stats already projected through the stats half
       of the weight (tiny (B,3F)@(3F,Fout) done outside); gathering a row with a
       one-hot matmul is exact (kept in f32), so this matches gather-then-matmul."""
    x = x_ref[...]
    ev = lax.broadcasted_iota(jnp.int32, (x.shape[0], num_events), 1)
    onehot = (bq_ref[...] == ev).astype(jnp.float32)     # rejected hits (id -1): all zero
    y = jnp.dot(onehot, p_ref[...], preferred_element_type=jnp.float32)
    y = y + jnp.dot(x.astype(jnp.bfloat16), w_ref[...],
                    preferred_element_type=jnp.float32)
    y = y + b_ref[...]
    if activation == "tanh":
        y = jnp.tanh(y)
    elif activation == "relu":
        y = jnp.maximum(y, 0.0)
    o_ref[...] = y


def ge_linear(x, batch_col, p_top, w_bot, b, num_events, activation=None, tile=512):
    n, fin = x.shape
    fout = w_bot.shape[1]
    t = _row_tile(n, tile)
    row = lambda f: pl.BlockSpec((t, f), lambda i: (i, 0))
    full = lambda s: pl.BlockSpec(s, lambda i: (0, 0))
    cost = pl.CostEstimate(
        flops=int(2 * n * (fin + num_events) * fout),
        transcendentals=int(n * fout if activation == "tanh" else 0),
        bytes_accessed=int(4 * (n * fin + n + num_events * fout + n * fout)
                           + 2 * fin * fout))
    return pl.pallas_call(
        functools.partial(_ge_linear_kernel, activation=activation,
                          num_events=num_events),
        out_shape=jax.ShapeDtypeStruct((n, fout), jnp.float32),
        grid=(pl.cdiv(n, t),),
        in_specs=[row(fin),
                  pl.BlockSpec((t, 1), lambda i: (i, 0)),
                  full((num_events, fout)), full((fin, fout)), full((1, fout))],
        out_specs=row(fout),
        compiler_params=_parallel(),
        cost_estimate=cost,
    )(x, batch_col, p_top, w_bot.astype(jnp.bfloat16), b)


def _lin_sh_kernel(x_ref, ws_ref, wh_ref, bs_ref, bh_ref, s_ref, h_ref):
    x = x_ref[...]
    # learned space coordinates stay f32: they feed the kNN distance path
    s_ref[...] = jnp.dot(x, ws_ref[...], preferred_element_type=jnp.float32) + bs_ref[...]
    h = jnp.dot(x.astype(jnp.bfloat16), wh_ref[...],
                preferred_element_type=jnp.float32) + bh_ref[...]
    h_ref[...] = h.astype(jnp.bfloat16)


def lin_sh(x, p, tile=512):
    """GravNetConv lin_s / lin_h in one kernel -> (s (N,4) f32, h (N,64) bf16).
    h is zero-padded 22 -> 64 features so the aggregation output is 128-lane dense;
    the padded columns multiply zero weights everywhere downstream (exact)."""
    n, fin = x.shape
    w, b = p["w"], p["b"]
    ws = w[:, :_SPACE_DIM]
    bs = b[:, :_SPACE_DIM]
    wh = jnp.zeros((fin, _PROP_PAD), jnp.float32).at[:, :_PROP_DIM].set(w[:, _SPACE_DIM:])
    bh = jnp.zeros((1, _PROP_PAD), jnp.float32).at[:, :_PROP_DIM].set(b[:, _SPACE_DIM:])
    t = _row_tile(n, tile)
    row = lambda f: pl.BlockSpec((t, f), lambda i: (i, 0))
    full = lambda s: pl.BlockSpec(s, lambda i: (0, 0))
    return pl.pallas_call(
        _lin_sh_kernel,
        out_shape=(jax.ShapeDtypeStruct((n, _SPACE_DIM), jnp.float32),
                   jax.ShapeDtypeStruct((n, _PROP_PAD), jnp.bfloat16)),
        grid=(pl.cdiv(n, t),),
        in_specs=[row(fin), full((fin, _SPACE_DIM)), full((fin, _PROP_PAD)),
                  full((1, _SPACE_DIM)), full((1, _PROP_PAD))],
        out_specs=(row(_SPACE_DIM), row(_PROP_PAD)),
        compiler_params=_parallel(),
    )(x, ws, wh.astype(jnp.bfloat16), bs, bh)


def _out_head_kernel(x_ref, sc_ref, sh_ref, w1_ref, b1_ref, w2_ref, b2_ref,
                     w3_ref, b3_ref, o_ref):
    """Final BN affine + Linear/ReLU + Linear/ReLU + Linear, fused."""
    x = (x_ref[...] * sc_ref[...] + sh_ref[...]).astype(jnp.bfloat16)
    h = jnp.dot(x, w1_ref[...], preferred_element_type=jnp.float32) + b1_ref[...]
    h = jnp.maximum(h, 0.0).astype(jnp.bfloat16)
    h = jnp.dot(h, w2_ref[...], preferred_element_type=jnp.float32) + b2_ref[...]
    h = jnp.maximum(h, 0.0).astype(jnp.bfloat16)
    o_ref[...] = jnp.dot(h, w3_ref[...], preferred_element_type=jnp.float32) + b3_ref[...]


def output_head(x, norm, p1, p2, p3, tile=512):
    n, fin = x.shape
    fout = p3["w"].shape[1]
    t = _row_tile(n, tile)
    row = lambda f: pl.BlockSpec((t, f), lambda i: (i, 0))
    full = lambda a: pl.BlockSpec(a.shape, lambda i: (0, 0))
    side = [norm[0], norm[1],
            p1["w"].astype(jnp.bfloat16), p1["b"],
            p2["w"].astype(jnp.bfloat16), p2["b"],
            p3["w"].astype(jnp.bfloat16), p3["b"]]
    return pl.pallas_call(
        _out_head_kernel,
        out_shape=jax.ShapeDtypeStruct((n, fout), jnp.float32),
        grid=(pl.cdiv(n, t),),
        in_specs=[row(fin)] + [full(a) for a in side],
        out_specs=row(fout),
        compiler_params=_parallel(),
    )(x, *side)


def _noise_filter_kernel(x_ref, sc_ref, sh_ref, w1, b1, w2, b2, w3, b3, w4, b4, o_ref):
    """NoiseFilterModel: BN affine + Linear/ReLU x3 + Linear + log_softmax, fused.
    Kept in f32 (tiny matmuls; its pass/fail decision gates the whole model)."""
    x = x_ref[...] * sc_ref[...] + sh_ref[...]
    h = jnp.maximum(jnp.dot(x, w1[...], preferred_element_type=jnp.float32) + b1[...], 0.0)
    h = jnp.maximum(jnp.dot(h, w2[...], preferred_element_type=jnp.float32) + b2[...], 0.0)
    h = jnp.maximum(jnp.dot(h, w3[...], preferred_element_type=jnp.float32) + b3[...], 0.0)
    z = jnp.dot(h, w4[...], preferred_element_type=jnp.float32) + b4[...]
    z = z - jnp.max(z, axis=1, keepdims=True)
    o_ref[...] = z - jnp.log(jnp.sum(jnp.exp(z), axis=1, keepdims=True))


def noise_filter_forward(p, x, tile=512):
    n, f = x.shape
    scale, shift = _bn_scale_shift(x, p["bn"])
    t = _row_tile(n, tile)
    row = lambda w: pl.BlockSpec((t, w), lambda i: (i, 0))
    full = lambda a: pl.BlockSpec(a.shape, lambda i: (0, 0))
    side = [scale, shift,
            p["fc1"]["w"], p["fc1"]["b"], p["fc2"]["w"], p["fc2"]["b"],
            p["fc3"]["w"], p["fc3"]["b"], p["fc4"]["w"], p["fc4"]["b"]]
    return pl.pallas_call(
        _noise_filter_kernel,
        out_shape=jax.ShapeDtypeStruct((n, 2), jnp.float32),
        grid=(pl.cdiv(n, t),),
        in_specs=[row(f)] + [full(a) for a in side],
        out_specs=row(2),
        compiler_params=_parallel(),
    )(x, *side)


def _gravnet_agg_kernel(sq_ref, bq_ref, sk_ref, hk_ref, bk_ref, sqk_ref, o_ref,
                        *, k, lane_bits, packed):
    """GravNetConv hot path for one tile of query hits vs. all hits:
       kNN in the learned space (same event only; int32 batch-id mask), edge
       weights exp(-10*d^2) only on the k selected edges, [mean | max] aggregation
       of the weighted messages (128-lane-dense output)."""
    s_q = sq_ref[...]                                # (T, 4) f32 queries
    s_k = sk_ref[...]                                # (N, 4) f32 all hits
    h_k = hk_ref[...]                                # (N, 64) bf16 all features (padded)
    t, n = s_q.shape[0], s_k.shape[0]
    p = h_k.shape[1]

    # squared distances in the learned space, f32 throughout (kNN ordering)
    gram = lax.dot_general(s_q, s_k, (((1,), (1,)), ((), ())),
                           preferred_element_type=jnp.float32)          # (T, N)
    sq_q = jnp.sum(s_q * s_q, axis=1, keepdims=True)                    # (T, 1)
    same = bq_ref[...] == bk_ref[...]                                   # (T, N)
    d = jnp.where(same, jnp.maximum(sq_q + sqk_ref[...] - 2.0 * gram, 0.0), _BIG)

    lane = lax.broadcasted_iota(jnp.int32, (t, n), 1)
    inv_k = 1.0 / float(k)
    hi_mask = ~((1 << lane_bits) - 1)

    if packed:
        # Single reduction per neighbour: pack the lane index into the low mantissa
        # bits of the (non-negative) f32 distance -> unique, order-preserving key.
        key = (pltpu.bitcast(d, jnp.int32) & hi_mask) | lane

        def body(_, carry):
            key_w, acc_sum, acc_max = carry
            kmin = jnp.min(key_w, axis=1, keepdims=True)                # (T, 1)
            sel = key_w == kmin                                         # exactly one / row
            h_sel = jnp.dot(sel.astype(jnp.bfloat16), h_k,
                            preferred_element_type=jnp.float32)         # (T, P) row gather
            d_sel = pltpu.bitcast(kmin & hi_mask, jnp.float32)          # selected distance
            w = jnp.where(kmin < _INT32_MAX, jnp.exp(-10.0 * d_sel), 0.0)
            msg = w * h_sel
            return (jnp.where(sel, _INT32_MAX, key_w),
                    acc_sum + msg, jnp.maximum(acc_max, msg))

        state = key
    else:
        # Exact fallback for very large events (no distance-bit clearing).
        def body(_, carry):
            d_w, acc_sum, acc_max = carry
            rowmin = jnp.min(d_w, axis=1, keepdims=True)                # (T, 1)
            first = jnp.min(jnp.where(d_w <= rowmin, lane, n), axis=1, keepdims=True)
            sel = lane == first
            h_sel = jnp.dot(sel.astype(jnp.bfloat16), h_k,
                            preferred_element_type=jnp.float32)
            msg = jnp.exp(-10.0 * rowmin) * h_sel    # selected edge IS the row minimum
            return (jnp.where(sel, 2.0 * _BIG, d_w),
                    acc_sum + msg, jnp.maximum(acc_max, msg))

        state = d

    init = (state,
            jnp.zeros((t, p), jnp.float32),
            jnp.full((t, p), -1e30, jnp.float32))
    _, acc_sum, acc_max = lax.fori_loop(0, k, body, init)
    o_ref[...] = jnp.concatenate([acc_sum * inv_k, acc_max], axis=1)    # (T, 2P) = [mean|max]


def gravnet_aggregate(s, h, batch_col, batch_row, k):
    n = s.shape[0]
    prop = h.shape[1]                                # 64 (padded)
    sqk = jnp.sum(s * s, axis=1)[None, :]            # (1, N) f32, XLA glue
    t = _agg_tile(n)
    lane_bits = max(1, (n - 1).bit_length())
    packed = lane_bits <= 12                         # keeps >= 11 mantissa bits of d
    cost = pl.CostEstimate(
        flops=int(2 * n * n * (_SPACE_DIM + k * prop)),
        transcendentals=int(n * k),
        bytes_accessed=int(n * (8 * _SPACE_DIM + 2 * prop + 8 * prop + 12)))
    return pl.pallas_call(
        functools.partial(_gravnet_agg_kernel, k=k, lane_bits=lane_bits, packed=packed),
        out_shape=jax.ShapeDtypeStruct((n, 2 * prop), jnp.float32),
        grid=(pl.cdiv(n, t),),
        in_specs=[
            pl.BlockSpec((t, _SPACE_DIM), lambda i: (i, 0)),   # query coords (tiled)
            pl.BlockSpec((t, 1), lambda i: (i, 0)),            # query batch ids
            pl.BlockSpec((n, _SPACE_DIM), lambda i: (0, 0)),   # all coords (resident)
            pl.BlockSpec((n, prop), lambda i: (0, 0)),         # all features, bf16
            pl.BlockSpec((1, n), lambda i: (0, 0)),            # all batch ids
            pl.BlockSpec((1, n), lambda i: (0, 0)),            # ||s||^2 of all hits
        ],
        out_specs=pl.BlockSpec((t, 2 * prop), lambda i: (i, 0)),
        compiler_params=_parallel(vmem_limit_bytes=40 << 20),
        cost_estimate=cost,
    )(s, batch_col, s, h, batch_row, sqk)


# ----------------------- XLA glue: BN stats / event stats -------------------

def _bn_scale_shift(x, p, valid=None, eps=1e-5):
    """Training-mode BatchNorm1d statistics (biased var), optionally over valid rows
    only; returned as an affine (scale, shift) to be fused into the next kernel."""
    if valid is None:
        mean = jnp.mean(x, axis=0, keepdims=True)
        var = jnp.mean((x - mean) ** 2, axis=0, keepdims=True)
    else:
        w = valid.astype(jnp.float32)[:, None]
        cnt = jnp.maximum(jnp.sum(w), 1.0)
        mean = jnp.sum(x * w, axis=0, keepdims=True) / cnt
        var = jnp.sum(((x - mean) ** 2) * w, axis=0, keepdims=True) / cnt
    scale = p["gamma"] * lax.rsqrt(var + eps)
    return scale, p["beta"] - mean * scale


def _event_stats(x, batch_eff, num_events):
    """Per-event [mean | min | max] over valid hits (batch_eff >= 0).  (B, 3F)."""
    valid = batch_eff >= 0
    seg = jnp.where(valid, batch_eff, 0)
    w = valid.astype(jnp.float32)[:, None]
    sums = jax_ops.segment_sum(x * w, seg, num_segments=num_events)
    cnt = jax_ops.segment_sum(w, seg, num_segments=num_events)          # (B, 1)
    mean = sums / jnp.maximum(cnt, 1.0)
    mins = jax_ops.segment_min(jnp.where(valid[:, None], x, _BIG), seg,
                               num_segments=num_events)
    maxs = jax_ops.segment_max(jnp.where(valid[:, None], x, -_BIG), seg,
                               num_segments=num_events)
    has = cnt > 0.0                                # events with no surviving hits -> zeros
    mins = jnp.where(has, mins, 0.0)
    maxs = jnp.where(has, maxs, 0.0)
    return jnp.concatenate([mean, mins, maxs], axis=1)


# ------------------------- parameter initialization ------------------------

def _init_linear(key, fan_in, fan_out):
    kw, kb = jax.random.split(key)
    bound = 1.0 / (fan_in ** 0.5)
    return {"w": jax.random.uniform(kw, (fan_in, fan_out), jnp.float32, -bound, bound),
            "b": jax.random.uniform(kb, (1, fan_out), jnp.float32, -bound, bound)}


def _init_bn(dim):
    return {"gamma": jnp.ones((1, dim), jnp.float32),
            "beta": jnp.zeros((1, dim), jnp.float32)}


def init_params(key, input_dim=5, output_dim=4, n_gravnet_blocks=4,
                n_postgn_dense_blocks=4):
    keys = iter(jax.random.split(key, 64))
    noise_filter = {
        "bn":  _init_bn(input_dim),
        "fc1": _init_linear(next(keys), input_dim, 64),
        "fc2": _init_linear(next(keys), 64, 32),
        "fc3": _init_linear(next(keys), 32, 16),
        "fc4": _init_linear(next(keys), 16, 2),
    }
    gravnet = {"bn1": _init_bn(input_dim),
               "input": _init_linear(next(keys), 4 * input_dim, 64)}
    blocks = []
    for i in range(n_gravnet_blocks):
        in_ch = 64 if i == 0 else 96
        blocks.append({
            # GravNetConv(in_ch, 96, space=4, prop=22); lin_s & lin_h fused into one matmul
            "lin_sh": _init_linear(next(keys), in_ch, _SPACE_DIM + _PROP_DIM),
            "lin":    _init_linear(next(keys), in_ch + 2 * _PROP_DIM, 96),
            # post_gravnet: BN(96), Linear(96,128), Tanh, BN(128), Linear(128,96), Tanh
            "bn_a":   _init_bn(96),
            "fc1":    _init_linear(next(keys), 96, 128),
            "bn_b":   _init_bn(128),
            "fc2":    _init_linear(next(keys), 128, 96),
            # block output head: Linear(4*96, 96), Tanh, BN(96)
            "out_fc": _init_linear(next(keys), 4 * 96, 96),
            "bn_c":   _init_bn(96),
        })
    gravnet["blocks"] = blocks
    gravnet["postgn"] = [
        {"fc": _init_linear(next(keys), 4 * 96 if i == 0 else 128, 128),
         "bn": _init_bn(128)}
        for i in range(n_postgn_dense_blocks)]
    gravnet["out1"] = _init_linear(next(keys), 128, 64)
    gravnet["out2"] = _init_linear(next(keys), 64, 64)
    gravnet["out3"] = _init_linear(next(keys), 64, output_dim)
    return {"noise_filter": noise_filter, "gravnet": gravnet}


# -------------------------------- forward ----------------------------------

def gravnet_forward(params, x_raw, batch_eff, num_events, k):
    valid = batch_eff >= 0
    batch_col = batch_eff[:, None]                # (N, 1) int32
    batch_row = batch_eff[None, :]                # (1, N) int32

    # batchnorm1 (masked stats) + global_exchange + input linear
    scale, shift = _bn_scale_shift(x_raw, params["bn1"], valid)
    xn = x_raw * scale + shift                                          # (N, F_in)
    f = xn.shape[1]
    stats = _event_stats(xn, batch_eff, num_events)                     # (B, 3F)
    w_in = params["input"]["w"]
    x = ge_linear(xn, batch_col, stats @ w_in[:3 * f], w_in[3 * f:],
                  params["input"]["b"], num_events)                     # (N, 64)

    per_block = []
    for blk in params["blocks"]:
        # --- GravNetConv ---
        s, h = lin_sh(x, blk["lin_sh"])                                 # (N,4) f32, (N,64) bf16
        agg = gravnet_aggregate(s, h, batch_col, batch_row, k)          # (N, 128) = [mean|max]
        w_lin = blk["lin"]["w"]                                         # (in+44, 96)
        # embed the 22+22 real aggregation rows into the padded 128-row weight
        wa = jnp.zeros((2 * _PROP_PAD, 96), jnp.float32)
        wa = wa.at[:_PROP_DIM].set(w_lin[:_PROP_DIM])
        wa = wa.at[_PROP_PAD:_PROP_PAD + _PROP_DIM].set(w_lin[_PROP_DIM:2 * _PROP_DIM])
        x = linear2(agg, x, wa, w_lin[2 * _PROP_DIM:], blk["lin"]["b"])  # (N, 96)
        # --- post_gravnet: BN normalize folded into the following linear kernels ---
        x = linear(x, blk["fc1"], activation="tanh",
                   norm=_bn_scale_shift(x, blk["bn_a"], valid))         # (N, 128)
        x = linear(x, blk["fc2"], activation="tanh",
                   norm=_bn_scale_shift(x, blk["bn_b"], valid))         # (N, 96)
        # --- global exchange + block output head ---
        stats = _event_stats(x, batch_eff, num_events)                  # (B, 288)
        w_out = blk["out_fc"]["w"]
        x = ge_linear(x, batch_col, stats @ w_out[:3 * 96], w_out[3 * 96:],
                      blk["out_fc"]["b"], num_events, activation="tanh")
        scale, shift = _bn_scale_shift(x, blk["bn_c"], valid)
        x = x * scale + shift                     # bn_c affine (XLA fuses with its stats)
        per_block.append(x)

    x = jnp.concatenate(per_block, axis=1)                              # (N, 384) lane-dense

    norm = None
    for dp in params["postgn"]:
        x = linear(x, dp["fc"], activation="relu", norm=norm)           # (N, 128)
        norm = _bn_scale_shift(x, dp["bn"], valid)                      # fold into next kernel
    # final BN + Linear/ReLU + Linear/ReLU + Linear fused into one kernel
    x = output_head(x, norm, params["out1"], params["out2"], params["out3"])
    return x


def gravnet_with_noise_filter_forward(params, x, batch, num_events, k):
    logp = noise_filter_forward(params["noise_filter"], x)              # (N, 2) log-probs
    passes = jnp.exp(logp[:, 1]) > 0.5
    # Static-shape stand-in for x[pass_noise_filter]: rejected hits get batch id -1
    # so they are excluded from kNN, global exchange, and BatchNorm statistics.
    batch_eff = jnp.where(passes, batch, -1).astype(jnp.int32)
    out = gravnet_forward(params["gravnet"], x, batch_eff, num_events, k)
    return logp, passes, out


# --------------------------------- main -------------------------------------

if __name__ == "__main__":
    key = jax.random.PRNGKey(0)
    k_params, k_x = jax.random.split(key)

    n_events = 2
    hits_per_event = 32
    n_hits = n_events * hits_per_event
    input_dim, output_dim = 5, 4
    knn_k = 8   # module default is k=40; smaller here to suit the small toy events

    params = init_params(k_params, input_dim, output_dim)
    x = jax.random.normal(k_x, (n_hits, input_dim), jnp.float32)
    batch = jnp.repeat(jnp.arange(n_events, dtype=jnp.int32), hits_per_event)

    fwd = jax.jit(functools.partial(gravnet_with_noise_filter_forward,
                                    num_events=n_events, k=knn_k))
    logp, passes, out = fwd(params, x, batch)
    out = jax.block_until_ready(out)

    assert logp.shape == (n_hits, 2), logp.shape
    assert passes.shape == (n_hits,), passes.shape
    assert out.shape == (n_hits, output_dim), out.shape
    assert bool(jnp.all(jnp.isfinite(logp)))
    assert bool(jnp.all(jnp.isfinite(out)))
    print("KERNEL_OK")
</pallas_src>

<mosaic_0001>
module attributes {stable_mosaic.version = 11 : i64} {
  func.func @_noise_filter_kernel(%arg0: i32, %arg1: memref<32x5xf32, #tpu.memory_space<vmem>>, %arg2: memref<1x5xf32, #tpu.memory_space<vmem>>, %arg3: memref<1x5xf32, #tpu.memory_space<vmem>>, %arg4: memref<5x64xf32, #tpu.memory_space<vmem>>, %arg5: memref<1x64xf32, #tpu.memory_space<vmem>>, %arg6: memref<64x32xf32, #tpu.memory_space<vmem>>, %arg7: memref<1x32xf32, #tpu.memory_space<vmem>>, %arg8: memref<32x16xf32, #tpu.memory_space<vmem>>, %arg9: memref<1x16xf32, #tpu.memory_space<vmem>>, %arg10: memref<16x2xf32, #tpu.memory_space<vmem>>, %arg11: memref<1x2xf32, #tpu.memory_space<vmem>>, %arg12: memref<32x2xf32, #tpu.memory_space<vmem>>) attributes {dimension_semantics = [#tpu.dimension_semantics<parallel>], iteration_bounds = array<i64: 2>, scalar_prefetch = 0 : i64, scratch_operands = 0 : i64, tpu.core_type = #tpu.core_type<tc>, window_params = [{transform_indices = @transform_0, window_bounds = array<i64: 32, 5>}, {pipeline_mode = #tpu.pipeline_mode<synchronous>, transform_indices = @transform_1, window_bounds = array<i64: 1, 5>}, {pipeline_mode = #tpu.pipeline_mode<synchronous>, transform_indices = @transform_2, window_bounds = array<i64: 1, 5>}, {pipeline_mode = #tpu.pipeline_mode<synchronous>, transform_indices = @transform_3, window_bounds = array<i64: 5, 64>}, {pipeline_mode = #tpu.pipeline_mode<synchronous>, transform_indices = @transform_4, window_bounds = array<i64: 1, 64>}, {pipeline_mode = #tpu.pipeline_mode<synchronous>, transform_indices = @transform_5, window_bounds = array<i64: 64, 32>}, {pipeline_mode = #tpu.pipeline_mode<synchronous>, transform_indices = @transform_6, window_bounds = array<i64: 1, 32>}, {pipeline_mode = #tpu.pipeline_mode<synchronous>, transform_indices = @transform_7, window_bounds = array<i64: 32, 16>}, {pipeline_mode = #tpu.pipeline_mode<synchronous>, transform_indices = @transform_8, window_bounds = array<i64: 1, 16>}, {pipeline_mode = #tpu.pipeline_mode<synchronous>, transform_indices = @transform_9, window_bounds = array<i64: 16, 2>}, {pipeline_mode = #tpu.pipeline_mode<synchronous>, transform_indices = @transform_10, window_bounds = array<i64: 1, 2>}, {transform_indices = @transform_11, window_bounds = array<i64: 32, 2>}]} {
    %c0 = arith.constant 0 : index
    %c0_0 = arith.constant 0 : index
    %0 = vector.load %arg1[%c0, %c0_0] : memref<32x5xf32, #tpu.memory_space<vmem>>, vector<32x5xf32>
    %c0_1 = arith.constant 0 : index
    %c0_2 = arith.constant 0 : index
    %1 = vector.load %arg2[%c0_1, %c0_2] : memref<1x5xf32, #tpu.memory_space<vmem>>, vector<1x5xf32>
    %2 = vector.broadcast %1 : vector<1x5xf32> to vector<32x5xf32>
    %3 = arith.mulf %0, %2 : vector<32x5xf32>
    %c0_3 = arith.constant 0 : index
    %c0_4 = arith.constant 0 : index
    %4 = vector.load %arg3[%c0_3, %c0_4] : memref<1x5xf32, #tpu.memory_space<vmem>>, vector<1x5xf32>
    %5 = vector.broadcast %4 : vector<1x5xf32> to vector<32x5xf32>
    %6 = arith.addf %3, %5 : vector<32x5xf32>
    %c0_5 = arith.constant 0 : index
    %c0_6 = arith.constant 0 : index
    %7 = vector.load %arg4[%c0_5, %c0_6] : memref<5x64xf32, #tpu.memory_space<vmem>>, vector<5x64xf32>
    %cst = arith.constant dense<0.000000e+00> : vector<32x64xf32>
    %8 = tpu.matmul %6, %7, %cst {dimension_numbers = #tpu.dot_dimension_numbers<[1], [0], [0], [1], [0, 0, 1, 1], [], []>} : vector<32x5xf32>, vector<5x64xf32>, vector<32x64xf32> -> vector<32x64xf32>
    %c0_7 = arith.constant 0 : index
    %c0_8 = arith.constant 0 : index
    %9 = vector.load %arg5[%c0_7, %c0_8] : memref<1x64xf32, #tpu.memory_space<vmem>>, vector<1x64xf32>
    %10 = vector.broadcast %9 : vector<1x64xf32> to vector<32x64xf32>
    %11 = arith.addf %8, %10 : vector<32x64xf32>
    %cst_9 = arith.constant 0.000000e+00 : f32
    %12 = vector.broadcast %cst_9 : f32 to vector<32x64xf32>
    %13 = arith.maximumf %11, %12 : vector<32x64xf32>
    %c0_10 = arith.constant 0 : index
    %c0_11 = arith.constant 0 : index
    %14 = vector.load %arg6[%c0_10, %c0_11] : memref<64x32xf32, #tpu.memory_space<vmem>>, vector<64x32xf32>
    %cst_12 = arith.constant dense<0.000000e+00> : vector<32x32xf32>
    %15 = tpu.matmul %13, %14, %cst_12 {dimension_numbers = #tpu.dot_dimension_numbers<[1], [0], [0], [1], [0, 0, 1, 1], [], []>} : vector<32x64xf32>, vector<64x32xf32>, vector<32x32xf32> -> vector<32x32xf32>
    %c0_13 = arith.constant 0 : index
    %c0_14 = arith.constant 0 : index
    %16 = vector.load %arg7[%c0_13, %c0_14] : memref<1x32xf32, #tpu.memory_space<vmem>>, vector<1x32xf32>
    %17 = vector.broadcast %16 : vector<1x32xf32> to vector<32x32xf32>
    %18 = arith.addf %15, %17 : vector<32x32xf32>
    %cst_15 = arith.constant 0.000000e+00 : f32
    %19 = vector.broadcast %cst_15 : f32 to vector<32x32xf32>
    %20 = arith.maximumf %18, %19 : vector<32x32xf32>
    %c0_16 = arith.constant 0 : index
    %c0_17 = arith.constant 0 : index
    %21 = vector.load %arg8[%c0_16, %c0_17] : memref<32x16xf32, #tpu.memory_space<vmem>>, vector<32x16xf32>
    %cst_18 = arith.constant dense<0.000000e+00> : vector<32x16xf32>
    %22 = tpu.matmul %20, %21, %cst_18 {dimension_numbers = #tpu.dot_dimension_numbers<[1], [0], [0], [1], [0, 0, 1, 1], [], []>} : vector<32x32xf32>, vector<32x16xf32>, vector<32x16xf32> -> vector<32x16xf32>
    %c0_19 = arith.constant 0 : index
    %c0_20 = arith.constant 0 : index
    %23 = vector.load %arg9[%c0_19, %c0_20] : memref<1x16xf32, #tpu.memory_space<vmem>>, vector<1x16xf32>
    %24 = vector.broadcast %23 : vector<1x16xf32> to vector<32x16xf32>
    %25 = arith.addf %22, %24 : vector<32x16xf32>
    %cst_21 = arith.constant 0.000000e+00 : f32
    %26 = vector.broadcast %cst_21 : f32 to vector<32x16xf32>
    %27 = arith.maximumf %25, %26 : vector<32x16xf32>
    %c0_22 = arith.constant 0 : index
    %c0_23 = arith.constant 0 : index
    %28 = vector.load %arg10[%c0_22, %c0_23] : memref<16x2xf32, #tpu.memory_space<vmem>>, vector<16x2xf32>
    %cst_24 = arith.constant dense<0.000000e+00> : vector<32x2xf32>
    %29 = tpu.matmul %27, %28, %cst_24 {dimension_numbers = #tpu.dot_dimension_numbers<[1], [0], [0], [1], [0, 0, 1, 1], [], []>} : vector<32x16xf32>, vector<16x2xf32>, vector<32x2xf32> -> vector<32x2xf32>
    %c0_25 = arith.constant 0 : index
    %c0_26 = arith.constant 0 : index
    %30 = vector.load %arg11[%c0_25, %c0_26] : memref<1x2xf32, #tpu.memory_space<vmem>>, vector<1x2xf32>
    %31 = vector.broadcast %30 : vector<1x2xf32> to vector<32x2xf32>
    %32 = arith.addf %29, %31 : vector<32x2xf32>
    %cst_27 = arith.constant dense<0xFF800000> : vector<32xf32>
    %33 = vector.multi_reduction <maximumf>, %32, %cst_27 [1] : vector<32x2xf32> to vector<32xf32>
    %34 = vector.shape_cast %33 : vector<32xf32> to vector<32x1xf32>
    %35 = vector.broadcast %34 : vector<32x1xf32> to vector<32x2xf32>
    %36 = arith.subf %32, %35 : vector<32x2xf32>
    %37 = math.exp %36 : vector<32x2xf32>
    %cst_28 = arith.constant dense<0.000000e+00> : vector<32xf32>
    %38 = vector.multi_reduction <add>, %37, %cst_28 [1] : vector<32x2xf32> to vector<32xf32>
    %39 = vector.shape_cast %38 : vector<32xf32> to vector<32x1xf32>
    %40 = math.log %39 : vector<32x1xf32>
    %41 = vector.broadcast %40 : vector<32x1xf32> to vector<32x2xf32>
    %42 = arith.subf %36, %41 : vector<32x2xf32>
    %c0_29 = arith.constant 0 : index
    %c0_30 = arith.constant 0 : index
    %43 = vector.load %arg12[%c0_29, %c0_30] : memref<32x2xf32, #tpu.memory_space<vmem>>, vector<32x2xf32>
    tpu.vector_store %arg12[%c0_29, %c0_30], %42 {strides = array<i32>} : memref<32x2xf32, #tpu.memory_space<vmem>>, vector<32x2xf32>,
    return
  }
  func.func @transform_0(%arg0: i32) -> (i32, i32) {
    %c0_i32 = arith.constant 0 : i32
    %c0_i32_0 = arith.constant 0 : i32
    return %arg0, %c0_i32 : i32, i32
  }
  func.func @transform_1(%arg0: i32) -> (i32, i32) {
    %c0_i32 = arith.constant 0 : i32
    %c0_i32_0 = arith.constant 0 : i32
    %c0_i32_1 = arith.constant 0 : i32
    return %c0_i32, %c0_i32_0 : i32, i32
  }
  func.func @transform_2(%arg0: i32) -> (i32, i32) {
    %c0_i32 = arith.constant 0 : i32
    %c0_i32_0 = arith.constant 0 : i32
    %c0_i32_1 = arith.constant 0 : i32
    return %c0_i32, %c0_i32_0 : i32, i32
  }
  func.func @transform_3(%arg0: i32) -> (i32, i32) {
    %c0_i32 = arith.constant 0 : i32
    %c0_i32_0 = arith.constant 0 : i32
    %c0_i32_1 = arith.constant 0 : i32
    return %c0_i32, %c0_i32_0 : i32, i32
  }
  func.func @transform_4(%arg0: i32) -> (i32, i32) {
    %c0_i32 = arith.constant 0 : i32
    %c0_i32_0 = arith.constant 0 : i32
    %c0_i32_1 = arith.constant 0 : i32
    return %c0_i32, %c0_i32_0 : i32, i32
  }
  func.func @transform_5(%arg0: i32) -> (i32, i32) {
    %c0_i32 = arith.constant 0 : i32
    %c0_i32_0 = arith.constant 0 : i32
    %c0_i32_1 = arith.constant 0 : i32
    return %c0_i32, %c0_i32_0 : i32, i32
  }
  func.func @transform_6(%arg0: i32) -> (i32, i32) {
    %c0_i32 = arith.constant 0 : i32
    %c0_i32_0 = arith.constant 0 : i32
    %c0_i32_1 = arith.constant 0 : i32
    return %c0_i32, %c0_i32_0 : i32, i32
  }
  func.func @transform_7(%arg0: i32) -> (i32, i32) {
    %c0_i32 = arith.constant 0 : i32
    %c0_i32_0 = arith.constant 0 : i32
    %c0_i32_1 = arith.constant 0 : i32
    return %c0_i32, %c0_i32_0 : i32, i32
  }
  func.func @transform_8(%arg0: i32) -> (i32, i32) {
    %c0_i32 = arith.constant 0 : i32
    %c0_i32_0 = arith.constant 0 : i32
    %c0_i32_1 = arith.constant 0 : i32
    return %c0_i32, %c0_i32_0 : i32, i32
  }
  func.func @transform_9(%arg0: i32) -> (i32, i32) {
    %c0_i32 = arith.constant 0 : i32
    %c0_i32_0 = arith.constant 0 : i32
    %c0_i32_1 = arith.constant 0 : i32
    return %c0_i32, %c0_i32_0 : i32, i32
  }
  func.func @transform_10(%arg0: i32) -> (i32, i32) {
    %c0_i32 = arith.constant 0 : i32
    %c0_i32_0 = arith.constant 0 : i32
    %c0_i32_1 = arith.constant 0 : i32
    return %c0_i32, %c0_i32_0 : i32, i32
  }
  func.func @transform_11(%arg0: i32) -> (i32, i32) {
    %c0_i32 = arith.constant 0 : i32
    %c0_i32_0 = arith.constant 0 : i32
    return %arg0, %c0_i32 : i32, i32
  }
}

module attributes {stable_mosaic.version = 11 : i64} {
  func.func @_ge_linear_kernel(%arg0: i32, %arg1: memref<32x5xf32, #tpu.memory_space<vmem>>, %arg2: memref<32x1xi32, #tpu.memory_space<vmem>>, %arg3: memref<2x64xf32, #tpu.memory_space<vmem>>, %arg4: memref<5x64xbf16, #tpu.memory_space<vmem>>, %arg5: memref<1x64xf32, #tpu.memory_space<vmem>>, %arg6: memref<32x64xf32, #tpu.memory_space<vmem>>) attributes {dimension_semantics = [#tpu.dimension_semantics<parallel>], iteration_bounds = array<i64: 2>, scalar_prefetch = 0 : i64, scratch_operands = 0 : i64, tpu.core_type = #tpu.core_type<tc>, window_params = [{transform_indices = @transform_0, window_bounds = array<i64: 32, 5>}, {transform_indices = @transform_1, window_bounds = array<i64: 32, 1>}, {pipeline_mode = #tpu.pipeline_mode<synchronous>, transform_indices = @transform_2, window_bounds = array<i64: 2, 64>}, {pipeline_mode = #tpu.pipeline_mode<synchronous>, transform_indices = @transform_3, window_bounds = array<i64: 5, 64>}, {pipeline_mode = #tpu.pipeline_mode<synchronous>, transform_indices = @transform_4, window_bounds = array<i64: 1, 64>}, {transform_indices = @transform_5, window_bounds = array<i64: 32, 64>}]} {
    %c0 = arith.constant 0 : index
    %c0_0 = arith.constant 0 : index
    %0 = vector.load %arg1[%c0, %c0_0] : memref<32x5xf32, #tpu.memory_space<vmem>>, vector<32x5xf32>
    %1 = tpu.iota {dimensions = array<i32: 1>} : vector<32x2xi32>
    %c0_1 = arith.constant 0 : index
    %c0_2 = arith.constant 0 : index
    %2 = vector.load %arg2[%c0_1, %c0_2] : memref<32x1xi32, #tpu.memory_space<vmem>>, vector<32x1xi32>
    %3 = vector.broadcast %2 : vector<32x1xi32> to vector<32x2xi32>
    %4 = arith.cmpi eq, %3, %1 : vector<32x2xi32>
    %5 = arith.extui %4 : vector<32x2xi1> to vector<32x2xi32>
    %6 = arith.sitofp %5 : vector<32x2xi32> to vector<32x2xf32>
    %c0_3 = arith.constant 0 : index
    %c0_4 = arith.constant 0 : index
    %7 = vector.load %arg3[%c0_3, %c0_4] : memref<2x64xf32, #tpu.memory_space<vmem>>, vector<2x64xf32>
    %cst = arith.constant dense<0.000000e+00> : vector<32x64xf32>
    %8 = tpu.matmul %6, %7, %cst {dimension_numbers = #tpu.dot_dimension_numbers<[1], [0], [0], [1], [0, 0, 1, 1], [], []>} : vector<32x2xf32>, vector<2x64xf32>, vector<32x64xf32> -> vector<32x64xf32>
    %9 = arith.truncf %0 : vector<32x5xf32> to vector<32x5xbf16>
    %c0_5 = arith.constant 0 : index
    %c0_6 = arith.constant 0 : index
    %10 = vector.load %arg4[%c0_5, %c0_6] : memref<5x64xbf16, #tpu.memory_space<vmem>>, vector<5x64xbf16>
    %cst_7 = arith.constant dense<0.000000e+00> : vector<32x64xf32>
    %11 = tpu.matmul %9, %10, %cst_7 {dimension_numbers = #tpu.dot_dimension_numbers<[1], [0], [0], [1], [0, 0, 1, 1], [], []>} : vector<32x5xbf16>, vector<5x64xbf16>, vector<32x64xf32> -> vector<32x64xf32>
    %12 = arith.addf %8, %11 : vector<32x64xf32>
    %c0_8 = arith.constant 0 : index
    %c0_9 = arith.constant 0 : index
    %13 = vector.load %arg5[%c0_8, %c0_9] : memref<1x64xf32, #tpu.memory_space<vmem>>, vector<1x64xf32>
    %14 = vector.broadcast %13 : vector<1x64xf32> to vector<32x64xf32>
    %15 = arith.addf %12, %14 : vector<32x64xf32>
    %c0_10 = arith.constant 0 : index
    %c0_11 = arith.constant 0 : index
    %16 = vector.load %arg6[%c0_10, %c0_11] : memref<32x64xf32, #tpu.memory_space<vmem>>, vector<32x64xf32>
    tpu.vector_store %arg6[%c0_10, %c0_11], %15 {strides = array<i32>} : memref<32x64xf32, #tpu.memory_space<vmem>>, vector<32x64xf32>,
    return
  }
  func.func @transform_0(%arg0: i32) -> (i32, i32) {
    %c0_i32 = arith.constant 0 : i32
    %c0_i32_0 = arith.constant 0 : i32
    return %arg0, %c0_i32 : i32, i32
  }
  func.func @transform_1(%arg0: i32) -> (i32, i32) {
    %c0_i32 = arith.constant 0 : i32
    %c0_i32_0 = arith.constant 0 : i32
    return %arg0, %c0_i32 : i32, i32
  }
  func.func @transform_2(%arg0: i32) -> (i32, i32) {
    %c0_i32 = arith.constant 0 : i32
    %c0_i32_0 = arith.constant 0 : i32
    %c0_i32_1 = arith.constant 0 : i32
    return %c0_i32, %c0_i32_0 : i32, i32
  }
  func.func @transform_3(%arg0: i32) -> (i32, i32) {
    %c0_i32 = arith.constant 0 : i32
    %c0_i32_0 = arith.constant 0 : i32
    %c0_i32_1 = arith.constant 0 : i32
    return %c0_i32, %c0_i32_0 : i32, i32
  }
  func.func @transform_4(%arg0: i32) -> (i32, i32) {
    %c0_i32 = arith.constant 0 : i32
    %c0_i32_0 = arith.constant 0 : i32
    %c0_i32_1 = arith.constant 0 : i32
    return %c0_i32, %c0_i32_0 : i32, i32
  }
  func.func @transform_5(%arg0: i32) -> (i32, i32) {
    %c0_i32 = arith.constant 0 : i32
    %c0_i32_0 = arith.constant 0 : i32
    return %arg0, %c0_i32 : i32, i32
  }
}

module attributes {stable_mosaic.version = 11 : i64} {
  func.func @_lin_sh_kernel(%arg0: i32, %arg1: memref<32x64xf32, #tpu.memory_space<vmem>>, %arg2: memref<64x4xf32, #tpu.memory_space<vmem>>, %arg3: memref<64x64xbf16, #tpu.memory_space<vmem>>, %arg4: memref<1x4xf32, #tpu.memory_space<vmem>>, %arg5: memref<1x64xf32, #tpu.memory_space<vmem>>, %arg6: memref<32x4xf32, #tpu.memory_space<vmem>>, %arg7: memref<32x64xbf16, #tpu.memory_space<vmem>>) attributes {dimension_semantics = [#tpu.dimension_semantics<parallel>], iteration_bounds = array<i64: 2>, scalar_prefetch = 0 : i64, scratch_operands = 0 : i64, tpu.core_type = #tpu.core_type<tc>, window_params = [{transform_indices = @transform_0, window_bounds = array<i64: 32, 64>}, {pipeline_mode = #tpu.pipeline_mode<synchronous>, transform_indices = @transform_1, window_bounds = array<i64: 64, 4>}, {pipeline_mode = #tpu.pipeline_mode<synchronous>, transform_indices = @transform_2, window_bounds = array<i64: 64, 64>}, {pipeline_mode = #tpu.pipeline_mode<synchronous>, transform_indices = @transform_3, window_bounds = array<i64: 1, 4>}, {pipeline_mode = #tpu.pipeline_mode<synchronous>, transform_indices = @transform_4, window_bounds = array<i64: 1, 64>}, {transform_indices = @transform_5, window_bounds = array<i64: 32, 4>}, {transform_indices = @transform_6, window_bounds = array<i64: 32, 64>}]} {
    %c0 = arith.constant 0 : index
    %c0_0 = arith.constant 0 : index
    %0 = vector.load %arg1[%c0, %c0_0] : memref<32x64xf32, #tpu.memory_space<vmem>>, vector<32x64xf32>
    %c0_1 = arith.constant 0 : index
    %c0_2 = arith.constant 0 : index
    %1 = vector.load %arg2[%c0_1, %c0_2] : memref<64x4xf32, #tpu.memory_space<vmem>>, vector<64x4xf32>
    %cst = arith.constant dense<0.000000e+00> : vector<32x4xf32>
    %2 = tpu.matmul %0, %1, %cst {dimension_numbers = #tpu.dot_dimension_numbers<[1], [0], [0], [1], [0, 0, 1, 1], [], []>} : vector<32x64xf32>, vector<64x4xf32>, vector<32x4xf32> -> vector<32x4xf32>
    %c0_3 = arith.constant 0 : index
    %c0_4 = arith.constant 0 : index
    %3 = vector.load %arg4[%c0_3, %c0_4] : memref<1x4xf32, #tpu.memory_space<vmem>>, vector<1x4xf32>
    %4 = vector.broadcast %3 : vector<1x4xf32> to vector<32x4xf32>
    %5 = arith.addf %2, %4 : vector<32x4xf32>
    %c0_5 = arith.constant 0 : index
    %c0_6 = arith.constant 0 : index
    %6 = vector.load %arg6[%c0_5, %c0_6] : memref<32x4xf32, #tpu.memory_space<vmem>>, vector<32x4xf32>
    tpu.vector_store %arg6[%c0_5, %c0_6], %5 {strides = array<i32>} : memref<32x4xf32, #tpu.memory_space<vmem>>, vector<32x4xf32>,
    %7 = arith.truncf %0 : vector<32x64xf32> to vector<32x64xbf16>
    %c0_7 = arith.constant 0 : index
    %c0_8 = arith.constant 0 : index
    %8 = vector.load %arg3[%c0_7, %c0_8] : memref<64x64xbf16, #tpu.memory_space<vmem>>, vector<64x64xbf16>
    %cst_9 = arith.constant dense<0.000000e+00> : vector<32x64xf32>
    %9 = tpu.matmul %7, %8, %cst_9 {dimension_numbers = #tpu.dot_dimension_numbers<[1], [0], [0], [1], [0, 0, 1, 1], [], []>} : vector<32x64xbf16>, vector<64x64xbf16>, vector<32x64xf32> -> vector<32x64xf32>
    %c0_10 = arith.constant 0 : index
    %c0_11 = arith.constant 0 : index
    %10 = vector.load %arg5[%c0_10, %c0_11] : memref<1x64xf32, #tpu.memory_space<vmem>>, vector<1x64xf32>
    %11 = vector.broadcast %10 : vector<1x64xf32> to vector<32x64xf32>
    %12 = arith.addf %9, %11 : vector<32x64xf32>
    %13 = arith.truncf %12 : vector<32x64xf32> to vector<32x64xbf16>
    %c0_12 = arith.constant 0 : index
    %c0_13 = arith.constant 0 : index
    %14 = vector.load %arg7[%c0_12, %c0_13] : memref<32x64xbf16, #tpu.memory_space<vmem>>, vector<32x64xbf16>
    tpu.vector_store %arg7[%c0_12, %c0_13], %13 {strides = array<i32>} : memref<32x64xbf16, #tpu.memory_space<vmem>>, vector<32x64xbf16>,
    return
  }
  func.func @transform_0(%arg0: i32) -> (i32, i32) {
    %c0_i32 = arith.constant 0 : i32
    %c0_i32_0 = arith.constant 0 : i32
    return %arg0, %c0_i32 : i32, i32
  }
  func.func @transform_1(%arg0: i32) -> (i32, i32) {
    %c0_i32 = arith.constant 0 : i32
    %c0_i32_0 = arith.constant 0 : i32
    %c0_i32_1 = arith.constant 0 : i32
    return %c0_i32, %c0_i32_0 : i32, i32
  }
  func.func @transform_2(%arg0: i32) -> (i32, i32) {
    %c0_i32 = arith.constant 0 : i32
    %c0_i32_0 = arith.constant 0 : i32
    %c0_i32_1 = arith.constant 0 : i32
    return %c0_i32, %c0_i32_0 : i32, i32
  }
  func.func @transform_3(%arg0: i32) -> (i32, i32) {
    %c0_i32 = arith.constant 0 : i32
    %c0_i32_0 = arith.constant 0 : i32
    %c0_i32_1 = arith.constant 0 : i32
    return %c0_i32, %c0_i32_0 : i32, i32
  }
  func.func @transform_4(%arg0: i32) -> (i32, i32) {
    %c0_i32 = arith.constant 0 : i32
    %c0_i32_0 = arith.constant 0 : i32
    %c0_i32_1 = arith.constant 0 : i32
    return %c0_i32, %c0_i32_0 : i32, i32
  }
  func.func @transform_5(%arg0: i32) -> (i32, i32) {
    %c0_i32 = arith.constant 0 : i32
    %c0_i32_0 = arith.constant 0 : i32
    return %arg0, %c0_i32 : i32, i32
  }
  func.func @transform_6(%arg0: i32) -> (i32, i32) {
    %c0_i32 = arith.constant 0 : i32
    %c0_i32_0 = arith.constant 0 : i32
    return %arg0, %c0_i32 : i32, i32
  }
}

module attributes {stable_mosaic.version = 11 : i64} {
  func.func @_gravnet_agg_kernel(%arg0: i32, %arg1: memref<32x4xf32, #tpu.memory_space<vmem>>, %arg2: memref<32x1xi32, #tpu.memory_space<vmem>>, %arg3: memref<64x4xf32, #tpu.memory_space<vmem>>, %arg4: memref<64x64xbf16, #tpu.memory_space<vmem>>, %arg5: memref<1x64xi32, #tpu.memory_space<vmem>>, %arg6: memref<1x64xf32, #tpu.memory_space<vmem>>, %arg7: memref<32x128xf32, #tpu.memory_space<vmem>>) attributes {dimension_semantics = [#tpu.dimension_semantics<parallel>], iteration_bounds = array<i64: 2>, scalar_prefetch = 0 : i64, scratch_operands = 0 : i64, tpu.core_type = #tpu.core_type<tc>, window_params = [{transform_indices = @transform_0, window_bounds = array<i64: 32, 4>}, {transform_indices = @transform_1, window_bounds = array<i64: 32, 1>}, {pipeline_mode = #tpu.pipeline_mode<synchronous>, transform_indices = @transform_2, window_bounds = array<i64: 64, 4>}, {pipeline_mode = #tpu.pipeline_mode<synchronous>, transform_indices = @transform_3, window_bounds = array<i64: 64, 64>}, {pipeline_mode = #tpu.pipeline_mode<synchronous>, transform_indices = @transform_4, window_bounds = array<i64: 1, 64>}, {pipeline_mode = #tpu.pipeline_mode<synchronous>, transform_indices = @transform_5, window_bounds = array<i64: 1, 64>}, {transform_indices = @transform_6, window_bounds = array<i64: 32, 128>}]} {
    %c0 = arith.constant 0 : index
    %c0_0 = arith.constant 0 : index
    %0 = vector.load %arg1[%c0, %c0_0] : memref<32x4xf32, #tpu.memory_space<vmem>>, vector<32x4xf32>
    %c0_1 = arith.constant 0 : index
    %c0_2 = arith.constant 0 : index
    %1 = vector.load %arg3[%c0_1, %c0_2] : memref<64x4xf32, #tpu.memory_space<vmem>>, vector<64x4xf32>
    %c0_3 = arith.constant 0 : index
    %c0_4 = arith.constant 0 : index
    %2 = vector.load %arg4[%c0_3, %c0_4] : memref<64x64xbf16, #tpu.memory_space<vmem>>, vector<64x64xbf16>
    %cst = arith.constant dense<0.000000e+00> : vector<32x64xf32>
    %3 = tpu.matmul %0, %1, %cst {dimension_numbers = #tpu.dot_dimension_numbers<[1], [1], [0], [0], [0, 0, 1, 0], [], []>} : vector<32x4xf32>, vector<64x4xf32>, vector<32x64xf32> -> vector<32x64xf32>
    %4 = arith.mulf %0, %0 : vector<32x4xf32>
    %cst_5 = arith.constant dense<0.000000e+00> : vector<32xf32>
    %5 = vector.multi_reduction <add>, %4, %cst_5 [1] : vector<32x4xf32> to vector<32xf32>
    %6 = vector.shape_cast %5 : vector<32xf32> to vector<32x1xf32>
    %c0_6 = arith.constant 0 : index
    %c0_7 = arith.constant 0 : index
    %7 = vector.load %arg2[%c0_6, %c0_7] : memref<32x1xi32, #tpu.memory_space<vmem>>, vector<32x1xi32>
    %c0_8 = arith.constant 0 : index
    %c0_9 = arith.constant 0 : index
    %8 = vector.load %arg5[%c0_8, %c0_9] : memref<1x64xi32, #tpu.memory_space<vmem>>, vector<1x64xi32>
    %9 = vector.broadcast %7 : vector<32x1xi32> to vector<32x64xi32>
    %10 = vector.broadcast %8 : vector<1x64xi32> to vector<32x64xi32>
    %11 = arith.cmpi eq, %9, %10 : vector<32x64xi32>
    %c0_10 = arith.constant 0 : index
    %c0_11 = arith.constant 0 : index
    %12 = vector.load %arg6[%c0_10, %c0_11] : memref<1x64xf32, #tpu.memory_space<vmem>>, vector<1x64xf32>
    %13 = vector.broadcast %6 : vector<32x1xf32> to vector<32x64xf32>
    %14 = vector.broadcast %12 : vector<1x64xf32> to vector<32x64xf32>
    %15 = arith.addf %13, %14 : vector<32x64xf32>
    %cst_12 = arith.constant 2.000000e+00 : f32
    %16 = vector.broadcast %cst_12 : f32 to vector<32x64xf32>
    %17 = arith.mulf %16, %3 : vector<32x64xf32>
    %18 = arith.subf %15, %17 : vector<32x64xf32>
    %cst_13 = arith.constant 0.000000e+00 : f32
    %19 = vector.broadcast %cst_13 : f32 to vector<32x64xf32>
    %20 = arith.maximumf %18, %19 : vector<32x64xf32>
    %cst_14 = arith.constant 1.000000e+09 : f32
    %21 = vector.broadcast %cst_14 : f32 to vector<32x64xf32>
    %22 = arith.select %11, %20, %21 : vector<32x64xi1>, vector<32x64xf32>
    %23 = tpu.iota {dimensions = array<i32: 1>} : vector<32x64xi32>
    %24 = tpu.bitcast %22 : vector<32x64xf32> -> vector<32x64xi32>
    %c-64_i32 = arith.constant -64 : i32
    %25 = vector.broadcast %c-64_i32 : i32 to vector<32x64xi32>
    %26 = arith.andi %24, %25 : vector<32x64xi32>
    %27 = arith.ori %26, %23 : vector<32x64xi32>
    %cst_15 = arith.constant 0.000000e+00 : f32
    %28 = vector.broadcast %cst_15 : f32 to vector<32x64xf32>
    %cst_16 = arith.constant -1.000000e+30 : f32
    %29 = vector.broadcast %cst_16 : f32 to vector<32x64xf32>
    %c0_i32 = arith.constant 0 : i32
    %c8_i32 = arith.constant 8 : i32
    %30 = arith.addi %c0_i32, %c8_i32 : i32
    %c1_i32 = arith.constant 1 : i32
    %31:3 = scf.for %arg8 = %c0_i32 to %30 step %c1_i32 iter_args(%arg9 = %27, %arg10 = %28, %arg11 = %29) -> (vector<32x64xi32>, vector<32x64xf32>, vector<32x64xf32>)  : i32 {
      %cst_20 = arith.constant dense<2147483647> : vector<32xi32>
      %36 = vector.multi_reduction <minsi>, %arg9, %cst_20 [1] : vector<32x64xi32> to vector<32xi32>
      %37 = vector.shape_cast %36 : vector<32xi32> to vector<32x1xi32>
      %38 = vector.broadcast %37 : vector<32x1xi32> to vector<32x64xi32>
      %39 = arith.cmpi eq, %arg9, %38 : vector<32x64xi32>
      %40 = arith.extui %39 : vector<32x64xi1> to vector<32x64xi32>
      %41 = arith.sitofp %40 : vector<32x64xi32> to vector<32x64xf32>
      %42 = arith.truncf %41 : vector<32x64xf32> to vector<32x64xbf16>
      %cst_21 = arith.constant dense<0.000000e+00> : vector<32x64xf32>
      %43 = tpu.matmul %42, %2, %cst_21 {dimension_numbers = #tpu.dot_dimension_numbers<[1], [0], [0], [1], [0, 0, 1, 1], [], []>} : vector<32x64xbf16>, vector<64x64xbf16>, vector<32x64xf32> -> vector<32x64xf32>
      %c-64_i32_22 = arith.constant -64 : i32
      %44 = vector.broadcast %c-64_i32_22 : i32 to vector<32x1xi32>
      %45 = arith.andi %37, %44 : vector<32x1xi32>
      %46 = tpu.bitcast %45 : vector<32x1xi32> -> vector<32x1xf32>
      %c2147483647_i32 = arith.constant 2147483647 : i32
      %47 = vector.broadcast %c2147483647_i32 : i32 to vector<32x1xi32>
      %48 = arith.cmpi slt, %37, %47 : vector<32x1xi32>
      %cst_23 = arith.constant -1.000000e+01 : f32
      %49 = vector.broadcast %cst_23 : f32 to vector<32x1xf32>
      %50 = arith.mulf %49, %46 : vector<32x1xf32>
      %51 = math.exp %50 : vector<32x1xf32>
      %cst_24 = arith.constant 0.000000e+00 : f32
      %52 = vector.broadcast %cst_24 : f32 to vector<32x1xf32>
      %53 = arith.select %48, %51, %52 : vector<32x1xi1>, vector<32x1xf32>
      %54 = vector.broadcast %53 : vector<32x1xf32> to vector<32x64xf32>
      %55 = arith.mulf %54, %43 : vector<32x64xf32>
      %c2147483647_i32_25 = arith.constant 2147483647 : i32
      %56 = vector.broadcast %c2147483647_i32_25 : i32 to vector<32x64xi32>
      %57 = arith.select %39, %56, %arg9 : vector<32x64xi1>, vector<32x64xi32>
      %58 = arith.addf %arg10, %55 : vector<32x64xf32>
      %59 = arith.maximumf %arg11, %55 : vector<32x64xf32>
      scf.yield %57, %58, %59 : vector<32x64xi32>, vector<32x64xf32>, vector<32x64xf32>
    }
    %cst_17 = arith.constant 1.250000e-01 : f32
    %32 = vector.broadcast %cst_17 : f32 to vector<32x64xf32>
    %33 = arith.mulf %31#1, %32 : vector<32x64xf32>
    %34 = tpu.concatenate %33, %31#2 in 1 : vector<32x64xf32>, vector<32x64xf32> -> vector<32x128xf32>
    %c0_18 = arith.constant 0 : index
    %c0_19 = arith.constant 0 : index
    %35 = vector.load %arg7[%c0_18, %c0_19] : memref<32x128xf32, #tpu.memory_space<vmem>>, vector<32x128xf32>
    tpu.vector_store %arg7[%c0_18, %c0_19], %34 {strides = array<i32>} : memref<32x128xf32, #tpu.memory_space<vmem>>, vector<32x128xf32>,
    return
  }
  func.func @transform_0(%arg0: i32) -> (i32, i32) {
    %c0_i32 = arith.constant 0 : i32
    %c0_i32_0 = arith.constant 0 : i32
    return %arg0, %c0_i32 : i32, i32
  }
  func.func @transform_1(%arg0: i32) -> (i32, i32) {
    %c0_i32 = arith.constant 0 : i32
    %c0_i32_0 = arith.constant 0 : i32
    return %arg0, %c0_i32 : i32, i32
  }
  func.func @transform_2(%arg0: i32) -> (i32, i32) {
    %c0_i32 = arith.constant 0 : i32
    %c0_i32_0 = arith.constant 0 : i32
    %c0_i32_1 = arith.constant 0 : i32
    return %c0_i32, %c0_i32_0 : i32, i32
  }
  func.func @transform_3(%arg0: i32) -> (i32, i32) {
    %c0_i32 = arith.constant 0 : i32
    %c0_i32_0 = arith.constant 0 : i32
    %c0_i32_1 = arith.constant 0 : i32
    return %c0_i32, %c0_i32_0 : i32, i32
  }
  func.func @transform_4(%arg0: i32) -> (i32, i32) {
    %c0_i32 = arith.constant 0 : i32
    %c0_i32_0 = arith.constant 0 : i32
    %c0_i32_1 = arith.constant 0 : i32
    return %c0_i32, %c0_i32_0 : i32, i32
  }
  func.func @transform_5(%arg0: i32) -> (i32, i32) {
    %c0_i32 = arith.constant 0 : i32
    %c0_i32_0 = arith.constant 0 : i32
    %c0_i32_1 = arith.constant 0 : i32
    return %c0_i32, %c0_i32_0 : i32, i32
  }
  func.func @transform_6(%arg0: i32) -> (i32, i32) {
    %c0_i32 = arith.constant 0 : i32
    %c0_i32_0 = arith.constant 0 : i32
    return %arg0, %c0_i32 : i32, i32
  }
}

module attributes {stable_mosaic.version = 11 : i64} {
  func.func @_linear2_kernel(%arg0: i32, %arg1: memref<32x128xf32, #tpu.memory_space<vmem>>, %arg2: memref<32x64xf32, #tpu.memory_space<vmem>>, %arg3: memref<128x96xbf16, #tpu.memory_space<vmem>>, %arg4: memref<64x96xbf16, #tpu.memory_space<vmem>>, %arg5: memref<1x96xf32, #tpu.memory_space<vmem>>, %arg6: memref<32x96xf32, #tpu.memory_space<vmem>>) attributes {dimension_semantics = [#tpu.dimension_semantics<parallel>], iteration_bounds = array<i64: 2>, scalar_prefetch = 0 : i64, scratch_operands = 0 : i64, tpu.core_type = #tpu.core_type<tc>, window_params = [{transform_indices = @transform_0, window_bounds = array<i64: 32, 128>}, {transform_indices = @transform_1, window_bounds = array<i64: 32, 64>}, {pipeline_mode = #tpu.pipeline_mode<synchronous>, transform_indices = @transform_2, window_bounds = array<i64: 128, 96>}, {pipeline_mode = #tpu.pipeline_mode<synchronous>, transform_indices = @transform_3, window_bounds = array<i64: 64, 96>}, {pipeline_mode = #tpu.pipeline_mode<synchronous>, transform_indices = @transform_4, window_bounds = array<i64: 1, 96>}, {transform_indices = @transform_5, window_bounds = array<i64: 32, 96>}]} {
    %c0 = arith.constant 0 : index
    %c0_0 = arith.constant 0 : index
    %0 = vector.load %arg1[%c0, %c0_0] : memref<32x128xf32, #tpu.memory_space<vmem>>, vector<32x128xf32>
    %1 = arith.truncf %0 : vector<32x128xf32> to vector<32x128xbf16>
    %c0_1 = arith.constant 0 : index
    %c0_2 = arith.constant 0 : index
    %2 = vector.load %arg3[%c0_1, %c0_2] : memref<128x96xbf16, #tpu.memory_space<vmem>>, vector<128x96xbf16>
    %cst = arith.constant dense<0.000000e+00> : vector<32x96xf32>
    %3 = tpu.matmul %1, %2, %cst {dimension_numbers = #tpu.dot_dimension_numbers<[1], [0], [0], [1], [0, 0, 1, 1], [], []>} : vector<32x128xbf16>, vector<128x96xbf16>, vector<32x96xf32> -> vector<32x96xf32>
    %c0_3 = arith.constant 0 : index
    %c0_4 = arith.constant 0 : index
    %4 = vector.load %arg2[%c0_3, %c0_4] : memref<32x64xf32, #tpu.memory_space<vmem>>, vector<32x64xf32>
    %5 = arith.truncf %4 : vector<32x64xf32> to vector<32x64xbf16>
    %c0_5 = arith.constant 0 : index
    %c0_6 = arith.constant 0 : index
    %6 = vector.load %arg4[%c0_5, %c0_6] : memref<64x96xbf16, #tpu.memory_space<vmem>>, vector<64x96xbf16>
    %cst_7 = arith.constant dense<0.000000e+00> : vector<32x96xf32>
    %7 = tpu.matmul %5, %6, %cst_7 {dimension_numbers = #tpu.dot_dimension_numbers<[1], [0], [0], [1], [0, 0, 1, 1], [], []>} : vector<32x64xbf16>, vector<64x96xbf16>, vector<32x96xf32> -> vector<32x96xf32>
    %8 = arith.addf %3, %7 : vector<32x96xf32>
    %c0_8 = arith.constant 0 : index
    %c0_9 = arith.constant 0 : index
    %9 = vector.load %arg5[%c0_8, %c0_9] : memref<1x96xf32, #tpu.memory_space<vmem>>, vector<1x96xf32>
    %10 = vector.broadcast %9 : vector<1x96xf32> to vector<32x96xf32>
    %11 = arith.addf %8, %10 : vector<32x96xf32>
    %c0_10 = arith.constant 0 : index
    %c0_11 = arith.constant 0 : index
    %12 = vector.load %arg6[%c0_10, %c0_11] : memref<32x96xf32, #tpu.memory_space<vmem>>, vector<32x96xf32>
    tpu.vector_store %arg6[%c0_10, %c0_11], %11 {strides = array<i32>} : memref<32x96xf32, #tpu.memory_space<vmem>>, vector<32x96xf32>,
    return
  }
  func.func @transform_0(%arg0: i32) -> (i32, i32) {
    %c0_i32 = arith.constant 0 : i32
    %c0_i32_0 = arith.constant 0 : i32
    return %arg0, %c0_i32 : i32, i32
  }
  func.func @transform_1(%arg0: i32) -> (i32, i32) {
    %c0_i32 = arith.constant 0 : i32
    %c0_i32_0 = arith.constant 0 : i32
    return %arg0, %c0_i32 : i32, i32
  }
  func.func @transform_2(%arg0: i32) -> (i32, i32) {
    %c0_i32 = arith.constant 0 : i32
    %c0_i32_0 = arith.constant 0 : i32
    %c0_i32_1 = arith.constant 0 : i32
    return %c0_i32, %c0_i32_0 : i32, i32
  }
  func.func @transform_3(%arg0: i32) -> (i32, i32) {
    %c0_i32 = arith.constant 0 : i32
    %c0_i32_0 = arith.constant 0 : i32
    %c0_i32_1 = arith.constant 0 : i32
    return %c0_i32, %c0_i32_0 : i32, i32
  }
  func.func @transform_4(%arg0: i32) -> (i32, i32) {
    %c0_i32 = arith.constant 0 : i32
    %c0_i32_0 = arith.constant 0 : i32
    %c0_i32_1 = arith.constant 0 : i32
    return %c0_i32, %c0_i32_0 : i32, i32
  }
  func.func @transform_5(%arg0: i32) -> (i32, i32) {
    %c0_i32 = arith.constant 0 : i32
    %c0_i32_0 = arith.constant 0 : i32
    return %arg0, %c0_i32 : i32, i32
  }
}

module attributes {stable_mosaic.version = 11 : i64} {
  func.func @_linear_kernel(%arg0: i32, %arg1: memref<32x96xf32, #tpu.memory_space<vmem>>, %arg2: memref<1x96xf32, #tpu.memory_space<vmem>>, %arg3: memref<1x96xf32, #tpu.memory_space<vmem>>, %arg4: memref<96x128xbf16, #tpu.memory_space<vmem>>, %arg5: memref<1x128xf32, #tpu.memory_space<vmem>>, %arg6: memref<32x128xf32, #tpu.memory_space<vmem>>) attributes {dimension_semantics = [#tpu.dimension_semantics<parallel>], iteration_bounds = array<i64: 2>, scalar_prefetch = 0 : i64, scratch_operands = 0 : i64, tpu.core_type = #tpu.core_type<tc>, window_params = [{transform_indices = @transform_0, window_bounds = array<i64: 32, 96>}, {pipeline_mode = #tpu.pipeline_mode<synchronous>, transform_indices = @transform_1, window_bounds = array<i64: 1, 96>}, {pipeline_mode = #tpu.pipeline_mode<synchronous>, transform_indices = @transform_2, window_bounds = array<i64: 1, 96>}, {pipeline_mode = #tpu.pipeline_mode<synchronous>, transform_indices = @transform_3, window_bounds = array<i64: 96, 128>}, {pipeline_mode = #tpu.pipeline_mode<synchronous>, transform_indices = @transform_4, window_bounds = array<i64: 1, 128>}, {transform_indices = @transform_5, window_bounds = array<i64: 32, 128>}]} {
    %c0 = arith.constant 0 : index
    %c0_0 = arith.constant 0 : index
    %0 = vector.load %arg1[%c0, %c0_0] : memref<32x96xf32, #tpu.memory_space<vmem>>, vector<32x96xf32>
    %c0_1 = arith.constant 0 : index
    %c0_2 = arith.constant 0 : index
    %1 = vector.load %arg2[%c0_1, %c0_2] : memref<1x96xf32, #tpu.memory_space<vmem>>, vector<1x96xf32>
    %2 = vector.broadcast %1 : vector<1x96xf32> to vector<32x96xf32>
    %3 = arith.mulf %0, %2 : vector<32x96xf32>
    %c0_3 = arith.constant 0 : index
    %c0_4 = arith.constant 0 : index
    %4 = vector.load %arg3[%c0_3, %c0_4] : memref<1x96xf32, #tpu.memory_space<vmem>>, vector<1x96xf32>
    %5 = vector.broadcast %4 : vector<1x96xf32> to vector<32x96xf32>
    %6 = arith.addf %3, %5 : vector<32x96xf32>
    %7 = arith.truncf %6 : vector<32x96xf32> to vector<32x96xbf16>
    %c0_5 = arith.constant 0 : index
    %c0_6 = arith.constant 0 : index
    %8 = vector.load %arg4[%c0_5, %c0_6] : memref<96x128xbf16, #tpu.memory_space<vmem>>, vector<96x128xbf16>
    %cst = arith.constant dense<0.000000e+00> : vector<32x128xf32>
    %9 = tpu.matmul %7, %8, %cst {dimension_numbers = #tpu.dot_dimension_numbers<[1], [0], [0], [1], [0, 0, 1, 1], [], []>} : vector<32x96xbf16>, vector<96x128xbf16>, vector<32x128xf32> -> vector<32x128xf32>
    %c0_7 = arith.constant 0 : index
    %c0_8 = arith.constant 0 : index
    %10 = vector.load %arg5[%c0_7, %c0_8] : memref<1x128xf32, #tpu.memory_space<vmem>>, vector<1x128xf32>
    %11 = vector.broadcast %10 : vector<1x128xf32> to vector<32x128xf32>
    %12 = arith.addf %9, %11 : vector<32x128xf32>
    %13 = math.tanh %12 : vector<32x128xf32>
    %c0_9 = arith.constant 0 : index
    %c0_10 = arith.constant 0 : index
    %14 = vector.load %arg6[%c0_9, %c0_10] : memref<32x128xf32, #tpu.memory_space<vmem>>, vector<32x128xf32>
    tpu.vector_store %arg6[%c0_9, %c0_10], %13 {strides = array<i32>} : memref<32x128xf32, #tpu.memory_space<vmem>>, vector<32x128xf32>,
    return
  }
  func.func @transform_0(%arg0: i32) -> (i32, i32) {
    %c0_i32 = arith.constant 0 : i32
    %c0_i32_0 = arith.constant 0 : i32
    return %arg0, %c0_i32 : i32, i32
  }
  func.func @transform_1(%arg0: i32) -> (i32, i32) {
    %c0_i32 = arith.constant 0 : i32
    %c0_i32_0 = arith.constant 0 : i32
    %c0_i32_1 = arith.constant 0 : i32
    return %c0_i32, %c0_i32_0 : i32, i32
  }
  func.func @transform_2(%arg0: i32) -> (i32, i32) {
    %c0_i32 = arith.constant 0 : i32
    %c0_i32_0 = arith.constant 0 : i32
    %c0_i32_1 = arith.constant 0 : i32
    return %c0_i32, %c0_i32_0 : i32, i32
  }
  func.func @transform_3(%arg0: i32) -> (i32, i32) {
    %c0_i32 = arith.constant 0 : i32
    %c0_i32_0 = arith.constant 0 : i32
    %c0_i32_1 = arith.constant 0 : i32
    return %c0_i32, %c0_i32_0 : i32, i32
  }
  func.func @transform_4(%arg0: i32) -> (i32, i32) {
    %c0_i32 = arith.constant 0 : i32
    %c0_i32_0 = arith.constant 0 : i32
    %c0_i32_1 = arith.constant 0 : i32
    return %c0_i32, %c0_i32_0 : i32, i32
  }
  func.func @transform_5(%arg0: i32) -> (i32, i32) {
    %c0_i32 = arith.constant 0 : i32
    %c0_i32_0 = arith.constant 0 : i32
    return %arg0, %c0_i32 : i32, i32
  }
}

module attributes {stable_mosaic.version = 11 : i64} {
  func.func @_linear_kernel(%arg0: i32, %arg1: memref<32x128xf32, #tpu.memory_space<vmem>>, %arg2: memref<1x128xf32, #tpu.memory_space<vmem>>, %arg3: memref<1x128xf32, #tpu.memory_space<vmem>>, %arg4: memref<128x96xbf16, #tpu.memory_space<vmem>>, %arg5: memref<1x96xf32, #tpu.memory_space<vmem>>, %arg6: memref<32x96xf32, #tpu.memory_space<vmem>>) attributes {dimension_semantics = [#tpu.dimension_semantics<parallel>], iteration_bounds = array<i64: 2>, scalar_prefetch = 0 : i64, scratch_operands = 0 : i64, tpu.core_type = #tpu.core_type<tc>, window_params = [{transform_indices = @transform_0, window_bounds = array<i64: 32, 128>}, {pipeline_mode = #tpu.pipeline_mode<synchronous>, transform_indices = @transform_1, window_bounds = array<i64: 1, 128>}, {pipeline_mode = #tpu.pipeline_mode<synchronous>, transform_indices = @transform_2, window_bounds = array<i64: 1, 128>}, {pipeline_mode = #tpu.pipeline_mode<synchronous>, transform_indices = @transform_3, window_bounds = array<i64: 128, 96>}, {pipeline_mode = #tpu.pipeline_mode<synchronous>, transform_indices = @transform_4, window_bounds = array<i64: 1, 96>}, {transform_indices = @transform_5, window_bounds = array<i64: 32, 96>}]} {
    %c0 = arith.constant 0 : index
    %c0_0 = arith.constant 0 : index
    %0 = vector.load %arg1[%c0, %c0_0] : memref<32x128xf32, #tpu.memory_space<vmem>>, vector<32x128xf32>
    %c0_1 = arith.constant 0 : index
    %c0_2 = arith.constant 0 : index
    %1 = vector.load %arg2[%c0_1, %c0_2] : memref<1x128xf32, #tpu.memory_space<vmem>>, vector<1x128xf32>
    %2 = vector.broadcast %1 : vector<1x128xf32> to vector<32x128xf32>
    %3 = arith.mulf %0, %2 : vector<32x128xf32>
    %c0_3 = arith.constant 0 : index
    %c0_4 = arith.constant 0 : index
    %4 = vector.load %arg3[%c0_3, %c0_4] : memref<1x128xf32, #tpu.memory_space<vmem>>, vector<1x128xf32>
    %5 = vector.broadcast %4 : vector<1x128xf32> to vector<32x128xf32>
    %6 = arith.addf %3, %5 : vector<32x128xf32>
    %7 = arith.truncf %6 : vector<32x128xf32> to vector<32x128xbf16>
    %c0_5 = arith.constant 0 : index
    %c0_6 = arith.constant 0 : index
    %8 = vector.load %arg4[%c0_5, %c0_6] : memref<128x96xbf16, #tpu.memory_space<vmem>>, vector<128x96xbf16>
    %cst = arith.constant dense<0.000000e+00> : vector<32x96xf32>
    %9 = tpu.matmul %7, %8, %cst {dimension_numbers = #tpu.dot_dimension_numbers<[1], [0], [0], [1], [0, 0, 1, 1], [], []>} : vector<32x128xbf16>, vector<128x96xbf16>, vector<32x96xf32> -> vector<32x96xf32>
    %c0_7 = arith.constant 0 : index
    %c0_8 = arith.constant 0 : index
    %10 = vector.load %arg5[%c0_7, %c0_8] : memref<1x96xf32, #tpu.memory_space<vmem>>, vector<1x96xf32>
    %11 = vector.broadcast %10 : vector<1x96xf32> to vector<32x96xf32>
    %12 = arith.addf %9, %11 : vector<32x96xf32>
    %13 = math.tanh %12 : vector<32x96xf32>
    %c0_9 = arith.constant 0 : index
    %c0_10 = arith.constant 0 : index
    %14 = vector.load %arg6[%c0_9, %c0_10] : memref<32x96xf32, #tpu.memory_space<vmem>>, vector<32x96xf32>
    tpu.vector_store %arg6[%c0_9, %c0_10], %13 {strides = array<i32>} : memref<32x96xf32, #tpu.memory_space<vmem>>, vector<32x96xf32>,
    return
  }
  func.func @transform_0(%arg0: i32) -> (i32, i32) {
    %c0_i32 = arith.constant 0 : i32
    %c0_i32_0 = arith.constant 0 : i32
    return %arg0, %c0_i32 : i32, i32
  }
  func.func @transform_1(%arg0: i32) -> (i32, i32) {
    %c0_i32 = arith.constant 0 : i32
    %c0_i32_0 = arith.constant 0 : i32
    %c0_i32_1 = arith.constant 0 : i32
    return %c0_i32, %c0_i32_0 : i32, i32
  }
  func.func @transform_2(%arg0: i32) -> (i32, i32) {
    %c0_i32 = arith.constant 0 : i32
    %c0_i32_0 = arith.constant 0 : i32
    %c0_i32_1 = arith.constant 0 : i32
    return %c0_i32, %c0_i32_0 : i32, i32
  }
  func.func @transform_3(%arg0: i32) -> (i32, i32) {
    %c0_i32 = arith.constant 0 : i32
    %c0_i32_0 = arith.constant 0 : i32
    %c0_i32_1 = arith.constant 0 : i32
    return %c0_i32, %c0_i32_0 : i32, i32
  }
  func.func @transform_4(%arg0: i32) -> (i32, i32) {
    %c0_i32 = arith.constant 0 : i32
    %c0_i32_0 = arith.constant 0 : i32
    %c0_i32_1 = arith.constant 0 : i32
    return %c0_i32, %c0_i32_0 : i32, i32
  }
  func.func @transform_5(%arg0: i32) -> (i32, i32) {
    %c0_i32 = arith.constant 0 : i32
    %c0_i32_0 = arith.constant 0 : i32
    return %arg0, %c0_i32 : i32, i32
  }
}

module attributes {stable_mosaic.version = 11 : i64} {
  func.func @_ge_linear_kernel(%arg0: i32, %arg1: memref<32x96xf32, #tpu.memory_space<vmem>>, %arg2: memref<32x1xi32, #tpu.memory_space<vmem>>, %arg3: memref<2x96xf32, #tpu.memory_space<vmem>>, %arg4: memref<96x96xbf16, #tpu.memory_space<vmem>>, %arg5: memref<1x96xf32, #tpu.memory_space<vmem>>, %arg6: memref<32x96xf32, #tpu.memory_space<vmem>>) attributes {dimension_semantics = [#tpu.dimension_semantics<parallel>], iteration_bounds = array<i64: 2>, scalar_prefetch = 0 : i64, scratch_operands = 0 : i64, tpu.core_type = #tpu.core_type<tc>, window_params = [{transform_indices = @transform_0, window_bounds = array<i64: 32, 96>}, {transform_indices = @transform_1, window_bounds = array<i64: 32, 1>}, {pipeline_mode = #tpu.pipeline_mode<synchronous>, transform_indices = @transform_2, window_bounds = array<i64: 2, 96>}, {pipeline_mode = #tpu.pipeline_mode<synchronous>, transform_indices = @transform_3, window_bounds = array<i64: 96, 96>}, {pipeline_mode = #tpu.pipeline_mode<synchronous>, transform_indices = @transform_4, window_bounds = array<i64: 1, 96>}, {transform_indices = @transform_5, window_bounds = array<i64: 32, 96>}]} {
    %c0 = arith.constant 0 : index
    %c0_0 = arith.constant 0 : index
    %0 = vector.load %arg1[%c0, %c0_0] : memref<32x96xf32, #tpu.memory_space<vmem>>, vector<32x96xf32>
    %1 = tpu.iota {dimensions = array<i32: 1>} : vector<32x2xi32>
    %c0_1 = arith.constant 0 : index
    %c0_2 = arith.constant 0 : index
    %2 = vector.load %arg2[%c0_1, %c0_2] : memref<32x1xi32, #tpu.memory_space<vmem>>, vector<32x1xi32>
    %3 = vector.broadcast %2 : vector<32x1xi32> to vector<32x2xi32>
    %4 = arith.cmpi eq, %3, %1 : vector<32x2xi32>
    %5 = arith.extui %4 : vector<32x2xi1> to vector<32x2xi32>
    %6 = arith.sitofp %5 : vector<32x2xi32> to vector<32x2xf32>
    %c0_3 = arith.constant 0 : index
    %c0_4 = arith.constant 0 : index
    %7 = vector.load %arg3[%c0_3, %c0_4] : memref<2x96xf32, #tpu.memory_space<vmem>>, vector<2x96xf32>
    %cst = arith.constant dense<0.000000e+00> : vector<32x96xf32>
    %8 = tpu.matmul %6, %7, %cst {dimension_numbers = #tpu.dot_dimension_numbers<[1], [0], [0], [1], [0, 0, 1, 1], [], []>} : vector<32x2xf32>, vector<2x96xf32>, vector<32x96xf32> -> vector<32x96xf32>
    %9 = arith.truncf %0 : vector<32x96xf32> to vector<32x96xbf16>
    %c0_5 = arith.constant 0 : index
    %c0_6 = arith.constant 0 : index
    %10 = vector.load %arg4[%c0_5, %c0_6] : memref<96x96xbf16, #tpu.memory_space<vmem>>, vector<96x96xbf16>
    %cst_7 = arith.constant dense<0.000000e+00> : vector<32x96xf32>
    %11 = tpu.matmul %9, %10, %cst_7 {dimension_numbers = #tpu.dot_dimension_numbers<[1], [0], [0], [1], [0, 0, 1, 1], [], []>} : vector<32x96xbf16>, vector<96x96xbf16>, vector<32x96xf32> -> vector<32x96xf32>
    %12 = arith.addf %8, %11 : vector<32x96xf32>
    %c0_8 = arith.constant 0 : index
    %c0_9 = arith.constant 0 : index
    %13 = vector.load %arg5[%c0_8, %c0_9] : memref<1x96xf32, #tpu.memory_space<vmem>>, vector<1x96xf32>
    %14 = vector.broadcast %13 : vector<1x96xf32> to vector<32x96xf32>
    %15 = arith.addf %12, %14 : vector<32x96xf32>
    %16 = math.tanh %15 : vector<32x96xf32>
    %c0_10 = arith.constant 0 : index
    %c0_11 = arith.constant 0 : index
    %17 = vector.load %arg6[%c0_10, %c0_11] : memref<32x96xf32, #tpu.memory_space<vmem>>, vector<32x96xf32>
    tpu.vector_store %arg6[%c0_10, %c0_11], %16 {strides = array<i32>} : memref<32x96xf32, #tpu.memory_space<vmem>>, vector<32x96xf32>,
    return
  }
  func.func @transform_0(%arg0: i32) -> (i32, i32) {
    %c0_i32 = arith.constant 0 : i32
    %c0_i32_0 = arith.constant 0 : i32
    return %arg0, %c0_i32 : i32, i32
  }
  func.func @transform_1(%arg0: i32) -> (i32, i32) {
    %c0_i32 = arith.constant 0 : i32
    %c0_i32_0 = arith.constant 0 : i32
    return %arg0, %c0_i32 : i32, i32
  }
  func.func @transform_2(%arg0: i32) -> (i32, i32) {
    %c0_i32 = arith.constant 0 : i32
    %c0_i32_0 = arith.constant 0 : i32
    %c0_i32_1 = arith.constant 0 : i32
    return %c0_i32, %c0_i32_0 : i32, i32
  }
  func.func @transform_3(%arg0: i32) -> (i32, i32) {
    %c0_i32 = arith.constant 0 : i32
    %c0_i32_0 = arith.constant 0 : i32
    %c0_i32_1 = arith.constant 0 : i32
    return %c0_i32, %c0_i32_0 : i32, i32
  }
  func.func @transform_4(%arg0: i32) -> (i32, i32) {
    %c0_i32 = arith.constant 0 : i32
    %c0_i32_0 = arith.constant 0 : i32
    %c0_i32_1 = arith.constant 0 : i32
    return %c0_i32, %c0_i32_0 : i32, i32
  }
  func.func @transform_5(%arg0: i32) -> (i32, i32) {
    %c0_i32 = arith.constant 0 : i32
    %c0_i32_0 = arith.constant 0 : i32
    return %arg0, %c0_i32 : i32, i32
  }
}

module attributes {stable_mosaic.version = 11 : i64} {
  func.func @_lin_sh_kernel(%arg0: i32, %arg1: memref<32x96xf32, #tpu.memory_space<vmem>>, %arg2: memref<96x4xf32, #tpu.memory_space<vmem>>, %arg3: memref<96x64xbf16, #tpu.memory_space<vmem>>, %arg4: memref<1x4xf32, #tpu.memory_space<vmem>>, %arg5: memref<1x64xf32, #tpu.memory_space<vmem>>, %arg6: memref<32x4xf32, #tpu.memory_space<vmem>>, %arg7: memref<32x64xbf16, #tpu.memory_space<vmem>>) attributes {dimension_semantics = [#tpu.dimension_semantics<parallel>], iteration_bounds = array<i64: 2>, scalar_prefetch = 0 : i64, scratch_operands = 0 : i64, tpu.core_type = #tpu.core_type<tc>, window_params = [{transform_indices = @transform_0, window_bounds = array<i64: 32, 96>}, {pipeline_mode = #tpu.pipeline_mode<synchronous>, transform_indices = @transform_1, window_bounds = array<i64: 96, 4>}, {pipeline_mode = #tpu.pipeline_mode<synchronous>, transform_indices = @transform_2, window_bounds = array<i64: 96, 64>}, {pipeline_mode = #tpu.pipeline_mode<synchronous>, transform_indices = @transform_3, window_bounds = array<i64: 1, 4>}, {pipeline_mode = #tpu.pipeline_mode<synchronous>, transform_indices = @transform_4, window_bounds = array<i64: 1, 64>}, {transform_indices = @transform_5, window_bounds = array<i64: 32, 4>}, {transform_indices = @transform_6, window_bounds = array<i64: 32, 64>}]} {
    %c0 = arith.constant 0 : index
    %c0_0 = arith.constant 0 : index
    %0 = vector.load %arg1[%c0, %c0_0] : memref<32x96xf32, #tpu.memory_space<vmem>>, vector<32x96xf32>
    %c0_1 = arith.constant 0 : index
    %c0_2 = arith.constant 0 : index
    %1 = vector.load %arg2[%c0_1, %c0_2] : memref<96x4xf32, #tpu.memory_space<vmem>>, vector<96x4xf32>
    %cst = arith.constant dense<0.000000e+00> : vector<32x4xf32>
    %2 = tpu.matmul %0, %1, %cst {dimension_numbers = #tpu.dot_dimension_numbers<[1], [0], [0], [1], [0, 0, 1, 1], [], []>} : vector<32x96xf32>, vector<96x4xf32>, vector<32x4xf32> -> vector<32x4xf32>
    %c0_3 = arith.constant 0 : index
    %c0_4 = arith.constant 0 : index
    %3 = vector.load %arg4[%c0_3, %c0_4] : memref<1x4xf32, #tpu.memory_space<vmem>>, vector<1x4xf32>
    %4 = vector.broadcast %3 : vector<1x4xf32> to vector<32x4xf32>
    %5 = arith.addf %2, %4 : vector<32x4xf32>
    %c0_5 = arith.constant 0 : index
    %c0_6 = arith.constant 0 : index
    %6 = vector.load %arg6[%c0_5, %c0_6] : memref<32x4xf32, #tpu.memory_space<vmem>>, vector<32x4xf32>
    tpu.vector_store %arg6[%c0_5, %c0_6], %5 {strides = array<i32>} : memref<32x4xf32, #tpu.memory_space<vmem>>, vector<32x4xf32>,
    %7 = arith.truncf %0 : vector<32x96xf32> to vector<32x96xbf16>
    %c0_7 = arith.constant 0 : index
    %c0_8 = arith.constant 0 : index
    %8 = vector.load %arg3[%c0_7, %c0_8] : memref<96x64xbf16, #tpu.memory_space<vmem>>, vector<96x64xbf16>
    %cst_9 = arith.constant dense<0.000000e+00> : vector<32x64xf32>
    %9 = tpu.matmul %7, %8, %cst_9 {dimension_numbers = #tpu.dot_dimension_numbers<[1], [0], [0], [1], [0, 0, 1, 1], [], []>} : vector<32x96xbf16>, vector<96x64xbf16>, vector<32x64xf32> -> vector<32x64xf32>
    %c0_10 = arith.constant 0 : index
    %c0_11 = arith.constant 0 : index
    %10 = vector.load %arg5[%c0_10, %c0_11] : memref<1x64xf32, #tpu.memory_space<vmem>>, vector<1x64xf32>
    %11 = vector.broadcast %10 : vector<1x64xf32> to vector<32x64xf32>
    %12 = arith.addf %9, %11 : vector<32x64xf32>
    %13 = arith.truncf %12 : vector<32x64xf32> to vector<32x64xbf16>
    %c0_12 = arith.constant 0 : index
    %c0_13 = arith.constant 0 : index
    %14 = vector.load %arg7[%c0_12, %c0_13] : memref<32x64xbf16, #tpu.memory_space<vmem>>, vector<32x64xbf16>
    tpu.vector_store %arg7[%c0_12, %c0_13], %13 {strides = array<i32>} : memref<32x64xbf16, #tpu.memory_space<vmem>>, vector<32x64xbf16>,
    return
  }
  func.func @transform_0(%arg0: i32) -> (i32, i32) {
    %c0_i32 = arith.constant 0 : i32
    %c0_i32_0 = arith.constant 0 : i32
    return %arg0, %c0_i32 : i32, i32
  }
  func.func @transform_1(%arg0: i32) -> (i32, i32) {
    %c0_i32 = arith.constant 0 : i32
    %c0_i32_0 = arith.constant 0 : i32
    %c0_i32_1 = arith.constant 0 : i32
    return %c0_i32, %c0_i32_0 : i32, i32
  }
  func.func @transform_2(%arg0: i32) -> (i32, i32) {
    %c0_i32 = arith.constant 0 : i32
    %c0_i32_0 = arith.constant 0 : i32
    %c0_i32_1 = arith.constant 0 : i32
    return %c0_i32, %c0_i32_0 : i32, i32
  }
  func.func @transform_3(%arg0: i32) -> (i32, i32) {
    %c0_i32 = arith.constant 0 : i32
    %c0_i32_0 = arith.constant 0 : i32
    %c0_i32_1 = arith.constant 0 : i32
    return %c0_i32, %c0_i32_0 : i32, i32
  }
  func.func @transform_4(%arg0: i32) -> (i32, i32) {
    %c0_i32 = arith.constant 0 : i32
    %c0_i32_0 = arith.constant 0 : i32
    %c0_i32_1 = arith.constant 0 : i32
    return %c0_i32, %c0_i32_0 : i32, i32
  }
  func.func @transform_5(%arg0: i32) -> (i32, i32) {
    %c0_i32 = arith.constant 0 : i32
    %c0_i32_0 = arith.constant 0 : i32
    return %arg0, %c0_i32 : i32, i32
  }
  func.func @transform_6(%arg0: i32) -> (i32, i32) {
    %c0_i32 = arith.constant 0 : i32
    %c0_i32_0 = arith.constant 0 : i32
    return %arg0, %c0_i32 : i32, i32
  }
}

module attributes {stable_mosaic.version = 11 : i64} {
  func.func @_linear2_kernel(%arg0: i32, %arg1: memref<32x128xf32, #tpu.memory_space<vmem>>, %arg2: memref<32x96xf32, #tpu.memory_space<vmem>>, %arg3: memref<128x96xbf16, #tpu.memory_space<vmem>>, %arg4: memref<96x96xbf16, #tpu.memory_space<vmem>>, %arg5: memref<1x96xf32, #tpu.memory_space<vmem>>, %arg6: memref<32x96xf32, #tpu.memory_space<vmem>>) attributes {dimension_semantics = [#tpu.dimension_semantics<parallel>], iteration_bounds = array<i64: 2>, scalar_prefetch = 0 : i64, scratch_operands = 0 : i64, tpu.core_type = #tpu.core_type<tc>, window_params = [{transform_indices = @transform_0, window_bounds = array<i64: 32, 128>}, {transform_indices = @transform_1, window_bounds = array<i64: 32, 96>}, {pipeline_mode = #tpu.pipeline_mode<synchronous>, transform_indices = @transform_2, window_bounds = array<i64: 128, 96>}, {pipeline_mode = #tpu.pipeline_mode<synchronous>, transform_indices = @transform_3, window_bounds = array<i64: 96, 96>}, {pipeline_mode = #tpu.pipeline_mode<synchronous>, transform_indices = @transform_4, window_bounds = array<i64: 1, 96>}, {transform_indices = @transform_5, window_bounds = array<i64: 32, 96>}]} {
    %c0 = arith.constant 0 : index
    %c0_0 = arith.constant 0 : index
    %0 = vector.load %arg1[%c0, %c0_0] : memref<32x128xf32, #tpu.memory_space<vmem>>, vector<32x128xf32>
    %1 = arith.truncf %0 : vector<32x128xf32> to vector<32x128xbf16>
    %c0_1 = arith.constant 0 : index
    %c0_2 = arith.constant 0 : index
    %2 = vector.load %arg3[%c0_1, %c0_2] : memref<128x96xbf16, #tpu.memory_space<vmem>>, vector<128x96xbf16>
    %cst = arith.constant dense<0.000000e+00> : vector<32x96xf32>
    %3 = tpu.matmul %1, %2, %cst {dimension_numbers = #tpu.dot_dimension_numbers<[1], [0], [0], [1], [0, 0, 1, 1], [], []>} : vector<32x128xbf16>, vector<128x96xbf16>, vector<32x96xf32> -> vector<32x96xf32>
    %c0_3 = arith.constant 0 : index
    %c0_4 = arith.constant 0 : index
    %4 = vector.load %arg2[%c0_3, %c0_4] : memref<32x96xf32, #tpu.memory_space<vmem>>, vector<32x96xf32>
    %5 = arith.truncf %4 : vector<32x96xf32> to vector<32x96xbf16>
    %c0_5 = arith.constant 0 : index
    %c0_6 = arith.constant 0 : index
    %6 = vector.load %arg4[%c0_5, %c0_6] : memref<96x96xbf16, #tpu.memory_space<vmem>>, vector<96x96xbf16>
    %cst_7 = arith.constant dense<0.000000e+00> : vector<32x96xf32>
    %7 = tpu.matmul %5, %6, %cst_7 {dimension_numbers = #tpu.dot_dimension_numbers<[1], [0], [0], [1], [0, 0, 1, 1], [], []>} : vector<32x96xbf16>, vector<96x96xbf16>, vector<32x96xf32> -> vector<32x96xf32>
    %8 = arith.addf %3, %7 : vector<32x96xf32>
    %c0_8 = arith.constant 0 : index
    %c0_9 = arith.constant 0 : index
    %9 = vector.load %arg5[%c0_8, %c0_9] : memref<1x96xf32, #tpu.memory_space<vmem>>, vector<1x96xf32>
    %10 = vector.broadcast %9 : vector<1x96xf32> to vector<32x96xf32>
    %11 = arith.addf %8, %10 : vector<32x96xf32>
    %c0_10 = arith.constant 0 : index
    %c0_11 = arith.constant 0 : index
    %12 = vector.load %arg6[%c0_10, %c0_11] : memref<32x96xf32, #tpu.memory_space<vmem>>, vector<32x96xf32>
    tpu.vector_store %arg6[%c0_10, %c0_11], %11 {strides = array<i32>} : memref<32x96xf32, #tpu.memory_space<vmem>>, vector<32x96xf32>,
    return
  }
  func.func @transform_0(%arg0: i32) -> (i32, i32) {
    %c0_i32 = arith.constant 0 : i32
    %c0_i32_0 = arith.constant 0 : i32
    return %arg0, %c0_i32 : i32, i32
  }
  func.func @transform_1(%arg0: i32) -> (i32, i32) {
    %c0_i32 = arith.constant 0 : i32
    %c0_i32_0 = arith.constant 0 : i32
    return %arg0, %c0_i32 : i32, i32
  }
  func.func @transform_2(%arg0: i32) -> (i32, i32) {
    %c0_i32 = arith.constant 0 : i32
    %c0_i32_0 = arith.constant 0 : i32
    %c0_i32_1 = arith.constant 0 : i32
    return %c0_i32, %c0_i32_0 : i32, i32
  }
  func.func @transform_3(%arg0: i32) -> (i32, i32) {
    %c0_i32 = arith.constant 0 : i32
    %c0_i32_0 = arith.constant 0 : i32
    %c0_i32_1 = arith.constant 0 : i32
    return %c0_i32, %c0_i32_0 : i32, i32
  }
  func.func @transform_4(%arg0: i32) -> (i32, i32) {
    %c0_i32 = arith.constant 0 : i32
    %c0_i32_0 = arith.constant 0 : i32
    %c0_i32_1 = arith.constant 0 : i32
    return %c0_i32, %c0_i32_0 : i32, i32
  }
  func.func @transform_5(%arg0: i32) -> (i32, i32) {
    %c0_i32 = arith.constant 0 : i32
    %c0_i32_0 = arith.constant 0 : i32
    return %arg0, %c0_i32 : i32, i32
  }
}

module attributes {stable_mosaic.version = 11 : i64} {
  func.func @_linear_kernel(%arg0: i32, %arg1: memref<32x384xf32, #tpu.memory_space<vmem>>, %arg2: memref<384x128xbf16, #tpu.memory_space<vmem>>, %arg3: memref<1x128xf32, #tpu.memory_space<vmem>>, %arg4: memref<32x128xf32, #tpu.memory_space<vmem>>) attributes {dimension_semantics = [#tpu.dimension_semantics<parallel>], iteration_bounds = array<i64: 2>, scalar_prefetch = 0 : i64, scratch_operands = 0 : i64, tpu.core_type = #tpu.core_type<tc>, window_params = [{transform_indices = @transform_0, window_bounds = array<i64: 32, 384>}, {pipeline_mode = #tpu.pipeline_mode<synchronous>, transform_indices = @transform_1, window_bounds = array<i64: 384, 128>}, {pipeline_mode = #tpu.pipeline_mode<synchronous>, transform_indices = @transform_2, window_bounds = array<i64: 1, 128>}, {transform_indices = @transform_3, window_bounds = array<i64: 32, 128>}]} {
    %c0 = arith.constant 0 : index
    %c0_0 = arith.constant 0 : index
    %0 = vector.load %arg1[%c0, %c0_0] : memref<32x384xf32, #tpu.memory_space<vmem>>, vector<32x384xf32>
    %1 = arith.truncf %0 : vector<32x384xf32> to vector<32x384xbf16>
    %c0_1 = arith.constant 0 : index
    %c0_2 = arith.constant 0 : index
    %2 = vector.load %arg2[%c0_1, %c0_2] : memref<384x128xbf16, #tpu.memory_space<vmem>>, vector<384x128xbf16>
    %cst = arith.constant dense<0.000000e+00> : vector<32x128xf32>
    %3 = tpu.matmul %1, %2, %cst {dimension_numbers = #tpu.dot_dimension_numbers<[1], [0], [0], [1], [0, 0, 1, 1], [], []>} : vector<32x384xbf16>, vector<384x128xbf16>, vector<32x128xf32> -> vector<32x128xf32>
    %c0_3 = arith.constant 0 : index
    %c0_4 = arith.constant 0 : index
    %4 = vector.load %arg3[%c0_3, %c0_4] : memref<1x128xf32, #tpu.memory_space<vmem>>, vector<1x128xf32>
    %5 = vector.broadcast %4 : vector<1x128xf32> to vector<32x128xf32>
    %6 = arith.addf %3, %5 : vector<32x128xf32>
    %cst_5 = arith.constant 0.000000e+00 : f32
    %7 = vector.broadcast %cst_5 : f32 to vector<32x128xf32>
    %8 = arith.maximumf %6, %7 : vector<32x128xf32>
    %c0_6 = arith.constant 0 : index
    %c0_7 = arith.constant 0 : index
    %9 = vector.load %arg4[%c0_6, %c0_7] : memref<32x128xf32, #tpu.memory_space<vmem>>, vector<32x128xf32>
    tpu.vector_store %arg4[%c0_6, %c0_7], %8 {strides = array<i32>} : memref<32x128xf32, #tpu.memory_space<vmem>>, vector<32x128xf32>,
    return
  }
  func.func @transform_0(%arg0: i32) -> (i32, i32) {
    %c0_i32 = arith.constant 0 : i32
    %c0_i32_0 = arith.constant 0 : i32
    return %arg0, %c0_i32 : i32, i32
  }
  func.func @transform_1(%arg0: i32) -> (i32, i32) {
    %c0_i32 = arith.constant 0 : i32
    %c0_i32_0 = arith.constant 0 : i32
    %c0_i32_1 = arith.constant 0 : i32
    return %c0_i32, %c0_i32_0 : i32, i32
  }
  func.func @transform_2(%arg0: i32) -> (i32, i32) {
    %c0_i32 = arith.constant 0 : i32
    %c0_i32_0 = arith.constant 0 : i32
    %c0_i32_1 = arith.constant 0 : i32
    return %c0_i32, %c0_i32_0 : i32, i32
  }
  func.func @transform_3(%arg0: i32) -> (i32, i32) {
    %c0_i32 = arith.constant 0 : i32
    %c0_i32_0 = arith.constant 0 : i32
    return %arg0, %c0_i32 : i32, i32
  }
}

module attributes {stable_mosaic.version = 11 : i64} {
  func.func @_linear_kernel(%arg0: i32, %arg1: memref<32x128xf32, #tpu.memory_space<vmem>>, %arg2: memref<1x128xf32, #tpu.memory_space<vmem>>, %arg3: memref<1x128xf32, #tpu.memory_space<vmem>>, %arg4: memref<128x128xbf16, #tpu.memory_space<vmem>>, %arg5: memref<1x128xf32, #tpu.memory_space<vmem>>, %arg6: memref<32x128xf32, #tpu.memory_space<vmem>>) attributes {dimension_semantics = [#tpu.dimension_semantics<parallel>], iteration_bounds = array<i64: 2>, scalar_prefetch = 0 : i64, scratch_operands = 0 : i64, tpu.core_type = #tpu.core_type<tc>, window_params = [{transform_indices = @transform_0, window_bounds = array<i64: 32, 128>}, {pipeline_mode = #tpu.pipeline_mode<synchronous>, transform_indices = @transform_1, window_bounds = array<i64: 1, 128>}, {pipeline_mode = #tpu.pipeline_mode<synchronous>, transform_indices = @transform_2, window_bounds = array<i64: 1, 128>}, {pipeline_mode = #tpu.pipeline_mode<synchronous>, transform_indices = @transform_3, window_bounds = array<i64: 128, 128>}, {pipeline_mode = #tpu.pipeline_mode<synchronous>, transform_indices = @transform_4, window_bounds = array<i64: 1, 128>}, {transform_indices = @transform_5, window_bounds = array<i64: 32, 128>}]} {
    %c0 = arith.constant 0 : index
    %c0_0 = arith.constant 0 : index
    %0 = vector.load %arg1[%c0, %c0_0] : memref<32x128xf32, #tpu.memory_space<vmem>>, vector<32x128xf32>
    %c0_1 = arith.constant 0 : index
    %c0_2 = arith.constant 0 : index
    %1 = vector.load %arg2[%c0_1, %c0_2] : memref<1x128xf32, #tpu.memory_space<vmem>>, vector<1x128xf32>
    %2 = vector.broadcast %1 : vector<1x128xf32> to vector<32x128xf32>
    %3 = arith.mulf %0, %2 : vector<32x128xf32>
    %c0_3 = arith.constant 0 : index
    %c0_4 = arith.constant 0 : index
    %4 = vector.load %arg3[%c0_3, %c0_4] : memref<1x128xf32, #tpu.memory_space<vmem>>, vector<1x128xf32>
    %5 = vector.broadcast %4 : vector<1x128xf32> to vector<32x128xf32>
    %6 = arith.addf %3, %5 : vector<32x128xf32>
    %7 = arith.truncf %6 : vector<32x128xf32> to vector<32x128xbf16>
    %c0_5 = arith.constant 0 : index
    %c0_6 = arith.constant 0 : index
    %8 = vector.load %arg4[%c0_5, %c0_6] : memref<128x128xbf16, #tpu.memory_space<vmem>>, vector<128x128xbf16>
    %cst = arith.constant dense<0.000000e+00> : vector<32x128xf32>
    %9 = tpu.matmul %7, %8, %cst {dimension_numbers = #tpu.dot_dimension_numbers<[1], [0], [0], [1], [0, 0, 1, 1], [], []>} : vector<32x128xbf16>, vector<128x128xbf16>, vector<32x128xf32> -> vector<32x128xf32>
    %c0_7 = arith.constant 0 : index
    %c0_8 = arith.constant 0 : index
    %10 = vector.load %arg5[%c0_7, %c0_8] : memref<1x128xf32, #tpu.memory_space<vmem>>, vector<1x128xf32>
    %11 = vector.broadcast %10 : vector<1x128xf32> to vector<32x128xf32>
    %12 = arith.addf %9, %11 : vector<32x128xf32>
    %cst_9 = arith.constant 0.000000e+00 : f32
    %13 = vector.broadcast %cst_9 : f32 to vector<32x128xf32>
    %14 = arith.maximumf %12, %13 : vector<32x128xf32>
    %c0_10 = arith.constant 0 : index
    %c0_11 = arith.constant 0 : index
    %15 = vector.load %arg6[%c0_10, %c0_11] : memref<32x128xf32, #tpu.memory_space<vmem>>, vector<32x128xf32>
    tpu.vector_store %arg6[%c0_10, %c0_11], %14 {strides = array<i32>} : memref<32x128xf32, #tpu.memory_space<vmem>>, vector<32x128xf32>,
    return
  }
  func.func @transform_0(%arg0: i32) -> (i32, i32) {
    %c0_i32 = arith.constant 0 : i32
    %c0_i32_0 = arith.constant 0 : i32
    return %arg0, %c0_i32 : i32, i32
  }
  func.func @transform_1(%arg0: i32) -> (i32, i32) {
    %c0_i32 = arith.constant 0 : i32
    %c0_i32_0 = arith.constant 0 : i32
    %c0_i32_1 = arith.constant 0 : i32
    return %c0_i32, %c0_i32_0 : i32, i32
  }
  func.func @transform_2(%arg0: i32) -> (i32, i32) {
    %c0_i32 = arith.constant 0 : i32
    %c0_i32_0 = arith.constant 0 : i32
    %c0_i32_1 = arith.constant 0 : i32
    return %c0_i32, %c0_i32_0 : i32, i32
  }
  func.func @transform_3(%arg0: i32) -> (i32, i32) {
    %c0_i32 = arith.constant 0 : i32
    %c0_i32_0 = arith.constant 0 : i32
    %c0_i32_1 = arith.constant 0 : i32
    return %c0_i32, %c0_i32_0 : i32, i32
  }
  func.func @transform_4(%arg0: i32) -> (i32, i32) {
    %c0_i32 = arith.constant 0 : i32
    %c0_i32_0 = arith.constant 0 : i32
    %c0_i32_1 = arith.constant 0 : i32
    return %c0_i32, %c0_i32_0 : i32, i32
  }
  func.func @transform_5(%arg0: i32) -> (i32, i32) {
    %c0_i32 = arith.constant 0 : i32
    %c0_i32_0 = arith.constant 0 : i32
    return %arg0, %c0_i32 : i32, i32
  }
}

module attributes {stable_mosaic.version = 11 : i64} {
  func.func @_out_head_kernel(%arg0: i32, %arg1: memref<32x128xf32, #tpu.memory_space<vmem>>, %arg2: memref<1x128xf32, #tpu.memory_space<vmem>>, %arg3: memref<1x128xf32, #tpu.memory_space<vmem>>, %arg4: memref<128x64xbf16, #tpu.memory_space<vmem>>, %arg5: memref<1x64xf32, #tpu.memory_space<vmem>>, %arg6: memref<64x64xbf16, #tpu.memory_space<vmem>>, %arg7: memref<1x64xf32, #tpu.memory_space<vmem>>, %arg8: memref<64x4xbf16, #tpu.memory_space<vmem>>, %arg9: memref<1x4xf32, #tpu.memory_space<vmem>>, %arg10: memref<32x4xf32, #tpu.memory_space<vmem>>) attributes {dimension_semantics = [#tpu.dimension_semantics<parallel>], iteration_bounds = array<i64: 2>, scalar_prefetch = 0 : i64, scratch_operands = 0 : i64, tpu.core_type = #tpu.core_type<tc>, window_params = [{transform_indices = @transform_0, window_bounds = array<i64: 32, 128>}, {pipeline_mode = #tpu.pipeline_mode<synchronous>, transform_indices = @transform_1, window_bounds = array<i64: 1, 128>}, {pipeline_mode = #tpu.pipeline_mode<synchronous>, transform_indices = @transform_2, window_bounds = array<i64: 1, 128>}, {pipeline_mode = #tpu.pipeline_mode<synchronous>, transform_indices = @transform_3, window_bounds = array<i64: 128, 64>}, {pipeline_mode = #tpu.pipeline_mode<synchronous>, transform_indices = @transform_4, window_bounds = array<i64: 1, 64>}, {pipeline_mode = #tpu.pipeline_mode<synchronous>, transform_indices = @transform_5, window_bounds = array<i64: 64, 64>}, {pipeline_mode = #tpu.pipeline_mode<synchronous>, transform_indices = @transform_6, window_bounds = array<i64: 1, 64>}, {pipeline_mode = #tpu.pipeline_mode<synchronous>, transform_indices = @transform_7, window_bounds = array<i64: 64, 4>}, {pipeline_mode = #tpu.pipeline_mode<synchronous>, transform_indices = @transform_8, window_bounds = array<i64: 1, 4>}, {transform_indices = @transform_9, window_bounds = array<i64: 32, 4>}]} {
    %c0 = arith.constant 0 : index
    %c0_0 = arith.constant 0 : index
    %0 = vector.load %arg1[%c0, %c0_0] : memref<32x128xf32, #tpu.memory_space<vmem>>, vector<32x128xf32>
    %c0_1 = arith.constant 0 : index
    %c0_2 = arith.constant 0 : index
    %1 = vector.load %arg2[%c0_1, %c0_2] : memref<1x128xf32, #tpu.memory_space<vmem>>, vector<1x128xf32>
    %2 = vector.broadcast %1 : vector<1x128xf32> to vector<32x128xf32>
    %3 = arith.mulf %0, %2 : vector<32x128xf32>
    %c0_3 = arith.constant 0 : index
    %c0_4 = arith.constant 0 : index
    %4 = vector.load %arg3[%c0_3, %c0_4] : memref<1x128xf32, #tpu.memory_space<vmem>>, vector<1x128xf32>
    %5 = vector.broadcast %4 : vector<1x128xf32> to vector<32x128xf32>
    %6 = arith.addf %3, %5 : vector<32x128xf32>
    %7 = arith.truncf %6 : vector<32x128xf32> to vector<32x128xbf16>
    %c0_5 = arith.constant 0 : index
    %c0_6 = arith.constant 0 : index
    %8 = vector.load %arg4[%c0_5, %c0_6] : memref<128x64xbf16, #tpu.memory_space<vmem>>, vector<128x64xbf16>
    %cst = arith.constant dense<0.000000e+00> : vector<32x64xf32>
    %9 = tpu.matmul %7, %8, %cst {dimension_numbers = #tpu.dot_dimension_numbers<[1], [0], [0], [1], [0, 0, 1, 1], [], []>} : vector<32x128xbf16>, vector<128x64xbf16>, vector<32x64xf32> -> vector<32x64xf32>
    %c0_7 = arith.constant 0 : index
    %c0_8 = arith.constant 0 : index
    %10 = vector.load %arg5[%c0_7, %c0_8] : memref<1x64xf32, #tpu.memory_space<vmem>>, vector<1x64xf32>
    %11 = vector.broadcast %10 : vector<1x64xf32> to vector<32x64xf32>
    %12 = arith.addf %9, %11 : vector<32x64xf32>
    %cst_9 = arith.constant 0.000000e+00 : f32
    %13 = vector.broadcast %cst_9 : f32 to vector<32x64xf32>
    %14 = arith.maximumf %12, %13 : vector<32x64xf32>
    %15 = arith.truncf %14 : vector<32x64xf32> to vector<32x64xbf16>
    %c0_10 = arith.constant 0 : index
    %c0_11 = arith.constant 0 : index
    %16 = vector.load %arg6[%c0_10, %c0_11] : memref<64x64xbf16, #tpu.memory_space<vmem>>, vector<64x64xbf16>
    %cst_12 = arith.constant dense<0.000000e+00> : vector<32x64xf32>
    %17 = tpu.matmul %15, %16, %cst_12 {dimension_numbers = #tpu.dot_dimension_numbers<[1], [0], [0], [1], [0, 0, 1, 1], [], []>} : vector<32x64xbf16>, vector<64x64xbf16>, vector<32x64xf32> -> vector<32x64xf32>
    %c0_13 = arith.constant 0 : index
    %c0_14 = arith.constant 0 : index
    %18 = vector.load %arg7[%c0_13, %c0_14] : memref<1x64xf32, #tpu.memory_space<vmem>>, vector<1x64xf32>
    %19 = vector.broadcast %18 : vector<1x64xf32> to vector<32x64xf32>
    %20 = arith.addf %17, %19 : vector<32x64xf32>
    %cst_15 = arith.constant 0.000000e+00 : f32
    %21 = vector.broadcast %cst_15 : f32 to vector<32x64xf32>
    %22 = arith.maximumf %20, %21 : vector<32x64xf32>
    %23 = arith.truncf %22 : vector<32x64xf32> to vector<32x64xbf16>
    %c0_16 = arith.constant 0 : index
    %c0_17 = arith.constant 0 : index
    %24 = vector.load %arg8[%c0_16, %c0_17] : memref<64x4xbf16, #tpu.memory_space<vmem>>, vector<64x4xbf16>
    %cst_18 = arith.constant dense<0.000000e+00> : vector<32x4xf32>
    %25 = tpu.matmul %23, %24, %cst_18 {dimension_numbers = #tpu.dot_dimension_numbers<[1], [0], [0], [1], [0, 0, 1, 1], [], []>} : vector<32x64xbf16>, vector<64x4xbf16>, vector<32x4xf32> -> vector<32x4xf32>
    %c0_19 = arith.constant 0 : index
    %c0_20 = arith.constant 0 : index
    %26 = vector.load %arg9[%c0_19, %c0_20] : memref<1x4xf32, #tpu.memory_space<vmem>>, vector<1x4xf32>
    %27 = vector.broadcast %26 : vector<1x4xf32> to vector<32x4xf32>
    %28 = arith.addf %25, %27 : vector<32x4xf32>
    %c0_21 = arith.constant 0 : index
    %c0_22 = arith.constant 0 : index
    %29 = vector.load %arg10[%c0_21, %c0_22] : memref<32x4xf32, #tpu.memory_space<vmem>>, vector<32x4xf32>
    tpu.vector_store %arg10[%c0_21, %c0_22], %28 {strides = array<i32>} : memref<32x4xf32, #tpu.memory_space<vmem>>, vector<32x4xf32>,
    return
  }
  func.func @transform_0(%arg0: i32) -> (i32, i32) {
    %c0_i32 = arith.constant 0 : i32
    %c0_i32_0 = arith.constant 0 : i32
    return %arg0, %c0_i32 : i32, i32
  }
  func.func @transform_1(%arg0: i32) -> (i32, i32) {
    %c0_i32 = arith.constant 0 : i32
    %c0_i32_0 = arith.constant 0 : i32
    %c0_i32_1 = arith.constant 0 : i32
    return %c0_i32, %c0_i32_0 : i32, i32
  }
  func.func @transform_2(%arg0: i32) -> (i32, i32) {
    %c0_i32 = arith.constant 0 : i32
    %c0_i32_0 = arith.constant 0 : i32
    %c0_i32_1 = arith.constant 0 : i32
    return %c0_i32, %c0_i32_0 : i32, i32
  }
  func.func @transform_3(%arg0: i32) -> (i32, i32) {
    %c0_i32 = arith.constant 0 : i32
    %c0_i32_0 = arith.constant 0 : i32
    %c0_i32_1 = arith.constant 0 : i32
    return %c0_i32, %c0_i32_0 : i32, i32
  }
  func.func @transform_4(%arg0: i32) -> (i32, i32) {
    %c0_i32 = arith.constant 0 : i32
    %c0_i32_0 = arith.constant 0 : i32
    %c0_i32_1 = arith.constant 0 : i32
    return %c0_i32, %c0_i32_0 : i32, i32
  }
  func.func @transform_5(%arg0: i32) -> (i32, i32) {
    %c0_i32 = arith.constant 0 : i32
    %c0_i32_0 = arith.constant 0 : i32
    %c0_i32_1 = arith.constant 0 : i32
    return %c0_i32, %c0_i32_0 : i32, i32
  }
  func.func @transform_6(%arg0: i32) -> (i32, i32) {
    %c0_i32 = arith.constant 0 : i32
    %c0_i32_0 = arith.constant 0 : i32
    %c0_i32_1 = arith.constant 0 : i32
    return %c0_i32, %c0_i32_0 : i32, i32
  }
  func.func @transform_7(%arg0: i32) -> (i32, i32) {
    %c0_i32 = arith.constant 0 : i32
    %c0_i32_0 = arith.constant 0 : i32
    %c0_i32_1 = arith.constant 0 : i32
    return %c0_i32, %c0_i32_0 : i32, i32
  }
  func.func @transform_8(%arg0: i32) -> (i32, i32) {
    %c0_i32 = arith.constant 0 : i32
    %c0_i32_0 = arith.constant 0 : i32
    %c0_i32_1 = arith.constant 0 : i32
    return %c0_i32, %c0_i32_0 : i32, i32
  }
  func.func @transform_9(%arg0: i32) -> (i32, i32) {
    %c0_i32 = arith.constant 0 : i32
    %c0_i32_0 = arith.constant 0 : i32
    return %arg0, %c0_i32 : i32, i32
  }
}

</mosaic_0001>

<llo_original>
// kernel: gravnet_with_noise_filter_forward.31
$region0: #{gravnet_with_noise_filter_forward.31}
  #allocation0 [shape = 'u32[]', space=smem, size = 0x4, offset = 0x4, fixed_abs, tag = 'smem constant byte address 0x4 - core index']
  #allocation1 [shape = 'u32[72,128]{1,0:T(1,128)}', space=vmem, size = 0x9000, scoped, tag = 'internal scratch']
  %s0 = inlined_call_operand.vmem [shape: f32[64,5], index: 0, kind: input, shape index: {}]
  %s1 = inlined_call_operand.vmem [shape: f32[1,5], index: 1, kind: input, shape index: {}]
  %s2 = inlined_call_operand.vmem [shape: f32[1,5], index: 2, kind: input, shape index: {}]
  %s3 = inlined_call_operand.vmem [shape: f32[5,64], index: 3, kind: input, shape index: {}]
  %s4 = inlined_call_operand.vmem [shape: f32[1,64], index: 4, kind: input, shape index: {}]
  %s5 = inlined_call_operand.vmem [shape: f32[64,32], index: 5, kind: input, shape index: {}]
  %s6 = inlined_call_operand.vmem [shape: f32[1,32], index: 6, kind: input, shape index: {}]
  %s7 = inlined_call_operand.vmem [shape: f32[32,16], index: 7, kind: input, shape index: {}]
  %s8 = inlined_call_operand.vmem [shape: f32[1,16], index: 8, kind: input, shape index: {}]
  %s9 = inlined_call_operand.vmem [shape: f32[16,2], index: 9, kind: input, shape index: {}]
  %s10 = inlined_call_operand.vmem [shape: f32[1,2], index: 10, kind: input, shape index: {}]
  %s11 = inlined_call_operand.vmem [shape: f32[64,2], index: 11, kind: output, shape index: {}]
  %s12 = sld [smem:[#allocation0]]
  $region77: #{gravnet_with_noise_filter_forward.31} parent=0
    _
  %s14 = ssub.s32 1, %s12
  %s15 = scalar_select 0, %s14, %s12
  loop: start=0, step=1, limit=4
  $region2: #{gravnet_with_noise_filter_forward.31} parent=0 // loop_pre_header
    _
  $region3: #{gravnet_with_noise_filter_forward.31} parent=0 // loop_header
    %s17 = sphi 0, %s21
    %p18 = scmp.ge.s32.totalorder %s17, 4
    %s27 = sphi 0, %s29
    %s30 = sphi 0, %s27
    %s31 = sphi 0, %s30
    %s47 = sphi 0, %s31
    %s51 = sphi 0, %s51
    %s53 = sphi 0, %s51
    %s54 = sphi 0, %s53
    %s68 = sphi 0, %s54
    %s72 = sphi 0, %s72
    %s74 = sphi 0, %s72
    %s75 = sphi 0, %s74
    %s89 = sphi 0, %s75
    %s93 = sphi 0, %s93
    %s95 = sphi 0, %s93
    %s96 = sphi 0, %s95
    %s110 = sphi 0, %s96
    %s114 = sphi 0, %s114
    %s116 = sphi 0, %s114
    %s117 = sphi 0, %s116
    %s131 = sphi 0, %s117
    %s135 = sphi 0, %s135
    %s137 = sphi 0, %s135
    %s138 = sphi 0, %s137
    %s152 = sphi 0, %s138
    %s156 = sphi 0, %s156
    %s158 = sphi 0, %s156
    %s159 = sphi 0, %s158
    %s173 = sphi 0, %s159
    %s177 = sphi 0, %s177
    %s179 = sphi 0, %s177
    %s180 = sphi 0, %s179
    %s194 = sphi 0, %s180
    %s198 = sphi 0, %s198
    %s200 = sphi 0, %s198
    %s201 = sphi 0, %s200
    %s215 = sphi 0, %s201
    %s219 = sphi 0, %s219
    %s221 = sphi 0, %s219
    %s222 = sphi 0, %s221
    %s236 = sphi 0, %s222
    %s240 = sphi 0, %s240
    %s242 = sphi 0, %s240
    %s243 = sphi 0, %s242
    %s257 = sphi 0, %s243
    %s263 = sphi 0, %s265
    %s266 = sphi 0, %s263
    %s267 = sphi 0, %s266
    %s283 = sphi 0, %s267
  $region4: #{gravnet_with_noise_filter_forward.31} parent=0 // loop_header_branch
    %20 = sbr.rel (%p18) target = $region8
  $region5: #{gravnet_with_noise_filter_forward.31} parent=0 // loop_body
    %s22 = ssub.s32 %s17, 1
    %s23 = ssub.s32 %s17, 2
    %s24 = sadd.s32 %s17, 1
    %s25 = ssub.s32 %s17, %s24
    %p26 = scmp.eq.s32.totalorder %s25, 0
    %s28 = sadd.s32 %s27, 1
    %s29 = scalar_select %p26, %s27, %s28
    %p32 = pneg %p26
    %p33 = scmp.eq.s32.totalorder %s17, 1
    %p34 = por %p32, %p33
    %p35 = scmp.ne.s32.totalorder %s27, %s30
    %p36 = scmp.eq.s32.totalorder %s17, 0
    %p37 = por %p35, %p36
    %p38 = scmp.ne.s32.totalorder %s27, %s30
    %p39 = scmp.eq.s32.totalorder %s22, 1
    %p40 = por %p38, %p39
    %p41 = scmp.ne.s32.totalorder %s30, %s31
    %p42 = scmp.eq.s32.totalorder %s22, 0
    %p43 = por %p41, %p42
    %p44 = scmp.ne.s32.totalorder %s30, %s31
    %p45 = scmp.eq.s32.totalorder %s23, 1
    %p46 = por %p44, %p45
    %p48 = scmp.ne.s32.totalorder %s31, %s47
    %p49 = scmp.eq.s32.totalorder %s23, 0
    %p50 = por %p48, %p49
    %s52 = sadd.s32 %s51, 1
    %p55 = scmp.eq.s32.totalorder %s17, 1
    %p56 = scmp.ne.s32.totalorder %s51, %s53
    %p57 = scmp.eq.s32.totalorder %s17, 0
    %p58 = por %p56, %p57
    %p59 = scmp.ne.s32.totalorder %s51, %s53
    %p60 = scmp.eq.s32.totalorder %s22, 1
    %p61 = por %p59, %p60
    %p62 = scmp.ne.s32.totalorder %s53, %s54
    %p63 = scmp.eq.s32.totalorder %s22, 0
    %p64 = por %p62, %p63
    %p65 = scmp.ne.s32.totalorder %s53, %s54
    %p66 = scmp.eq.s32.totalorder %s23, 1
    %p67 = por %p65, %p66
    %p69 = scmp.ne.s32.totalorder %s54, %s68
    %p70 = scmp.eq.s32.totalorder %s23, 0
    %p71 = por %p69, %p70
    %s73 = sadd.s32 %s72, 1
    %p76 = scmp.eq.s32.totalorder %s17, 1
    %p77 = scmp.ne.s32.totalorder %s72, %s74
    %p78 = scmp.eq.s32.totalorder %s17, 0
    %p79 = por %p77, %p78
    %p80 = scmp.ne.s32.totalorder %s72, %s74
    %p81 = scmp.eq.s32.totalorder %s22, 1
    %p82 = por %p80, %p81
    %p83 = scmp.ne.s32.totalorder %s74, %s75
    %p84 = scmp.eq.s32.totalorder %s22, 0
    %p85 = por %p83, %p84
    %p86 = scmp.ne.s32.totalorder %s74, %s75
    %p87 = scmp.eq.s32.totalorder %s23, 1
    %p88 = por %p86, %p87
    %p90 = scmp.ne.s32.totalorder %s75, %s89
    %p91 = scmp.eq.s32.totalorder %s23, 0
    %p92 = por %p90, %p91
    %s94 = sadd.s32 %s93, 1
    %p97 = scmp.eq.s32.totalorder %s17, 1
    %p98 = scmp.ne.s32.totalorder %s93, %s95
    %p99 = scmp.eq.s32.totalorder %s17, 0
    %p100 = por %p98, %p99
    %p101 = scmp.ne.s32.totalorder %s93, %s95
    %p102 = scmp.eq.s32.totalorder %s22, 1
    %p103 = por %p101, %p102
    %p104 = scmp.ne.s32.totalorder %s95, %s96
    %p105 = scmp.eq.s32.totalorder %s22, 0
    %p106 = por %p104, %p105
    %p107 = scmp.ne.s32.totalorder %s95, %s96
    %p108 = scmp.eq.s32.totalorder %s23, 1
    %p109 = por %p107, %p108
    %p111 = scmp.ne.s32.totalorder %s96, %s110
    %p112 = scmp.eq.s32.totalorder %s23, 0
    %p113 = por %p111, %p112
    %s115 = sadd.s32 %s114, 1
    %p118 = scmp.eq.s32.totalorder %s17, 1
    %p119 = scmp.ne.s32.totalorder %s114, %s116
    %p120 = scmp.eq.s32.totalorder %s17, 0
    %p121 = por %p119, %p120
    %p122 = scmp.ne.s32.totalorder %s114, %s116
    %p123 = scmp.eq.s32.totalorder %s22, 1
    %p124 = por %p122, %p123
    %p125 = scmp.ne.s32.totalorder %s116, %s117
    %p126 = scmp.eq.s32.totalorder %s22, 0
    %p127 = por %p125, %p126
    %p128 = scmp.ne.s32.totalorder %s116, %s117
    %p129 = scmp.eq.s32.totalorder %s23, 1
    %p130 = por %p128, %p129
    %p132 = scmp.ne.s32.totalorder %s117, %s131
    %p133 = scmp.eq.s32.totalorder %s23, 0
    %p134 = por %p132, %p133
    %s136 = sadd.s32 %s135, 1
    %p139 = scmp.eq.s32.totalorder %s17, 1
    %p140 = scmp.ne.s32.totalorder %s135, %s137
    %p141 = scmp.eq.s32.totalorder %s17, 0
    %p142 = por %p140, %p141
    %p143 = scmp.ne.s32.totalorder %s135, %s137
    %p144 = scmp.eq.s32.totalorder %s22, 1
    %p145 = por %p143, %p144
    %p146 = scmp.ne.s32.totalorder %s137, %s138
    %p147 = scmp.eq.s32.totalorder %s22, 0
    %p148 = por %p146, %p147
    %p149 = scmp.ne.s32.totalorder %s137, %s138
    %p150 = scmp.eq.s32.totalorder %s23, 1
    %p151 = por %p149, %p150
    %p153 = scmp.ne.s32.totalorder %s138, %s152
    %p154 = scmp.eq.s32.totalorder %s23, 0
    %p155 = por %p153, %p154
    %s157 = sadd.s32 %s156, 1
    %p160 = scmp.eq.s32.totalorder %s17, 1
    %p161 = scmp.ne.s32.totalorder %s156, %s158
    %p162 = scmp.eq.s32.totalorder %s17, 0
    %p163 = por %p161, %p162
    %p164 = scmp.ne.s32.totalorder %s156, %s158
    %p165 = scmp.eq.s32.totalorder %s22, 1
    %p166 = por %p164, %p165
    %p167 = scmp.ne.s32.totalorder %s158, %s159
    %p168 = scmp.eq.s32.totalorder %s22, 0
    %p169 = por %p167, %p168
    %p170 = scmp.ne.s32.totalorder %s158, %s159
    %p171 = scmp.eq.s32.totalorder %s23, 1
    %p172 = por %p170, %p171
    %p174 = scmp.ne.s32.totalorder %s159, %s173
    %p175 = scmp.eq.s32.totalorder %s23, 0
    %p176 = por %p174, %p175
    %s178 = sadd.s32 %s177, 1
    %p181 = scmp.eq.s32.totalorder %s17, 1
    %p182 = scmp.ne.s32.totalorder %s177, %s179
    %p183 = scmp.eq.s32.totalorder %s17, 0
    %p184 = por %p182, %p183
    %p185 = scmp.ne.s32.totalorder %s177, %s179
    %p186 = scmp.eq.s32.totalorder %s22, 1
    %p187 = por %p185, %p186
    %p188 = scmp.ne.s32.totalorder %s179, %s180
    %p189 = scmp.eq.s32.totalorder %s22, 0
    %p190 = por %p188, %p189
    %p191 = scmp.ne.s32.totalorder %s179, %s180
    %p192 = scmp.eq.s32.totalorder %s23, 1
    %p193 = por %p191, %p192
    %p195 = scmp.ne.s32.totalorder %s180, %s194
    %p196 = scmp.eq.s32.totalorder %s23, 0
    %p197 = por %p195, %p196
    %s199 = sadd.s32 %s198, 1
    %p202 = scmp.eq.s32.totalorder %s17, 1
    %p203 = scmp.ne.s32.totalorder %s198, %s200
    %p204 = scmp.eq.s32.totalorder %s17, 0
    %p205 = por %p203, %p204
    %p206 = scmp.ne.s32.totalorder %s198, %s200
    %p207 = scmp.eq.s32.totalorder %s22, 1
    %p208 = por %p206, %p207
    %p209 = scmp.ne.s32.totalorder %s200, %s201
    %p210 = scmp.eq.s32.totalorder %s22, 0
    %p211 = por %p209, %p210
    %p212 = scmp.ne.s32.totalorder %s200, %s201
    %p213 = scmp.eq.s32.totalorder %s23, 1
    %p214 = por %p212, %p213
    %p216 = scmp.ne.s32.totalorder %s201, %s215
    %p217 = scmp.eq.s32.totalorder %s23, 0
    %p218 = por %p216, %p217
    %s220 = sadd.s32 %s219, 1
    %p223 = scmp.eq.s32.totalorder %s17, 1
    %p224 = scmp.ne.s32.totalorder %s219, %s221
    %p225 = scmp.eq.s32.totalorder %s17, 0
    %p226 = por %p224, %p225
    %p227 = scmp.ne.s32.totalorder %s219, %s221
    %p228 = scmp.eq.s32.totalorder %s22, 1
    %p229 = por %p227, %p228
    %p230 = scmp.ne.s32.totalorder %s221, %s222
    %p231 = scmp.eq.s32.totalorder %s22, 0
    %p232 = por %p230, %p231
    %p233 = scmp.ne.s32.totalorder %s221, %s222
    %p234 = scmp.eq.s32.totalorder %s23, 1
    %p235 = por %p233, %p234
    %p237 = scmp.ne.s32.totalorder %s222, %s236
    %p238 = scmp.eq.s32.totalorder %s23, 0
    %p239 = por %p237, %p238
    %s241 = sadd.s32 %s240, 1
    %p244 = scmp.eq.s32.totalorder %s17, 1
    %p245 = scmp.ne.s32.totalorder %s240, %s242
    %p246 = scmp.eq.s32.totalorder %s17, 0
    %p247 = por %p245, %p246
    %p248 = scmp.ne.s32.totalorder %s240, %s242
    %p249 = scmp.eq.s32.totalorder %s22, 1
    %p250 = por %p248, %p249
    %p251 = scmp.ne.s32.totalorder %s242, %s243
    %p252 = scmp.eq.s32.totalorder %s22, 0
    %p253 = por %p251, %p252
    %p254 = scmp.ne.s32.totalorder %s242, %s243
    %p255 = scmp.eq.s32.totalorder %s23, 1
    %p256 = por %p254, %p255
    %p258 = scmp.ne.s32.totalorder %s243, %s257
    %p259 = scmp.eq.s32.totalorder %s23, 0
    %p260 = por %p258, %p259
    %s261 = ssub.s32 %s17, %s24
    %p262 = scmp.eq.s32.totalorder %s261, 0
    %s264 = sadd.s32 %s263, 1
    %s265 = scalar_select %p262, %s263, %s264
    %p268 = pneg %p262
    %p269 = scmp.eq.s32.totalorder %s17, 1
    %p270 = por %p268, %p269
    %p271 = scmp.ne.s32.totalorder %s263, %s266
    %p272 = scmp.eq.s32.totalorder %s17, 0
    %p273 = por %p271, %p272
    %p274 = scmp.ne.s32.totalorder %s263, %s266
    %p275 = scmp.eq.s32.totalorder %s22, 1
    %p276 = por %p274, %p275
    %p277 = scmp.ne.s32.totalorder %s266, %s267
    %p278 = scmp.eq.s32.totalorder %s22, 0
    %p279 = por %p277, %p278
    %p280 = scmp.ne.s32.totalorder %s266, %s267
    %p281 = scmp.eq.s32.totalorder %s23, 1
    %p282 = por %p280, %p281
    %p284 = scmp.ne.s32.totalorder %s267, %s283
    %p285 = scmp.eq.s32.totalorder %s23, 0
    %p286 = por %p284, %p285
    %p287 = scmp.le.s32.totalorder 1, %s17
    %p288 = scmp.lt.s32.totalorder %s17, 3
    %p289 = pnand %p287, %p288
    %p290 = pneg %p289
    // Predicated region
    $region9: #{gravnet_with_noise_filter_forward.31} parent=5 // pred_check
      _
    $region10: #{gravnet_with_noise_filter_forward.31} parent=5 // pred_check_branch
      %292 = sbr.rel (%p289) target = $region12
    $region11: #{gravnet_with_noise_filter_forward.31} parent=5 // pred_region
      %s293 = ssub.s32 %s17, 1
      // Predicated region
      $region13: #{gravnet_with_noise_filter_forward.31} parent=11 // pred_check
        %p294 = pneg %p64
      $region14: #{gravnet_with_noise_filter_forward.31} parent=11 // pred_check_branch
        %296 = sbr.rel (%p294) target = $region16
      $region15: #{gravnet_with_noise_filter_forward.31} parent=11 // pred_region
        _
      $region16: #{gravnet_with_noise_filter_forward.31} parent=11 // pred_fallthru
        _
      // Predicated region
      $region17: #{gravnet_with_noise_filter_forward.31} parent=11 // pred_check
        %p297 = pneg %p85
      $region18: #{gravnet_with_noise_filter_forward.31} parent=11 // pred_check_branch
        %299 = sbr.rel (%p297) target = $region20
      $region19: #{gravnet_with_noise_filter_forward.31} parent=11 // pred_region
        _
      $region20: #{gravnet_with_noise_filter_forward.31} parent=11 // pred_fallthru
        _
      // Predicated region
      $region21: #{gravnet_with_noise_filter_forward.31} parent=11 // pred_check
        %p300 = pneg %p106
      $region22: #{gravnet_with_noise_filter_forward.31} parent=11 // pred_check_branch
        %302 = sbr.rel (%p300) target = $region24
      $region23: #{gravnet_with_noise_filter_forward.31} parent=11 // pred_region
        _
      $region24: #{gravnet_with_noise_filter_forward.31} parent=11 // pred_fallthru
        _
      // Predicated region
      $region25: #{gravnet_with_noise_filter_forward.31} parent=11 // pred_check
        %p303 = pneg %p127
      $region26: #{gravnet_with_noise_filter_forward.31} parent=11 // pred_check_branch
        %305 = sbr.rel (%p303) target = $region28
      $region27: #{gravnet_with_noise_filter_forward.31} parent=11 // pred_region
        _
      $region28: #{gravnet_with_noise_filter_forward.31} parent=11 // pred_fallthru
        _
      // Predicated region
      $region29: #{gravnet_with_noise_filter_forward.31} parent=11 // pred_check
        %p306 = pneg %p148
      $region30: #{gravnet_with_noise_filter_forward.31} parent=11 // pred_check_branch
        %308 = sbr.rel (%p306) target = $region32
      $region31: #{gravnet_with_noise_filter_forward.31} parent=11 // pred_region
        _
      $region32: #{gravnet_with_noise_filter_forward.31} parent=11 // pred_fallthru
        _
      // Predicated region
      $region33: #{gravnet_with_noise_filter_forward.31} parent=11 // pred_check
        %p309 = pneg %p169
      $region34: #{gravnet_with_noise_filter_forward.31} parent=11 // pred_check_branch
        %311 = sbr.rel (%p309) target = $region36
      $region35: #{gravnet_with_noise_filter_forward.31} parent=11 // pred_region
        _
      $region36: #{gravnet_with_noise_filter_forward.31} parent=11 // pred_fallthru
        _
      // Predicated region
      $region37: #{gravnet_with_noise_filter_forward.31} parent=11 // pred_check
        %p312 = pneg %p190
      $region38: #{gravnet_with_noise_filter_forward.31} parent=11 // pred_check_branch
        %314 = sbr.rel (%p312) target = $region40
      $region39: #{gravnet_with_noise_filter_forward.31} parent=11 // pred_region
        _
      $region40: #{gravnet_with_noise_filter_forward.31} parent=11 // pred_fallthru
        _
      // Predicated region
      $region41: #{gravnet_with_noise_filter_forward.31} parent=11 // pred_check
        %p315 = pneg %p211
      $region42: #{gravnet_with_noise_filter_forward.31} parent=11 // pred_check_branch
        %317 = sbr.rel (%p315) target = $region44
      $region43: #{gravnet_with_noise_filter_forward.31} parent=11 // pred_region
        _
      $region44: #{gravnet_with_noise_filter_forward.31} parent=11 // pred_fallthru
        _
      // Predicated region
      $region45: #{gravnet_with_noise_filter_forward.31} parent=11 // pred_check
        %p318 = pneg %p232
      $region46: #{gravnet_with_noise_filter_forward.31} parent=11 // pred_check_branch
        %320 = sbr.rel (%p318) target = $region48
      $region47: #{gravnet_with_noise_filter_forward.31} parent=11 // pred_region
        _
      $region48: #{gravnet_with_noise_filter_forward.31} parent=11 // pred_fallthru
        _
      // Predicated region
      $region49: #{gravnet_with_noise_filter_forward.31} parent=11 // pred_check
        %p321 = pneg %p253
      $region50: #{gravnet_with_noise_filter_forward.31} parent=11 // pred_check_branch
        %323 = sbr.rel (%p321) target = $region52
      $region51: #{gravnet_with_noise_filter_forward.31} parent=11 // pred_region
        _
      $region52: #{gravnet_with_noise_filter_forward.31} parent=11 // pred_fallthru
        _
    $region12: #{gravnet_with_noise_filter_forward.31} parent=5 // pred_fallthru
      _
    %p324 = scmp.lt.s32.totalorder %s17, 2
    // Predicated region
    $region53: #{gravnet_with_noise_filter_forward.31} parent=5 // pred_check
      %p325 = pneg %p324
    $region54: #{gravnet_with_noise_filter_forward.31} parent=5 // pred_check_branch
      %327 = sbr.rel (%p325) target = $region56
    $region55: #{gravnet_with_noise_filter_forward.31} parent=5 // pred_region
      // Predicated region
      $region57: #{gravnet_with_noise_filter_forward.31} parent=55 // pred_check
        %p328 = pneg %p37
      $region58: #{gravnet_with_noise_filter_forward.31} parent=55 // pred_check_branch
        %330 = sbr.rel (%p328) target = $region60
      $region59: #{gravnet_with_noise_filter_forward.31} parent=55 // pred_region
        %s331 = smul.u32 4, %s17
        %p332 = scmp.lt.s32.totalorder %s331, 7
        %s333 = scalar_select %p332, %s331, 7
        %s334 = smul.addr %s333, 8
        %s335 = scalar_lea.vmem %s0, %s334
        %s336 = smul.u32 4, %s17
      $region60: #{gravnet_with_noise_filter_forward.31} parent=55 // pred_fallthru
        _
    $region56: #{gravnet_with_noise_filter_forward.31} parent=5 // pred_fallthru
      _
    %p337 = scmp.le.s32.totalorder 1, %s17
    %p338 = scmp.lt.s32.totalorder %s17, 3
    %p339 = pnand %p337, %p338
    %p340 = pneg %p339
    // Predicated region
    $region61: #{gravnet_with_noise_filter_forward.31} parent=5 // pred_check
      _
    $region62: #{gravnet_with_noise_filter_forward.31} parent=5 // pred_check_branch
      %342 = sbr.rel (%p339) target = $region64
    $region63: #{gravnet_with_noise_filter_forward.31} parent=5 // pred_region
      %s343 = ssub.s32 %s17, 1
      %s344 = smul.u32 4, %s22
      %p345 = scmp.lt.s32.totalorder %s344, 7
      %s346 = scalar_select %p345, %s344, 7
      %s347 = smul.addr %s346, 8
      %s348 = scalar_lea.vmem %s0, %s347
      %p349 = pneg %p43
      %p350 = pneg %p40
      %p351 = pneg %p64
      %p352 = pneg %p61
      %p353 = pneg %p85
      %p354 = pneg %p82
      %p355 = pneg %p106
      %p356 = pneg %p103
      %p357 = pneg %p127
      %p358 = pneg %p124
      %p359 = pneg %p148
      %p360 = pneg %p145
      %p361 = pneg %p169
      %p362 = pneg %p166
      %p363 = pneg %p190
      %p364 = pneg %p187
      %p365 = pneg %p211
      %p366 = pneg %p208
      %p367 = pneg %p232
      %p368 = pneg %p229
      %p369 = pneg %p253
      %p370 = pneg %p250
      %p371 = pneg %p279
      %p372 = pneg %p276
      %s373 = smul.u32 4, %s22
      %p374 = scmp.lt.s32.totalorder %s373, 7
      %s375 = scalar_select %p374, %s373, 7
      %s376 = smul.addr %s375, 8
      %s377 = scalar_lea.vmem %s11, %s376
      %s378 = smul.u32 4, %s22
      %p379 = scmp.lt.s32.totalorder %s378, 7
      %s380 = scalar_select %p379, %s378, 7
      %s381 = smul.addr %s380, 8
      %s382 = scalar_lea.vmem %s0, %s381
      %s383 = smul.u32 4, %s22
      %s384 = smul.u32 4, %s22
      %p385 = scmp.lt.s32.totalorder %s384, 7
      %s386 = scalar_select %p385, %s384, 7
      %s387 = smul.addr %s386, 8
      %s388 = scalar_lea.vmem %s11, %s387
      %s389 = smul.u32 4, %s22
      %v390 = vld [vmem:[%s382] sm:$0xff]
      %v391 = vld [vmem:[%s382 + $0x8] sm:$0xff]
      %v392 = vld [vmem:[%s382 + $0x10] sm:$0xff]
      %v393 = vld [vmem:[%s382 + $0x18] sm:$0xff]
      %v394 = vld [vmem:[%s1] sm:$0x1]
      %v396 = vperm.slane %v394, 0
      %v398 = vmul.f32 %v390, %v396
      %v399 = vmul.f32 %v391, %v396
      %v400 = vmul.f32 %v392, %v396
      %v401 = vmul.f32 %v393, %v396
      %v402 = vld [vmem:[%s2] sm:$0x1]
      %v404 = vperm.slane %v402, 0
      %v406 = vadd.f32 %v398, %v404
      %v407 = vadd.f32 %v399, %v404
      %v408 = vadd.f32 %v400, %v404
      %v409 = vadd.f32 %v401, %v404
      %v410 = vld [vmem:[%s3] sm:$0x1f]
      %v411 = vld [vmem:[%s4] sm:$0x1]
      %v413 = vperm.slane %v411, 0
      %vm415 = vcmask 39936
      %v417 = vsel %vm415, %v406, 0
      %v420 = vsel %vm415, %v407, 0
      %v423 = vsel %vm415, %v408, 0
      %v426 = vsel %vm415, %v409, 0
      %vm428 = vcmask 1044480
      %v430 = vsel %vm428, %v410, 0
      %432 = vmatpush.msra.mxu0 0.0
      %433 = vmatpush.msra.mxu0 0.0
      %434 = vmatpush.msra.mxu0 0.0
      %435 = vmatpush.msra.mxu0 0.0
      %436 = vmatpush.msra.mxu0 0.0
      %437 = vmatpush.msra.mxu0 0.0
      %438 = vmatpush.msra.mxu0 0.0
      %439 = vmatpush.msra.mxu0 0.0
      %440 = vmatpush.msra.mxu0 0.0
      %441 = vmatpush.msra.mxu0 0.0
      %442 = vmatpush.msra.mxu0 0.0
      %443 = vmatpush.msra.mxu0 0.0
      %444 = vmatpush.msra.mxu0 0.0
      %445 = vmatpush.msra.mxu0 0.0
      %446 = vmatpush.msra.mxu0 0.0
      %447 = vmatpush.msra.mxu0 %v430
      %448 = vmatmul.f32.gmra.mxu0 %v417
      %v449 = vpop.f32.mrf.mxu0
      %v450 = vadd.f32 %v413, %v449
      %451 = vmatmul.f32.gmra.mxu0 %v420
      %v452 = vpop.f32.mrf.mxu0
      %v453 = vadd.f32 %v413, %v452
      %454 = vmatmul.f32.gmra.mxu0 %v423
      %v455 = vpop.f32.mrf.mxu0
      %v456 = vadd.f32 %v413, %v455
      %457 = vmatmul.f32.gmra.mxu0 %v426
      %v458 = vpop.f32.mrf.mxu0
      %v459 = vadd.f32 %v413, %v458
      %460 = vdwg.mxu0
      %v461 = vmax.f32 %v450, 0.0
      %v462 = vmax.f32 %v453, 0.0
      %v463 = vmax.f32 %v456, 0.0
      %v464 = vmax.f32 %v459, 0.0
      %v465 = vld [vmem:[%s5] sm:$0xff]
      %v466 = vld [vmem:[%s5 + $0x8] sm:$0xff]
      %v467 = vld [vmem:[%s5 + $0x10] sm:$0xff]
      %v468 = vld [vmem:[%s5 + $0x18] sm:$0xff]
      %v469 = vld [vmem:[%s5 + $0x20] sm:$0xff]
      %v470 = vld [vmem:[%s5 + $0x28] sm:$0xff]
      %v471 = vld [vmem:[%s5 + $0x30] sm:$0xff]
      %v472 = vld [vmem:[%s5 + $0x38] sm:$0xff]
      %v473 = vld [vmem:[%s6] sm:$0x1]
      %v475 = vperm.slane %v473, 0
      %vm477 = vcmask 523264
      %v479 = vsel %vm477, %v461, 0
      %v482 = vsel %vm477, %v462, 0
      %v485 = vsel %vm477, %v463, 0
      %v488 = vsel %vm477, %v464, 0
      %490 = vmatpush.msra.mxu0 0.0
      %491 = vmatpush.msra.mxu0 0.0
      %492 = vmatpush.msra.mxu0 0.0
      %493 = vmatpush.msra.mxu0 0.0
      %494 = vmatpush.msra.mxu0 0.0
      %495 = vmatpush.msra.mxu0 0.0
      %496 = vmatpush.msra.mxu0 0.0
      %497 = vmatpush.msra.mxu0 0.0
      %498 = vmatpush.msra.mxu0 %v472
      %499 = vmatpush.msra.mxu0 %v471
      %500 = vmatpush.msra.mxu0 %v470
      %501 = vmatpush.msra.mxu0 %v469
      %502 = vmatpush.msra.mxu0 %v468
      %503 = vmatpush.msra.mxu0 %v467
      %504 = vmatpush.msra.mxu0 %v466
      %505 = vmatpush.msra.mxu0 %v465
      %506 = vmatmul.f32.gmra.mxu0 %v479
      %v507 = vpop.f32.mrf.mxu0
      %v508 = vadd.f32 %v475, %v507
      %509 = vmatmul.f32.gmra.mxu0 %v482
      %v510 = vpop.f32.mrf.mxu0
      %v511 = vadd.f32 %v475, %v510
      %512 = vmatmul.f32.gmra.mxu0 %v485
      %v513 = vpop.f32.mrf.mxu0
      %v514 = vadd.f32 %v475, %v513
      %515 = vmatmul.f32.gmra.mxu0 %v488
      %v516 = vpop.f32.mrf.mxu0
      %v517 = vadd.f32 %v475, %v516
      %518 = vdwg.mxu0
      %v519 = vmax.f32 %v508, 0.0
      %v520 = vmax.f32 %v511, 0.0
      %v521 = vmax.f32 %v514, 0.0
      %v522 = vmax.f32 %v517, 0.0
      %v523 = vld [vmem:[%s7] sm:$0xff]
      %v524 = vld [vmem:[%s7 + $0x8] sm:$0xff]
      %v525 = vld [vmem:[%s7 + $0x10] sm:$0xff]
      %v526 = vld [vmem:[%s7 + $0x18] sm:$0xff]
      %v527 = vld [vmem:[%s8] sm:$0x1]
      %v529 = vperm.slane %v527, 0
      %vm531 = vcmask 261120
      %v533 = vsel %vm531, %v519, 0
      %v536 = vsel %vm531, %v520, 0
      %v539 = vsel %vm531, %v521, 0
      %v542 = vsel %vm531, %v522, 0
      %544 = vmatpush.msra.mxu0 0.0
      %545 = vmatpush.msra.mxu0 0.0
      %546 = vmatpush.msra.mxu0 0.0
      %547 = vmatpush.msra.mxu0 0.0
      %548 = vmatpush.msra.mxu0 0.0
      %549 = vmatpush.msra.mxu0 0.0
      %550 = vmatpush.msra.mxu0 0.0
      %551 = vmatpush.msra.mxu0 0.0
      %552 = vmatpush.msra.mxu0 0.0
      %553 = vmatpush.msra.mxu0 0.0
      %554 = vmatpush.msra.mxu0 0.0
      %555 = vmatpush.msra.mxu0 0.0
      %556 = vmatpush.msra.mxu0 %v526
      %557 = vmatpush.msra.mxu0 %v525
      %558 = vmatpush.msra.mxu0 %v524
      %559 = vmatpush.msra.mxu0 %v523
      %560 = vmatmul.f32.gmra.mxu0 %v533
      %v561 = vpop.f32.mrf.mxu0
      %v562 = vadd.f32 %v529, %v561
      %563 = vmatmul.f32.gmra.mxu0 %v536
      %v564 = vpop.f32.mrf.mxu0
      %v565 = vadd.f32 %v529, %v564
      %566 = vmatmul.f32.gmra.mxu0 %v539
      %v567 = vpop.f32.mrf.mxu0
      %v568 = vadd.f32 %v529, %v567
      %569 = vmatmul.f32.gmra.mxu0 %v542
      %v570 = vpop.f32.mrf.mxu0
      %v571 = vadd.f32 %v529, %v570
      %572 = vdwg.mxu0
      %v573 = vmax.f32 %v562, 0.0
      %v574 = vmax.f32 %v565, 0.0
      %v575 = vmax.f32 %v568, 0.0
      %v576 = vmax.f32 %v571, 0.0
      %v577 = vld [vmem:[%s9] sm:$0xff]
      %v578 = vld [vmem:[%s9 + $0x8] sm:$0xff]
      %v579 = vld [vmem:[%s10] sm:$0x1]
      %v581 = vperm.slane %v579, 0
      %vm583 = vcmask 130048
      %v585 = vsel %vm583, %v573, 0
      %v588 = vsel %vm583, %v574, 0
      %v591 = vsel %vm583, %v575, 0
      %v594 = vsel %vm583, %v576, 0
      %596 = vmatpush.msra.mxu0 0.0
      %597 = vmatpush.msra.mxu0 0.0
      %598 = vmatpush.msra.mxu0 0.0
      %599 = vmatpush.msra.mxu0 0.0
      %600 = vmatpush.msra.mxu0 0.0
      %601 = vmatpush.msra.mxu0 0.0
      %602 = vmatpush.msra.mxu0 0.0
      %603 = vmatpush.msra.mxu0 0.0
      %604 = vmatpush.msra.mxu0 0.0
      %605 = vmatpush.msra.mxu0 0.0
      %606 = vmatpush.msra.mxu0 0.0
      %607 = vmatpush.msra.mxu0 0.0
      %608 = vmatpush.msra.mxu0 0.0
      %609 = vmatpush.msra.mxu0 0.0
      %610 = vmatpush.msra.mxu0 %v578
      %611 = vmatpush.msra.mxu0 %v577
      %612 = vmatmul.f32.gmra.mxu0 %v585
      %v613 = vpop.f32.mrf.mxu0
      %v614 = vadd.f32 %v581, %v613
      %615 = vmatmul.f32.gmra.mxu0 %v588
      %v616 = vpop.f32.mrf.mxu0
      %v617 = vadd.f32 %v581, %v616
      %618 = vmatmul.f32.gmra.mxu0 %v591
      %v619 = vpop.f32.mrf.mxu0
      %v620 = vadd.f32 %v581, %v619
      %621 = vmatmul.f32.gmra.mxu0 %v594
      %v622 = vpop.f32.mrf.mxu0
      %v623 = vadd.f32 %v581, %v622
      %624 = vdwg.mxu0
      %vm625 = vcmask 15360
      %v626 = vsel %vm625, %v614, -inf
      %627 = vmax.xlane.f32.xlu0 %v626
      %v628 = vpop.xlane.xlu0 %627
      %v629 = vsel %vm625, %v617, -inf
      %630 = vmax.xlane.f32.xlu0 %v629
      %v631 = vpop.xlane.xlu0 %630
      %v632 = vsel %vm625, %v620, -inf
      %633 = vmax.xlane.f32.xlu0 %v632
      %v634 = vpop.xlane.xlu0 %633
      %v635 = vsel %vm625, %v623, -inf
      %636 = vmax.xlane.f32.xlu0 %v635
      %v637 = vpop.xlane.xlu0 %636
      %v638 = vsub.f32 %v614, %v628
      %v639 = vsub.f32 %v617, %v631
      %v640 = vsub.f32 %v620, %v634
      %v641 = vsub.f32 %v623, %v637
      %v642 = vmul.f32 %v638, 1.442695
      %v643 = vpow.pop %v642
      %v644 = vmul.f32 %v639, 1.442695
      %v645 = vpow.pop %v644
      %v646 = vmul.f32 %v640, 1.442695
      %v647 = vpow.pop %v646
      %v648 = vmul.f32 %v641, 1.442695
      %v649 = vpow.pop %v648
      %v650 = vsel %vm625, %v643, 0.0
      %651 = vadd.xlane.f32.xlu0 %v650
      %v652 = vpop.xlane.xlu0 %651
      %v653 = vsel %vm625, %v645, 0.0
      %654 = vadd.xlane.f32.xlu0 %v653
      %v655 = vpop.xlane.xlu0 %654
      %v656 = vsel %vm625, %v647, 0.0
      %657 = vadd.xlane.f32.xlu0 %v656
      %v658 = vpop.xlane.xlu0 %657
      %v659 = vsel %vm625, %v649, 0.0
      %660 = vadd.xlane.f32.xlu0 %v659
      %v661 = vpop.xlane.xlu0 %660
      %v662 = vlog2.pop %v652
      %v663 = vmul.f32 %v662, 0.6931472
      %v664 = vlog2.pop %v655
      %v665 = vmul.f32 %v664, 0.6931472
      %v666 = vlog2.pop %v658
      %v667 = vmul.f32 %v666, 0.6931472
      %v668 = vlog2.pop %v661
      %v669 = vmul.f32 %v668, 0.6931472
      %v670 = vsub.f32 %v638, %v663
      %v671 = vsub.f32 %v639, %v665
      %v672 = vsub.f32 %v640, %v667
      %v673 = vsub.f32 %v641, %v669
      %674 = vst.msk [vmem:[%s388] sm:$0xff] %vm625, %v670
      %675 = vst.msk [vmem:[%s388 + $0x8] sm:$0xff] %vm625, %v671
      %676 = vst.msk [vmem:[%s388 + $0x10] sm:$0xff] %vm625, %v672
      %677 = vst.msk [vmem:[%s388 + $0x18] sm:$0xff] %vm625, %v673
      %s678 = smul.u32 4, %s22
      %p679 = scmp.lt.s32.totalorder %s678, 7
      %s680 = scalar_select %p679, %s678, 7
      %s681 = smul.addr %s680, 8
      %s682 = scalar_lea.vmem %s11, %s681
      // Predicated region
      $region65: #{gravnet_with_noise_filter_forward.31} parent=63 // pred_check
        %p683 = pneg %p276
      $region66: #{gravnet_with_noise_filter_forward.31} parent=63 // pred_check_branch
        %685 = sbr.rel (%p683) target = $region68
      $region67: #{gravnet_with_noise_filter_forward.31} parent=63 // pred_region
        %s686 = smul.u32 4, %s22
      $region68: #{gravnet_with_noise_filter_forward.31} parent=63 // pred_fallthru
        _
    $region64: #{gravnet_with_noise_filter_forward.31} parent=5 // pred_fallthru
      _
    %p687 = scmp.le.s32.totalorder 2, %s17
    // Predicated region
    $region69: #{gravnet_with_noise_filter_forward.31} parent=5 // pred_check
      %p688 = pneg %p687
    $region70: #{gravnet_with_noise_filter_forward.31} parent=5 // pred_check_branch
      %690 = sbr.rel (%p688) target = $region72
    $region71: #{gravnet_with_noise_filter_forward.31} parent=5 // pred_region
      %s691 = ssub.s32 %s17, 2
      // Predicated region
      $region73: #{gravnet_with_noise_filter_forward.31} parent=71 // pred_check
        %p692 = pneg %p282
      $region74: #{gravnet_with_noise_filter_forward.31} parent=71 // pred_check_branch
        %694 = sbr.rel (%p692) target = $region76
      $region75: #{gravnet_with_noise_filter_forward.31} parent=71 // pred_region
        %s695 = smul.u32 4, %s23
        %p696 = scmp.lt.s32.totalorder %s695, 7
        %s697 = scalar_select %p696, %s695, 7
        %s698 = smul.addr %s697, 8
        %s699 = scalar_lea.vmem %s11, %s698
      $region76: #{gravnet_with_noise_filter_forward.31} parent=71 // pred_fallthru
        _
    $region72: #{gravnet_with_noise_filter_forward.31} parent=5 // pred_fallthru
      _
  $region6: #{gravnet_with_noise_filter_forward.31} parent=0 // loop_footer
    %s21 = sadd.s32 1, %s17
  $region7: #{gravnet_with_noise_filter_forward.31} parent=0 // loop_footer_branch
    %16 = sbr.rel target = $region3
  $region8: #{gravnet_with_noise_filter_forward.31} parent=0 // loop_exit
    _

// kernel: gravnet_with_noise_filter_forward.32
$region0: #{gravnet_with_noise_filter_forward.32}
  #allocation0 [shape = 'u32[]', space=smem, size = 0x4, offset = 0x4, fixed_abs, tag = 'smem constant byte address 0x4 - core index']
  #allocation1 [shape = 'u32[72,128]{1,0:T(1,128)}', space=vmem, size = 0x9000, scoped, tag = 'internal scratch']
  %s0 = inlined_call_operand.vmem [shape: f32[64,5], index: 0, kind: input, shape index: {}]
  %s1 = inlined_call_operand.vmem [shape: s32[64,1], index: 1, kind: input, shape index: {}]
  %s2 = inlined_call_operand.vmem [shape: f32[2,64], index: 2, kind: input, shape index: {}]
  %s3 = inlined_call_operand.vmem [shape: bf16[5,64], index: 3, kind: input, shape index: {}]
  %s4 = inlined_call_operand.vmem [shape: f32[1,64], index: 4, kind: input, shape index: {}]
  %s5 = inlined_call_operand.vmem [shape: f32[64,64], index: 5, kind: output, shape index: {}]
  %s6 = sld [smem:[#allocation0]]
  $region53: #{gravnet_with_noise_filter_forward.32} parent=0
    _
  %s8 = ssub.s32 1, %s6
  %s9 = scalar_select 0, %s8, %s6
  loop: start=0, step=1, limit=4
  $region2: #{gravnet_with_noise_filter_forward.32} parent=0 // loop_pre_header
    _
  $region3: #{gravnet_with_noise_filter_forward.32} parent=0 // loop_header
    %s11 = sphi 0, %s15
    %p12 = scmp.ge.s32.totalorder %s11, 4
    %s21 = sphi 0, %s23
    %s24 = sphi 0, %s21
    %s25 = sphi 0, %s24
    %s41 = sphi 0, %s25
    %s47 = sphi 0, %s49
    %s50 = sphi 0, %s47
    %s51 = sphi 0, %s50
    %s67 = sphi 0, %s51
    %s71 = sphi 0, %s71
    %s73 = sphi 0, %s71
    %s74 = sphi 0, %s73
    %s88 = sphi 0, %s74
    %s92 = sphi 0, %s92
    %s94 = sphi 0, %s92
    %s95 = sphi 0, %s94
    %s109 = sphi 0, %s95
    %s113 = sphi 0, %s113
    %s115 = sphi 0, %s113
    %s116 = sphi 0, %s115
    %s130 = sphi 0, %s116
    %s136 = sphi 0, %s138
    %s139 = sphi 0, %s136
    %s140 = sphi 0, %s139
    %s156 = sphi 0, %s140
  $region4: #{gravnet_with_noise_filter_forward.32} parent=0 // loop_header_branch
    %14 = sbr.rel (%p12) target = $region8
  $region5: #{gravnet_with_noise_filter_forward.32} parent=0 // loop_body
    %s16 = ssub.s32 %s11, 1
    %s17 = ssub.s32 %s11, 2
    %s18 = sadd.s32 %s11, 1
    %s19 = ssub.s32 %s11, %s18
    %p20 = scmp.eq.s32.totalorder %s19, 0
    %s22 = sadd.s32 %s21, 1
    %s23 = scalar_select %p20, %s21, %s22
    %p26 = pneg %p20
    %p27 = scmp.eq.s32.totalorder %s11, 1
    %p28 = por %p26, %p27
    %p29 = scmp.ne.s32.totalorder %s21, %s24
    %p30 = scmp.eq.s32.totalorder %s11, 0
    %p31 = por %p29, %p30
    %p32 = scmp.ne.s32.totalorder %s21, %s24
    %p33 = scmp.eq.s32.totalorder %s16, 1
    %p34 = por %p32, %p33
    %p35 = scmp.ne.s32.totalorder %s24, %s25
    %p36 = scmp.eq.s32.totalorder %s16, 0
    %p37 = por %p35, %p36
    %p38 = scmp.ne.s32.totalorder %s24, %s25
    %p39 = scmp.eq.s32.totalorder %s17, 1
    %p40 = por %p38, %p39
    %p42 = scmp.ne.s32.totalorder %s25, %s41
    %p43 = scmp.eq.s32.totalorder %s17, 0
    %p44 = por %p42, %p43
    %s45 = ssub.s32 %s11, %s18
    %p46 = scmp.eq.s32.totalorder %s45, 0
    %s48 = sadd.s32 %s47, 1
    %s49 = scalar_select %p46, %s47, %s48
    %p52 = pneg %p46
    %p53 = scmp.eq.s32.totalorder %s11, 1
    %p54 = por %p52, %p53
    %p55 = scmp.ne.s32.totalorder %s47, %s50
    %p56 = scmp.eq.s32.totalorder %s11, 0
    %p57 = por %p55, %p56
    %p58 = scmp.ne.s32.totalorder %s47, %s50
    %p59 = scmp.eq.s32.totalorder %s16, 1
    %p60 = por %p58, %p59
    %p61 = scmp.ne.s32.totalorder %s50, %s51
    %p62 = scmp.eq.s32.totalorder %s16, 0
    %p63 = por %p61, %p62
    %p64 = scmp.ne.s32.totalorder %s50, %s51
    %p65 = scmp.eq.s32.totalorder %s17, 1
    %p66 = por %p64, %p65
    %p68 = scmp.ne.s32.totalorder %s51, %s67
    %p69 = scmp.eq.s32.totalorder %s17, 0
    %p70 = por %p68, %p69
    %s72 = sadd.s32 %s71, 1
    %p75 = scmp.eq.s32.totalorder %s11, 1
    %p76 = scmp.ne.s32.totalorder %s71, %s73
    %p77 = scmp.eq.s32.totalorder %s11, 0
    %p78 = por %p76, %p77
    %p79 = scmp.ne.s32.totalorder %s71, %s73
    %p80 = scmp.eq.s32.totalorder %s16, 1
    %p81 = por %p79, %p80
    %p82 = scmp.ne.s32.totalorder %s73, %s74
    %p83 = scmp.eq.s32.totalorder %s16, 0
    %p84 = por %p82, %p83
    %p85 = scmp.ne.s32.totalorder %s73, %s74
    %p86 = scmp.eq.s32.totalorder %s17, 1
    %p87 = por %p85, %p86
    %p89 = scmp.ne.s32.totalorder %s74, %s88
    %p90 = scmp.eq.s32.totalorder %s17, 0
    %p91 = por %p89, %p90
    %s93 = sadd.s32 %s92, 1
    %p96 = scmp.eq.s32.totalorder %s11, 1
    %p97 = scmp.ne.s32.totalorder %s92, %s94
    %p98 = scmp.eq.s32.totalorder %s11, 0
    %p99 = por %p97, %p98
    %p100 = scmp.ne.s32.totalorder %s92, %s94
    %p101 = scmp.eq.s32.totalorder %s16, 1
    %p102 = por %p100, %p101
    %p103 = scmp.ne.s32.totalorder %s94, %s95
    %p104 = scmp.eq.s32.totalorder %s16, 0
    %p105 = por %p103, %p104
    %p106 = scmp.ne.s32.totalorder %s94, %s95
    %p107 = scmp.eq.s32.totalorder %s17, 1
    %p108 = por %p106, %p107
    %p110 = scmp.ne.s32.totalorder %s95, %s109
    %p111 = scmp.eq.s32.totalorder %s17, 0
    %p112 = por %p110, %p111
    %s114 = sadd.s32 %s113, 1
    %p117 = scmp.eq.s32.totalorder %s11, 1
    %p118 = scmp.ne.s32.totalorder %s113, %s115
    %p119 = scmp.eq.s32.totalorder %s11, 0
    %p120 = por %p118, %p119
    %p121 = scmp.ne.s32.totalorder %s113, %s115
    %p122 = scmp.eq.s32.totalorder %s16, 1
    %p123 = por %p121, %p122
    %p124 = scmp.ne.s32.totalorder %s115, %s116
    %p125 = scmp.eq.s32.totalorder %s16, 0
    %p126 = por %p124, %p125
    %p127 = scmp.ne.s32.totalorder %s115, %s116
    %p128 = scmp.eq.s32.totalorder %s17, 1
    %p129 = por %p127, %p128
    %p131 = scmp.ne.s32.totalorder %s116, %s130
    %p132 = scmp.eq.s32.totalorder %s17, 0
    %p133 = por %p131, %p132
    %s134 = ssub.s32 %s11, %s18
    %p135 = scmp.eq.s32.totalorder %s134, 0
    %s137 = sadd.s32 %s136, 1
    %s138 = scalar_select %p135, %s136, %s137
    %p141 = pneg %p135
    %p142 = scmp.eq.s32.totalorder %s11, 1
    %p143 = por %p141, %p142
    %p144 = scmp.ne.s32.totalorder %s136, %s139
    %p145 = scmp.eq.s32.totalorder %s11, 0
    %p146 = por %p144, %p145
    %p147 = scmp.ne.s32.totalorder %s136, %s139
    %p148 = scmp.eq.s32.totalorder %s16, 1
    %p149 = por %p147, %p148
    %p150 = scmp.ne.s32.totalorder %s139, %s140
    %p151 = scmp.eq.s32.totalorder %s16, 0
    %p152 = por %p150, %p151
    %p153 = scmp.ne.s32.totalorder %s139, %s140
    %p154 = scmp.eq.s32.totalorder %s17, 1
    %p155 = por %p153, %p154
    %p157 = scmp.ne.s32.totalorder %s140, %s156
    %p158 = scmp.eq.s32.totalorder %s17, 0
    %p159 = por %p157, %p158
    %p160 = scmp.le.s32.totalorder 1, %s11
    %p161 = scmp.lt.s32.totalorder %s11, 3
    %p162 = pnand %p160, %p161
    %p163 = pneg %p162
    // Predicated region
    $region9: #{gravnet_with_noise_filter_forward.32} parent=5 // pred_check
      _
    $region10: #{gravnet_with_noise_filter_forward.32} parent=5 // pred_check_branch
      %165 = sbr.rel (%p162) target = $region12
    $region11: #{gravnet_with_noise_filter_forward.32} parent=5 // pred_region
      %s166 = ssub.s32 %s11, 1
      // Predicated region
      $region13: #{gravnet_with_noise_filter_forward.32} parent=11 // pred_check
        %p167 = pneg %p84
      $region14: #{gravnet_with_noise_filter_forward.32} parent=11 // pred_check_branch
        %169 = sbr.rel (%p167) target = $region16
      $region15: #{gravnet_with_noise_filter_forward.32} parent=11 // pred_region
        _
      $region16: #{gravnet_with_noise_filter_forward.32} parent=11 // pred_fallthru
        _
      // Predicated region
      $region17: #{gravnet_with_noise_filter_forward.32} parent=11 // pred_check
        %p170 = pneg %p105
      $region18: #{gravnet_with_noise_filter_forward.32} parent=11 // pred_check_branch
        %172 = sbr.rel (%p170) target = $region20
      $region19: #{gravnet_with_noise_filter_forward.32} parent=11 // pred_region
        _
      $region20: #{gravnet_with_noise_filter_forward.32} parent=11 // pred_fallthru
        _
      // Predicated region
      $region21: #{gravnet_with_noise_filter_forward.32} parent=11 // pred_check
        %p173 = pneg %p126
      $region22: #{gravnet_with_noise_filter_forward.32} parent=11 // pred_check_branch
        %175 = sbr.rel (%p173) target = $region24
      $region23: #{gravnet_with_noise_filter_forward.32} parent=11 // pred_region
        _
      $region24: #{gravnet_with_noise_filter_forward.32} parent=11 // pred_fallthru
        _
    $region12: #{gravnet_with_noise_filter_forward.32} parent=5 // pred_fallthru
      _
    %p176 = scmp.lt.s32.totalorder %s11, 2
    // Predicated region
    $region25: #{gravnet_with_noise_filter_forward.32} parent=5 // pred_check
      %p177 = pneg %p176
    $region26: #{gravnet_with_noise_filter_forward.32} parent=5 // pred_check_branch
      %179 = sbr.rel (%p177) target = $region28
    $region27: #{gravnet_with_noise_filter_forward.32} parent=5 // pred_region
      // Predicated region
      $region29: #{gravnet_with_noise_filter_forward.32} parent=27 // pred_check
        %p180 = pneg %p31
      $region30: #{gravnet_with_noise_filter_forward.32} parent=27 // pred_check_branch
        %182 = sbr.rel (%p180) target = $region32
      $region31: #{gravnet_with_noise_filter_forward.32} parent=27 // pred_region
        %s183 = smul.u32 4, %s11
        %p184 = scmp.lt.s32.totalorder %s183, 7
        %s185 = scalar_select %p184, %s183, 7
        %s186 = smul.addr %s185, 8
        %s187 = scalar_lea.vmem %s0, %s186
        %s188 = smul.u32 4, %s11
      $region32: #{gravnet_with_noise_filter_forward.32} parent=27 // pred_fallthru
        _
      // Predicated region
      $region33: #{gravnet_with_noise_filter_forward.32} parent=27 // pred_check
        %p189 = pneg %p57
      $region34: #{gravnet_with_noise_filter_forward.32} parent=27 // pred_check_branch
        %191 = sbr.rel (%p189) target = $region36
      $region35: #{gravnet_with_noise_filter_forward.32} parent=27 // pred_region
        %s192 = smul.u32 4, %s11
        %p193 = scmp.lt.s32.totalorder %s192, 7
        %s194 = scalar_select %p193, %s192, 7
        %s195 = smul.addr %s194, 8
        %s196 = scalar_lea.vmem %s1, %s195
        %s197 = smul.u32 4, %s11
      $region36: #{gravnet_with_noise_filter_forward.32} parent=27 // pred_fallthru
        _
    $region28: #{gravnet_with_noise_filter_forward.32} parent=5 // pred_fallthru
      _
    %p198 = scmp.le.s32.totalorder 1, %s11
    %p199 = scmp.lt.s32.totalorder %s11, 3
    %p200 = pnand %p198, %p199
    %p201 = pneg %p200
    // Predicated region
    $region37: #{gravnet_with_noise_filter_forward.32} parent=5 // pred_check
      _
    $region38: #{gravnet_with_noise_filter_forward.32} parent=5 // pred_check_branch
      %203 = sbr.rel (%p200) target = $region40
    $region39: #{gravnet_with_noise_filter_forward.32} parent=5 // pred_region
      %s204 = ssub.s32 %s11, 1
      %s205 = smul.u32 4, %s16
      %p206 = scmp.lt.s32.totalorder %s205, 7
      %s207 = scalar_select %p206, %s205, 7
      %s208 = smul.addr %s207, 8
      %s209 = scalar_lea.vmem %s0, %s208
      %p210 = pneg %p37
      %p211 = pneg %p34
      %s212 = smul.u32 4, %s16
      %p213 = scmp.lt.s32.totalorder %s212, 7
      %s214 = scalar_select %p213, %s212, 7
      %s215 = smul.addr %s214, 8
      %s216 = scalar_lea.vmem %s1, %s215
      %p217 = pneg %p63
      %p218 = pneg %p60
      %p219 = pneg %p84
      %p220 = pneg %p81
      %p221 = pneg %p105
      %p222 = pneg %p102
      %p223 = pneg %p126
      %p224 = pneg %p123
      %p225 = pneg %p152
      %p226 = pneg %p149
      %s227 = smul.u32 4, %s16
      %p228 = scmp.lt.s32.totalorder %s227, 7
      %s229 = scalar_select %p228, %s227, 7
      %s230 = smul.addr %s229, 8
      %s231 = scalar_lea.vmem %s5, %s230
      %s232 = smul.u32 4, %s16
      %p233 = scmp.lt.s32.totalorder %s232, 7
      %s234 = scalar_select %p233, %s232, 7
      %s235 = smul.addr %s234, 8
      %s236 = scalar_lea.vmem %s0, %s235
      %s237 = smul.u32 4, %s16
      %s238 = smul.u32 4, %s16
      %p239 = scmp.lt.s32.totalorder %s238, 7
      %s240 = scalar_select %p239, %s238, 7
      %s241 = smul.addr %s240, 8
      %s242 = scalar_lea.vmem %s1, %s241
      %s243 = smul.u32 4, %s16
      %s244 = smul.u32 4, %s16
      %p245 = scmp.lt.s32.totalorder %s244, 7
      %s246 = scalar_select %p245, %s244, 7
      %s247 = smul.addr %s246, 8
      %s248 = scalar_lea.vmem %s5, %s247
      %s249 = smul.u32 4, %s16
      %v251 = vld [vmem:[%s236] sm:$0xff]
      %v252 = vld [vmem:[%s236 + $0x8] sm:$0xff]
      %v253 = vld [vmem:[%s236 + $0x10] sm:$0xff]
      %v254 = vld [vmem:[%s236 + $0x18] sm:$0xff]
      %v255 = vlaneseq
      %v256 = vand.u32 %v255, 127
      %v257 = vld [vmem:[%s242] sm:$0xff]
      %v258 = vld [vmem:[%s242 + $0x8] sm:$0xff]
      %v259 = vld [vmem:[%s242 + $0x10] sm:$0xff]
      %v260 = vld [vmem:[%s242 + $0x18] sm:$0xff]
      %261 = vset.pattern.permute.xlu0 0
      %262 = vperm.xlu0 %261, %v257
      %v263 = vpop.permute.xlu0 %262
      %264 = vset.pattern.permute.xlu0 0
      %265 = vperm.xlu0 %264, %v258
      %v266 = vpop.permute.xlu0 %265
      %267 = vset.pattern.permute.xlu0 0
      %268 = vperm.xlu0 %267, %v259
      %v269 = vpop.permute.xlu0 %268
      %270 = vset.pattern.permute.xlu0 0
      %271 = vperm.xlu0 %270, %v260
      %v272 = vpop.permute.xlu0 %271
      %vm273 = vcmp.eq.s32.totalorder %v263, %v256
      %vm274 = vcmp.eq.s32.totalorder %v266, %v256
      %vm275 = vcmp.eq.s32.totalorder %v269, %v256
      %vm276 = vcmp.eq.s32.totalorder %v272, %v256
      %v277 = vsel %vm273, 1, 0
      %v278 = vsel %vm274, 1, 0
      %v279 = vsel %vm275, 1, 0
      %v280 = vsel %vm276, 1, 0
      %v281 = vcvt.s32.f32 %v277
      %v282 = vcvt.s32.f32 %v278
      %v283 = vcvt.s32.f32 %v279
      %v284 = vcvt.s32.f32 %v280
      %v285 = vld [vmem:[%s2] sm:$0x3]
      %v286 = vpack.c.bf16 %v252, %v251
      %v287 = vpack.c.bf16 %v254, %v253
      %v288 = vld [vmem:[%s3] sm:$0x7]
      %vm289 = vcmask 39936
      %v291 = vsel %vm289, %v286, 0
      %v294 = vsel %vm289, %v287, 0
      %vm296 = vcmask 1041408
      %vm297 = vcmask 1042432
      %v298 = vsel %vm296, 4294967295, 65535
      %v299 = vsel %vm297, %v298, 0
      %v301 = vand.u32 %v288, %v299
      %303 = vmatpush.bf16.msra.mxu0 0
      %304 = vmatpush.bf16.msra.mxu0 0
      %305 = vmatpush.bf16.msra.mxu0 0
      %306 = vmatpush.bf16.msra.mxu0 0
      %307 = vmatpush.bf16.msra.mxu0 0
      %308 = vmatpush.bf16.msra.mxu0 0
      %309 = vmatpush.bf16.msra.mxu0 0
      %310 = vmatpush.bf16.msra.mxu0 %v301
      %311 = vmatmul.bf16.gmra.mxu0 %v291
      %v312 = vpop.f32.mrf.mxu0
      %v313 = vadd.f32 0.0, %v312
      %v314 = vpop.f32.mrf.mxu0
      %v315 = vadd.f32 0.0, %v314
      %316 = vmatmul.bf16.gmra.mxu0 %v294
      %v317 = vpop.f32.mrf.mxu0
      %v318 = vadd.f32 0.0, %v317
      %v319 = vpop.f32.mrf.mxu0
      %v320 = vadd.f32 0.0, %v319
      %321 = vdwg.mxu0
      %vm322 = vcmask 15360
      %v324 = vsel %vm322, %v281, 0
      %v327 = vsel %vm322, %v282, 0
      %v330 = vsel %vm322, %v283, 0
      %v333 = vsel %vm322, %v284, 0
      %v336 = vsel %vm296, %v285, 0
      %338 = vmatpush.msra.mxu0 0.0
      %339 = vmatpush.msra.mxu0 0.0
      %340 = vmatpush.msra.mxu0 0.0
      %341 = vmatpush.msra.mxu0 0.0
      %342 = vmatpush.msra.mxu0 0.0
      %343 = vmatpush.msra.mxu0 0.0
      %344 = vmatpush.msra.mxu0 0.0
      %345 = vmatpush.msra.mxu0 0.0
      %346 = vmatpush.msra.mxu0 0.0
      %347 = vmatpush.msra.mxu0 0.0
      %348 = vmatpush.msra.mxu0 0.0
      %349 = vmatpush.msra.mxu0 0.0
      %350 = vmatpush.msra.mxu0 0.0
      %351 = vmatpush.msra.mxu0 0.0
      %352 = vmatpush.msra.mxu0 0.0
      %353 = vmatpush.msra.mxu0 %v336
      %354 = vmatmul.f32.gmra.mxu0 %v324
      %v355 = vpop.f32.mrf.mxu0
      %v356 = vadd.f32 %v313, %v355
      %357 = vmatmul.f32.gmra.mxu0 %v327
      %v358 = vpop.f32.mrf.mxu0
      %v359 = vadd.f32 %v315, %v358
      %360 = vmatmul.f32.gmra.mxu0 %v330
      %v361 = vpop.f32.mrf.mxu0
      %v362 = vadd.f32 %v318, %v361
      %363 = vmatmul.f32.gmra.mxu0 %v333
      %v364 = vpop.f32.mrf.mxu0
      %v365 = vadd.f32 %v320, %v364
      %366 = vdwg.mxu0
      %v367 = vld [vmem:[%s4] sm:$0x1]
      %v369 = vperm.slane %v367, 0
      %v371 = vadd.f32 %v356, %v369
      %v372 = vadd.f32 %v359, %v369
      %v373 = vadd.f32 %v362, %v369
      %v374 = vadd.f32 %v365, %v369
      %vm375 = vcmask 523264
      %376 = vst.msk [vmem:[%s248] sm:$0xff] %vm375, %v371
      %377 = vst.msk [vmem:[%s248 + $0x8] sm:$0xff] %vm375, %v372
      %378 = vst.msk [vmem:[%s248 + $0x10] sm:$0xff] %vm375, %v373
      %379 = vst.msk [vmem:[%s248 + $0x18] sm:$0xff] %vm375, %v374
      %s380 = smul.u32 4, %s16
      %p381 = scmp.lt.s32.totalorder %s380, 7
      %s382 = scalar_select %p381, %s380, 7
      %s383 = smul.addr %s382, 8
      %s384 = scalar_lea.vmem %s5, %s383
      // Predicated region
      $region41: #{gravnet_with_noise_filter_forward.32} parent=39 // pred_check
        %p385 = pneg %p149
      $region42: #{gravnet_with_noise_filter_forward.32} parent=39 // pred_check_branch
        %387 = sbr.rel (%p385) target = $region44
      $region43: #{gravnet_with_noise_filter_forward.32} parent=39 // pred_region
        %s388 = smul.u32 4, %s16
      $region44: #{gravnet_with_noise_filter_forward.32} parent=39 // pred_fallthru
        _
    $region40: #{gravnet_with_noise_filter_forward.32} parent=5 // pred_fallthru
      _
    %p389 = scmp.le.s32.totalorder 2, %s11
    // Predicated region
    $region45: #{gravnet_with_noise_filter_forward.32} parent=5 // pred_check
      %p390 = pneg %p389
    $region46: #{gravnet_with_noise_filter_forward.32} parent=5 // pred_check_branch
      %392 = sbr.rel (%p390) target = $region48
    $region47: #{gravnet_with_noise_filter_forward.32} parent=5 // pred_region
      %s393 = ssub.s32 %s11, 2
      // Predicated region
      $region49: #{gravnet_with_noise_filter_forward.32} parent=47 // pred_check
        %p394 = pneg %p155
      $region50: #{gravnet_with_noise_filter_forward.32} parent=47 // pred_check_branch
        %396 = sbr.rel (%p394) target = $region52
      $region51: #{gravnet_with_noise_filter_forward.32} parent=47 // pred_region
        %s397 = smul.u32 4, %s17
        %p398 = scmp.lt.s32.totalorder %s397, 7
        %s399 = scalar_select %p398, %s397, 7
        %s400 = smul.addr %s399, 8
        %s401 = scalar_lea.vmem %s5, %s400
      $region52: #{gravnet_with_noise_filter_forward.32} parent=47 // pred_fallthru
        _
    $region48: #{gravnet_with_noise_filter_forward.32} parent=5 // pred_fallthru
      _
  $region6: #{gravnet_with_noise_filter_forward.32} parent=0 // loop_footer
    %s15 = sadd.s32 1, %s11
  $region7: #{gravnet_with_noise_filter_forward.32} parent=0 // loop_footer_branch
    %10 = sbr.rel target = $region3
  $region8: #{gravnet_with_noise_filter_forward.32} parent=0 // loop_exit
    _

// kernel: gravnet_with_noise_filter_forward.33
$region0: #{gravnet_with_noise_filter_forward.33}
  #allocation0 [shape = 'u32[]', space=smem, size = 0x4, offset = 0x4, fixed_abs, tag = 'smem constant byte address 0x4 - core index']
  #allocation1 [shape = 'u32[72,128]{1,0:T(1,128)}', space=vmem, size = 0x9000, scoped, tag = 'internal scratch']
  %s0 = inlined_call_operand.vmem [shape: f32[64,64], index: 0, kind: input, shape index: {}]
  %s1 = inlined_call_operand.vmem [shape: f32[64,4], index: 1, kind: input, shape index: {}]
  %s2 = inlined_call_operand.vmem [shape: bf16[64,64], index: 2, kind: input, shape index: {}]
  %s3 = inlined_call_operand.vmem [shape: f32[1,4], index: 3, kind: input, shape index: {}]
  %s4 = inlined_call_operand.vmem [shape: f32[1,64], index: 4, kind: input, shape index: {}]
  %s5 = inlined_call_operand.vmem [shape: f32[64,4], index: 5, kind: output, shape index: {0}]
  %s6 = inlined_call_operand.vmem [shape: bf16[64,64], index: 6, kind: output, shape index: {1}]
  %7 = xla_tuple %s5, %s6
  %s8 = sld [smem:[#allocation0]]
  $region61: #{gravnet_with_noise_filter_forward.33} parent=0
    _
  %s10 = ssub.s32 1, %s8
  %s11 = scalar_select 0, %s10, %s8
  loop: start=0, step=1, limit=4
  $region2: #{gravnet_with_noise_filter_forward.33} parent=0 // loop_pre_header
    _
  $region3: #{gravnet_with_noise_filter_forward.33} parent=0 // loop_header
    %s13 = sphi 0, %s17
    %p14 = scmp.ge.s32.totalorder %s13, 4
    %s23 = sphi 0, %s25
    %s26 = sphi 0, %s23
    %s27 = sphi 0, %s26
    %s43 = sphi 0, %s27
    %s47 = sphi 0, %s47
    %s49 = sphi 0, %s47
    %s50 = sphi 0, %s49
    %s64 = sphi 0, %s50
    %s68 = sphi 0, %s68
    %s70 = sphi 0, %s68
    %s71 = sphi 0, %s70
    %s85 = sphi 0, %s71
    %s89 = sphi 0, %s89
    %s91 = sphi 0, %s89
    %s92 = sphi 0, %s91
    %s106 = sphi 0, %s92
    %s110 = sphi 0, %s110
    %s112 = sphi 0, %s110
    %s113 = sphi 0, %s112
    %s127 = sphi 0, %s113
    %s133 = sphi 0, %s135
    %s136 = sphi 0, %s133
    %s137 = sphi 0, %s136
    %s153 = sphi 0, %s137
    %s159 = sphi 0, %s161
    %s162 = sphi 0, %s159
    %s163 = sphi 0, %s162
    %s179 = sphi 0, %s163
  $region4: #{gravnet_with_noise_filter_forward.33} parent=0 // loop_header_branch
    %16 = sbr.rel (%p14) target = $region8
  $region5: #{gravnet_with_noise_filter_forward.33} parent=0 // loop_body
    %s18 = ssub.s32 %s13, 1
    %s19 = ssub.s32 %s13, 2
    %s20 = sadd.s32 %s13, 1
    %s21 = ssub.s32 %s13, %s20
    %p22 = scmp.eq.s32.totalorder %s21, 0
    %s24 = sadd.s32 %s23, 1
    %s25 = scalar_select %p22, %s23, %s24
    %p28 = pneg %p22
    %p29 = scmp.eq.s32.totalorder %s13, 1
    %p30 = por %p28, %p29
    %p31 = scmp.ne.s32.totalorder %s23, %s26
    %p32 = scmp.eq.s32.totalorder %s13, 0
    %p33 = por %p31, %p32
    %p34 = scmp.ne.s32.totalorder %s23, %s26
    %p35 = scmp.eq.s32.totalorder %s18, 1
    %p36 = por %p34, %p35
    %p37 = scmp.ne.s32.totalorder %s26, %s27
    %p38 = scmp.eq.s32.totalorder %s18, 0
    %p39 = por %p37, %p38
    %p40 = scmp.ne.s32.totalorder %s26, %s27
    %p41 = scmp.eq.s32.totalorder %s19, 1
    %p42 = por %p40, %p41
    %p44 = scmp.ne.s32.totalorder %s27, %s43
    %p45 = scmp.eq.s32.totalorder %s19, 0
    %p46 = por %p44, %p45
    %s48 = sadd.s32 %s47, 1
    %p51 = scmp.eq.s32.totalorder %s13, 1
    %p52 = scmp.ne.s32.totalorder %s47, %s49
    %p53 = scmp.eq.s32.totalorder %s13, 0
    %p54 = por %p52, %p53
    %p55 = scmp.ne.s32.totalorder %s47, %s49
    %p56 = scmp.eq.s32.totalorder %s18, 1
    %p57 = por %p55, %p56
    %p58 = scmp.ne.s32.totalorder %s49, %s50
    %p59 = scmp.eq.s32.totalorder %s18, 0
    %p60 = por %p58, %p59
    %p61 = scmp.ne.s32.totalorder %s49, %s50
    %p62 = scmp.eq.s32.totalorder %s19, 1
    %p63 = por %p61, %p62
    %p65 = scmp.ne.s32.totalorder %s50, %s64
    %p66 = scmp.eq.s32.totalorder %s19, 0
    %p67 = por %p65, %p66
    %s69 = sadd.s32 %s68, 1
    %p72 = scmp.eq.s32.totalorder %s13, 1
    %p73 = scmp.ne.s32.totalorder %s68, %s70
    %p74 = scmp.eq.s32.totalorder %s13, 0
    %p75 = por %p73, %p74
    %p76 = scmp.ne.s32.totalorder %s68, %s70
    %p77 = scmp.eq.s32.totalorder %s18, 1
    %p78 = por %p76, %p77
    %p79 = scmp.ne.s32.totalorder %s70, %s71
    %p80 = scmp.eq.s32.totalorder %s18, 0
    %p81 = por %p79, %p80
    %p82 = scmp.ne.s32.totalorder %s70, %s71
    %p83 = scmp.eq.s32.totalorder %s19, 1
    %p84 = por %p82, %p83
    %p86 = scmp.ne.s32.totalorder %s71, %s85
    %p87 = scmp.eq.s32.totalorder %s19, 0
    %p88 = por %p86, %p87
    %s90 = sadd.s32 %s89, 1
    %p93 = scmp.eq.s32.totalorder %s13, 1
    %p94 = scmp.ne.s32.totalorder %s89, %s91
    %p95 = scmp.eq.s32.totalorder %s13, 0
    %p96 = por %p94, %p95
    %p97 = scmp.ne.s32.totalorder %s89, %s91
    %p98 = scmp.eq.s32.totalorder %s18, 1
    %p99 = por %p97, %p98
    %p100 = scmp.ne.s32.totalorder %s91, %s92
    %p101 = scmp.eq.s32.totalorder %s18, 0
    %p102 = por %p100, %p101
    %p103 = scmp.ne.s32.totalorder %s91, %s92
    %p104 = scmp.eq.s32.totalorder %s19, 1
    %p105 = por %p103, %p104
    %p107 = scmp.ne.s32.totalorder %s92, %s106
    %p108 = scmp.eq.s32.totalorder %s19, 0
    %p109 = por %p107, %p108
    %s111 = sadd.s32 %s110, 1
    %p114 = scmp.eq.s32.totalorder %s13, 1
    %p115 = scmp.ne.s32.totalorder %s110, %s112
    %p116 = scmp.eq.s32.totalorder %s13, 0
    %p117 = por %p115, %p116
    %p118 = scmp.ne.s32.totalorder %s110, %s112
    %p119 = scmp.eq.s32.totalorder %s18, 1
    %p120 = por %p118, %p119
    %p121 = scmp.ne.s32.totalorder %s112, %s113
    %p122 = scmp.eq.s32.totalorder %s18, 0
    %p123 = por %p121, %p122
    %p124 = scmp.ne.s32.totalorder %s112, %s113
    %p125 = scmp.eq.s32.totalorder %s19, 1
    %p126 = por %p124, %p125
    %p128 = scmp.ne.s32.totalorder %s113, %s127
    %p129 = scmp.eq.s32.totalorder %s19, 0
    %p130 = por %p128, %p129
    %s131 = ssub.s32 %s13, %s20
    %p132 = scmp.eq.s32.totalorder %s131, 0
    %s134 = sadd.s32 %s133, 1
    %s135 = scalar_select %p132, %s133, %s134
    %p138 = pneg %p132
    %p139 = scmp.eq.s32.totalorder %s13, 1
    %p140 = por %p138, %p139
    %p141 = scmp.ne.s32.totalorder %s133, %s136
    %p142 = scmp.eq.s32.totalorder %s13, 0
    %p143 = por %p141, %p142
    %p144 = scmp.ne.s32.totalorder %s133, %s136
    %p145 = scmp.eq.s32.totalorder %s18, 1
    %p146 = por %p144, %p145
    %p147 = scmp.ne.s32.totalorder %s136, %s137
    %p148 = scmp.eq.s32.totalorder %s18, 0
    %p149 = por %p147, %p148
    %p150 = scmp.ne.s32.totalorder %s136, %s137
    %p151 = scmp.eq.s32.totalorder %s19, 1
    %p152 = por %p150, %p151
    %p154 = scmp.ne.s32.totalorder %s137, %s153
    %p155 = scmp.eq.s32.totalorder %s19, 0
    %p156 = por %p154, %p155
    %s157 = ssub.s32 %s13, %s20
    %p158 = scmp.eq.s32.totalorder %s157, 0
    %s160 = sadd.s32 %s159, 1
    %s161 = scalar_select %p158, %s159, %s160
    %p164 = pneg %p158
    %p165 = scmp.eq.s32.totalorder %s13, 1
    %p166 = por %p164, %p165
    %p167 = scmp.ne.s32.totalorder %s159, %s162
    %p168 = scmp.eq.s32.totalorder %s13, 0
    %p169 = por %p167, %p168
    %p170 = scmp.ne.s32.totalorder %s159, %s162
    %p171 = scmp.eq.s32.totalorder %s18, 1
    %p172 = por %p170, %p171
    %p173 = scmp.ne.s32.totalorder %s162, %s163
    %p174 = scmp.eq.s32.totalorder %s18, 0
    %p175 = por %p173, %p174
    %p176 = scmp.ne.s32.totalorder %s162, %s163
    %p177 = scmp.eq.s32.totalorder %s19, 1
    %p178 = por %p176, %p177
    %p180 = scmp.ne.s32.totalorder %s163, %s179
    %p181 = scmp.eq.s32.totalorder %s19, 0
    %p182 = por %p180, %p181
    %p183 = scmp.le.s32.totalorder 1, %s13
    %p184 = scmp.lt.s32.totalorder %s13, 3
    %p185 = pnand %p183, %p184
    %p186 = pneg %p185
    // Predicated region
    $region9: #{gravnet_with_noise_filter_forward.33} parent=5 // pred_check
      _
    $region10: #{gravnet_with_noise_filter_forward.33} parent=5 // pred_check_branch
      %188 = sbr.rel (%p185) target = $region12
    $region11: #{gravnet_with_noise_filter_forward.33} parent=5 // pred_region
      %s189 = ssub.s32 %s13, 1
      // Predicated region
      $region13: #{gravnet_with_noise_filter_forward.33} parent=11 // pred_check
        %p190 = pneg %p60
      $region14: #{gravnet_with_noise_filter_forward.33} parent=11 // pred_check_branch
        %192 = sbr.rel (%p190) target = $region16
      $region15: #{gravnet_with_noise_filter_forward.33} parent=11 // pred_region
        _
      $region16: #{gravnet_with_noise_filter_forward.33} parent=11 // pred_fallthru
        _
      // Predicated region
      $region17: #{gravnet_with_noise_filter_forward.33} parent=11 // pred_check
        %p193 = pneg %p81
      $region18: #{gravnet_with_noise_filter_forward.33} parent=11 // pred_check_branch
        %195 = sbr.rel (%p193) target = $region20
      $region19: #{gravnet_with_noise_filter_forward.33} parent=11 // pred_region
        _
      $region20: #{gravnet_with_noise_filter_forward.33} parent=11 // pred_fallthru
        _
      // Predicated region
      $region21: #{gravnet_with_noise_filter_forward.33} parent=11 // pred_check
        %p196 = pneg %p102
      $region22: #{gravnet_with_noise_filter_forward.33} parent=11 // pred_check_branch
        %198 = sbr.rel (%p196) target = $region24
      $region23: #{gravnet_with_noise_filter_forward.33} parent=11 // pred_region
        _
      $region24: #{gravnet_with_noise_filter_forward.33} parent=11 // pred_fallthru
        _
      // Predicated region
      $region25: #{gravnet_with_noise_filter_forward.33} parent=11 // pred_check
        %p199 = pneg %p123
      $region26: #{gravnet_with_noise_filter_forward.33} parent=11 // pred_check_branch
        %201 = sbr.rel (%p199) target = $region28
      $region27: #{gravnet_with_noise_filter_forward.33} parent=11 // pred_region
        _
      $region28: #{gravnet_with_noise_filter_forward.33} parent=11 // pred_fallthru
        _
    $region12: #{gravnet_with_noise_filter_forward.33} parent=5 // pred_fallthru
      _
    %p202 = scmp.lt.s32.totalorder %s13, 2
    // Predicated region
    $region29: #{gravnet_with_noise_filter_forward.33} parent=5 // pred_check
      %p203 = pneg %p202
    $region30: #{gravnet_with_noise_filter_forward.33} parent=5 // pred_check_branch
      %205 = sbr.rel (%p203) target = $region32
    $region31: #{gravnet_with_noise_filter_forward.33} parent=5 // pred_region
      // Predicated region
      $region33: #{gravnet_with_noise_filter_forward.33} parent=31 // pred_check
        %p206 = pneg %p33
      $region34: #{gravnet_with_noise_filter_forward.33} parent=31 // pred_check_branch
        %208 = sbr.rel (%p206) target = $region36
      $region35: #{gravnet_with_noise_filter_forward.33} parent=31 // pred_region
        %s209 = smul.u32 4, %s13
        %p210 = scmp.lt.s32.totalorder %s209, 7
        %s211 = scalar_select %p210, %s209, 7
        %s212 = smul.addr %s211, 8
        %s213 = scalar_lea.vmem %s0, %s212
        %s214 = smul.u32 4, %s13
      $region36: #{gravnet_with_noise_filter_forward.33} parent=31 // pred_fallthru
        _
    $region32: #{gravnet_with_noise_filter_forward.33} parent=5 // pred_fallthru
      _
    %p215 = scmp.le.s32.totalorder 1, %s13
    %p216 = scmp.lt.s32.totalorder %s13, 3
    %p217 = pnand %p215, %p216
    %p218 = pneg %p217
    // Predicated region
    $region37: #{gravnet_with_noise_filter_forward.33} parent=5 // pred_check
      _
    $region38: #{gravnet_with_noise_filter_forward.33} parent=5 // pred_check_branch
      %220 = sbr.rel (%p217) target = $region40
    $region39: #{gravnet_with_noise_filter_forward.33} parent=5 // pred_region
      %s221 = ssub.s32 %s13, 1
      %s222 = smul.u32 4, %s18
      %p223 = scmp.lt.s32.totalorder %s222, 7
      %s224 = scalar_select %p223, %s222, 7
      %s225 = smul.addr %s224, 8
      %s226 = scalar_lea.vmem %s0, %s225
      %p227 = pneg %p39
      %p228 = pneg %p36
      %p229 = pneg %p60
      %p230 = pneg %p57
      %p231 = pneg %p81
      %p232 = pneg %p78
      %p233 = pneg %p102
      %p234 = pneg %p99
      %p235 = pneg %p123
      %p236 = pneg %p120
      %p237 = pneg %p149
      %p238 = pneg %p146
      %s239 = smul.u32 4, %s18
      %p240 = scmp.lt.s32.totalorder %s239, 7
      %s241 = scalar_select %p240, %s239, 7
      %s242 = smul.addr %s241, 8
      %s243 = scalar_lea.vmem %s5, %s242
      %p244 = pneg %p175
      %p245 = pneg %p172
      %s246 = smul.u32 4, %s18
      %p247 = scmp.lt.s32.totalorder %s246, 7
      %s248 = scalar_select %p247, %s246, 7
      %s249 = smul.addr %s248, 4
      %s250 = scalar_lea.vmem %s6, %s249
      %s251 = smul.u32 4, %s18
      %p252 = scmp.lt.s32.totalorder %s251, 7
      %s253 = scalar_select %p252, %s251, 7
      %s254 = smul.addr %s253, 8
      %s255 = scalar_lea.vmem %s0, %s254
      %s256 = smul.u32 4, %s18
      %s257 = smul.u32 4, %s18
      %p258 = scmp.lt.s32.totalorder %s257, 7
      %s259 = scalar_select %p258, %s257, 7
      %s260 = smul.addr %s259, 8
      %s261 = scalar_lea.vmem %s5, %s260
      %s262 = smul.u32 4, %s18
      %s263 = smul.u32 4, %s18
      %p264 = scmp.lt.s32.totalorder %s263, 7
      %s265 = scalar_select %p264, %s263, 7
      %s266 = smul.addr %s265, 4
      %s267 = scalar_lea.vmem %s6, %s266
      %s268 = smul.u32 4, %s18
      %v270 = vld [vmem:[%s255] sm:$0xff]
      %v271 = vld [vmem:[%s255 + $0x8] sm:$0xff]
      %v272 = vld [vmem:[%s255 + $0x10] sm:$0xff]
      %v273 = vld [vmem:[%s255 + $0x18] sm:$0xff]
      %v274 = vld [vmem:[%s1] sm:$0xff]
      %v275 = vld [vmem:[%s1 + $0x8] sm:$0xff]
      %v276 = vld [vmem:[%s1 + $0x10] sm:$0xff]
      %v277 = vld [vmem:[%s1 + $0x18] sm:$0xff]
      %v278 = vld [vmem:[%s1 + $0x20] sm:$0xff]
      %v279 = vld [vmem:[%s1 + $0x28] sm:$0xff]
      %v280 = vld [vmem:[%s1 + $0x30] sm:$0xff]
      %v281 = vld [vmem:[%s1 + $0x38] sm:$0xff]
      %v282 = vld [vmem:[%s3] sm:$0x1]
      %v284 = vperm.slane %v282, 0
      %vm286 = vcmask 523264
      %v288 = vsel %vm286, %v270, 0
      %v291 = vsel %vm286, %v271, 0
      %v294 = vsel %vm286, %v272, 0
      %v297 = vsel %vm286, %v273, 0
      %299 = vmatpush.msra.mxu0 0.0
      %300 = vmatpush.msra.mxu0 0.0
      %301 = vmatpush.msra.mxu0 0.0
      %302 = vmatpush.msra.mxu0 0.0
      %303 = vmatpush.msra.mxu0 0.0
      %304 = vmatpush.msra.mxu0 0.0
      %305 = vmatpush.msra.mxu0 0.0
      %306 = vmatpush.msra.mxu0 0.0
      %307 = vmatpush.msra.mxu0 %v281
      %308 = vmatpush.msra.mxu0 %v280
      %309 = vmatpush.msra.mxu0 %v279
      %310 = vmatpush.msra.mxu0 %v278
      %311 = vmatpush.msra.mxu0 %v277
      %312 = vmatpush.msra.mxu0 %v276
      %313 = vmatpush.msra.mxu0 %v275
      %314 = vmatpush.msra.mxu0 %v274
      %315 = vmatmul.f32.gmra.mxu0 %v288
      %v316 = vpop.f32.mrf.mxu0
      %v317 = vadd.f32 %v284, %v316
      %318 = vmatmul.f32.gmra.mxu0 %v291
      %v319 = vpop.f32.mrf.mxu0
      %v320 = vadd.f32 %v284, %v319
      %321 = vmatmul.f32.gmra.mxu0 %v294
      %v322 = vpop.f32.mrf.mxu0
      %v323 = vadd.f32 %v284, %v322
      %324 = vmatmul.f32.gmra.mxu0 %v297
      %v325 = vpop.f32.mrf.mxu0
      %v326 = vadd.f32 %v284, %v325
      %327 = vdwg.mxu0
      %vm328 = vcmask 31744
      %329 = vst.msk [vmem:[%s261] sm:$0xff] %vm328, %v317
      %330 = vst.msk [vmem:[%s261 + $0x8] sm:$0xff] %vm328, %v320
      %331 = vst.msk [vmem:[%s261 + $0x10] sm:$0xff] %vm328, %v323
      %332 = vst.msk [vmem:[%s261 + $0x18] sm:$0xff] %vm328, %v326
      %v333 = vpack.c.bf16 %v271, %v270
      %v334 = vpack.c.bf16 %v273, %v272
      %v335 = vld [vmem:[%s2] sm:$0xf]
      %v336 = vld [vmem:[%s2 + $0x4] sm:$0xf]
      %v337 = vld [vmem:[%s2 + $0x8] sm:$0xf]
      %v338 = vld [vmem:[%s2 + $0xc] sm:$0xf]
      %v339 = vld [vmem:[%s2 + $0x10] sm:$0xf]
      %v340 = vld [vmem:[%s2 + $0x14] sm:$0xf]
      %v341 = vld [vmem:[%s2 + $0x18] sm:$0xf]
      %v342 = vld [vmem:[%s2 + $0x1c] sm:$0xf]
      %v343 = vld [vmem:[%s4] sm:$0x1]
      %v345 = vperm.slane %v343, 0
      %v355 = vunpack.c.l.b16 %v335
      %v356 = vunpack.c.l.b16 %v336
      %v357 = vunpack.c.l.b16 %v337
      %v358 = vunpack.c.l.b16 %v338
      %v359 = vunpack.c.l.b16 %v339
      %v360 = vunpack.c.l.b16 %v340
      %v361 = vunpack.c.l.b16 %v341
      %v362 = vunpack.c.l.b16 %v342
      %v363 = vpack.c.b16 %v356, %v355
      %v364 = vpack.c.b16 %v358, %v357
      %v365 = vpack.c.b16 %v360, %v359
      %v366 = vpack.c.b16 %v362, %v361
      %v372 = vsel %vm286, %v333, 0
      %v375 = vsel %vm286, %v334, 0
      %377 = vmatpush.bf16.msra.mxu0 0
      %378 = vmatpush.bf16.msra.mxu0 0
      %379 = vmatpush.bf16.msra.mxu0 0
      %380 = vmatpush.bf16.msra.mxu0 0
      %381 = vmatpush.bf16.msra.mxu0 %v366
      %382 = vmatpush.bf16.msra.mxu0 %v365
      %383 = vmatpush.bf16.msra.mxu0 %v364
      %384 = vmatpush.bf16.msra.mxu0 %v363
      %385 = vmatmul.bf16.gmra.mxu0 %v372
      %v386 = vpop.f32.mrf.mxu0
      %v387 = vadd.f32 %v345, %v386
      %v388 = vpop.f32.mrf.mxu0
      %v389 = vadd.f32 %v345, %v388
      %390 = vmatmul.bf16.gmra.mxu0 %v375
      %v391 = vpop.f32.mrf.mxu0
      %v392 = vadd.f32 %v345, %v391
      %v393 = vpop.f32.mrf.mxu0
      %v394 = vadd.f32 %v345, %v393
      %395 = vdwg.mxu0
      %v396 = vpack.c.bf16 %v387, %v387
      %v397 = vpack.c.bf16 %v389, %v389
      %v398 = vpack.c.bf16 %v392, %v392
      %v399 = vpack.c.bf16 %v394, %v394
      %vm400 = vcmask 519168
      %401 = vst.msk [vmem:[%s267] sm:$0xf] %vm400, %v396
      %402 = vst.msk [vmem:[%s267 + $0x4] sm:$0xf] %vm400, %v397
      %403 = vst.msk [vmem:[%s267 + $0x8] sm:$0xf] %vm400, %v398
      %404 = vst.msk [vmem:[%s267 + $0xc] sm:$0xf] %vm400, %v399
      %s405 = smul.u32 4, %s18
      %p406 = scmp.lt.s32.totalorder %s405, 7
      %s407 = scalar_select %p406, %s405, 7
      %s408 = smul.addr %s407, 8
      %s409 = scalar_lea.vmem %s5, %s408
      %s410 = smul.u32 4, %s18
      %p411 = scmp.lt.s32.totalorder %s410, 7
      %s412 = scalar_select %p411, %s410, 7
      %s413 = smul.addr %s412, 4
      %s414 = scalar_lea.vmem %s6, %s413
      // Predicated region
      $region41: #{gravnet_with_noise_filter_forward.33} parent=39 // pred_check
        %p415 = pneg %p146
      $region42: #{gravnet_with_noise_filter_forward.33} parent=39 // pred_check_branch
        %417 = sbr.rel (%p415) target = $region44
      $region43: #{gravnet_with_noise_filter_forward.33} parent=39 // pred_region
        %s418 = smul.u32 4, %s18
      $region44: #{gravnet_with_noise_filter_forward.33} parent=39 // pred_fallthru
        _
      // Predicated region
      $region45: #{gravnet_with_noise_filter_forward.33} parent=39 // pred_check
        %p419 = pneg %p172
      $region46: #{gravnet_with_noise_filter_forward.33} parent=39 // pred_check_branch
        %421 = sbr.rel (%p419) target = $region48
      $region47: #{gravnet_with_noise_filter_forward.33} parent=39 // pred_region
        %s422 = smul.u32 4, %s18
      $region48: #{gravnet_with_noise_filter_forward.33} parent=39 // pred_fallthru
        _
    $region40: #{gravnet_with_noise_filter_forward.33} parent=5 // pred_fallthru
      _
    %p423 = scmp.le.s32.totalorder 2, %s13
    // Predicated region
    $region49: #{gravnet_with_noise_filter_forward.33} parent=5 // pred_check
      %p424 = pneg %p423
    $region50: #{gravnet_with_noise_filter_forward.33} parent=5 // pred_check_branch
      %426 = sbr.rel (%p424) target = $region52
    $region51: #{gravnet_with_noise_filter_forward.33} parent=5 // pred_region
      %s427 = ssub.s32 %s13, 2
      // Predicated region
      $region53: #{gravnet_with_noise_filter_forward.33} parent=51 // pred_check
        %p428 = pneg %p152
      $region54: #{gravnet_with_noise_filter_forward.33} parent=51 // pred_check_branch
        %430 = sbr.rel (%p428) target = $region56
      $region55: #{gravnet_with_noise_filter_forward.33} parent=51 // pred_region
        %s431 = smul.u32 4, %s19
        %p432 = scmp.lt.s32.totalorder %s431, 7
        %s433 = scalar_select %p432, %s431, 7
        %s434 = smul.addr %s433, 8
        %s435 = scalar_lea.vmem %s5, %s434
      $region56: #{gravnet_with_noise_filter_forward.33} parent=51 // pred_fallthru
        _
      // Predicated region
      $region57: #{gravnet_with_noise_filter_forward.33} parent=51 // pred_check
        %p436 = pneg %p178
      $region58: #{gravnet_with_noise_filter_forward.33} parent=51 // pred_check_branch
        %438 = sbr.rel (%p436) target = $region60
      $region59: #{gravnet_with_noise_filter_forward.33} parent=51 // pred_region
        %s439 = smul.u32 4, %s19
        %p440 = scmp.lt.s32.totalorder %s439, 7
        %s441 = scalar_select %p440, %s439, 7
        %s442 = smul.addr %s441, 4
        %s443 = scalar_lea.vmem %s6, %s442
      $region60: #{gravnet_with_noise_filter_forward.33} parent=51 // pred_fallthru
        _
    $region52: #{gravnet_with_noise_filter_forward.33} parent=5 // pred_fallthru
      _
  $region6: #{gravnet_with_noise_filter_forward.33} parent=0 // loop_footer
    %s17 = sadd.s32 1, %s13
  $region7: #{gravnet_with_noise_filter_forward.33} parent=0 // loop_footer_branch
    %12 = sbr.rel target = $region3
  $region8: #{gravnet_with_noise_filter_forward.33} parent=0 // loop_exit
    _

// kernel: gravnet_with_noise_filter_forward.34
$region0: #{gravnet_with_noise_filter_forward.34}
  #allocation0 [shape = 'u32[]', space=smem, size = 0x4, offset = 0x4, fixed_abs, tag = 'smem constant byte address 0x4 - core index']
  #allocation1 [shape = 'u32[72,128]{1,0:T(1,128)}', space=vmem, size = 0x9000, scoped, tag = 'internal scratch']
  %s0 = inlined_call_operand.vmem [shape: f32[64,4], index: 0, kind: input, shape index: {}, may-alias: {0,2}]
  %s1 = inlined_call_operand.vmem [shape: s32[64,1], index: 1, kind: input, shape index: {}]
  %s2 = inlined_call_operand.vmem [shape: f32[64,4], index: 2, kind: input, shape index: {}, may-alias: {0,2}]
  %s3 = inlined_call_operand.vmem [shape: bf16[64,64], index: 3, kind: input, shape index: {}]
  %s4 = inlined_call_operand.vmem [shape: s32[1,64], index: 4, kind: input, shape index: {}]
  %s5 = inlined_call_operand.vmem [shape: f32[1,64], index: 5, kind: input, shape index: {}]
  %s6 = inlined_call_operand.vmem [shape: f32[64,128], index: 6, kind: output, shape index: {}]
  %s7 = sld [smem:[#allocation0]]
  $region64: #{gravnet_with_noise_filter_forward.34} parent=0
    _
  %s9 = ssub.s32 1, %s7
  %s10 = scalar_select 0, %s9, %s7
  loop: start=0, step=1, limit=4
  $region2: #{gravnet_with_noise_filter_forward.34} parent=0 // loop_pre_header
    _
  $region3: #{gravnet_with_noise_filter_forward.34} parent=0 // loop_header
    %s12 = sphi 0, %s16
    %p13 = scmp.ge.s32.totalorder %s12, 4
    %s22 = sphi 0, %s24
    %s25 = sphi 0, %s22
    %s26 = sphi 0, %s25
    %s42 = sphi 0, %s26
    %s48 = sphi 0, %s50
    %s51 = sphi 0, %s48
    %s52 = sphi 0, %s51
    %s68 = sphi 0, %s52
    %s72 = sphi 0, %s72
    %s74 = sphi 0, %s72
    %s75 = sphi 0, %s74
    %s89 = sphi 0, %s75
    %s93 = sphi 0, %s93
    %s95 = sphi 0, %s93
    %s96 = sphi 0, %s95
    %s110 = sphi 0, %s96
    %s114 = sphi 0, %s114
    %s116 = sphi 0, %s114
    %s117 = sphi 0, %s116
    %s131 = sphi 0, %s117
    %s135 = sphi 0, %s135
    %s137 = sphi 0, %s135
    %s138 = sphi 0, %s137
    %s152 = sphi 0, %s138
    %s158 = sphi 0, %s160
    %s161 = sphi 0, %s158
    %s162 = sphi 0, %s161
    %s178 = sphi 0, %s162
  $region4: #{gravnet_with_noise_filter_forward.34} parent=0 // loop_header_branch
    %15 = sbr.rel (%p13) target = $region8
  $region5: #{gravnet_with_noise_filter_forward.34} parent=0 // loop_body
    %s17 = ssub.s32 %s12, 1
    %s18 = ssub.s32 %s12, 2
    %s19 = sadd.s32 %s12, 1
    %s20 = ssub.s32 %s12, %s19
    %p21 = scmp.eq.s32.totalorder %s20, 0
    %s23 = sadd.s32 %s22, 1
    %s24 = scalar_select %p21, %s22, %s23
    %p27 = pneg %p21
    %p28 = scmp.eq.s32.totalorder %s12, 1
    %p29 = por %p27, %p28
    %p30 = scmp.ne.s32.totalorder %s22, %s25
    %p31 = scmp.eq.s32.totalorder %s12, 0
    %p32 = por %p30, %p31
    %p33 = scmp.ne.s32.totalorder %s22, %s25
    %p34 = scmp.eq.s32.totalorder %s17, 1
    %p35 = por %p33, %p34
    %p36 = scmp.ne.s32.totalorder %s25, %s26
    %p37 = scmp.eq.s32.totalorder %s17, 0
    %p38 = por %p36, %p37
    %p39 = scmp.ne.s32.totalorder %s25, %s26
    %p40 = scmp.eq.s32.totalorder %s18, 1
    %p41 = por %p39, %p40
    %p43 = scmp.ne.s32.totalorder %s26, %s42
    %p44 = scmp.eq.s32.totalorder %s18, 0
    %p45 = por %p43, %p44
    %s46 = ssub.s32 %s12, %s19
    %p47 = scmp.eq.s32.totalorder %s46, 0
    %s49 = sadd.s32 %s48, 1
    %s50 = scalar_select %p47, %s48, %s49
    %p53 = pneg %p47
    %p54 = scmp.eq.s32.totalorder %s12, 1
    %p55 = por %p53, %p54
    %p56 = scmp.ne.s32.totalorder %s48, %s51
    %p57 = scmp.eq.s32.totalorder %s12, 0
    %p58 = por %p56, %p57
    %p59 = scmp.ne.s32.totalorder %s48, %s51
    %p60 = scmp.eq.s32.totalorder %s17, 1
    %p61 = por %p59, %p60
    %p62 = scmp.ne.s32.totalorder %s51, %s52
    %p63 = scmp.eq.s32.totalorder %s17, 0
    %p64 = por %p62, %p63
    %p65 = scmp.ne.s32.totalorder %s51, %s52
    %p66 = scmp.eq.s32.totalorder %s18, 1
    %p67 = por %p65, %p66
    %p69 = scmp.ne.s32.totalorder %s52, %s68
    %p70 = scmp.eq.s32.totalorder %s18, 0
    %p71 = por %p69, %p70
    %s73 = sadd.s32 %s72, 1
    %p76 = scmp.eq.s32.totalorder %s12, 1
    %p77 = scmp.ne.s32.totalorder %s72, %s74
    %p78 = scmp.eq.s32.totalorder %s12, 0
    %p79 = por %p77, %p78
    %p80 = scmp.ne.s32.totalorder %s72, %s74
    %p81 = scmp.eq.s32.totalorder %s17, 1
    %p82 = por %p80, %p81
    %p83 = scmp.ne.s32.totalorder %s74, %s75
    %p84 = scmp.eq.s32.totalorder %s17, 0
    %p85 = por %p83, %p84
    %p86 = scmp.ne.s32.totalorder %s74, %s75
    %p87 = scmp.eq.s32.totalorder %s18, 1
    %p88 = por %p86, %p87
    %p90 = scmp.ne.s32.totalorder %s75, %s89
    %p91 = scmp.eq.s32.totalorder %s18, 0
    %p92 = por %p90, %p91
    %s94 = sadd.s32 %s93, 1
    %p97 = scmp.eq.s32.totalorder %s12, 1
    %p98 = scmp.ne.s32.totalorder %s93, %s95
    %p99 = scmp.eq.s32.totalorder %s12, 0
    %p100 = por %p98, %p99
    %p101 = scmp.ne.s32.totalorder %s93, %s95
    %p102 = scmp.eq.s32.totalorder %s17, 1
    %p103 = por %p101, %p102
    %p104 = scmp.ne.s32.totalorder %s95, %s96
    %p105 = scmp.eq.s32.totalorder %s17, 0
    %p106 = por %p104, %p105
    %p107 = scmp.ne.s32.totalorder %s95, %s96
    %p108 = scmp.eq.s32.totalorder %s18, 1
    %p109 = por %p107, %p108
    %p111 = scmp.ne.s32.totalorder %s96, %s110
    %p112 = scmp.eq.s32.totalorder %s18, 0
    %p113 = por %p111, %p112
    %s115 = sadd.s32 %s114, 1
    %p118 = scmp.eq.s32.totalorder %s12, 1
    %p119 = scmp.ne.s32.totalorder %s114, %s116
    %p120 = scmp.eq.s32.totalorder %s12, 0
    %p121 = por %p119, %p120
    %p122 = scmp.ne.s32.totalorder %s114, %s116
    %p123 = scmp.eq.s32.totalorder %s17, 1
    %p124 = por %p122, %p123
    %p125 = scmp.ne.s32.totalorder %s116, %s117
    %p126 = scmp.eq.s32.totalorder %s17, 0
    %p127 = por %p125, %p126
    %p128 = scmp.ne.s32.totalorder %s116, %s117
    %p129 = scmp.eq.s32.totalorder %s18, 1
    %p130 = por %p128, %p129
    %p132 = scmp.ne.s32.totalorder %s117, %s131
    %p133 = scmp.eq.s32.totalorder %s18, 0
    %p134 = por %p132, %p133
    %s136 = sadd.s32 %s135, 1
    %p139 = scmp.eq.s32.totalorder %s12, 1
    %p140 = scmp.ne.s32.totalorder %s135, %s137
    %p141 = scmp.eq.s32.totalorder %s12, 0
    %p142 = por %p140, %p141
    %p143 = scmp.ne.s32.totalorder %s135, %s137
    %p144 = scmp.eq.s32.totalorder %s17, 1
    %p145 = por %p143, %p144
    %p146 = scmp.ne.s32.totalorder %s137, %s138
    %p147 = scmp.eq.s32.totalorder %s17, 0
    %p148 = por %p146, %p147
    %p149 = scmp.ne.s32.totalorder %s137, %s138
    %p150 = scmp.eq.s32.totalorder %s18, 1
    %p151 = por %p149, %p150
    %p153 = scmp.ne.s32.totalorder %s138, %s152
    %p154 = scmp.eq.s32.totalorder %s18, 0
    %p155 = por %p153, %p154
    %s156 = ssub.s32 %s12, %s19
    %p157 = scmp.eq.s32.totalorder %s156, 0
    %s159 = sadd.s32 %s158, 1
    %s160 = scalar_select %p157, %s158, %s159
    %p163 = pneg %p157
    %p164 = scmp.eq.s32.totalorder %s12, 1
    %p165 = por %p163, %p164
    %p166 = scmp.ne.s32.totalorder %s158, %s161
    %p167 = scmp.eq.s32.totalorder %s12, 0
    %p168 = por %p166, %p167
    %p169 = scmp.ne.s32.totalorder %s158, %s161
    %p170 = scmp.eq.s32.totalorder %s17, 1
    %p171 = por %p169, %p170
    %p172 = scmp.ne.s32.totalorder %s161, %s162
    %p173 = scmp.eq.s32.totalorder %s17, 0
    %p174 = por %p172, %p173
    %p175 = scmp.ne.s32.totalorder %s161, %s162
    %p176 = scmp.eq.s32.totalorder %s18, 1
    %p177 = por %p175, %p176
    %p179 = scmp.ne.s32.totalorder %s162, %s178
    %p180 = scmp.eq.s32.totalorder %s18, 0
    %p181 = por %p179, %p180
    %p182 = scmp.le.s32.totalorder 1, %s12
    %p183 = scmp.lt.s32.totalorder %s12, 3
    %p184 = pnand %p182, %p183
    %p185 = pneg %p184
    // Predicated region
    $region9: #{gravnet_with_noise_filter_forward.34} parent=5 // pred_check
      _
    $region10: #{gravnet_with_noise_filter_forward.34} parent=5 // pred_check_branch
      %187 = sbr.rel (%p184) target = $region12
    $region11: #{gravnet_with_noise_filter_forward.34} parent=5 // pred_region
      %s188 = ssub.s32 %s12, 1
      // Predicated region
      $region13: #{gravnet_with_noise_filter_forward.34} parent=11 // pred_check
        %p189 = pneg %p85
      $region14: #{gravnet_with_noise_filter_forward.34} parent=11 // pred_check_branch
        %191 = sbr.rel (%p189) target = $region16
      $region15: #{gravnet_with_noise_filter_forward.34} parent=11 // pred_region
        _
      $region16: #{gravnet_with_noise_filter_forward.34} parent=11 // pred_fallthru
        _
      // Predicated region
      $region17: #{gravnet_with_noise_filter_forward.34} parent=11 // pred_check
        %p192 = pneg %p106
      $region18: #{gravnet_with_noise_filter_forward.34} parent=11 // pred_check_branch
        %194 = sbr.rel (%p192) target = $region20
      $region19: #{gravnet_with_noise_filter_forward.34} parent=11 // pred_region
        _
      $region20: #{gravnet_with_noise_filter_forward.34} parent=11 // pred_fallthru
        _
      // Predicated region
      $region21: #{gravnet_with_noise_filter_forward.34} parent=11 // pred_check
        %p195 = pneg %p127
      $region22: #{gravnet_with_noise_filter_forward.34} parent=11 // pred_check_branch
        %197 = sbr.rel (%p195) target = $region24
      $region23: #{gravnet_with_noise_filter_forward.34} parent=11 // pred_region
        _
      $region24: #{gravnet_with_noise_filter_forward.34} parent=11 // pred_fallthru
        _
      // Predicated region
      $region25: #{gravnet_with_noise_filter_forward.34} parent=11 // pred_check
        %p198 = pneg %p148
      $region26: #{gravnet_with_noise_filter_forward.34} parent=11 // pred_check_branch
        %200 = sbr.rel (%p198) target = $region28
      $region27: #{gravnet_with_noise_filter_forward.34} parent=11 // pred_region
        _
      $region28: #{gravnet_with_noise_filter_forward.34} parent=11 // pred_fallthru
        _
    $region12: #{gravnet_with_noise_filter_forward.34} parent=5 // pred_fallthru
      _
    %p201 = scmp.lt.s32.totalorder %s12, 2
    // Predicated region
    $region29: #{gravnet_with_noise_filter_forward.34} parent=5 // pred_check
      %p202 = pneg %p201
    $region30: #{gravnet_with_noise_filter_forward.34} parent=5 // pred_check_branch
      %204 = sbr.rel (%p202) target = $region32
    $region31: #{gravnet_with_noise_filter_forward.34} parent=5 // pred_region
      // Predicated region
      $region33: #{gravnet_with_noise_filter_forward.34} parent=31 // pred_check
        %p205 = pneg %p32
      $region34: #{gravnet_with_noise_filter_forward.34} parent=31 // pred_check_branch
        %207 = sbr.rel (%p205) target = $region36
      $region35: #{gravnet_with_noise_filter_forward.34} parent=31 // pred_region
        %s208 = smul.u32 4, %s12
        %p209 = scmp.lt.s32.totalorder %s208, 7
        %s210 = scalar_select %p209, %s208, 7
        %s211 = smul.addr %s210, 8
        %s212 = scalar_lea.vmem %s0, %s211
        %s213 = smul.u32 4, %s12
      $region36: #{gravnet_with_noise_filter_forward.34} parent=31 // pred_fallthru
        _
      // Predicated region
      $region37: #{gravnet_with_noise_filter_forward.34} parent=31 // pred_check
        %p214 = pneg %p58
      $region38: #{gravnet_with_noise_filter_forward.34} parent=31 // pred_check_branch
        %216 = sbr.rel (%p214) target = $region40
      $region39: #{gravnet_with_noise_filter_forward.34} parent=31 // pred_region
        %s217 = smul.u32 4, %s12
        %p218 = scmp.lt.s32.totalorder %s217, 7
        %s219 = scalar_select %p218, %s217, 7
        %s220 = smul.addr %s219, 8
        %s221 = scalar_lea.vmem %s1, %s220
        %s222 = smul.u32 4, %s12
      $region40: #{gravnet_with_noise_filter_forward.34} parent=31 // pred_fallthru
        _
    $region32: #{gravnet_with_noise_filter_forward.34} parent=5 // pred_fallthru
      _
    %p223 = scmp.le.s32.totalorder 1, %s12
    %p224 = scmp.lt.s32.totalorder %s12, 3
    %p225 = pnand %p223, %p224
    %p226 = pneg %p225
    // Predicated region
    $region41: #{gravnet_with_noise_filter_forward.34} parent=5 // pred_check
      _
    $region42: #{gravnet_with_noise_filter_forward.34} parent=5 // pred_check_branch
      %228 = sbr.rel (%p225) target = $region44
    $region43: #{gravnet_with_noise_filter_forward.34} parent=5 // pred_region
      %s229 = ssub.s32 %s12, 1
      %s230 = smul.u32 4, %s17
      %p231 = scmp.lt.s32.totalorder %s230, 7
      %s232 = scalar_select %p231, %s230, 7
      %s233 = smul.addr %s232, 8
      %s234 = scalar_lea.vmem %s0, %s233
      %p235 = pneg %p38
      %p236 = pneg %p35
      %s237 = smul.u32 4, %s17
      %p238 = scmp.lt.s32.totalorder %s237, 7
      %s239 = scalar_select %p238, %s237, 7
      %s240 = smul.addr %s239, 8
      %s241 = scalar_lea.vmem %s1, %s240
      %p242 = pneg %p64
      %p243 = pneg %p61
      %p244 = pneg %p85
      %p245 = pneg %p82
      %p246 = pneg %p106
      %p247 = pneg %p103
      %p248 = pneg %p127
      %p249 = pneg %p124
      %p250 = pneg %p148
      %p251 = pneg %p145
      %p252 = pneg %p174
      %p253 = pneg %p171
      %s254 = smul.u32 4, %s17
      %p255 = scmp.lt.s32.totalorder %s254, 7
      %s256 = scalar_select %p255, %s254, 7
      %s257 = smul.addr %s256, 8
      %s258 = scalar_lea.vmem %s6, %s257
      %s259 = smul.u32 4, %s17
      %p260 = scmp.lt.s32.totalorder %s259, 7
      %s261 = scalar_select %p260, %s259, 7
      %s262 = smul.addr %s261, 8
      %s263 = scalar_lea.vmem %s0, %s262
      %s264 = smul.u32 4, %s17
      %s265 = smul.u32 4, %s17
      %p266 = scmp.lt.s32.totalorder %s265, 7
      %s267 = scalar_select %p266, %s265, 7
      %s268 = smul.addr %s267, 8
      %s269 = scalar_lea.vmem %s1, %s268
      %s270 = smul.u32 4, %s17
      %s271 = smul.u32 4, %s17
      %p272 = scmp.lt.s32.totalorder %s271, 7
      %s273 = scalar_select %p272, %s271, 7
      %s274 = smul.addr %s273, 8
      %s275 = scalar_lea.vmem %s6, %s274
      %s276 = smul.u32 4, %s17
      %v278 = vld [vmem:[%s263] sm:$0xff]
      %v279 = vld [vmem:[%s263 + $0x8] sm:$0xff]
      %v280 = vld [vmem:[%s263 + $0x10] sm:$0xff]
      %v281 = vld [vmem:[%s263 + $0x18] sm:$0xff]
      %v282 = vld [vmem:[%s2] sm:$0xff]
      %v283 = vld [vmem:[%s2 + $0x8] sm:$0xff]
      %v284 = vld [vmem:[%s2 + $0x10] sm:$0xff]
      %v285 = vld [vmem:[%s2 + $0x18] sm:$0xff]
      %v286 = vld [vmem:[%s2 + $0x20] sm:$0xff]
      %v287 = vld [vmem:[%s2 + $0x28] sm:$0xff]
      %v288 = vld [vmem:[%s2 + $0x30] sm:$0xff]
      %v289 = vld [vmem:[%s2 + $0x38] sm:$0xff]
      %v290 = vld [vmem:[%s3] sm:$0xf]
      %v291 = vld [vmem:[%s3 + $0x4] sm:$0xf]
      %v292 = vld [vmem:[%s3 + $0x8] sm:$0xf]
      %v293 = vld [vmem:[%s3 + $0xc] sm:$0xf]
      %v294 = vld [vmem:[%s3 + $0x10] sm:$0xf]
      %v295 = vld [vmem:[%s3 + $0x14] sm:$0xf]
      %v296 = vld [vmem:[%s3 + $0x18] sm:$0xf]
      %v297 = vld [vmem:[%s3 + $0x1c] sm:$0xf]
      %vm298 = vcmask 31744
      %v300 = vsel %vm298, %v278, 0
      %v303 = vsel %vm298, %v279, 0
      %v306 = vsel %vm298, %v280, 0
      %v309 = vsel %vm298, %v281, 0
      %v312 = vsel %vm298, %v282, 0
      %v315 = vsel %vm298, %v283, 0
      %v318 = vsel %vm298, %v284, 0
      %v321 = vsel %vm298, %v285, 0
      %v324 = vsel %vm298, %v286, 0
      %v327 = vsel %vm298, %v287, 0
      %v330 = vsel %vm298, %v288, 0
      %v333 = vsel %vm298, %v289, 0
      %335 = vmatpush.xpose.msra.mxu0 0.0
      %336 = vmatpush.xpose.msra.mxu0 0.0
      %337 = vmatpush.xpose.msra.mxu0 0.0
      %338 = vmatpush.xpose.msra.mxu0 0.0
      %339 = vmatpush.xpose.msra.mxu0 0.0
      %340 = vmatpush.xpose.msra.mxu0 0.0
      %341 = vmatpush.xpose.msra.mxu0 0.0
      %342 = vmatpush.xpose.msra.mxu0 0.0
      %343 = vmatpush.xpose.msra.mxu0 %v333
      %344 = vmatpush.xpose.msra.mxu0 %v330
      %345 = vmatpush.xpose.msra.mxu0 %v327
      %346 = vmatpush.xpose.msra.mxu0 %v324
      %347 = vmatpush.xpose.msra.mxu0 %v321
      %348 = vmatpush.xpose.msra.mxu0 %v318
      %349 = vmatpush.xpose.msra.mxu0 %v315
      %350 = vmatpush.xpose.msra.mxu0 %v312
      %351 = vmatmul.f32.gmra.mxu0 %v300
      %v352 = vpop.f32.mrf.mxu0
      %v353 = vadd.f32 0.0, %v352
      %354 = vmatmul.f32.gmra.mxu0 %v303
      %v355 = vpop.f32.mrf.mxu0
      %v356 = vadd.f32 0.0, %v355
      %357 = vmatmul.f32.gmra.mxu0 %v306
      %v358 = vpop.f32.mrf.mxu0
      %v359 = vadd.f32 0.0, %v358
      %360 = vmatmul.f32.gmra.mxu0 %v309
      %v361 = vpop.f32.mrf.mxu0
      %v362 = vadd.f32 0.0, %v361
      %363 = vdwg.mxu0
      %v364 = vmul.f32 %v278, %v278
      %v365 = vmul.f32 %v279, %v279
      %v366 = vmul.f32 %v280, %v280
      %v367 = vmul.f32 %v281, %v281
      %v368 = vsel %vm298, %v364, 0.0
      %369 = vadd.xlane.f32.xlu0 %v368
      %v370 = vpop.xlane.xlu0 %369
      %v371 = vsel %vm298, %v365, 0.0
      %372 = vadd.xlane.f32.xlu0 %v371
      %v373 = vpop.xlane.xlu0 %372
      %v374 = vsel %vm298, %v366, 0.0
      %375 = vadd.xlane.f32.xlu0 %v374
      %v376 = vpop.xlane.xlu0 %375
      %v377 = vsel %vm298, %v367, 0.0
      %378 = vadd.xlane.f32.xlu0 %v377
      %v379 = vpop.xlane.xlu0 %378
      %v380 = vld [vmem:[%s269] sm:$0xff]
      %v381 = vld [vmem:[%s269 + $0x8] sm:$0xff]
      %v382 = vld [vmem:[%s269 + $0x10] sm:$0xff]
      %v383 = vld [vmem:[%s269 + $0x18] sm:$0xff]
      %v384 = vld [vmem:[%s4] sm:$0x1]
      %385 = vset.pattern.permute.xlu0 0
      %386 = vperm.xlu0 %385, %v380
      %v387 = vpop.permute.xlu0 %386
      %388 = vset.pattern.permute.xlu0 0
      %389 = vperm.xlu0 %388, %v381
      %v390 = vpop.permute.xlu0 %389
      %391 = vset.pattern.permute.xlu0 0
      %392 = vperm.xlu0 %391, %v382
      %v393 = vpop.permute.xlu0 %392
      %394 = vset.pattern.permute.xlu0 0
      %395 = vperm.xlu0 %394, %v383
      %v396 = vpop.permute.xlu0 %395
      %v397 = vperm.slane %v384, 0
      %vm398 = vcmp.eq.s32.totalorder %v387, %v397
      %vm399 = vcmp.eq.s32.totalorder %v390, %v397
      %vm400 = vcmp.eq.s32.totalorder %v393, %v397
      %vm401 = vcmp.eq.s32.totalorder %v396, %v397
      %v402 = vld [vmem:[%s5] sm:$0x1]
      %v404 = vperm.slane %v402, 0
      %v406 = vadd.f32 %v370, %v404
      %v407 = vadd.f32 %v373, %v404
      %v408 = vadd.f32 %v376, %v404
      %v409 = vadd.f32 %v379, %v404
      %v410 = vmul.f32 %v353, 2.0
      %v411 = vmul.f32 %v356, 2.0
      %v412 = vmul.f32 %v359, 2.0
      %v413 = vmul.f32 %v362, 2.0
      %v414 = vsub.f32 %v406, %v410
      %v415 = vsub.f32 %v407, %v411
      %v416 = vsub.f32 %v408, %v412
      %v417 = vsub.f32 %v409, %v413
      %v418 = vmax.f32 %v414, 0.0
      %v419 = vmax.f32 %v415, 0.0
      %v420 = vmax.f32 %v416, 0.0
      %v421 = vmax.f32 %v417, 0.0
      %v422 = vsel %vm398, %v418, 1e+09
      %v423 = vsel %vm399, %v419, 1e+09
      %v424 = vsel %vm400, %v420, 1e+09
      %v425 = vsel %vm401, %v421, 1e+09
      %v426 = vlaneseq
      %v427 = vand.u32 %v426, 127
      %v432 = vand.u32 %v422, 4294967232
      %v433 = vand.u32 %v423, 4294967232
      %v434 = vand.u32 %v424, 4294967232
      %v435 = vand.u32 %v425, 4294967232
      %v436 = vor.u32 %v432, %v427
      %v437 = vor.u32 %v433, %v427
      %v438 = vor.u32 %v434, %v427
      %v439 = vor.u32 %v435, %v427
      loop: start=0, step=1, limit=8
      $region45: #{gravnet_with_noise_filter_forward.34} parent=43 // loop_pre_header
        _
      $region46: #{gravnet_with_noise_filter_forward.34} parent=43 // loop_header
        %s441 = sphi 0, %s445
        %p442 = scmp.ge.s32.totalorder %s441, 8
        %v446 = vphi %v436, %v614
        %v447 = vphi %v437, %v615
        %v448 = vphi %v438, %v616
        %v449 = vphi %v439, %v617
        %v450 = vphi 0.0, %v618
        %v451 = vphi 0.0, %v619
        %v452 = vphi 0.0, %v620
        %v453 = vphi 0.0, %v621
        %v454 = vphi -1e+30, %v622
        %v455 = vphi -1e+30, %v623
        %v456 = vphi -1e+30, %v624
        %v457 = vphi -1e+30, %v625
      $region47: #{gravnet_with_noise_filter_forward.34} parent=43 // loop_header_branch
        %444 = sbr.rel (%p442) target = $region51
      $region48: #{gravnet_with_noise_filter_forward.34} parent=43 // loop_body
        %vm458 = vcmask 523264
        %v459 = vsel %vm458, %v446, 2147483647
        %v460 = vand.u32 %v459, 65535
        %v461 = vshra.s32 %v459, 16
        %v462 = vcvt.s32.f32 %v460
        %v463 = vcvt.s32.f32 %v461
        %464 = vmin.xlane.f32.xlu0 %v463
        %v465 = vpop.xlane.xlu0 %464
        %vm466 = vcmp.eq.f32.partialorder %v463, %v465
        %v467 = vsel %vm466, %v462, inf
        %468 = vmin.xlane.f32.xlu0 %v467
        %v469 = vpop.xlane.xlu0 %468
        %v470 = vcvt.f32.s32 %v469
        %v471 = vcvt.f32.s32 %v465
        %v472 = vshll.u32 %v471, 16
        %v473 = vadd.s32 %v472, %v470
        %v474 = vsel %vm458, %v447, 2147483647
        %v475 = vand.u32 %v474, 65535
        %v476 = vshra.s32 %v474, 16
        %v477 = vcvt.s32.f32 %v475
        %v478 = vcvt.s32.f32 %v476
        %479 = vmin.xlane.f32.xlu0 %v478
        %v480 = vpop.xlane.xlu0 %479
        %vm481 = vcmp.eq.f32.partialorder %v478, %v480
        %v482 = vsel %vm481, %v477, inf
        %483 = vmin.xlane.f32.xlu0 %v482
        %v484 = vpop.xlane.xlu0 %483
        %v485 = vcvt.f32.s32 %v484
        %v486 = vcvt.f32.s32 %v480
        %v487 = vshll.u32 %v486, 16
        %v488 = vadd.s32 %v487, %v485
        %v489 = vsel %vm458, %v448, 2147483647
        %v490 = vand.u32 %v489, 65535
        %v491 = vshra.s32 %v489, 16
        %v492 = vcvt.s32.f32 %v490
        %v493 = vcvt.s32.f32 %v491
        %494 = vmin.xlane.f32.xlu0 %v493
        %v495 = vpop.xlane.xlu0 %494
        %vm496 = vcmp.eq.f32.partialorder %v493, %v495
        %v497 = vsel %vm496, %v492, inf
        %498 = vmin.xlane.f32.xlu0 %v497
        %v499 = vpop.xlane.xlu0 %498
        %v500 = vcvt.f32.s32 %v499
        %v501 = vcvt.f32.s32 %v495
        %v502 = vshll.u32 %v501, 16
        %v503 = vadd.s32 %v502, %v500
        %v504 = vsel %vm458, %v449, 2147483647
        %v505 = vand.u32 %v504, 65535
        %v506 = vshra.s32 %v504, 16
        %v507 = vcvt.s32.f32 %v505
        %v508 = vcvt.s32.f32 %v506
        %509 = vmin.xlane.f32.xlu0 %v508
        %v510 = vpop.xlane.xlu0 %509
        %vm511 = vcmp.eq.f32.partialorder %v508, %v510
        %v512 = vsel %vm511, %v507, inf
        %513 = vmin.xlane.f32.xlu0 %v512
        %v514 = vpop.xlane.xlu0 %513
        %v515 = vcvt.f32.s32 %v514
        %v516 = vcvt.f32.s32 %v510
        %v517 = vshll.u32 %v516, 16
        %v518 = vadd.s32 %v517, %v515
        %vm519 = vcmp.eq.s32.totalorder %v446, %v473
        %vm520 = vcmp.eq.s32.totalorder %v447, %v488
        %vm521 = vcmp.eq.s32.totalorder %v448, %v503
        %vm522 = vcmp.eq.s32.totalorder %v449, %v518
        %v523 = vsel %vm519, 1, 0
        %v524 = vsel %vm520, 1, 0
        %v525 = vsel %vm521, 1, 0
        %v526 = vsel %vm522, 1, 0
        %v527 = vcvt.s32.f32 %v523
        %v528 = vcvt.s32.f32 %v524
        %v529 = vcvt.s32.f32 %v525
        %v530 = vcvt.s32.f32 %v526
        %v531 = vpack.c.bf16 %v528, %v527
        %v532 = vpack.c.bf16 %v530, %v529
        %v541 = vunpack.c.l.b16 %v290
        %v542 = vunpack.c.l.b16 %v291
        %v543 = vunpack.c.l.b16 %v292
        %v544 = vunpack.c.l.b16 %v293
        %v545 = vunpack.c.l.b16 %v294
        %v546 = vunpack.c.l.b16 %v295
        %v547 = vunpack.c.l.b16 %v296
        %v548 = vunpack.c.l.b16 %v297
        %v549 = vpack.c.b16 %v542, %v541
        %v550 = vpack.c.b16 %v544, %v543
        %v551 = vpack.c.b16 %v546, %v545
        %v552 = vpack.c.b16 %v548, %v547
        %v558 = vsel %vm458, %v531, 0
        %v561 = vsel %vm458, %v532, 0
        %563 = vmatpush.bf16.msra.mxu0 0
        %564 = vmatpush.bf16.msra.mxu0 0
        %565 = vmatpush.bf16.msra.mxu0 0
        %566 = vmatpush.bf16.msra.mxu0 0
        %567 = vmatpush.bf16.msra.mxu0 %v552
        %568 = vmatpush.bf16.msra.mxu0 %v551
        %569 = vmatpush.bf16.msra.mxu0 %v550
        %570 = vmatpush.bf16.msra.mxu0 %v549
        %571 = vmatmul.bf16.gmra.mxu0 %v558
        %v572 = vpop.f32.mrf.mxu0
        %v573 = vadd.f32 0.0, %v572
        %v574 = vpop.f32.mrf.mxu0
        %v575 = vadd.f32 0.0, %v574
        %576 = vmatmul.bf16.gmra.mxu0 %v561
        %v577 = vpop.f32.mrf.mxu0
        %v578 = vadd.f32 0.0, %v577
        %v579 = vpop.f32.mrf.mxu0
        %v580 = vadd.f32 0.0, %v579
        %581 = vdwg.mxu0
        %v582 = vand.u32 %v473, 4294967232
        %v583 = vand.u32 %v488, 4294967232
        %v584 = vand.u32 %v503, 4294967232
        %v585 = vand.u32 %v518, 4294967232
        %vm590 = vcmp.lt.s32.totalorder %v473, 2147483647
        %vm591 = vcmp.lt.s32.totalorder %v488, 2147483647
        %vm592 = vcmp.lt.s32.totalorder %v503, 2147483647
        %vm593 = vcmp.lt.s32.totalorder %v518, 2147483647
        %v594 = vmul.f32 %v582, -10.0
        %v595 = vmul.f32 %v583, -10.0
        %v596 = vmul.f32 %v584, -10.0
        %v597 = vmul.f32 %v585, -10.0
        %v598 = vmul.f32 %v594, 1.442695
        %v599 = vpow.pop %v598
        %v600 = vmul.f32 %v595, 1.442695
        %v601 = vpow.pop %v600
        %v602 = vmul.f32 %v596, 1.442695
        %v603 = vpow.pop %v602
        %v604 = vmul.f32 %v597, 1.442695
        %v605 = vpow.pop %v604
        %v606 = vsel %vm590, %v599, 0.0
        %v607 = vsel %vm591, %v601, 0.0
        %v608 = vsel %vm592, %v603, 0.0
        %v609 = vsel %vm593, %v605, 0.0
        %v610 = vmul.f32 %v606, %v573
        %v611 = vmul.f32 %v607, %v575
        %v612 = vmul.f32 %v608, %v578
        %v613 = vmul.f32 %v609, %v580
        %v614 = vsel %vm519, 2147483647, %v446
        %v615 = vsel %vm520, 2147483647, %v447
        %v616 = vsel %vm521, 2147483647, %v448
        %v617 = vsel %vm522, 2147483647, %v449
        %v618 = vadd.f32 %v450, %v610
        %v619 = vadd.f32 %v451, %v611
        %v620 = vadd.f32 %v452, %v612
        %v621 = vadd.f32 %v453, %v613
        %v622 = vmax.f32 %v454, %v610
        %v623 = vmax.f32 %v455, %v611
        %v624 = vmax.f32 %v456, %v612
        %v625 = vmax.f32 %v457, %v613
      $region49: #{gravnet_with_noise_filter_forward.34} parent=43 // loop_footer
        %s445 = sadd.s32 1, %s441
      $region50: #{gravnet_with_noise_filter_forward.34} parent=43 // loop_footer_branch
        %440 = sbr.rel target = $region46
      $region51: #{gravnet_with_noise_filter_forward.34} parent=43 // loop_exit
        _
      %v626 = vmul.f32 %v450, 0.125
      %v627 = vmul.f32 %v451, 0.125
      %v628 = vmul.f32 %v452, 0.125
      %v629 = vmul.f32 %v453, 0.125
      %634 = vrot.lane.b32.xlu0 %v454, 64
      %v635 = vpop.permute.xlu0 %634
      %636 = vrot.lane.b32.xlu0 %v455, 64
      %v637 = vpop.permute.xlu0 %636
      %638 = vrot.lane.b32.xlu0 %v456, 64
      %v639 = vpop.permute.xlu0 %638
      %640 = vrot.lane.b32.xlu0 %v457, 64
      %v641 = vpop.permute.xlu0 %640
      %vm646 = vcmask 523264
      %v647 = vsel %vm646, %v626, %v635
      %v648 = vsel %vm646, %v627, %v637
      %v649 = vsel %vm646, %v628, %v639
      %v650 = vsel %vm646, %v629, %v641
      %651 = vst [vmem:[%s275] sm:$0xff] %v647
      %652 = vst [vmem:[%s275 + $0x8] sm:$0xff] %v648
      %653 = vst [vmem:[%s275 + $0x10] sm:$0xff] %v649
      %654 = vst [vmem:[%s275 + $0x18] sm:$0xff] %v650
      %s655 = smul.u32 4, %s17
      %p656 = scmp.lt.s32.totalorder %s655, 7
      %s657 = scalar_select %p656, %s655, 7
      %s658 = smul.addr %s657, 8
      %s659 = scalar_lea.vmem %s6, %s658
      // Predicated region
      $region52: #{gravnet_with_noise_filter_forward.34} parent=43 // pred_check
        %p660 = pneg %p171
      $region53: #{gravnet_with_noise_filter_forward.34} parent=43 // pred_check_branch
        %662 = sbr.rel (%p660) target = $region55
      $region54: #{gravnet_with_noise_filter_forward.34} parent=43 // pred_region
        %s663 = smul.u32 4, %s17
      $region55: #{gravnet_with_noise_filter_forward.34} parent=43 // pred_fallthru
        _
    $region44: #{gravnet_with_noise_filter_forward.34} parent=5 // pred_fallthru
      _
    %p664 = scmp.le.s32.totalorder 2, %s12
    // Predicated region
    $region56: #{gravnet_with_noise_filter_forward.34} parent=5 // pred_check
      %p665 = pneg %p664
    $region57: #{gravnet_with_noise_filter_forward.34} parent=5 // pred_check_branch
      %667 = sbr.rel (%p665) target = $region59
    $region58: #{gravnet_with_noise_filter_forward.34} parent=5 // pred_region
      %s668 = ssub.s32 %s12, 2
      // Predicated region
      $region60: #{gravnet_with_noise_filter_forward.34} parent=58 // pred_check
        %p669 = pneg %p177
      $region61: #{gravnet_with_noise_filter_forward.34} parent=58 // pred_check_branch
        %671 = sbr.rel (%p669) target = $region63
      $region62: #{gravnet_with_noise_filter_forward.34} parent=58 // pred_region
        %s672 = smul.u32 4, %s18
        %p673 = scmp.lt.s32.totalorder %s672, 7
        %s674 = scalar_select %p673, %s672, 7
        %s675 = smul.addr %s674, 8
        %s676 = scalar_lea.vmem %s6, %s675
      $region63: #{gravnet_with_noise_filter_forward.34} parent=58 // pred_fallthru
        _
    $region59: #{gravnet_with_noise_filter_forward.34} parent=5 // pred_fallthru
      _
  $region6: #{gravnet_with_noise_filter_forward.34} parent=0 // loop_footer
    %s16 = sadd.s32 1, %s12
  $region7: #{gravnet_with_noise_filter_forward.34} parent=0 // loop_footer_branch
    %11 = sbr.rel target = $region3
  $region8: #{gravnet_with_noise_filter_forward.34} parent=0 // loop_exit
    _

// kernel: gravnet_with_noise_filter_forward.35
$region0: #{gravnet_with_noise_filter_forward.35}
  #allocation0 [shape = 'u32[]', space=smem, size = 0x4, offset = 0x4, fixed_abs, tag = 'smem constant byte address 0x4 - core index']
  #allocation1 [shape = 'u32[72,128]{1,0:T(1,128)}', space=vmem, size = 0x9000, scoped, tag = 'internal scratch']
  %s0 = inlined_call_operand.vmem [shape: f32[64,128], index: 0, kind: input, shape index: {}]
  %s1 = inlined_call_operand.vmem [shape: f32[64,64], index: 1, kind: input, shape index: {}]
  %s2 = inlined_call_operand.vmem [shape: bf16[128,96], index: 2, kind: input, shape index: {}]
  %s3 = inlined_call_operand.vmem [shape: bf16[64,96], index: 3, kind: input, shape index: {}]
  %s4 = inlined_call_operand.vmem [shape: f32[1,96], index: 4, kind: input, shape index: {}]
  %s5 = inlined_call_operand.vmem [shape: f32[64,96], index: 5, kind: output, shape index: {}]
  %s6 = sld [smem:[#allocation0]]
  $region53: #{gravnet_with_noise_filter_forward.35} parent=0
    _
  %s8 = ssub.s32 1, %s6
  %s9 = scalar_select 0, %s8, %s6
  loop: start=0, step=1, limit=4
  $region2: #{gravnet_with_noise_filter_forward.35} parent=0 // loop_pre_header
    _
  $region3: #{gravnet_with_noise_filter_forward.35} parent=0 // loop_header
    %s11 = sphi 0, %s15
    %p12 = scmp.ge.s32.totalorder %s11, 4
    %s21 = sphi 0, %s23
    %s24 = sphi 0, %s21
    %s25 = sphi 0, %s24
    %s41 = sphi 0, %s25
    %s47 = sphi 0, %s49
    %s50 = sphi 0, %s47
    %s51 = sphi 0, %s50
    %s67 = sphi 0, %s51
    %s71 = sphi 0, %s71
    %s73 = sphi 0, %s71
    %s74 = sphi 0, %s73
    %s88 = sphi 0, %s74
    %s92 = sphi 0, %s92
    %s94 = sphi 0, %s92
    %s95 = sphi 0, %s94
    %s109 = sphi 0, %s95
    %s113 = sphi 0, %s113
    %s115 = sphi 0, %s113
    %s116 = sphi 0, %s115
    %s130 = sphi 0, %s116
    %s136 = sphi 0, %s138
    %s139 = sphi 0, %s136
    %s140 = sphi 0, %s139
    %s156 = sphi 0, %s140
  $region4: #{gravnet_with_noise_filter_forward.35} parent=0 // loop_header_branch
    %14 = sbr.rel (%p12) target = $region8
  $region5: #{gravnet_with_noise_filter_forward.35} parent=0 // loop_body
    %s16 = ssub.s32 %s11, 1
    %s17 = ssub.s32 %s11, 2
    %s18 = sadd.s32 %s11, 1
    %s19 = ssub.s32 %s11, %s18
    %p20 = scmp.eq.s32.totalorder %s19, 0
    %s22 = sadd.s32 %s21, 1
    %s23 = scalar_select %p20, %s21, %s22
    %p26 = pneg %p20
    %p27 = scmp.eq.s32.totalorder %s11, 1
    %p28 = por %p26, %p27
    %p29 = scmp.ne.s32.totalorder %s21, %s24
    %p30 = scmp.eq.s32.totalorder %s11, 0
    %p31 = por %p29, %p30
    %p32 = scmp.ne.s32.totalorder %s21, %s24
    %p33 = scmp.eq.s32.totalorder %s16, 1
    %p34 = por %p32, %p33
    %p35 = scmp.ne.s32.totalorder %s24, %s25
    %p36 = scmp.eq.s32.totalorder %s16, 0
    %p37 = por %p35, %p36
    %p38 = scmp.ne.s32.totalorder %s24, %s25
    %p39 = scmp.eq.s32.totalorder %s17, 1
    %p40 = por %p38, %p39
    %p42 = scmp.ne.s32.totalorder %s25, %s41
    %p43 = scmp.eq.s32.totalorder %s17, 0
    %p44 = por %p42, %p43
    %s45 = ssub.s32 %s11, %s18
    %p46 = scmp.eq.s32.totalorder %s45, 0
    %s48 = sadd.s32 %s47, 1
    %s49 = scalar_select %p46, %s47, %s48
    %p52 = pneg %p46
    %p53 = scmp.eq.s32.totalorder %s11, 1
    %p54 = por %p52, %p53
    %p55 = scmp.ne.s32.totalorder %s47, %s50
    %p56 = scmp.eq.s32.totalorder %s11, 0
    %p57 = por %p55, %p56
    %p58 = scmp.ne.s32.totalorder %s47, %s50
    %p59 = scmp.eq.s32.totalorder %s16, 1
    %p60 = por %p58, %p59
    %p61 = scmp.ne.s32.totalorder %s50, %s51
    %p62 = scmp.eq.s32.totalorder %s16, 0
    %p63 = por %p61, %p62
    %p64 = scmp.ne.s32.totalorder %s50, %s51
    %p65 = scmp.eq.s32.totalorder %s17, 1
    %p66 = por %p64, %p65
    %p68 = scmp.ne.s32.totalorder %s51, %s67
    %p69 = scmp.eq.s32.totalorder %s17, 0
    %p70 = por %p68, %p69
    %s72 = sadd.s32 %s71, 1
    %p75 = scmp.eq.s32.totalorder %s11, 1
    %p76 = scmp.ne.s32.totalorder %s71, %s73
    %p77 = scmp.eq.s32.totalorder %s11, 0
    %p78 = por %p76, %p77
    %p79 = scmp.ne.s32.totalorder %s71, %s73
    %p80 = scmp.eq.s32.totalorder %s16, 1
    %p81 = por %p79, %p80
    %p82 = scmp.ne.s32.totalorder %s73, %s74
    %p83 = scmp.eq.s32.totalorder %s16, 0
    %p84 = por %p82, %p83
    %p85 = scmp.ne.s32.totalorder %s73, %s74
    %p86 = scmp.eq.s32.totalorder %s17, 1
    %p87 = por %p85, %p86
    %p89 = scmp.ne.s32.totalorder %s74, %s88
    %p90 = scmp.eq.s32.totalorder %s17, 0
    %p91 = por %p89, %p90
    %s93 = sadd.s32 %s92, 1
    %p96 = scmp.eq.s32.totalorder %s11, 1
    %p97 = scmp.ne.s32.totalorder %s92, %s94
    %p98 = scmp.eq.s32.totalorder %s11, 0
    %p99 = por %p97, %p98
    %p100 = scmp.ne.s32.totalorder %s92, %s94
    %p101 = scmp.eq.s32.totalorder %s16, 1
    %p102 = por %p100, %p101
    %p103 = scmp.ne.s32.totalorder %s94, %s95
    %p104 = scmp.eq.s32.totalorder %s16, 0
    %p105 = por %p103, %p104
    %p106 = scmp.ne.s32.totalorder %s94, %s95
    %p107 = scmp.eq.s32.totalorder %s17, 1
    %p108 = por %p106, %p107
    %p110 = scmp.ne.s32.totalorder %s95, %s109
    %p111 = scmp.eq.s32.totalorder %s17, 0
    %p112 = por %p110, %p111
    %s114 = sadd.s32 %s113, 1
    %p117 = scmp.eq.s32.totalorder %s11, 1
    %p118 = scmp.ne.s32.totalorder %s113, %s115
    %p119 = scmp.eq.s32.totalorder %s11, 0
    %p120 = por %p118, %p119
    %p121 = scmp.ne.s32.totalorder %s113, %s115
    %p122 = scmp.eq.s32.totalorder %s16, 1
    %p123 = por %p121, %p122
    %p124 = scmp.ne.s32.totalorder %s115, %s116
    %p125 = scmp.eq.s32.totalorder %s16, 0
    %p126 = por %p124, %p125
    %p127 = scmp.ne.s32.totalorder %s115, %s116
    %p128 = scmp.eq.s32.totalorder %s17, 1
    %p129 = por %p127, %p128
    %p131 = scmp.ne.s32.totalorder %s116, %s130
    %p132 = scmp.eq.s32.totalorder %s17, 0
    %p133 = por %p131, %p132
    %s134 = ssub.s32 %s11, %s18
    %p135 = scmp.eq.s32.totalorder %s134, 0
    %s137 = sadd.s32 %s136, 1
    %s138 = scalar_select %p135, %s136, %s137
    %p141 = pneg %p135
    %p142 = scmp.eq.s32.totalorder %s11, 1
    %p143 = por %p141, %p142
    %p144 = scmp.ne.s32.totalorder %s136, %s139
    %p145 = scmp.eq.s32.totalorder %s11, 0
    %p146 = por %p144, %p145
    %p147 = scmp.ne.s32.totalorder %s136, %s139
    %p148 = scmp.eq.s32.totalorder %s16, 1
    %p149 = por %p147, %p148
    %p150 = scmp.ne.s32.totalorder %s139, %s140
    %p151 = scmp.eq.s32.totalorder %s16, 0
    %p152 = por %p150, %p151
    %p153 = scmp.ne.s32.totalorder %s139, %s140
    %p154 = scmp.eq.s32.totalorder %s17, 1
    %p155 = por %p153, %p154
    %p157 = scmp.ne.s32.totalorder %s140, %s156
    %p158 = scmp.eq.s32.totalorder %s17, 0
    %p159 = por %p157, %p158
    %p160 = scmp.le.s32.totalorder 1, %s11
    %p161 = scmp.lt.s32.totalorder %s11, 3
    %p162 = pnand %p160, %p161
    %p163 = pneg %p162
    // Predicated region
    $region9: #{gravnet_with_noise_filter_forward.35} parent=5 // pred_check
      _
    $region10: #{gravnet_with_noise_filter_forward.35} parent=5 // pred_check_branch
      %165 = sbr.rel (%p162) target = $region12
    $region11: #{gravnet_with_noise_filter_forward.35} parent=5 // pred_region
      %s166 = ssub.s32 %s11, 1
      // Predicated region
      $region13: #{gravnet_with_noise_filter_forward.35} parent=11 // pred_check
        %p167 = pneg %p84
      $region14: #{gravnet_with_noise_filter_forward.35} parent=11 // pred_check_branch
        %169 = sbr.rel (%p167) target = $region16
      $region15: #{gravnet_with_noise_filter_forward.35} parent=11 // pred_region
        _
      $region16: #{gravnet_with_noise_filter_forward.35} parent=11 // pred_fallthru
        _
      // Predicated region
      $region17: #{gravnet_with_noise_filter_forward.35} parent=11 // pred_check
        %p170 = pneg %p105
      $region18: #{gravnet_with_noise_filter_forward.35} parent=11 // pred_check_branch
        %172 = sbr.rel (%p170) target = $region20
      $region19: #{gravnet_with_noise_filter_forward.35} parent=11 // pred_region
        _
      $region20: #{gravnet_with_noise_filter_forward.35} parent=11 // pred_fallthru
        _
      // Predicated region
      $region21: #{gravnet_with_noise_filter_forward.35} parent=11 // pred_check
        %p173 = pneg %p126
      $region22: #{gravnet_with_noise_filter_forward.35} parent=11 // pred_check_branch
        %175 = sbr.rel (%p173) target = $region24
      $region23: #{gravnet_with_noise_filter_forward.35} parent=11 // pred_region
        _
      $region24: #{gravnet_with_noise_filter_forward.35} parent=11 // pred_fallthru
        _
    $region12: #{gravnet_with_noise_filter_forward.35} parent=5 // pred_fallthru
      _
    %p176 = scmp.lt.s32.totalorder %s11, 2
    // Predicated region
    $region25: #{gravnet_with_noise_filter_forward.35} parent=5 // pred_check
      %p177 = pneg %p176
    $region26: #{gravnet_with_noise_filter_forward.35} parent=5 // pred_check_branch
      %179 = sbr.rel (%p177) target = $region28
    $region27: #{gravnet_with_noise_filter_forward.35} parent=5 // pred_region
      // Predicated region
      $region29: #{gravnet_with_noise_filter_forward.35} parent=27 // pred_check
        %p180 = pneg %p31
      $region30: #{gravnet_with_noise_filter_forward.35} parent=27 // pred_check_branch
        %182 = sbr.rel (%p180) target = $region32
      $region31: #{gravnet_with_noise_filter_forward.35} parent=27 // pred_region
        %s183 = smul.u32 4, %s11
        %p184 = scmp.lt.s32.totalorder %s183, 7
        %s185 = scalar_select %p184, %s183, 7
        %s186 = smul.addr %s185, 8
        %s187 = scalar_lea.vmem %s0, %s186
        %s188 = smul.u32 4, %s11
      $region32: #{gravnet_with_noise_filter_forward.35} parent=27 // pred_fallthru
        _
      // Predicated region
      $region33: #{gravnet_with_noise_filter_forward.35} parent=27 // pred_check
        %p189 = pneg %p57
      $region34: #{gravnet_with_noise_filter_forward.35} parent=27 // pred_check_branch
        %191 = sbr.rel (%p189) target = $region36
      $region35: #{gravnet_with_noise_filter_forward.35} parent=27 // pred_region
        %s192 = smul.u32 4, %s11
        %p193 = scmp.lt.s32.totalorder %s192, 7
        %s194 = scalar_select %p193, %s192, 7
        %s195 = smul.addr %s194, 8
        %s196 = scalar_lea.vmem %s1, %s195
        %s197 = smul.u32 4, %s11
      $region36: #{gravnet_with_noise_filter_forward.35} parent=27 // pred_fallthru
        _
    $region28: #{gravnet_with_noise_filter_forward.35} parent=5 // pred_fallthru
      _
    %p198 = scmp.le.s32.totalorder 1, %s11
    %p199 = scmp.lt.s32.totalorder %s11, 3
    %p200 = pnand %p198, %p199
    %p201 = pneg %p200
    // Predicated region
    $region37: #{gravnet_with_noise_filter_forward.35} parent=5 // pred_check
      _
    $region38: #{gravnet_with_noise_filter_forward.35} parent=5 // pred_check_branch
      %203 = sbr.rel (%p200) target = $region40
    $region39: #{gravnet_with_noise_filter_forward.35} parent=5 // pred_region
      %s204 = ssub.s32 %s11, 1
      %s205 = smul.u32 4, %s16
      %p206 = scmp.lt.s32.totalorder %s205, 7
      %s207 = scalar_select %p206, %s205, 7
      %s208 = smul.addr %s207, 8
      %s209 = scalar_lea.vmem %s0, %s208
      %p210 = pneg %p37
      %p211 = pneg %p34
      %s212 = smul.u32 4, %s16
      %p213 = scmp.lt.s32.totalorder %s212, 7
      %s214 = scalar_select %p213, %s212, 7
      %s215 = smul.addr %s214, 8
      %s216 = scalar_lea.vmem %s1, %s215
      %p217 = pneg %p63
      %p218 = pneg %p60
      %p219 = pneg %p84
      %p220 = pneg %p81
      %p221 = pneg %p105
      %p222 = pneg %p102
      %p223 = pneg %p126
      %p224 = pneg %p123
      %p225 = pneg %p152
      %p226 = pneg %p149
      %s227 = smul.u32 4, %s16
      %p228 = scmp.lt.s32.totalorder %s227, 7
      %s229 = scalar_select %p228, %s227, 7
      %s230 = smul.addr %s229, 8
      %s231 = scalar_lea.vmem %s5, %s230
      %s232 = smul.u32 4, %s16
      %p233 = scmp.lt.s32.totalorder %s232, 7
      %s234 = scalar_select %p233, %s232, 7
      %s235 = smul.addr %s234, 8
      %s236 = scalar_lea.vmem %s0, %s235
      %s237 = smul.u32 4, %s16
      %s238 = smul.u32 4, %s16
      %p239 = scmp.lt.s32.totalorder %s238, 7
      %s240 = scalar_select %p239, %s238, 7
      %s241 = smul.addr %s240, 8
      %s242 = scalar_lea.vmem %s1, %s241
      %s243 = smul.u32 4, %s16
      %s244 = smul.u32 4, %s16
      %p245 = scmp.lt.s32.totalorder %s244, 7
      %s246 = scalar_select %p245, %s244, 7
      %s247 = smul.addr %s246, 8
      %s248 = scalar_lea.vmem %s5, %s247
      %s249 = smul.u32 4, %s16
      %v251 = vld [vmem:[%s236] sm:$0xff]
      %v252 = vld [vmem:[%s236 + $0x8] sm:$0xff]
      %v253 = vld [vmem:[%s236 + $0x10] sm:$0xff]
      %v254 = vld [vmem:[%s236 + $0x18] sm:$0xff]
      %v255 = vpack.c.bf16 %v252, %v251
      %v256 = vpack.c.bf16 %v254, %v253
      %v257 = vld [vmem:[%s2] sm:$0xf]
      %v258 = vld [vmem:[%s2 + $0x4] sm:$0xf]
      %v259 = vld [vmem:[%s2 + $0x8] sm:$0xf]
      %v260 = vld [vmem:[%s2 + $0xc] sm:$0xf]
      %v261 = vld [vmem:[%s2 + $0x10] sm:$0xf]
      %v262 = vld [vmem:[%s2 + $0x14] sm:$0xf]
      %v263 = vld [vmem:[%s2 + $0x18] sm:$0xf]
      %v264 = vld [vmem:[%s2 + $0x1c] sm:$0xf]
      %v265 = vld [vmem:[%s2 + $0x20] sm:$0xf]
      %v266 = vld [vmem:[%s2 + $0x24] sm:$0xf]
      %v267 = vld [vmem:[%s2 + $0x28] sm:$0xf]
      %v268 = vld [vmem:[%s2 + $0x2c] sm:$0xf]
      %v269 = vld [vmem:[%s2 + $0x30] sm:$0xf]
      %v270 = vld [vmem:[%s2 + $0x34] sm:$0xf]
      %v271 = vld [vmem:[%s2 + $0x38] sm:$0xf]
      %v272 = vld [vmem:[%s2 + $0x3c] sm:$0xf]
      %v273 = vld [vmem:[%s242] sm:$0xff]
      %v274 = vld [vmem:[%s242 + $0x8] sm:$0xff]
      %v275 = vld [vmem:[%s242 + $0x10] sm:$0xff]
      %v276 = vld [vmem:[%s242 + $0x18] sm:$0xff]
      %v277 = vpack.c.bf16 %v274, %v273
      %v278 = vpack.c.bf16 %v276, %v275
      %v279 = vld [vmem:[%s3] sm:$0xf]
      %v280 = vld [vmem:[%s3 + $0x4] sm:$0xf]
      %v281 = vld [vmem:[%s3 + $0x8] sm:$0xf]
      %v282 = vld [vmem:[%s3 + $0xc] sm:$0xf]
      %v283 = vld [vmem:[%s3 + $0x10] sm:$0xf]
      %v284 = vld [vmem:[%s3 + $0x14] sm:$0xf]
      %v285 = vld [vmem:[%s3 + $0x18] sm:$0xf]
      %v286 = vld [vmem:[%s3 + $0x1c] sm:$0xf]
      %v295 = vunpack.c.l.b16 %v279
      %v296 = vunpack.c.l.b16 %v280
      %v297 = vunpack.c.l.b16 %v281
      %v298 = vunpack.c.l.b16 %v282
      %v299 = vunpack.c.l.b16 %v283
      %v300 = vunpack.c.l.b16 %v284
      %v301 = vunpack.c.l.b16 %v285
      %v302 = vunpack.c.l.b16 %v286
      %v303 = vpack.c.b16 %v296, %v295
      %v304 = vpack.c.b16 %v298, %v297
      %v305 = vpack.c.b16 %v300, %v299
      %v306 = vpack.c.b16 %v302, %v301
      %vm311 = vcmask 523264
      %v313 = vsel %vm311, %v277, 0
      %v316 = vsel %vm311, %v278, 0
      %318 = vmatpush.bf16.msra.mxu0 0
      %319 = vmatpush.bf16.msra.mxu0 0
      %320 = vmatpush.bf16.msra.mxu0 0
      %321 = vmatpush.bf16.msra.mxu0 0
      %322 = vmatpush.bf16.msra.mxu0 %v306
      %323 = vmatpush.bf16.msra.mxu0 %v305
      %324 = vmatpush.bf16.msra.mxu0 %v304
      %325 = vmatpush.bf16.msra.mxu0 %v303
      %326 = vmatmul.bf16.gmra.mxu0 %v313
      %v327 = vpop.f32.mrf.mxu0
      %v328 = vadd.f32 0.0, %v327
      %v329 = vpop.f32.mrf.mxu0
      %v330 = vadd.f32 0.0, %v329
      %331 = vmatmul.bf16.gmra.mxu0 %v316
      %v332 = vpop.f32.mrf.mxu0
      %v333 = vadd.f32 0.0, %v332
      %v334 = vpop.f32.mrf.mxu0
      %v335 = vadd.f32 0.0, %v334
      %336 = vdwg.mxu0
      %v353 = vunpack.c.l.b16 %v257
      %v354 = vunpack.c.l.b16 %v258
      %v355 = vunpack.c.l.b16 %v259
      %v356 = vunpack.c.l.b16 %v260
      %v357 = vunpack.c.l.b16 %v261
      %v358 = vunpack.c.l.b16 %v262
      %v359 = vunpack.c.l.b16 %v263
      %v360 = vunpack.c.l.b16 %v264
      %v361 = vunpack.c.l.b16 %v265
      %v362 = vunpack.c.l.b16 %v266
      %v363 = vunpack.c.l.b16 %v267
      %v364 = vunpack.c.l.b16 %v268
      %v365 = vunpack.c.l.b16 %v269
      %v366 = vunpack.c.l.b16 %v270
      %v367 = vunpack.c.l.b16 %v271
      %v368 = vunpack.c.l.b16 %v272
      %v369 = vpack.c.b16 %v354, %v353
      %v370 = vpack.c.b16 %v356, %v355
      %v371 = vpack.c.b16 %v358, %v357
      %v372 = vpack.c.b16 %v360, %v359
      %v373 = vpack.c.b16 %v362, %v361
      %v374 = vpack.c.b16 %v364, %v363
      %v375 = vpack.c.b16 %v366, %v365
      %v376 = vpack.c.b16 %v368, %v367
      %385 = vmatpush.bf16.msra.mxu0 %v376
      %386 = vmatpush.bf16.msra.mxu0 %v375
      %387 = vmatpush.bf16.msra.mxu0 %v374
      %388 = vmatpush.bf16.msra.mxu0 %v373
      %389 = vmatpush.bf16.msra.mxu0 %v372
      %390 = vmatpush.bf16.msra.mxu0 %v371
      %391 = vmatpush.bf16.msra.mxu0 %v370
      %392 = vmatpush.bf16.msra.mxu0 %v369
      %393 = vmatmul.bf16.gmra.mxu0 %v255
      %v394 = vpop.f32.mrf.mxu0
      %v395 = vadd.f32 %v328, %v394
      %v396 = vpop.f32.mrf.mxu0
      %v397 = vadd.f32 %v330, %v396
      %398 = vmatmul.bf16.gmra.mxu0 %v256
      %v399 = vpop.f32.mrf.mxu0
      %v400 = vadd.f32 %v333, %v399
      %v401 = vpop.f32.mrf.mxu0
      %v402 = vadd.f32 %v335, %v401
      %403 = vdwg.mxu0
      %v404 = vld [vmem:[%s4] sm:$0x1]
      %v406 = vperm.slane %v404, 0
      %v408 = vadd.f32 %v395, %v406
      %v409 = vadd.f32 %v397, %v406
      %v410 = vadd.f32 %v400, %v406
      %v411 = vadd.f32 %v402, %v406
      %vm412 = vcmask 785408
      %413 = vst.msk [vmem:[%s248] sm:$0xff] %vm412, %v408
      %414 = vst.msk [vmem:[%s248 + $0x8] sm:$0xff] %vm412, %v409
      %415 = vst.msk [vmem:[%s248 + $0x10] sm:$0xff] %vm412, %v410
      %416 = vst.msk [vmem:[%s248 + $0x18] sm:$0xff] %vm412, %v411
      %s417 = smul.u32 4, %s16
      %p418 = scmp.lt.s32.totalorder %s417, 7
      %s419 = scalar_select %p418, %s417, 7
      %s420 = smul.addr %s419, 8
      %s421 = scalar_lea.vmem %s5, %s420
      // Predicated region
      $region41: #{gravnet_with_noise_filter_forward.35} parent=39 // pred_check
        %p422 = pneg %p149
      $region42: #{gravnet_with_noise_filter_forward.35} parent=39 // pred_check_branch
        %424 = sbr.rel (%p422) target = $region44
      $region43: #{gravnet_with_noise_filter_forward.35} parent=39 // pred_region
        %s425 = smul.u32 4, %s16
      $region44: #{gravnet_with_noise_filter_forward.35} parent=39 // pred_fallthru
        _
    $region40: #{gravnet_with_noise_filter_forward.35} parent=5 // pred_fallthru
      _
    %p426 = scmp.le.s32.totalorder 2, %s11
    // Predicated region
    $region45: #{gravnet_with_noise_filter_forward.35} parent=5 // pred_check
      %p427 = pneg %p426
    $region46: #{gravnet_with_noise_filter_forward.35} parent=5 // pred_check_branch
      %429 = sbr.rel (%p427) target = $region48
    $region47: #{gravnet_with_noise_filter_forward.35} parent=5 // pred_region
      %s430 = ssub.s32 %s11, 2
      // Predicated region
      $region49: #{gravnet_with_noise_filter_forward.35} parent=47 // pred_check
        %p431 = pneg %p155
      $region50: #{gravnet_with_noise_filter_forward.35} parent=47 // pred_check_branch
        %433 = sbr.rel (%p431) target = $region52
      $region51: #{gravnet_with_noise_filter_forward.35} parent=47 // pred_region
        %s434 = smul.u32 4, %s17
        %p435 = scmp.lt.s32.totalorder %s434, 7
        %s436 = scalar_select %p435, %s434, 7
        %s437 = smul.addr %s436, 8
        %s438 = scalar_lea.vmem %s5, %s437
      $region52: #{gravnet_with_noise_filter_forward.35} parent=47 // pred_fallthru
        _
    $region48: #{gravnet_with_noise_filter_forward.35} parent=5 // pred_fallthru
      _
  $region6: #{gravnet_with_noise_filter_forward.35} parent=0 // loop_footer
    %s15 = sadd.s32 1, %s11
  $region7: #{gravnet_with_noise_filter_forward.35} parent=0 // loop_footer_branch
    %10 = sbr.rel target = $region3
  $region8: #{gravnet_with_noise_filter_forward.35} parent=0 // loop_exit
    _

// kernel: gravnet_with_noise_filter_forward.36
$region0: #{gravnet_with_noise_filter_forward.36}
  #allocation0 [shape = 'u32[]', space=smem, size = 0x4, offset = 0x4, fixed_abs, tag = 'smem constant byte address 0x4 - core index']
  #allocation1 [shape = 'u32[72,128]{1,0:T(1,128)}', space=vmem, size = 0x9000, scoped, tag = 'internal scratch']
  %s0 = inlined_call_operand.vmem [shape: f32[64,96], index: 0, kind: input, shape index: {}]
  %s1 = inlined_call_operand.vmem [shape: f32[1,96], index: 1, kind: input, shape index: {}]
  %s2 = inlined_call_operand.vmem [shape: f32[1,96], index: 2, kind: input, shape index: {}]
  %s3 = inlined_call_operand.vmem [shape: bf16[96,128], index: 3, kind: input, shape index: {}]
  %s4 = inlined_call_operand.vmem [shape: f32[1,128], index: 4, kind: input, shape index: {}]
  %s5 = inlined_call_operand.vmem [shape: f32[64,128], index: 5, kind: output, shape index: {}]
  %s6 = sld [smem:[#allocation0]]
  $region53: #{gravnet_with_noise_filter_forward.36} parent=0
    _
  %s8 = ssub.s32 1, %s6
  %s9 = scalar_select 0, %s8, %s6
  loop: start=0, step=1, limit=4
  $region2: #{gravnet_with_noise_filter_forward.36} parent=0 // loop_pre_header
    _
  $region3: #{gravnet_with_noise_filter_forward.36} parent=0 // loop_header
    %s11 = sphi 0, %s15
    %p12 = scmp.ge.s32.totalorder %s11, 4
    %s21 = sphi 0, %s23
    %s24 = sphi 0, %s21
    %s25 = sphi 0, %s24
    %s41 = sphi 0, %s25
    %s45 = sphi 0, %s45
    %s47 = sphi 0, %s45
    %s48 = sphi 0, %s47
    %s62 = sphi 0, %s48
    %s66 = sphi 0, %s66
    %s68 = sphi 0, %s66
    %s69 = sphi 0, %s68
    %s83 = sphi 0, %s69
    %s87 = sphi 0, %s87
    %s89 = sphi 0, %s87
    %s90 = sphi 0, %s89
    %s104 = sphi 0, %s90
    %s108 = sphi 0, %s108
    %s110 = sphi 0, %s108
    %s111 = sphi 0, %s110
    %s125 = sphi 0, %s111
    %s131 = sphi 0, %s133
    %s134 = sphi 0, %s131
    %s135 = sphi 0, %s134
    %s151 = sphi 0, %s135
  $region4: #{gravnet_with_noise_filter_forward.36} parent=0 // loop_header_branch
    %14 = sbr.rel (%p12) target = $region8
  $region5: #{gravnet_with_noise_filter_forward.36} parent=0 // loop_body
    %s16 = ssub.s32 %s11, 1
    %s17 = ssub.s32 %s11, 2
    %s18 = sadd.s32 %s11, 1
    %s19 = ssub.s32 %s11, %s18
    %p20 = scmp.eq.s32.totalorder %s19, 0
    %s22 = sadd.s32 %s21, 1
    %s23 = scalar_select %p20, %s21, %s22
    %p26 = pneg %p20
    %p27 = scmp.eq.s32.totalorder %s11, 1
    %p28 = por %p26, %p27
    %p29 = scmp.ne.s32.totalorder %s21, %s24
    %p30 = scmp.eq.s32.totalorder %s11, 0
    %p31 = por %p29, %p30
    %p32 = scmp.ne.s32.totalorder %s21, %s24
    %p33 = scmp.eq.s32.totalorder %s16, 1
    %p34 = por %p32, %p33
    %p35 = scmp.ne.s32.totalorder %s24, %s25
    %p36 = scmp.eq.s32.totalorder %s16, 0
    %p37 = por %p35, %p36
    %p38 = scmp.ne.s32.totalorder %s24, %s25
    %p39 = scmp.eq.s32.totalorder %s17, 1
    %p40 = por %p38, %p39
    %p42 = scmp.ne.s32.totalorder %s25, %s41
    %p43 = scmp.eq.s32.totalorder %s17, 0
    %p44 = por %p42, %p43
    %s46 = sadd.s32 %s45, 1
    %p49 = scmp.eq.s32.totalorder %s11, 1
    %p50 = scmp.ne.s32.totalorder %s45, %s47
    %p51 = scmp.eq.s32.totalorder %s11, 0
    %p52 = por %p50, %p51
    %p53 = scmp.ne.s32.totalorder %s45, %s47
    %p54 = scmp.eq.s32.totalorder %s16, 1
    %p55 = por %p53, %p54
    %p56 = scmp.ne.s32.totalorder %s47, %s48
    %p57 = scmp.eq.s32.totalorder %s16, 0
    %p58 = por %p56, %p57
    %p59 = scmp.ne.s32.totalorder %s47, %s48
    %p60 = scmp.eq.s32.totalorder %s17, 1
    %p61 = por %p59, %p60
    %p63 = scmp.ne.s32.totalorder %s48, %s62
    %p64 = scmp.eq.s32.totalorder %s17, 0
    %p65 = por %p63, %p64
    %s67 = sadd.s32 %s66, 1
    %p70 = scmp.eq.s32.totalorder %s11, 1
    %p71 = scmp.ne.s32.totalorder %s66, %s68
    %p72 = scmp.eq.s32.totalorder %s11, 0
    %p73 = por %p71, %p72
    %p74 = scmp.ne.s32.totalorder %s66, %s68
    %p75 = scmp.eq.s32.totalorder %s16, 1
    %p76 = por %p74, %p75
    %p77 = scmp.ne.s32.totalorder %s68, %s69
    %p78 = scmp.eq.s32.totalorder %s16, 0
    %p79 = por %p77, %p78
    %p80 = scmp.ne.s32.totalorder %s68, %s69
    %p81 = scmp.eq.s32.totalorder %s17, 1
    %p82 = por %p80, %p81
    %p84 = scmp.ne.s32.totalorder %s69, %s83
    %p85 = scmp.eq.s32.totalorder %s17, 0
    %p86 = por %p84, %p85
    %s88 = sadd.s32 %s87, 1
    %p91 = scmp.eq.s32.totalorder %s11, 1
    %p92 = scmp.ne.s32.totalorder %s87, %s89
    %p93 = scmp.eq.s32.totalorder %s11, 0
    %p94 = por %p92, %p93
    %p95 = scmp.ne.s32.totalorder %s87, %s89
    %p96 = scmp.eq.s32.totalorder %s16, 1
    %p97 = por %p95, %p96
    %p98 = scmp.ne.s32.totalorder %s89, %s90
    %p99 = scmp.eq.s32.totalorder %s16, 0
    %p100 = por %p98, %p99
    %p101 = scmp.ne.s32.totalorder %s89, %s90
    %p102 = scmp.eq.s32.totalorder %s17, 1
    %p103 = por %p101, %p102
    %p105 = scmp.ne.s32.totalorder %s90, %s104
    %p106 = scmp.eq.s32.totalorder %s17, 0
    %p107 = por %p105, %p106
    %s109 = sadd.s32 %s108, 1
    %p112 = scmp.eq.s32.totalorder %s11, 1
    %p113 = scmp.ne.s32.totalorder %s108, %s110
    %p114 = scmp.eq.s32.totalorder %s11, 0
    %p115 = por %p113, %p114
    %p116 = scmp.ne.s32.totalorder %s108, %s110
    %p117 = scmp.eq.s32.totalorder %s16, 1
    %p118 = por %p116, %p117
    %p119 = scmp.ne.s32.totalorder %s110, %s111
    %p120 = scmp.eq.s32.totalorder %s16, 0
    %p121 = por %p119, %p120
    %p122 = scmp.ne.s32.totalorder %s110, %s111
    %p123 = scmp.eq.s32.totalorder %s17, 1
    %p124 = por %p122, %p123
    %p126 = scmp.ne.s32.totalorder %s111, %s125
    %p127 = scmp.eq.s32.totalorder %s17, 0
    %p128 = por %p126, %p127
    %s129 = ssub.s32 %s11, %s18
    %p130 = scmp.eq.s32.totalorder %s129, 0
    %s132 = sadd.s32 %s131, 1
    %s133 = scalar_select %p130, %s131, %s132
    %p136 = pneg %p130
    %p137 = scmp.eq.s32.totalorder %s11, 1
    %p138 = por %p136, %p137
    %p139 = scmp.ne.s32.totalorder %s131, %s134
    %p140 = scmp.eq.s32.totalorder %s11, 0
    %p141 = por %p139, %p140
    %p142 = scmp.ne.s32.totalorder %s131, %s134
    %p143 = scmp.eq.s32.totalorder %s16, 1
    %p144 = por %p142, %p143
    %p145 = scmp.ne.s32.totalorder %s134, %s135
    %p146 = scmp.eq.s32.totalorder %s16, 0
    %p147 = por %p145, %p146
    %p148 = scmp.ne.s32.totalorder %s134, %s135
    %p149 = scmp.eq.s32.totalorder %s17, 1
    %p150 = por %p148, %p149
    %p152 = scmp.ne.s32.totalorder %s135, %s151
    %p153 = scmp.eq.s32.totalorder %s17, 0
    %p154 = por %p152, %p153
    %p155 = scmp.le.s32.totalorder 1, %s11
    %p156 = scmp.lt.s32.totalorder %s11, 3
    %p157 = pnand %p155, %p156
    %p158 = pneg %p157
    // Predicated region
    $region9: #{gravnet_with_noise_filter_forward.36} parent=5 // pred_check
      _
    $region10: #{gravnet_with_noise_filter_forward.36} parent=5 // pred_check_branch
      %160 = sbr.rel (%p157) target = $region12
    $region11: #{gravnet_with_noise_filter_forward.36} parent=5 // pred_region
      %s161 = ssub.s32 %s11, 1
      // Predicated region
      $region13: #{gravnet_with_noise_filter_forward.36} parent=11 // pred_check
        %p162 = pneg %p58
      $region14: #{gravnet_with_noise_filter_forward.36} parent=11 // pred_check_branch
        %164 = sbr.rel (%p162) target = $region16
      $region15: #{gravnet_with_noise_filter_forward.36} parent=11 // pred_region
        _
      $region16: #{gravnet_with_noise_filter_forward.36} parent=11 // pred_fallthru
        _
      // Predicated region
      $region17: #{gravnet_with_noise_filter_forward.36} parent=11 // pred_check
        %p165 = pneg %p79
      $region18: #{gravnet_with_noise_filter_forward.36} parent=11 // pred_check_branch
        %167 = sbr.rel (%p165) target = $region20
      $region19: #{gravnet_with_noise_filter_forward.36} parent=11 // pred_region
        _
      $region20: #{gravnet_with_noise_filter_forward.36} parent=11 // pred_fallthru
        _
      // Predicated region
      $region21: #{gravnet_with_noise_filter_forward.36} parent=11 // pred_check
        %p168 = pneg %p100
      $region22: #{gravnet_with_noise_filter_forward.36} parent=11 // pred_check_branch
        %170 = sbr.rel (%p168) target = $region24
      $region23: #{gravnet_with_noise_filter_forward.36} parent=11 // pred_region
        _
      $region24: #{gravnet_with_noise_filter_forward.36} parent=11 // pred_fallthru
        _
      // Predicated region
      $region25: #{gravnet_with_noise_filter_forward.36} parent=11 // pred_check
        %p171 = pneg %p121
      $region26: #{gravnet_with_noise_filter_forward.36} parent=11 // pred_check_branch
        %173 = sbr.rel (%p171) target = $region28
      $region27: #{gravnet_with_noise_filter_forward.36} parent=11 // pred_region
        _
      $region28: #{gravnet_with_noise_filter_forward.36} parent=11 // pred_fallthru
        _
    $region12: #{gravnet_with_noise_filter_forward.36} parent=5 // pred_fallthru
      _
    %p174 = scmp.lt.s32.totalorder %s11, 2
    // Predicated region
    $region29: #{gravnet_with_noise_filter_forward.36} parent=5 // pred_check
      %p175 = pneg %p174
    $region30: #{gravnet_with_noise_filter_forward.36} parent=5 // pred_check_branch
      %177 = sbr.rel (%p175) target = $region32
    $region31: #{gravnet_with_noise_filter_forward.36} parent=5 // pred_region
      // Predicated region
      $region33: #{gravnet_with_noise_filter_forward.36} parent=31 // pred_check
        %p178 = pneg %p31
      $region34: #{gravnet_with_noise_filter_forward.36} parent=31 // pred_check_branch
        %180 = sbr.rel (%p178) target = $region36
      $region35: #{gravnet_with_noise_filter_forward.36} parent=31 // pred_region
        %s181 = smul.u32 4, %s11
        %p182 = scmp.lt.s32.totalorder %s181, 7
        %s183 = scalar_select %p182, %s181, 7
        %s184 = smul.addr %s183, 8
        %s185 = scalar_lea.vmem %s0, %s184
        %s186 = smul.u32 4, %s11
      $region36: #{gravnet_with_noise_filter_forward.36} parent=31 // pred_fallthru
        _
    $region32: #{gravnet_with_noise_filter_forward.36} parent=5 // pred_fallthru
      _
    %p187 = scmp.le.s32.totalorder 1, %s11
    %p188 = scmp.lt.s32.totalorder %s11, 3
    %p189 = pnand %p187, %p188
    %p190 = pneg %p189
    // Predicated region
    $region37: #{gravnet_with_noise_filter_forward.36} parent=5 // pred_check
      _
    $region38: #{gravnet_with_noise_filter_forward.36} parent=5 // pred_check_branch
      %192 = sbr.rel (%p189) target = $region40
    $region39: #{gravnet_with_noise_filter_forward.36} parent=5 // pred_region
      %s193 = ssub.s32 %s11, 1
      %s194 = smul.u32 4, %s16
      %p195 = scmp.lt.s32.totalorder %s194, 7
      %s196 = scalar_select %p195, %s194, 7
      %s197 = smul.addr %s196, 8
      %s198 = scalar_lea.vmem %s0, %s197
      %p199 = pneg %p37
      %p200 = pneg %p34
      %p201 = pneg %p58
      %p202 = pneg %p55
      %p203 = pneg %p79
      %p204 = pneg %p76
      %p205 = pneg %p100
      %p206 = pneg %p97
      %p207 = pneg %p121
      %p208 = pneg %p118
      %p209 = pneg %p147
      %p210 = pneg %p144
      %s211 = smul.u32 4, %s16
      %p212 = scmp.lt.s32.totalorder %s211, 7
      %s213 = scalar_select %p212, %s211, 7
      %s214 = smul.addr %s213, 8
      %s215 = scalar_lea.vmem %s5, %s214
      %s216 = smul.u32 4, %s16
      %p217 = scmp.lt.s32.totalorder %s216, 7
      %s218 = scalar_select %p217, %s216, 7
      %s219 = smul.addr %s218, 8
      %s220 = scalar_lea.vmem %s0, %s219
      %s221 = smul.u32 4, %s16
      %s222 = smul.u32 4, %s16
      %p223 = scmp.lt.s32.totalorder %s222, 7
      %s224 = scalar_select %p223, %s222, 7
      %s225 = smul.addr %s224, 8
      %s226 = scalar_lea.vmem %s5, %s225
      %s227 = smul.u32 4, %s16
      %v229 = vld [vmem:[%s220] sm:$0xff]
      %v230 = vld [vmem:[%s220 + $0x8] sm:$0xff]
      %v231 = vld [vmem:[%s220 + $0x10] sm:$0xff]
      %v232 = vld [vmem:[%s220 + $0x18] sm:$0xff]
      %v233 = vld [vmem:[%s1] sm:$0x1]
      %v235 = vperm.slane %v233, 0
      %v237 = vmul.f32 %v229, %v235
      %v238 = vmul.f32 %v230, %v235
      %v239 = vmul.f32 %v231, %v235
      %v240 = vmul.f32 %v232, %v235
      %v241 = vld [vmem:[%s2] sm:$0x1]
      %v243 = vperm.slane %v241, 0
      %v245 = vadd.f32 %v237, %v243
      %v246 = vadd.f32 %v238, %v243
      %v247 = vadd.f32 %v239, %v243
      %v248 = vadd.f32 %v240, %v243
      %v249 = vpack.c.bf16 %v246, %v245
      %v250 = vpack.c.bf16 %v248, %v247
      %v251 = vld [vmem:[%s3] sm:$0xf]
      %v252 = vld [vmem:[%s3 + $0x4] sm:$0xf]
      %v253 = vld [vmem:[%s3 + $0x8] sm:$0xf]
      %v254 = vld [vmem:[%s3 + $0xc] sm:$0xf]
      %v255 = vld [vmem:[%s3 + $0x10] sm:$0xf]
      %v256 = vld [vmem:[%s3 + $0x14] sm:$0xf]
      %v257 = vld [vmem:[%s3 + $0x18] sm:$0xf]
      %v258 = vld [vmem:[%s3 + $0x1c] sm:$0xf]
      %v259 = vld [vmem:[%s3 + $0x20] sm:$0xf]
      %v260 = vld [vmem:[%s3 + $0x24] sm:$0xf]
      %v261 = vld [vmem:[%s3 + $0x28] sm:$0xf]
      %v262 = vld [vmem:[%s3 + $0x2c] sm:$0xf]
      %v263 = vld [vmem:[%s4] sm:$0x1]
      %v265 = vperm.slane %v263, 0
      %v279 = vunpack.c.l.b16 %v251
      %v280 = vunpack.c.l.b16 %v252
      %v281 = vunpack.c.l.b16 %v253
      %v282 = vunpack.c.l.b16 %v254
      %v283 = vunpack.c.l.b16 %v255
      %v284 = vunpack.c.l.b16 %v256
      %v285 = vunpack.c.l.b16 %v257
      %v286 = vunpack.c.l.b16 %v258
      %v287 = vunpack.c.l.b16 %v259
      %v288 = vunpack.c.l.b16 %v260
      %v289 = vunpack.c.l.b16 %v261
      %v290 = vunpack.c.l.b16 %v262
      %v291 = vpack.c.b16 %v280, %v279
      %v292 = vpack.c.b16 %v282, %v281
      %v293 = vpack.c.b16 %v284, %v283
      %v294 = vpack.c.b16 %v286, %v285
      %v295 = vpack.c.b16 %v288, %v287
      %v296 = vpack.c.b16 %v290, %v289
      %vm303 = vcmask 785408
      %v305 = vsel %vm303, %v249, 0
      %v308 = vsel %vm303, %v250, 0
      %310 = vmatpush.bf16.msra.mxu0 0
      %311 = vmatpush.bf16.msra.mxu0 0
      %312 = vmatpush.bf16.msra.mxu0 %v296
      %313 = vmatpush.bf16.msra.mxu0 %v295
      %314 = vmatpush.bf16.msra.mxu0 %v294
      %315 = vmatpush.bf16.msra.mxu0 %v293
      %316 = vmatpush.bf16.msra.mxu0 %v292
      %317 = vmatpush.bf16.msra.mxu0 %v291
      %318 = vmatmul.bf16.gmra.mxu0 %v305
      %v319 = vpop.f32.mrf.mxu0
      %v320 = vadd.f32 %v265, %v319
      %v321 = vpop.f32.mrf.mxu0
      %v322 = vadd.f32 %v265, %v321
      %323 = vmatmul.bf16.gmra.mxu0 %v308
      %v324 = vpop.f32.mrf.mxu0
      %v325 = vadd.f32 %v265, %v324
      %v326 = vpop.f32.mrf.mxu0
      %v327 = vadd.f32 %v265, %v326
      %328 = vdwg.mxu0
      %v329 = vtanh.pop %v320
      %v330 = vtanh.pop %v322
      %v331 = vtanh.pop %v325
      %v332 = vtanh.pop %v327
      %333 = vst [vmem:[%s226] sm:$0xff] %v329
      %334 = vst [vmem:[%s226 + $0x8] sm:$0xff] %v330
      %335 = vst [vmem:[%s226 + $0x10] sm:$0xff] %v331
      %336 = vst [vmem:[%s226 + $0x18] sm:$0xff] %v332
      %s337 = smul.u32 4, %s16
      %p338 = scmp.lt.s32.totalorder %s337, 7
      %s339 = scalar_select %p338, %s337, 7
      %s340 = smul.addr %s339, 8
      %s341 = scalar_lea.vmem %s5, %s340
      // Predicated region
      $region41: #{gravnet_with_noise_filter_forward.36} parent=39 // pred_check
        %p342 = pneg %p144
      $region42: #{gravnet_with_noise_filter_forward.36} parent=39 // pred_check_branch
        %344 = sbr.rel (%p342) target = $region44
      $region43: #{gravnet_with_noise_filter_forward.36} parent=39 // pred_region
        %s345 = smul.u32 4, %s16
      $region44: #{gravnet_with_noise_filter_forward.36} parent=39 // pred_fallthru
        _
    $region40: #{gravnet_with_noise_filter_forward.36} parent=5 // pred_fallthru
      _
    %p346 = scmp.le.s32.totalorder 2, %s11
    // Predicated region
    $region45: #{gravnet_with_noise_filter_forward.36} parent=5 // pred_check
      %p347 = pneg %p346
    $region46: #{gravnet_with_noise_filter_forward.36} parent=5 // pred_check_branch
      %349 = sbr.rel (%p347) target = $region48
    $region47: #{gravnet_with_noise_filter_forward.36} parent=5 // pred_region
      %s350 = ssub.s32 %s11, 2
      // Predicated region
      $region49: #{gravnet_with_noise_filter_forward.36} parent=47 // pred_check
        %p351 = pneg %p150
      $region50: #{gravnet_with_noise_filter_forward.36} parent=47 // pred_check_branch
        %353 = sbr.rel (%p351) target = $region52
      $region51: #{gravnet_with_noise_filter_forward.36} parent=47 // pred_region
        %s354 = smul.u32 4, %s17
        %p355 = scmp.lt.s32.totalorder %s354, 7
        %s356 = scalar_select %p355, %s354, 7
        %s357 = smul.addr %s356, 8
        %s358 = scalar_lea.vmem %s5, %s357
      $region52: #{gravnet_with_noise_filter_forward.36} parent=47 // pred_fallthru
        _
    $region48: #{gravnet_with_noise_filter_forward.36} parent=5 // pred_fallthru
      _
  $region6: #{gravnet_with_noise_filter_forward.36} parent=0 // loop_footer
    %s15 = sadd.s32 1, %s11
  $region7: #{gravnet_with_noise_filter_forward.36} parent=0 // loop_footer_branch
    %10 = sbr.rel target = $region3
  $region8: #{gravnet_with_noise_filter_forward.36} parent=0 // loop_exit
    _

// kernel: gravnet_with_noise_filter_forward.37
$region0: #{gravnet_with_noise_filter_forward.37}
  #allocation0 [shape = 'u32[]', space=smem, size = 0x4, offset = 0x4, fixed_abs, tag = 'smem constant byte address 0x4 - core index']
  #allocation1 [shape = 'u32[72,128]{1,0:T(1,128)}', space=vmem, size = 0x9000, scoped, tag = 'internal scratch']
  %s0 = inlined_call_operand.vmem [shape: f32[64,128], index: 0, kind: input, shape index: {}]
  %s1 = inlined_call_operand.vmem [shape: f32[1,128], index: 1, kind: input, shape index: {}]
  %s2 = inlined_call_operand.vmem [shape: f32[1,128], index: 2, kind: input, shape index: {}]
  %s3 = inlined_call_operand.vmem [shape: bf16[128,96], index: 3, kind: input, shape index: {}]
  %s4 = inlined_call_operand.vmem [shape: f32[1,96], index: 4, kind: input, shape index: {}]
  %s5 = inlined_call_operand.vmem [shape: f32[64,96], index: 5, kind: output, shape index: {}]
  %s6 = sld [smem:[#allocation0]]
  $region53: #{gravnet_with_noise_filter_forward.37} parent=0
    _
  %s8 = ssub.s32 1, %s6
  %s9 = scalar_select 0, %s8, %s6
  loop: start=0, step=1, limit=4
  $region2: #{gravnet_with_noise_filter_forward.37} parent=0 // loop_pre_header
    _
  $region3: #{gravnet_with_noise_filter_forward.37} parent=0 // loop_header
    %s11 = sphi 0, %s15
    %p12 = scmp.ge.s32.totalorder %s11, 4
    %s21 = sphi 0, %s23
    %s24 = sphi 0, %s21
    %s25 = sphi 0, %s24
    %s41 = sphi 0, %s25
    %s45 = sphi 0, %s45
    %s47 = sphi 0, %s45
    %s48 = sphi 0, %s47
    %s62 = sphi 0, %s48
    %s66 = sphi 0, %s66
    %s68 = sphi 0, %s66
    %s69 = sphi 0, %s68
    %s83 = sphi 0, %s69
    %s87 = sphi 0, %s87
    %s89 = sphi 0, %s87
    %s90 = sphi 0, %s89
    %s104 = sphi 0, %s90
    %s108 = sphi 0, %s108
    %s110 = sphi 0, %s108
    %s111 = sphi 0, %s110
    %s125 = sphi 0, %s111
    %s131 = sphi 0, %s133
    %s134 = sphi 0, %s131
    %s135 = sphi 0, %s134
    %s151 = sphi 0, %s135
  $region4: #{gravnet_with_noise_filter_forward.37} parent=0 // loop_header_branch
    %14 = sbr.rel (%p12) target = $region8
  $region5: #{gravnet_with_noise_filter_forward.37} parent=0 // loop_body
    %s16 = ssub.s32 %s11, 1
    %s17 = ssub.s32 %s11, 2
    %s18 = sadd.s32 %s11, 1
    %s19 = ssub.s32 %s11, %s18
    %p20 = scmp.eq.s32.totalorder %s19, 0
    %s22 = sadd.s32 %s21, 1
    %s23 = scalar_select %p20, %s21, %s22
    %p26 = pneg %p20
    %p27 = scmp.eq.s32.totalorder %s11, 1
    %p28 = por %p26, %p27
    %p29 = scmp.ne.s32.totalorder %s21, %s24
    %p30 = scmp.eq.s32.totalorder %s11, 0
    %p31 = por %p29, %p30
    %p32 = scmp.ne.s32.totalorder %s21, %s24
    %p33 = scmp.eq.s32.totalorder %s16, 1
    %p34 = por %p32, %p33
    %p35 = scmp.ne.s32.totalorder %s24, %s25
    %p36 = scmp.eq.s32.totalorder %s16, 0
    %p37 = por %p35, %p36
    %p38 = scmp.ne.s32.totalorder %s24, %s25
    %p39 = scmp.eq.s32.totalorder %s17, 1
    %p40 = por %p38, %p39
    %p42 = scmp.ne.s32.totalorder %s25, %s41
    %p43 = scmp.eq.s32.totalorder %s17, 0
    %p44 = por %p42, %p43
    %s46 = sadd.s32 %s45, 1
    %p49 = scmp.eq.s32.totalorder %s11, 1
    %p50 = scmp.ne.s32.totalorder %s45, %s47
    %p51 = scmp.eq.s32.totalorder %s11, 0
    %p52 = por %p50, %p51
    %p53 = scmp.ne.s32.totalorder %s45, %s47
    %p54 = scmp.eq.s32.totalorder %s16, 1
    %p55 = por %p53, %p54
    %p56 = scmp.ne.s32.totalorder %s47, %s48
    %p57 = scmp.eq.s32.totalorder %s16, 0
    %p58 = por %p56, %p57
    %p59 = scmp.ne.s32.totalorder %s47, %s48
    %p60 = scmp.eq.s32.totalorder %s17, 1
    %p61 = por %p59, %p60
    %p63 = scmp.ne.s32.totalorder %s48, %s62
    %p64 = scmp.eq.s32.totalorder %s17, 0
    %p65 = por %p63, %p64
    %s67 = sadd.s32 %s66, 1
    %p70 = scmp.eq.s32.totalorder %s11, 1
    %p71 = scmp.ne.s32.totalorder %s66, %s68
    %p72 = scmp.eq.s32.totalorder %s11, 0
    %p73 = por %p71, %p72
    %p74 = scmp.ne.s32.totalorder %s66, %s68
    %p75 = scmp.eq.s32.totalorder %s16, 1
    %p76 = por %p74, %p75
    %p77 = scmp.ne.s32.totalorder %s68, %s69
    %p78 = scmp.eq.s32.totalorder %s16, 0
    %p79 = por %p77, %p78
    %p80 = scmp.ne.s32.totalorder %s68, %s69
    %p81 = scmp.eq.s32.totalorder %s17, 1
    %p82 = por %p80, %p81
    %p84 = scmp.ne.s32.totalorder %s69, %s83
    %p85 = scmp.eq.s32.totalorder %s17, 0
    %p86 = por %p84, %p85
    %s88 = sadd.s32 %s87, 1
    %p91 = scmp.eq.s32.totalorder %s11, 1
    %p92 = scmp.ne.s32.totalorder %s87, %s89
    %p93 = scmp.eq.s32.totalorder %s11, 0
    %p94 = por %p92, %p93
    %p95 = scmp.ne.s32.totalorder %s87, %s89
    %p96 = scmp.eq.s32.totalorder %s16, 1
    %p97 = por %p95, %p96
    %p98 = scmp.ne.s32.totalorder %s89, %s90
    %p99 = scmp.eq.s32.totalorder %s16, 0
    %p100 = por %p98, %p99
    %p101 = scmp.ne.s32.totalorder %s89, %s90
    %p102 = scmp.eq.s32.totalorder %s17, 1
    %p103 = por %p101, %p102
    %p105 = scmp.ne.s32.totalorder %s90, %s104
    %p106 = scmp.eq.s32.totalorder %s17, 0
    %p107 = por %p105, %p106
    %s109 = sadd.s32 %s108, 1
    %p112 = scmp.eq.s32.totalorder %s11, 1
    %p113 = scmp.ne.s32.totalorder %s108, %s110
    %p114 = scmp.eq.s32.totalorder %s11, 0
    %p115 = por %p113, %p114
    %p116 = scmp.ne.s32.totalorder %s108, %s110
    %p117 = scmp.eq.s32.totalorder %s16, 1
    %p118 = por %p116, %p117
    %p119 = scmp.ne.s32.totalorder %s110, %s111
    %p120 = scmp.eq.s32.totalorder %s16, 0
    %p121 = por %p119, %p120
    %p122 = scmp.ne.s32.totalorder %s110, %s111
    %p123 = scmp.eq.s32.totalorder %s17, 1
    %p124 = por %p122, %p123
    %p126 = scmp.ne.s32.totalorder %s111, %s125
    %p127 = scmp.eq.s32.totalorder %s17, 0
    %p128 = por %p126, %p127
    %s129 = ssub.s32 %s11, %s18
    %p130 = scmp.eq.s32.totalorder %s129, 0
    %s132 = sadd.s32 %s131, 1
    %s133 = scalar_select %p130, %s131, %s132
    %p136 = pneg %p130
    %p137 = scmp.eq.s32.totalorder %s11, 1
    %p138 = por %p136, %p137
    %p139 = scmp.ne.s32.totalorder %s131, %s134
    %p140 = scmp.eq.s32.totalorder %s11, 0
    %p141 = por %p139, %p140
    %p142 = scmp.ne.s32.totalorder %s131, %s134
    %p143 = scmp.eq.s32.totalorder %s16, 1
    %p144 = por %p142, %p143
    %p145 = scmp.ne.s32.totalorder %s134, %s135
    %p146 = scmp.eq.s32.totalorder %s16, 0
    %p147 = por %p145, %p146
    %p148 = scmp.ne.s32.totalorder %s134, %s135
    %p149 = scmp.eq.s32.totalorder %s17, 1
    %p150 = por %p148, %p149
    %p152 = scmp.ne.s32.totalorder %s135, %s151
    %p153 = scmp.eq.s32.totalorder %s17, 0
    %p154 = por %p152, %p153
    %p155 = scmp.le.s32.totalorder 1, %s11
    %p156 = scmp.lt.s32.totalorder %s11, 3
    %p157 = pnand %p155, %p156
    %p158 = pneg %p157
    // Predicated region
    $region9: #{gravnet_with_noise_filter_forward.37} parent=5 // pred_check
      _
    $region10: #{gravnet_with_noise_filter_forward.37} parent=5 // pred_check_branch
      %160 = sbr.rel (%p157) target = $region12
    $region11: #{gravnet_with_noise_filter_forward.37} parent=5 // pred_region
      %s161 = ssub.s32 %s11, 1
      // Predicated region
      $region13: #{gravnet_with_noise_filter_forward.37} parent=11 // pred_check
        %p162 = pneg %p58
      $region14: #{gravnet_with_noise_filter_forward.37} parent=11 // pred_check_branch
        %164 = sbr.rel (%p162) target = $region16
      $region15: #{gravnet_with_noise_filter_forward.37} parent=11 // pred_region
        _
      $region16: #{gravnet_with_noise_filter_forward.37} parent=11 // pred_fallthru
        _
      // Predicated region
      $region17: #{gravnet_with_noise_filter_forward.37} parent=11 // pred_check
        %p165 = pneg %p79
      $region18: #{gravnet_with_noise_filter_forward.37} parent=11 // pred_check_branch
        %167 = sbr.rel (%p165) target = $region20
      $region19: #{gravnet_with_noise_filter_forward.37} parent=11 // pred_region
        _
      $region20: #{gravnet_with_noise_filter_forward.37} parent=11 // pred_fallthru
        _
      // Predicated region
      $region21: #{gravnet_with_noise_filter_forward.37} parent=11 // pred_check
        %p168 = pneg %p100
      $region22: #{gravnet_with_noise_filter_forward.37} parent=11 // pred_check_branch
        %170 = sbr.rel (%p168) target = $region24
      $region23: #{gravnet_with_noise_filter_forward.37} parent=11 // pred_region
        _
      $region24: #{gravnet_with_noise_filter_forward.37} parent=11 // pred_fallthru
        _
      // Predicated region
      $region25: #{gravnet_with_noise_filter_forward.37} parent=11 // pred_check
        %p171 = pneg %p121
      $region26: #{gravnet_with_noise_filter_forward.37} parent=11 // pred_check_branch
        %173 = sbr.rel (%p171) target = $region28
      $region27: #{gravnet_with_noise_filter_forward.37} parent=11 // pred_region
        _
      $region28: #{gravnet_with_noise_filter_forward.37} parent=11 // pred_fallthru
        _
    $region12: #{gravnet_with_noise_filter_forward.37} parent=5 // pred_fallthru
      _
    %p174 = scmp.lt.s32.totalorder %s11, 2
    // Predicated region
    $region29: #{gravnet_with_noise_filter_forward.37} parent=5 // pred_check
      %p175 = pneg %p174
    $region30: #{gravnet_with_noise_filter_forward.37} parent=5 // pred_check_branch
      %177 = sbr.rel (%p175) target = $region32
    $region31: #{gravnet_with_noise_filter_forward.37} parent=5 // pred_region
      // Predicated region
      $region33: #{gravnet_with_noise_filter_forward.37} parent=31 // pred_check
        %p178 = pneg %p31
      $region34: #{gravnet_with_noise_filter_forward.37} parent=31 // pred_check_branch
        %180 = sbr.rel (%p178) target = $region36
      $region35: #{gravnet_with_noise_filter_forward.37} parent=31 // pred_region
        %s181 = smul.u32 4, %s11
        %p182 = scmp.lt.s32.totalorder %s181, 7
        %s183 = scalar_select %p182, %s181, 7
        %s184 = smul.addr %s183, 8
        %s185 = scalar_lea.vmem %s0, %s184
        %s186 = smul.u32 4, %s11
      $region36: #{gravnet_with_noise_filter_forward.37} parent=31 // pred_fallthru
        _
    $region32: #{gravnet_with_noise_filter_forward.37} parent=5 // pred_fallthru
      _
    %p187 = scmp.le.s32.totalorder 1, %s11
    %p188 = scmp.lt.s32.totalorder %s11, 3
    %p189 = pnand %p187, %p188
    %p190 = pneg %p189
    // Predicated region
    $region37: #{gravnet_with_noise_filter_forward.37} parent=5 // pred_check
      _
    $region38: #{gravnet_with_noise_filter_forward.37} parent=5 // pred_check_branch
      %192 = sbr.rel (%p189) target = $region40
    $region39: #{gravnet_with_noise_filter_forward.37} parent=5 // pred_region
      %s193 = ssub.s32 %s11, 1
      %s194 = smul.u32 4, %s16
      %p195 = scmp.lt.s32.totalorder %s194, 7
      %s196 = scalar_select %p195, %s194, 7
      %s197 = smul.addr %s196, 8
      %s198 = scalar_lea.vmem %s0, %s197
      %p199 = pneg %p37
      %p200 = pneg %p34
      %p201 = pneg %p58
      %p202 = pneg %p55
      %p203 = pneg %p79
      %p204 = pneg %p76
      %p205 = pneg %p100
      %p206 = pneg %p97
      %p207 = pneg %p121
      %p208 = pneg %p118
      %p209 = pneg %p147
      %p210 = pneg %p144
      %s211 = smul.u32 4, %s16
      %p212 = scmp.lt.s32.totalorder %s211, 7
      %s213 = scalar_select %p212, %s211, 7
      %s214 = smul.addr %s213, 8
      %s215 = scalar_lea.vmem %s5, %s214
      %s216 = smul.u32 4, %s16
      %p217 = scmp.lt.s32.totalorder %s216, 7
      %s218 = scalar_select %p217, %s216, 7
      %s219 = smul.addr %s218, 8
      %s220 = scalar_lea.vmem %s0, %s219
      %s221 = smul.u32 4, %s16
      %s222 = smul.u32 4, %s16
      %p223 = scmp.lt.s32.totalorder %s222, 7
      %s224 = scalar_select %p223, %s222, 7
      %s225 = smul.addr %s224, 8
      %s226 = scalar_lea.vmem %s5, %s225
      %s227 = smul.u32 4, %s16
      %v228 = vld [vmem:[%s220] sm:$0xff]
      %v229 = vld [vmem:[%s220 + $0x8] sm:$0xff]
      %v230 = vld [vmem:[%s220 + $0x10] sm:$0xff]
      %v231 = vld [vmem:[%s220 + $0x18] sm:$0xff]
      %v232 = vld [vmem:[%s1] sm:$0x1]
      %v234 = vperm.slane %v232, 0
      %v236 = vmul.f32 %v228, %v234
      %v237 = vmul.f32 %v229, %v234
      %v238 = vmul.f32 %v230, %v234
      %v239 = vmul.f32 %v231, %v234
      %v240 = vld [vmem:[%s2] sm:$0x1]
      %v242 = vperm.slane %v240, 0
      %v244 = vadd.f32 %v236, %v242
      %v245 = vadd.f32 %v237, %v242
      %v246 = vadd.f32 %v238, %v242
      %v247 = vadd.f32 %v239, %v242
      %v248 = vpack.c.bf16 %v245, %v244
      %v249 = vpack.c.bf16 %v247, %v246
      %v250 = vld [vmem:[%s3] sm:$0xf]
      %v251 = vld [vmem:[%s3 + $0x4] sm:$0xf]
      %v252 = vld [vmem:[%s3 + $0x8] sm:$0xf]
      %v253 = vld [vmem:[%s3 + $0xc] sm:$0xf]
      %v254 = vld [vmem:[%s3 + $0x10] sm:$0xf]
      %v255 = vld [vmem:[%s3 + $0x14] sm:$0xf]
      %v256 = vld [vmem:[%s3 + $0x18] sm:$0xf]
      %v257 = vld [vmem:[%s3 + $0x1c] sm:$0xf]
      %v258 = vld [vmem:[%s3 + $0x20] sm:$0xf]
      %v259 = vld [vmem:[%s3 + $0x24] sm:$0xf]
      %v260 = vld [vmem:[%s3 + $0x28] sm:$0xf]
      %v261 = vld [vmem:[%s3 + $0x2c] sm:$0xf]
      %v262 = vld [vmem:[%s3 + $0x30] sm:$0xf]
      %v263 = vld [vmem:[%s3 + $0x34] sm:$0xf]
      %v264 = vld [vmem:[%s3 + $0x38] sm:$0xf]
      %v265 = vld [vmem:[%s3 + $0x3c] sm:$0xf]
      %v266 = vld [vmem:[%s4] sm:$0x1]
      %v268 = vperm.slane %v266, 0
      %v286 = vunpack.c.l.b16 %v250
      %v287 = vunpack.c.l.b16 %v251
      %v288 = vunpack.c.l.b16 %v252
      %v289 = vunpack.c.l.b16 %v253
      %v290 = vunpack.c.l.b16 %v254
      %v291 = vunpack.c.l.b16 %v255
      %v292 = vunpack.c.l.b16 %v256
      %v293 = vunpack.c.l.b16 %v257
      %v294 = vunpack.c.l.b16 %v258
      %v295 = vunpack.c.l.b16 %v259
      %v296 = vunpack.c.l.b16 %v260
      %v297 = vunpack.c.l.b16 %v261
      %v298 = vunpack.c.l.b16 %v262
      %v299 = vunpack.c.l.b16 %v263
      %v300 = vunpack.c.l.b16 %v264
      %v301 = vunpack.c.l.b16 %v265
      %v302 = vpack.c.b16 %v287, %v286
      %v303 = vpack.c.b16 %v289, %v288
      %v304 = vpack.c.b16 %v291, %v290
      %v305 = vpack.c.b16 %v293, %v292
      %v306 = vpack.c.b16 %v295, %v294
      %v307 = vpack.c.b16 %v297, %v296
      %v308 = vpack.c.b16 %v299, %v298
      %v309 = vpack.c.b16 %v301, %v300
      %318 = vmatpush.bf16.msra.mxu0 %v309
      %319 = vmatpush.bf16.msra.mxu0 %v308
      %320 = vmatpush.bf16.msra.mxu0 %v307
      %321 = vmatpush.bf16.msra.mxu0 %v306
      %322 = vmatpush.bf16.msra.mxu0 %v305
      %323 = vmatpush.bf16.msra.mxu0 %v304
      %324 = vmatpush.bf16.msra.mxu0 %v303
      %325 = vmatpush.bf16.msra.mxu0 %v302
      %326 = vmatmul.bf16.gmra.mxu0 %v248
      %v327 = vpop.f32.mrf.mxu0
      %v328 = vadd.f32 %v268, %v327
      %v329 = vpop.f32.mrf.mxu0
      %v330 = vadd.f32 %v268, %v329
      %331 = vmatmul.bf16.gmra.mxu0 %v249
      %v332 = vpop.f32.mrf.mxu0
      %v333 = vadd.f32 %v268, %v332
      %v334 = vpop.f32.mrf.mxu0
      %v335 = vadd.f32 %v268, %v334
      %336 = vdwg.mxu0
      %v337 = vtanh.pop %v328
      %v338 = vtanh.pop %v330
      %v339 = vtanh.pop %v333
      %v340 = vtanh.pop %v335
      %vm341 = vcmask 785408
      %342 = vst.msk [vmem:[%s226] sm:$0xff] %vm341, %v337
      %343 = vst.msk [vmem:[%s226 + $0x8] sm:$0xff] %vm341, %v338
      %344 = vst.msk [vmem:[%s226 + $0x10] sm:$0xff] %vm341, %v339
      %345 = vst.msk [vmem:[%s226 + $0x18] sm:$0xff] %vm341, %v340
      %s346 = smul.u32 4, %s16
      %p347 = scmp.lt.s32.totalorder %s346, 7
      %s348 = scalar_select %p347, %s346, 7
      %s349 = smul.addr %s348, 8
      %s350 = scalar_lea.vmem %s5, %s349
      // Predicated region
      $region41: #{gravnet_with_noise_filter_forward.37} parent=39 // pred_check
        %p351 = pneg %p144
      $region42: #{gravnet_with_noise_filter_forward.37} parent=39 // pred_check_branch
        %353 = sbr.rel (%p351) target = $region44
      $region43: #{gravnet_with_noise_filter_forward.37} parent=39 // pred_region
        %s354 = smul.u32 4, %s16
      $region44: #{gravnet_with_noise_filter_forward.37} parent=39 // pred_fallthru
        _
    $region40: #{gravnet_with_noise_filter_forward.37} parent=5 // pred_fallthru
      _
    %p355 = scmp.le.s32.totalorder 2, %s11
    // Predicated region
    $region45: #{gravnet_with_noise_filter_forward.37} parent=5 // pred_check
      %p356 = pneg %p355
    $region46: #{gravnet_with_noise_filter_forward.37} parent=5 // pred_check_branch
      %358 = sbr.rel (%p356) target = $region48
    $region47: #{gravnet_with_noise_filter_forward.37} parent=5 // pred_region
      %s359 = ssub.s32 %s11, 2
      // Predicated region
      $region49: #{gravnet_with_noise_filter_forward.37} parent=47 // pred_check
        %p360 = pneg %p150
      $region50: #{gravnet_with_noise_filter_forward.37} parent=47 // pred_check_branch
        %362 = sbr.rel (%p360) target = $region52
      $region51: #{gravnet_with_noise_filter_forward.37} parent=47 // pred_region
        %s363 = smul.u32 4, %s17
        %p364 = scmp.lt.s32.totalorder %s363, 7
        %s365 = scalar_select %p364, %s363, 7
        %s366 = smul.addr %s365, 8
        %s367 = scalar_lea.vmem %s5, %s366
      $region52: #{gravnet_with_noise_filter_forward.37} parent=47 // pred_fallthru
        _
    $region48: #{gravnet_with_noise_filter_forward.37} parent=5 // pred_fallthru
      _
  $region6: #{gravnet_with_noise_filter_forward.37} parent=0 // loop_footer
    %s15 = sadd.s32 1, %s11
  $region7: #{gravnet_with_noise_filter_forward.37} parent=0 // loop_footer_branch
    %10 = sbr.rel target = $region3
  $region8: #{gravnet_with_noise_filter_forward.37} parent=0 // loop_exit
    _

// kernel: gravnet_with_noise_filter_forward.38
$region0: #{gravnet_with_noise_filter_forward.38}
  #allocation0 [shape = 'u32[]', space=smem, size = 0x4, offset = 0x4, fixed_abs, tag = 'smem constant byte address 0x4 - core index']
  #allocation1 [shape = 'u32[72,128]{1,0:T(1,128)}', space=vmem, size = 0x9000, scoped, tag = 'internal scratch']
  %s0 = inlined_call_operand.vmem [shape: f32[64,96], index: 0, kind: input, shape index: {}]
  %s1 = inlined_call_operand.vmem [shape: s32[64,1], index: 1, kind: input, shape index: {}]
  %s2 = inlined_call_operand.vmem [shape: f32[2,96], index: 2, kind: input, shape index: {}]
  %s3 = inlined_call_operand.vmem [shape: bf16[96,96], index: 3, kind: input, shape index: {}]
  %s4 = inlined_call_operand.vmem [shape: f32[1,96], index: 4, kind: input, shape index: {}]
  %s5 = inlined_call_operand.vmem [shape: f32[64,96], index: 5, kind: output, shape index: {}]
  %s6 = sld [smem:[#allocation0]]
  $region53: #{gravnet_with_noise_filter_forward.38} parent=0
    _
  %s8 = ssub.s32 1, %s6
  %s9 = scalar_select 0, %s8, %s6
  loop: start=0, step=1, limit=4
  $region2: #{gravnet_with_noise_filter_forward.38} parent=0 // loop_pre_header
    _
  $region3: #{gravnet_with_noise_filter_forward.38} parent=0 // loop_header
    %s11 = sphi 0, %s15
    %p12 = scmp.ge.s32.totalorder %s11, 4
    %s21 = sphi 0, %s23
    %s24 = sphi 0, %s21
    %s25 = sphi 0, %s24
    %s41 = sphi 0, %s25
    %s47 = sphi 0, %s49
    %s50 = sphi 0, %s47
    %s51 = sphi 0, %s50
    %s67 = sphi 0, %s51
    %s71 = sphi 0, %s71
    %s73 = sphi 0, %s71
    %s74 = sphi 0, %s73
    %s88 = sphi 0, %s74
    %s92 = sphi 0, %s92
    %s94 = sphi 0, %s92
    %s95 = sphi 0, %s94
    %s109 = sphi 0, %s95
    %s113 = sphi 0, %s113
    %s115 = sphi 0, %s113
    %s116 = sphi 0, %s115
    %s130 = sphi 0, %s116
    %s136 = sphi 0, %s138
    %s139 = sphi 0, %s136
    %s140 = sphi 0, %s139
    %s156 = sphi 0, %s140
  $region4: #{gravnet_with_noise_filter_forward.38} parent=0 // loop_header_branch
    %14 = sbr.rel (%p12) target = $region8
  $region5: #{gravnet_with_noise_filter_forward.38} parent=0 // loop_body
    %s16 = ssub.s32 %s11, 1
    %s17 = ssub.s32 %s11, 2
    %s18 = sadd.s32 %s11, 1
    %s19 = ssub.s32 %s11, %s18
    %p20 = scmp.eq.s32.totalorder %s19, 0
    %s22 = sadd.s32 %s21, 1
    %s23 = scalar_select %p20, %s21, %s22
    %p26 = pneg %p20
    %p27 = scmp.eq.s32.totalorder %s11, 1
    %p28 = por %p26, %p27
    %p29 = scmp.ne.s32.totalorder %s21, %s24
    %p30 = scmp.eq.s32.totalorder %s11, 0
    %p31 = por %p29, %p30
    %p32 = scmp.ne.s32.totalorder %s21, %s24
    %p33 = scmp.eq.s32.totalorder %s16, 1
    %p34 = por %p32, %p33
    %p35 = scmp.ne.s32.totalorder %s24, %s25
    %p36 = scmp.eq.s32.totalorder %s16, 0
    %p37 = por %p35, %p36
    %p38 = scmp.ne.s32.totalorder %s24, %s25
    %p39 = scmp.eq.s32.totalorder %s17, 1
    %p40 = por %p38, %p39
    %p42 = scmp.ne.s32.totalorder %s25, %s41
    %p43 = scmp.eq.s32.totalorder %s17, 0
    %p44 = por %p42, %p43
    %s45 = ssub.s32 %s11, %s18
    %p46 = scmp.eq.s32.totalorder %s45, 0
    %s48 = sadd.s32 %s47, 1
    %s49 = scalar_select %p46, %s47, %s48
    %p52 = pneg %p46
    %p53 = scmp.eq.s32.totalorder %s11, 1
    %p54 = por %p52, %p53
    %p55 = scmp.ne.s32.totalorder %s47, %s50
    %p56 = scmp.eq.s32.totalorder %s11, 0
    %p57 = por %p55, %p56
    %p58 = scmp.ne.s32.totalorder %s47, %s50
    %p59 = scmp.eq.s32.totalorder %s16, 1
    %p60 = por %p58, %p59
    %p61 = scmp.ne.s32.totalorder %s50, %s51
    %p62 = scmp.eq.s32.totalorder %s16, 0
    %p63 = por %p61, %p62
    %p64 = scmp.ne.s32.totalorder %s50, %s51
    %p65 = scmp.eq.s32.totalorder %s17, 1
    %p66 = por %p64, %p65
    %p68 = scmp.ne.s32.totalorder %s51, %s67
    %p69 = scmp.eq.s32.totalorder %s17, 0
    %p70 = por %p68, %p69
    %s72 = sadd.s32 %s71, 1
    %p75 = scmp.eq.s32.totalorder %s11, 1
    %p76 = scmp.ne.s32.totalorder %s71, %s73
    %p77 = scmp.eq.s32.totalorder %s11, 0
    %p78 = por %p76, %p77
    %p79 = scmp.ne.s32.totalorder %s71, %s73
    %p80 = scmp.eq.s32.totalorder %s16, 1
    %p81 = por %p79, %p80
    %p82 = scmp.ne.s32.totalorder %s73, %s74
    %p83 = scmp.eq.s32.totalorder %s16, 0
    %p84 = por %p82, %p83
    %p85 = scmp.ne.s32.totalorder %s73, %s74
    %p86 = scmp.eq.s32.totalorder %s17, 1
    %p87 = por %p85, %p86
    %p89 = scmp.ne.s32.totalorder %s74, %s88
    %p90 = scmp.eq.s32.totalorder %s17, 0
    %p91 = por %p89, %p90
    %s93 = sadd.s32 %s92, 1
    %p96 = scmp.eq.s32.totalorder %s11, 1
    %p97 = scmp.ne.s32.totalorder %s92, %s94
    %p98 = scmp.eq.s32.totalorder %s11, 0
    %p99 = por %p97, %p98
    %p100 = scmp.ne.s32.totalorder %s92, %s94
    %p101 = scmp.eq.s32.totalorder %s16, 1
    %p102 = por %p100, %p101
    %p103 = scmp.ne.s32.totalorder %s94, %s95
    %p104 = scmp.eq.s32.totalorder %s16, 0
    %p105 = por %p103, %p104
    %p106 = scmp.ne.s32.totalorder %s94, %s95
    %p107 = scmp.eq.s32.totalorder %s17, 1
    %p108 = por %p106, %p107
    %p110 = scmp.ne.s32.totalorder %s95, %s109
    %p111 = scmp.eq.s32.totalorder %s17, 0
    %p112 = por %p110, %p111
    %s114 = sadd.s32 %s113, 1
    %p117 = scmp.eq.s32.totalorder %s11, 1
    %p118 = scmp.ne.s32.totalorder %s113, %s115
    %p119 = scmp.eq.s32.totalorder %s11, 0
    %p120 = por %p118, %p119
    %p121 = scmp.ne.s32.totalorder %s113, %s115
    %p122 = scmp.eq.s32.totalorder %s16, 1
    %p123 = por %p121, %p122
    %p124 = scmp.ne.s32.totalorder %s115, %s116
    %p125 = scmp.eq.s32.totalorder %s16, 0
    %p126 = por %p124, %p125
    %p127 = scmp.ne.s32.totalorder %s115, %s116
    %p128 = scmp.eq.s32.totalorder %s17, 1
    %p129 = por %p127, %p128
    %p131 = scmp.ne.s32.totalorder %s116, %s130
    %p132 = scmp.eq.s32.totalorder %s17, 0
    %p133 = por %p131, %p132
    %s134 = ssub.s32 %s11, %s18
    %p135 = scmp.eq.s32.totalorder %s134, 0
    %s137 = sadd.s32 %s136, 1
    %s138 = scalar_select %p135, %s136, %s137
    %p141 = pneg %p135
    %p142 = scmp.eq.s32.totalorder %s11, 1
    %p143 = por %p141, %p142
    %p144 = scmp.ne.s32.totalorder %s136, %s139
    %p145 = scmp.eq.s32.totalorder %s11, 0
    %p146 = por %p144, %p145
    %p147 = scmp.ne.s32.totalorder %s136, %s139
    %p148 = scmp.eq.s32.totalorder %s16, 1
    %p149 = por %p147, %p148
    %p150 = scmp.ne.s32.totalorder %s139, %s140
    %p151 = scmp.eq.s32.totalorder %s16, 0
    %p152 = por %p150, %p151
    %p153 = scmp.ne.s32.totalorder %s139, %s140
    %p154 = scmp.eq.s32.totalorder %s17, 1
    %p155 = por %p153, %p154
    %p157 = scmp.ne.s32.totalorder %s140, %s156
    %p158 = scmp.eq.s32.totalorder %s17, 0
    %p159 = por %p157, %p158
    %p160 = scmp.le.s32.totalorder 1, %s11
    %p161 = scmp.lt.s32.totalorder %s11, 3
    %p162 = pnand %p160, %p161
    %p163 = pneg %p162
    // Predicated region
    $region9: #{gravnet_with_noise_filter_forward.38} parent=5 // pred_check
      _
    $region10: #{gravnet_with_noise_filter_forward.38} parent=5 // pred_check_branch
      %165 = sbr.rel (%p162) target = $region12
    $region11: #{gravnet_with_noise_filter_forward.38} parent=5 // pred_region
      %s166 = ssub.s32 %s11, 1
      // Predicated region
      $region13: #{gravnet_with_noise_filter_forward.38} parent=11 // pred_check
        %p167 = pneg %p84
      $region14: #{gravnet_with_noise_filter_forward.38} parent=11 // pred_check_branch
        %169 = sbr.rel (%p167) target = $region16
      $region15: #{gravnet_with_noise_filter_forward.38} parent=11 // pred_region
        _
      $region16: #{gravnet_with_noise_filter_forward.38} parent=11 // pred_fallthru
        _
      // Predicated region
      $region17: #{gravnet_with_noise_filter_forward.38} parent=11 // pred_check
        %p170 = pneg %p105
      $region18: #{gravnet_with_noise_filter_forward.38} parent=11 // pred_check_branch
        %172 = sbr.rel (%p170) target = $region20
      $region19: #{gravnet_with_noise_filter_forward.38} parent=11 // pred_region
        _
      $region20: #{gravnet_with_noise_filter_forward.38} parent=11 // pred_fallthru
        _
      // Predicated region
      $region21: #{gravnet_with_noise_filter_forward.38} parent=11 // pred_check
        %p173 = pneg %p126
      $region22: #{gravnet_with_noise_filter_forward.38} parent=11 // pred_check_branch
        %175 = sbr.rel (%p173) target = $region24
      $region23: #{gravnet_with_noise_filter_forward.38} parent=11 // pred_region
        _
      $region24: #{gravnet_with_noise_filter_forward.38} parent=11 // pred_fallthru
        _
    $region12: #{gravnet_with_noise_filter_forward.38} parent=5 // pred_fallthru
      _
    %p176 = scmp.lt.s32.totalorder %s11, 2
    // Predicated region
    $region25: #{gravnet_with_noise_filter_forward.38} parent=5 // pred_check
      %p177 = pneg %p176
    $region26: #{gravnet_with_noise_filter_forward.38} parent=5 // pred_check_branch
      %179 = sbr.rel (%p177) target = $region28
    $region27: #{gravnet_with_noise_filter_forward.38} parent=5 // pred_region
      // Predicated region
      $region29: #{gravnet_with_noise_filter_forward.38} parent=27 // pred_check
        %p180 = pneg %p31
      $region30: #{gravnet_with_noise_filter_forward.38} parent=27 // pred_check_branch
        %182 = sbr.rel (%p180) target = $region32
      $region31: #{gravnet_with_noise_filter_forward.38} parent=27 // pred_region
        %s183 = smul.u32 4, %s11
        %p184 = scmp.lt.s32.totalorder %s183, 7
        %s185 = scalar_select %p184, %s183, 7
        %s186 = smul.addr %s185, 8
        %s187 = scalar_lea.vmem %s0, %s186
        %s188 = smul.u32 4, %s11
      $region32: #{gravnet_with_noise_filter_forward.38} parent=27 // pred_fallthru
        _
      // Predicated region
      $region33: #{gravnet_with_noise_filter_forward.38} parent=27 // pred_check
        %p189 = pneg %p57
      $region34: #{gravnet_with_noise_filter_forward.38} parent=27 // pred_check_branch
        %191 = sbr.rel (%p189) target = $region36
      $region35: #{gravnet_with_noise_filter_forward.38} parent=27 // pred_region
        %s192 = smul.u32 4, %s11
        %p193 = scmp.lt.s32.totalorder %s192, 7
        %s194 = scalar_select %p193, %s192, 7
        %s195 = smul.addr %s194, 8
        %s196 = scalar_lea.vmem %s1, %s195
        %s197 = smul.u32 4, %s11
      $region36: #{gravnet_with_noise_filter_forward.38} parent=27 // pred_fallthru
        _
    $region28: #{gravnet_with_noise_filter_forward.38} parent=5 // pred_fallthru
      _
    %p198 = scmp.le.s32.totalorder 1, %s11
    %p199 = scmp.lt.s32.totalorder %s11, 3
    %p200 = pnand %p198, %p199
    %p201 = pneg %p200
    // Predicated region
    $region37: #{gravnet_with_noise_filter_forward.38} parent=5 // pred_check
      _
    $region38: #{gravnet_with_noise_filter_forward.38} parent=5 // pred_check_branch
      %203 = sbr.rel (%p200) target = $region40
    $region39: #{gravnet_with_noise_filter_forward.38} parent=5 // pred_region
      %s204 = ssub.s32 %s11, 1
      %s205 = smul.u32 4, %s16
      %p206 = scmp.lt.s32.totalorder %s205, 7
      %s207 = scalar_select %p206, %s205, 7
      %s208 = smul.addr %s207, 8
      %s209 = scalar_lea.vmem %s0, %s208
      %p210 = pneg %p37
      %p211 = pneg %p34
      %s212 = smul.u32 4, %s16
      %p213 = scmp.lt.s32.totalorder %s212, 7
      %s214 = scalar_select %p213, %s212, 7
      %s215 = smul.addr %s214, 8
      %s216 = scalar_lea.vmem %s1, %s215
      %p217 = pneg %p63
      %p218 = pneg %p60
      %p219 = pneg %p84
      %p220 = pneg %p81
      %p221 = pneg %p105
      %p222 = pneg %p102
      %p223 = pneg %p126
      %p224 = pneg %p123
      %p225 = pneg %p152
      %p226 = pneg %p149
      %s227 = smul.u32 4, %s16
      %p228 = scmp.lt.s32.totalorder %s227, 7
      %s229 = scalar_select %p228, %s227, 7
      %s230 = smul.addr %s229, 8
      %s231 = scalar_lea.vmem %s5, %s230
      %s232 = smul.u32 4, %s16
      %p233 = scmp.lt.s32.totalorder %s232, 7
      %s234 = scalar_select %p233, %s232, 7
      %s235 = smul.addr %s234, 8
      %s236 = scalar_lea.vmem %s0, %s235
      %s237 = smul.u32 4, %s16
      %s238 = smul.u32 4, %s16
      %p239 = scmp.lt.s32.totalorder %s238, 7
      %s240 = scalar_select %p239, %s238, 7
      %s241 = smul.addr %s240, 8
      %s242 = scalar_lea.vmem %s1, %s241
      %s243 = smul.u32 4, %s16
      %s244 = smul.u32 4, %s16
      %p245 = scmp.lt.s32.totalorder %s244, 7
      %s246 = scalar_select %p245, %s244, 7
      %s247 = smul.addr %s246, 8
      %s248 = scalar_lea.vmem %s5, %s247
      %s249 = smul.u32 4, %s16
      %v251 = vld [vmem:[%s236] sm:$0xff]
      %v252 = vld [vmem:[%s236 + $0x8] sm:$0xff]
      %v253 = vld [vmem:[%s236 + $0x10] sm:$0xff]
      %v254 = vld [vmem:[%s236 + $0x18] sm:$0xff]
      %v255 = vlaneseq
      %v256 = vand.u32 %v255, 127
      %v257 = vld [vmem:[%s242] sm:$0xff]
      %v258 = vld [vmem:[%s242 + $0x8] sm:$0xff]
      %v259 = vld [vmem:[%s242 + $0x10] sm:$0xff]
      %v260 = vld [vmem:[%s242 + $0x18] sm:$0xff]
      %261 = vset.pattern.permute.xlu0 0
      %262 = vperm.xlu0 %261, %v257
      %v263 = vpop.permute.xlu0 %262
      %264 = vset.pattern.permute.xlu0 0
      %265 = vperm.xlu0 %264, %v258
      %v266 = vpop.permute.xlu0 %265
      %267 = vset.pattern.permute.xlu0 0
      %268 = vperm.xlu0 %267, %v259
      %v269 = vpop.permute.xlu0 %268
      %270 = vset.pattern.permute.xlu0 0
      %271 = vperm.xlu0 %270, %v260
      %v272 = vpop.permute.xlu0 %271
      %vm273 = vcmp.eq.s32.totalorder %v263, %v256
      %vm274 = vcmp.eq.s32.totalorder %v266, %v256
      %vm275 = vcmp.eq.s32.totalorder %v269, %v256
      %vm276 = vcmp.eq.s32.totalorder %v272, %v256
      %v277 = vsel %vm273, 1, 0
      %v278 = vsel %vm274, 1, 0
      %v279 = vsel %vm275, 1, 0
      %v280 = vsel %vm276, 1, 0
      %v281 = vcvt.s32.f32 %v277
      %v282 = vcvt.s32.f32 %v278
      %v283 = vcvt.s32.f32 %v279
      %v284 = vcvt.s32.f32 %v280
      %v285 = vld [vmem:[%s2] sm:$0x3]
      %v286 = vpack.c.bf16 %v252, %v251
      %v287 = vpack.c.bf16 %v254, %v253
      %v288 = vld [vmem:[%s3] sm:$0xf]
      %v289 = vld [vmem:[%s3 + $0x4] sm:$0xf]
      %v290 = vld [vmem:[%s3 + $0x8] sm:$0xf]
      %v291 = vld [vmem:[%s3 + $0xc] sm:$0xf]
      %v292 = vld [vmem:[%s3 + $0x10] sm:$0xf]
      %v293 = vld [vmem:[%s3 + $0x14] sm:$0xf]
      %v294 = vld [vmem:[%s3 + $0x18] sm:$0xf]
      %v295 = vld [vmem:[%s3 + $0x1c] sm:$0xf]
      %v296 = vld [vmem:[%s3 + $0x20] sm:$0xf]
      %v297 = vld [vmem:[%s3 + $0x24] sm:$0xf]
      %v298 = vld [vmem:[%s3 + $0x28] sm:$0xf]
      %v299 = vld [vmem:[%s3 + $0x2c] sm:$0xf]
      %v312 = vunpack.c.l.b16 %v288
      %v313 = vunpack.c.l.b16 %v289
      %v314 = vunpack.c.l.b16 %v290
      %v315 = vunpack.c.l.b16 %v291
      %v316 = vunpack.c.l.b16 %v292
      %v317 = vunpack.c.l.b16 %v293
      %v318 = vunpack.c.l.b16 %v294
      %v319 = vunpack.c.l.b16 %v295
      %v320 = vunpack.c.l.b16 %v296
      %v321 = vunpack.c.l.b16 %v297
      %v322 = vunpack.c.l.b16 %v298
      %v323 = vunpack.c.l.b16 %v299
      %v324 = vpack.c.b16 %v313, %v312
      %v325 = vpack.c.b16 %v315, %v314
      %v326 = vpack.c.b16 %v317, %v316
      %v327 = vpack.c.b16 %v319, %v318
      %v328 = vpack.c.b16 %v321, %v320
      %v329 = vpack.c.b16 %v323, %v322
      %vm336 = vcmask 785408
      %v338 = vsel %vm336, %v286, 0
      %v341 = vsel %vm336, %v287, 0
      %343 = vmatpush.bf16.msra.mxu0 0
      %344 = vmatpush.bf16.msra.mxu0 0
      %345 = vmatpush.bf16.msra.mxu0 %v329
      %346 = vmatpush.bf16.msra.mxu0 %v328
      %347 = vmatpush.bf16.msra.mxu0 %v327
      %348 = vmatpush.bf16.msra.mxu0 %v326
      %349 = vmatpush.bf16.msra.mxu0 %v325
      %350 = vmatpush.bf16.msra.mxu0 %v324
      %351 = vmatmul.bf16.gmra.mxu0 %v338
      %v352 = vpop.f32.mrf.mxu0
      %v353 = vadd.f32 0.0, %v352
      %v354 = vpop.f32.mrf.mxu0
      %v355 = vadd.f32 0.0, %v354
      %356 = vmatmul.bf16.gmra.mxu0 %v341
      %v357 = vpop.f32.mrf.mxu0
      %v358 = vadd.f32 0.0, %v357
      %v359 = vpop.f32.mrf.mxu0
      %v360 = vadd.f32 0.0, %v359
      %361 = vdwg.mxu0
      %vm362 = vcmask 15360
      %v364 = vsel %vm362, %v281, 0
      %v367 = vsel %vm362, %v282, 0
      %v370 = vsel %vm362, %v283, 0
      %v373 = vsel %vm362, %v284, 0
      %vm375 = vcmask 1041408
      %v377 = vsel %vm375, %v285, 0
      %379 = vmatpush.msra.mxu0 0.0
      %380 = vmatpush.msra.mxu0 0.0
      %381 = vmatpush.msra.mxu0 0.0
      %382 = vmatpush.msra.mxu0 0.0
      %383 = vmatpush.msra.mxu0 0.0
      %384 = vmatpush.msra.mxu0 0.0
      %385 = vmatpush.msra.mxu0 0.0
      %386 = vmatpush.msra.mxu0 0.0
      %387 = vmatpush.msra.mxu0 0.0
      %388 = vmatpush.msra.mxu0 0.0
      %389 = vmatpush.msra.mxu0 0.0
      %390 = vmatpush.msra.mxu0 0.0
      %391 = vmatpush.msra.mxu0 0.0
      %392 = vmatpush.msra.mxu0 0.0
      %393 = vmatpush.msra.mxu0 0.0
      %394 = vmatpush.msra.mxu0 %v377
      %395 = vmatmul.f32.gmra.mxu0 %v364
      %v396 = vpop.f32.mrf.mxu0
      %v397 = vadd.f32 %v353, %v396
      %398 = vmatmul.f32.gmra.mxu0 %v367
      %v399 = vpop.f32.mrf.mxu0
      %v400 = vadd.f32 %v355, %v399
      %401 = vmatmul.f32.gmra.mxu0 %v370
      %v402 = vpop.f32.mrf.mxu0
      %v403 = vadd.f32 %v358, %v402
      %404 = vmatmul.f32.gmra.mxu0 %v373
      %v405 = vpop.f32.mrf.mxu0
      %v406 = vadd.f32 %v360, %v405
      %407 = vdwg.mxu0
      %v408 = vld [vmem:[%s4] sm:$0x1]
      %v410 = vperm.slane %v408, 0
      %v412 = vadd.f32 %v397, %v410
      %v413 = vadd.f32 %v400, %v410
      %v414 = vadd.f32 %v403, %v410
      %v415 = vadd.f32 %v406, %v410
      %v416 = vtanh.pop %v412
      %v417 = vtanh.pop %v413
      %v418 = vtanh.pop %v414
      %v419 = vtanh.pop %v415
      %420 = vst.msk [vmem:[%s248] sm:$0xff] %vm336, %v416
      %421 = vst.msk [vmem:[%s248 + $0x8] sm:$0xff] %vm336, %v417
      %422 = vst.msk [vmem:[%s248 + $0x10] sm:$0xff] %vm336, %v418
      %423 = vst.msk [vmem:[%s248 + $0x18] sm:$0xff] %vm336, %v419
      %s424 = smul.u32 4, %s16
      %p425 = scmp.lt.s32.totalorder %s424, 7
      %s426 = scalar_select %p425, %s424, 7
      %s427 = smul.addr %s426, 8
      %s428 = scalar_lea.vmem %s5, %s427
      // Predicated region
      $region41: #{gravnet_with_noise_filter_forward.38} parent=39 // pred_check
        %p429 = pneg %p149
      $region42: #{gravnet_with_noise_filter_forward.38} parent=39 // pred_check_branch
        %431 = sbr.rel (%p429) target = $region44
      $region43: #{gravnet_with_noise_filter_forward.38} parent=39 // pred_region
        %s432 = smul.u32 4, %s16
      $region44: #{gravnet_with_noise_filter_forward.38} parent=39 // pred_fallthru
        _
    $region40: #{gravnet_with_noise_filter_forward.38} parent=5 // pred_fallthru
      _
    %p433 = scmp.le.s32.totalorder 2, %s11
    // Predicated region
    $region45: #{gravnet_with_noise_filter_forward.38} parent=5 // pred_check
      %p434 = pneg %p433
    $region46: #{gravnet_with_noise_filter_forward.38} parent=5 // pred_check_branch
      %436 = sbr.rel (%p434) target = $region48
    $region47: #{gravnet_with_noise_filter_forward.38} parent=5 // pred_region
      %s437 = ssub.s32 %s11, 2
      // Predicated region
      $region49: #{gravnet_with_noise_filter_forward.38} parent=47 // pred_check
        %p438 = pneg %p155
      $region50: #{gravnet_with_noise_filter_forward.38} parent=47 // pred_check_branch
        %440 = sbr.rel (%p438) target = $region52
      $region51: #{gravnet_with_noise_filter_forward.38} parent=47 // pred_region
        %s441 = smul.u32 4, %s17
        %p442 = scmp.lt.s32.totalorder %s441, 7
        %s443 = scalar_select %p442, %s441, 7
        %s444 = smul.addr %s443, 8
        %s445 = scalar_lea.vmem %s5, %s444
      $region52: #{gravnet_with_noise_filter_forward.38} parent=47 // pred_fallthru
        _
    $region48: #{gravnet_with_noise_filter_forward.38} parent=5 // pred_fallthru
      _
  $region6: #{gravnet_with_noise_filter_forward.38} parent=0 // loop_footer
    %s15 = sadd.s32 1, %s11
  $region7: #{gravnet_with_noise_filter_forward.38} parent=0 // loop_footer_branch
    %10 = sbr.rel target = $region3
  $region8: #{gravnet_with_noise_filter_forward.38} parent=0 // loop_exit
    _

// kernel: gravnet_with_noise_filter_forward.39
$region0: #{gravnet_with_noise_filter_forward.39}
  #allocation0 [shape = 'u32[]', space=smem, size = 0x4, offset = 0x4, fixed_abs, tag = 'smem constant byte address 0x4 - core index']
  #allocation1 [shape = 'u32[72,128]{1,0:T(1,128)}', space=vmem, size = 0x9000, scoped, tag = 'internal scratch']
  %s0 = inlined_call_operand.vmem [shape: f32[64,96], index: 0, kind: input, shape index: {}]
  %s1 = inlined_call_operand.vmem [shape: f32[96,4], index: 1, kind: input, shape index: {}]
  %s2 = inlined_call_operand.vmem [shape: bf16[96,64], index: 2, kind: input, shape index: {}]
  %s3 = inlined_call_operand.vmem [shape: f32[1,4], index: 3, kind: input, shape index: {}]
  %s4 = inlined_call_operand.vmem [shape: f32[1,64], index: 4, kind: input, shape index: {}]
  %s5 = inlined_call_operand.vmem [shape: f32[64,4], index: 5, kind: output, shape index: {0}]
  %s6 = inlined_call_operand.vmem [shape: bf16[64,64], index: 6, kind: output, shape index: {1}]
  %7 = xla_tuple %s5, %s6
  %s8 = sld [smem:[#allocation0]]
  $region61: #{gravnet_with_noise_filter_forward.39} parent=0
    _
  %s10 = ssub.s32 1, %s8
  %s11 = scalar_select 0, %s10, %s8
  loop: start=0, step=1, limit=4
  $region2: #{gravnet_with_noise_filter_forward.39} parent=0 // loop_pre_header
    _
  $region3: #{gravnet_with_noise_filter_forward.39} parent=0 // loop_header
    %s13 = sphi 0, %s17
    %p14 = scmp.ge.s32.totalorder %s13, 4
    %s23 = sphi 0, %s25
    %s26 = sphi 0, %s23
    %s27 = sphi 0, %s26
    %s43 = sphi 0, %s27
    %s47 = sphi 0, %s47
    %s49 = sphi 0, %s47
    %s50 = sphi 0, %s49
    %s64 = sphi 0, %s50
    %s68 = sphi 0, %s68
    %s70 = sphi 0, %s68
    %s71 = sphi 0, %s70
    %s85 = sphi 0, %s71
    %s89 = sphi 0, %s89
    %s91 = sphi 0, %s89
    %s92 = sphi 0, %s91
    %s106 = sphi 0, %s92
    %s110 = sphi 0, %s110
    %s112 = sphi 0, %s110
    %s113 = sphi 0, %s112
    %s127 = sphi 0, %s113
    %s133 = sphi 0, %s135
    %s136 = sphi 0, %s133
    %s137 = sphi 0, %s136
    %s153 = sphi 0, %s137
    %s159 = sphi 0, %s161
    %s162 = sphi 0, %s159
    %s163 = sphi 0, %s162
    %s179 = sphi 0, %s163
  $region4: #{gravnet_with_noise_filter_forward.39} parent=0 // loop_header_branch
    %16 = sbr.rel (%p14) target = $region8
  $region5: #{gravnet_with_noise_filter_forward.39} parent=0 // loop_body
    %s18 = ssub.s32 %s13, 1
    %s19 = ssub.s32 %s13, 2
    %s20 = sadd.s32 %s13, 1
    %s21 = ssub.s32 %s13, %s20
    %p22 = scmp.eq.s32.totalorder %s21, 0
    %s24 = sadd.s32 %s23, 1
    %s25 = scalar_select %p22, %s23, %s24
    %p28 = pneg %p22
    %p29 = scmp.eq.s32.totalorder %s13, 1
    %p30 = por %p28, %p29
    %p31 = scmp.ne.s32.totalorder %s23, %s26
    %p32 = scmp.eq.s32.totalorder %s13, 0
    %p33 = por %p31, %p32
    %p34 = scmp.ne.s32.totalorder %s23, %s26
    %p35 = scmp.eq.s32.totalorder %s18, 1
    %p36 = por %p34, %p35
    %p37 = scmp.ne.s32.totalorder %s26, %s27
    %p38 = scmp.eq.s32.totalorder %s18, 0
    %p39 = por %p37, %p38
    %p40 = scmp.ne.s32.totalorder %s26, %s27
    %p41 = scmp.eq.s32.totalorder %s19, 1
    %p42 = por %p40, %p41
    %p44 = scmp.ne.s32.totalorder %s27, %s43
    %p45 = scmp.eq.s32.totalorder %s19, 0
    %p46 = por %p44, %p45
    %s48 = sadd.s32 %s47, 1
    %p51 = scmp.eq.s32.totalorder %s13, 1
    %p52 = scmp.ne.s32.totalorder %s47, %s49
    %p53 = scmp.eq.s32.totalorder %s13, 0
    %p54 = por %p52, %p53
    %p55 = scmp.ne.s32.totalorder %s47, %s49
    %p56 = scmp.eq.s32.totalorder %s18, 1
    %p57 = por %p55, %p56
    %p58 = scmp.ne.s32.totalorder %s49, %s50
    %p59 = scmp.eq.s32.totalorder %s18, 0
    %p60 = por %p58, %p59
    %p61 = scmp.ne.s32.totalorder %s49, %s50
    %p62 = scmp.eq.s32.totalorder %s19, 1
    %p63 = por %p61, %p62
    %p65 = scmp.ne.s32.totalorder %s50, %s64
    %p66 = scmp.eq.s32.totalorder %s19, 0
    %p67 = por %p65, %p66
    %s69 = sadd.s32 %s68, 1
    %p72 = scmp.eq.s32.totalorder %s13, 1
    %p73 = scmp.ne.s32.totalorder %s68, %s70
    %p74 = scmp.eq.s32.totalorder %s13, 0
    %p75 = por %p73, %p74
    %p76 = scmp.ne.s32.totalorder %s68, %s70
    %p77 = scmp.eq.s32.totalorder %s18, 1
    %p78 = por %p76, %p77
    %p79 = scmp.ne.s32.totalorder %s70, %s71
    %p80 = scmp.eq.s32.totalorder %s18, 0
    %p81 = por %p79, %p80
    %p82 = scmp.ne.s32.totalorder %s70, %s71
    %p83 = scmp.eq.s32.totalorder %s19, 1
    %p84 = por %p82, %p83
    %p86 = scmp.ne.s32.totalorder %s71, %s85
    %p87 = scmp.eq.s32.totalorder %s19, 0
    %p88 = por %p86, %p87
    %s90 = sadd.s32 %s89, 1
    %p93 = scmp.eq.s32.totalorder %s13, 1
    %p94 = scmp.ne.s32.totalorder %s89, %s91
    %p95 = scmp.eq.s32.totalorder %s13, 0
    %p96 = por %p94, %p95
    %p97 = scmp.ne.s32.totalorder %s89, %s91
    %p98 = scmp.eq.s32.totalorder %s18, 1
    %p99 = por %p97, %p98
    %p100 = scmp.ne.s32.totalorder %s91, %s92
    %p101 = scmp.eq.s32.totalorder %s18, 0
    %p102 = por %p100, %p101
    %p103 = scmp.ne.s32.totalorder %s91, %s92
    %p104 = scmp.eq.s32.totalorder %s19, 1
    %p105 = por %p103, %p104
    %p107 = scmp.ne.s32.totalorder %s92, %s106
    %p108 = scmp.eq.s32.totalorder %s19, 0
    %p109 = por %p107, %p108
    %s111 = sadd.s32 %s110, 1
    %p114 = scmp.eq.s32.totalorder %s13, 1
    %p115 = scmp.ne.s32.totalorder %s110, %s112
    %p116 = scmp.eq.s32.totalorder %s13, 0
    %p117 = por %p115, %p116
    %p118 = scmp.ne.s32.totalorder %s110, %s112
    %p119 = scmp.eq.s32.totalorder %s18, 1
    %p120 = por %p118, %p119
    %p121 = scmp.ne.s32.totalorder %s112, %s113
    %p122 = scmp.eq.s32.totalorder %s18, 0
    %p123 = por %p121, %p122
    %p124 = scmp.ne.s32.totalorder %s112, %s113
    %p125 = scmp.eq.s32.totalorder %s19, 1
    %p126 = por %p124, %p125
    %p128 = scmp.ne.s32.totalorder %s113, %s127
    %p129 = scmp.eq.s32.totalorder %s19, 0
    %p130 = por %p128, %p129
    %s131 = ssub.s32 %s13, %s20
    %p132 = scmp.eq.s32.totalorder %s131, 0
    %s134 = sadd.s32 %s133, 1
    %s135 = scalar_select %p132, %s133, %s134
    %p138 = pneg %p132
    %p139 = scmp.eq.s32.totalorder %s13, 1
    %p140 = por %p138, %p139
    %p141 = scmp.ne.s32.totalorder %s133, %s136
    %p142 = scmp.eq.s32.totalorder %s13, 0
    %p143 = por %p141, %p142
    %p144 = scmp.ne.s32.totalorder %s133, %s136
    %p145 = scmp.eq.s32.totalorder %s18, 1
    %p146 = por %p144, %p145
    %p147 = scmp.ne.s32.totalorder %s136, %s137
    %p148 = scmp.eq.s32.totalorder %s18, 0
    %p149 = por %p147, %p148
    %p150 = scmp.ne.s32.totalorder %s136, %s137
    %p151 = scmp.eq.s32.totalorder %s19, 1
    %p152 = por %p150, %p151
    %p154 = scmp.ne.s32.totalorder %s137, %s153
    %p155 = scmp.eq.s32.totalorder %s19, 0
    %p156 = por %p154, %p155
    %s157 = ssub.s32 %s13, %s20
    %p158 = scmp.eq.s32.totalorder %s157, 0
    %s160 = sadd.s32 %s159, 1
    %s161 = scalar_select %p158, %s159, %s160
    %p164 = pneg %p158
    %p165 = scmp.eq.s32.totalorder %s13, 1
    %p166 = por %p164, %p165
    %p167 = scmp.ne.s32.totalorder %s159, %s162
    %p168 = scmp.eq.s32.totalorder %s13, 0
    %p169 = por %p167, %p168
    %p170 = scmp.ne.s32.totalorder %s159, %s162
    %p171 = scmp.eq.s32.totalorder %s18, 1
    %p172 = por %p170, %p171
    %p173 = scmp.ne.s32.totalorder %s162, %s163
    %p174 = scmp.eq.s32.totalorder %s18, 0
    %p175 = por %p173, %p174
    %p176 = scmp.ne.s32.totalorder %s162, %s163
    %p177 = scmp.eq.s32.totalorder %s19, 1
    %p178 = por %p176, %p177
    %p180 = scmp.ne.s32.totalorder %s163, %s179
    %p181 = scmp.eq.s32.totalorder %s19, 0
    %p182 = por %p180, %p181
    %p183 = scmp.le.s32.totalorder 1, %s13
    %p184 = scmp.lt.s32.totalorder %s13, 3
    %p185 = pnand %p183, %p184
    %p186 = pneg %p185
    // Predicated region
    $region9: #{gravnet_with_noise_filter_forward.39} parent=5 // pred_check
      _
    $region10: #{gravnet_with_noise_filter_forward.39} parent=5 // pred_check_branch
      %188 = sbr.rel (%p185) target = $region12
    $region11: #{gravnet_with_noise_filter_forward.39} parent=5 // pred_region
      %s189 = ssub.s32 %s13, 1
      // Predicated region
      $region13: #{gravnet_with_noise_filter_forward.39} parent=11 // pred_check
        %p190 = pneg %p60
      $region14: #{gravnet_with_noise_filter_forward.39} parent=11 // pred_check_branch
        %192 = sbr.rel (%p190) target = $region16
      $region15: #{gravnet_with_noise_filter_forward.39} parent=11 // pred_region
        _
      $region16: #{gravnet_with_noise_filter_forward.39} parent=11 // pred_fallthru
        _
      // Predicated region
      $region17: #{gravnet_with_noise_filter_forward.39} parent=11 // pred_check
        %p193 = pneg %p81
      $region18: #{gravnet_with_noise_filter_forward.39} parent=11 // pred_check_branch
        %195 = sbr.rel (%p193) target = $region20
      $region19: #{gravnet_with_noise_filter_forward.39} parent=11 // pred_region
        _
      $region20: #{gravnet_with_noise_filter_forward.39} parent=11 // pred_fallthru
        _
      // Predicated region
      $region21: #{gravnet_with_noise_filter_forward.39} parent=11 // pred_check
        %p196 = pneg %p102
      $region22: #{gravnet_with_noise_filter_forward.39} parent=11 // pred_check_branch
        %198 = sbr.rel (%p196) target = $region24
      $region23: #{gravnet_with_noise_filter_forward.39} parent=11 // pred_region
        _
      $region24: #{gravnet_with_noise_filter_forward.39} parent=11 // pred_fallthru
        _
      // Predicated region
      $region25: #{gravnet_with_noise_filter_forward.39} parent=11 // pred_check
        %p199 = pneg %p123
      $region26: #{gravnet_with_noise_filter_forward.39} parent=11 // pred_check_branch
        %201 = sbr.rel (%p199) target = $region28
      $region27: #{gravnet_with_noise_filter_forward.39} parent=11 // pred_region
        _
      $region28: #{gravnet_with_noise_filter_forward.39} parent=11 // pred_fallthru
        _
    $region12: #{gravnet_with_noise_filter_forward.39} parent=5 // pred_fallthru
      _
    %p202 = scmp.lt.s32.totalorder %s13, 2
    // Predicated region
    $region29: #{gravnet_with_noise_filter_forward.39} parent=5 // pred_check
      %p203 = pneg %p202
    $region30: #{gravnet_with_noise_filter_forward.39} parent=5 // pred_check_branch
      %205 = sbr.rel (%p203) target = $region32
    $region31: #{gravnet_with_noise_filter_forward.39} parent=5 // pred_region
      // Predicated region
      $region33: #{gravnet_with_noise_filter_forward.39} parent=31 // pred_check
        %p206 = pneg %p33
      $region34: #{gravnet_with_noise_filter_forward.39} parent=31 // pred_check_branch
        %208 = sbr.rel (%p206) target = $region36
      $region35: #{gravnet_with_noise_filter_forward.39} parent=31 // pred_region
        %s209 = smul.u32 4, %s13
        %p210 = scmp.lt.s32.totalorder %s209, 7
        %s211 = scalar_select %p210, %s209, 7
        %s212 = smul.addr %s211, 8
        %s213 = scalar_lea.vmem %s0, %s212
        %s214 = smul.u32 4, %s13
      $region36: #{gravnet_with_noise_filter_forward.39} parent=31 // pred_fallthru
        _
    $region32: #{gravnet_with_noise_filter_forward.39} parent=5 // pred_fallthru
      _
    %p215 = scmp.le.s32.totalorder 1, %s13
    %p216 = scmp.lt.s32.totalorder %s13, 3
    %p217 = pnand %p215, %p216
    %p218 = pneg %p217
    // Predicated region
    $region37: #{gravnet_with_noise_filter_forward.39} parent=5 // pred_check
      _
    $region38: #{gravnet_with_noise_filter_forward.39} parent=5 // pred_check_branch
      %220 = sbr.rel (%p217) target = $region40
    $region39: #{gravnet_with_noise_filter_forward.39} parent=5 // pred_region
      %s221 = ssub.s32 %s13, 1
      %s222 = smul.u32 4, %s18
      %p223 = scmp.lt.s32.totalorder %s222, 7
      %s224 = scalar_select %p223, %s222, 7
      %s225 = smul.addr %s224, 8
      %s226 = scalar_lea.vmem %s0, %s225
      %p227 = pneg %p39
      %p228 = pneg %p36
      %p229 = pneg %p60
      %p230 = pneg %p57
      %p231 = pneg %p81
      %p232 = pneg %p78
      %p233 = pneg %p102
      %p234 = pneg %p99
      %p235 = pneg %p123
      %p236 = pneg %p120
      %p237 = pneg %p149
      %p238 = pneg %p146
      %s239 = smul.u32 4, %s18
      %p240 = scmp.lt.s32.totalorder %s239, 7
      %s241 = scalar_select %p240, %s239, 7
      %s242 = smul.addr %s241, 8
      %s243 = scalar_lea.vmem %s5, %s242
      %p244 = pneg %p175
      %p245 = pneg %p172
      %s246 = smul.u32 4, %s18
      %p247 = scmp.lt.s32.totalorder %s246, 7
      %s248 = scalar_select %p247, %s246, 7
      %s249 = smul.addr %s248, 4
      %s250 = scalar_lea.vmem %s6, %s249
      %s251 = smul.u32 4, %s18
      %p252 = scmp.lt.s32.totalorder %s251, 7
      %s253 = scalar_select %p252, %s251, 7
      %s254 = smul.addr %s253, 8
      %s255 = scalar_lea.vmem %s0, %s254
      %s256 = smul.u32 4, %s18
      %s257 = smul.u32 4, %s18
      %p258 = scmp.lt.s32.totalorder %s257, 7
      %s259 = scalar_select %p258, %s257, 7
      %s260 = smul.addr %s259, 8
      %s261 = scalar_lea.vmem %s5, %s260
      %s262 = smul.u32 4, %s18
      %s263 = smul.u32 4, %s18
      %p264 = scmp.lt.s32.totalorder %s263, 7
      %s265 = scalar_select %p264, %s263, 7
      %s266 = smul.addr %s265, 4
      %s267 = scalar_lea.vmem %s6, %s266
      %s268 = smul.u32 4, %s18
      %v270 = vld [vmem:[%s255] sm:$0xff]
      %v271 = vld [vmem:[%s255 + $0x8] sm:$0xff]
      %v272 = vld [vmem:[%s255 + $0x10] sm:$0xff]
      %v273 = vld [vmem:[%s255 + $0x18] sm:$0xff]
      %v274 = vld [vmem:[%s1] sm:$0xff]
      %v275 = vld [vmem:[%s1 + $0x8] sm:$0xff]
      %v276 = vld [vmem:[%s1 + $0x10] sm:$0xff]
      %v277 = vld [vmem:[%s1 + $0x18] sm:$0xff]
      %v278 = vld [vmem:[%s1 + $0x20] sm:$0xff]
      %v279 = vld [vmem:[%s1 + $0x28] sm:$0xff]
      %v280 = vld [vmem:[%s1 + $0x30] sm:$0xff]
      %v281 = vld [vmem:[%s1 + $0x38] sm:$0xff]
      %v282 = vld [vmem:[%s1 + $0x40] sm:$0xff]
      %v283 = vld [vmem:[%s1 + $0x48] sm:$0xff]
      %v284 = vld [vmem:[%s1 + $0x50] sm:$0xff]
      %v285 = vld [vmem:[%s1 + $0x58] sm:$0xff]
      %v286 = vld [vmem:[%s3] sm:$0x1]
      %v288 = vperm.slane %v286, 0
      %vm290 = vcmask 785408
      %v292 = vsel %vm290, %v270, 0
      %v295 = vsel %vm290, %v271, 0
      %v298 = vsel %vm290, %v272, 0
      %v301 = vsel %vm290, %v273, 0
      %303 = vmatpush.msra.mxu0 0.0
      %304 = vmatpush.msra.mxu0 0.0
      %305 = vmatpush.msra.mxu0 0.0
      %306 = vmatpush.msra.mxu0 0.0
      %307 = vmatpush.msra.mxu0 %v285
      %308 = vmatpush.msra.mxu0 %v284
      %309 = vmatpush.msra.mxu0 %v283
      %310 = vmatpush.msra.mxu0 %v282
      %311 = vmatpush.msra.mxu0 %v281
      %312 = vmatpush.msra.mxu0 %v280
      %313 = vmatpush.msra.mxu0 %v279
      %314 = vmatpush.msra.mxu0 %v278
      %315 = vmatpush.msra.mxu0 %v277
      %316 = vmatpush.msra.mxu0 %v276
      %317 = vmatpush.msra.mxu0 %v275
      %318 = vmatpush.msra.mxu0 %v274
      %319 = vmatmul.f32.gmra.mxu0 %v292
      %v320 = vpop.f32.mrf.mxu0
      %v321 = vadd.f32 %v288, %v320
      %322 = vmatmul.f32.gmra.mxu0 %v295
      %v323 = vpop.f32.mrf.mxu0
      %v324 = vadd.f32 %v288, %v323
      %325 = vmatmul.f32.gmra.mxu0 %v298
      %v326 = vpop.f32.mrf.mxu0
      %v327 = vadd.f32 %v288, %v326
      %328 = vmatmul.f32.gmra.mxu0 %v301
      %v329 = vpop.f32.mrf.mxu0
      %v330 = vadd.f32 %v288, %v329
      %331 = vdwg.mxu0
      %vm332 = vcmask 31744
      %333 = vst.msk [vmem:[%s261] sm:$0xff] %vm332, %v321
      %334 = vst.msk [vmem:[%s261 + $0x8] sm:$0xff] %vm332, %v324
      %335 = vst.msk [vmem:[%s261 + $0x10] sm:$0xff] %vm332, %v327
      %336 = vst.msk [vmem:[%s261 + $0x18] sm:$0xff] %vm332, %v330
      %v337 = vpack.c.bf16 %v271, %v270
      %v338 = vpack.c.bf16 %v273, %v272
      %v339 = vld [vmem:[%s2] sm:$0xf]
      %v340 = vld [vmem:[%s2 + $0x4] sm:$0xf]
      %v341 = vld [vmem:[%s2 + $0x8] sm:$0xf]
      %v342 = vld [vmem:[%s2 + $0xc] sm:$0xf]
      %v343 = vld [vmem:[%s2 + $0x10] sm:$0xf]
      %v344 = vld [vmem:[%s2 + $0x14] sm:$0xf]
      %v345 = vld [vmem:[%s2 + $0x18] sm:$0xf]
      %v346 = vld [vmem:[%s2 + $0x1c] sm:$0xf]
      %v347 = vld [vmem:[%s2 + $0x20] sm:$0xf]
      %v348 = vld [vmem:[%s2 + $0x24] sm:$0xf]
      %v349 = vld [vmem:[%s2 + $0x28] sm:$0xf]
      %v350 = vld [vmem:[%s2 + $0x2c] sm:$0xf]
      %v351 = vld [vmem:[%s4] sm:$0x1]
      %v353 = vperm.slane %v351, 0
      %v367 = vunpack.c.l.b16 %v339
      %v368 = vunpack.c.l.b16 %v340
      %v369 = vunpack.c.l.b16 %v341
      %v370 = vunpack.c.l.b16 %v342
      %v371 = vunpack.c.l.b16 %v343
      %v372 = vunpack.c.l.b16 %v344
      %v373 = vunpack.c.l.b16 %v345
      %v374 = vunpack.c.l.b16 %v346
      %v375 = vunpack.c.l.b16 %v347
      %v376 = vunpack.c.l.b16 %v348
      %v377 = vunpack.c.l.b16 %v349
      %v378 = vunpack.c.l.b16 %v350
      %v379 = vpack.c.b16 %v368, %v367
      %v380 = vpack.c.b16 %v370, %v369
      %v381 = vpack.c.b16 %v372, %v371
      %v382 = vpack.c.b16 %v374, %v373
      %v383 = vpack.c.b16 %v376, %v375
      %v384 = vpack.c.b16 %v378, %v377
      %v392 = vsel %vm290, %v337, 0
      %v395 = vsel %vm290, %v338, 0
      %397 = vmatpush.bf16.msra.mxu0 0
      %398 = vmatpush.bf16.msra.mxu0 0
      %399 = vmatpush.bf16.msra.mxu0 %v384
      %400 = vmatpush.bf16.msra.mxu0 %v383
      %401 = vmatpush.bf16.msra.mxu0 %v382
      %402 = vmatpush.bf16.msra.mxu0 %v381
      %403 = vmatpush.bf16.msra.mxu0 %v380
      %404 = vmatpush.bf16.msra.mxu0 %v379
      %405 = vmatmul.bf16.gmra.mxu0 %v392
      %v406 = vpop.f32.mrf.mxu0
      %v407 = vadd.f32 %v353, %v406
      %v408 = vpop.f32.mrf.mxu0
      %v409 = vadd.f32 %v353, %v408
      %410 = vmatmul.bf16.gmra.mxu0 %v395
      %v411 = vpop.f32.mrf.mxu0
      %v412 = vadd.f32 %v353, %v411
      %v413 = vpop.f32.mrf.mxu0
      %v414 = vadd.f32 %v353, %v413
      %415 = vdwg.mxu0
      %v416 = vpack.c.bf16 %v407, %v407
      %v417 = vpack.c.bf16 %v409, %v409
      %v418 = vpack.c.bf16 %v412, %v412
      %v419 = vpack.c.bf16 %v414, %v414
      %vm420 = vcmask 519168
      %421 = vst.msk [vmem:[%s267] sm:$0xf] %vm420, %v416
      %422 = vst.msk [vmem:[%s267 + $0x4] sm:$0xf] %vm420, %v417
      %423 = vst.msk [vmem:[%s267 + $0x8] sm:$0xf] %vm420, %v418
      %424 = vst.msk [vmem:[%s267 + $0xc] sm:$0xf] %vm420, %v419
      %s425 = smul.u32 4, %s18
      %p426 = scmp.lt.s32.totalorder %s425, 7
      %s427 = scalar_select %p426, %s425, 7
      %s428 = smul.addr %s427, 8
      %s429 = scalar_lea.vmem %s5, %s428
      %s430 = smul.u32 4, %s18
      %p431 = scmp.lt.s32.totalorder %s430, 7
      %s432 = scalar_select %p431, %s430, 7
      %s433 = smul.addr %s432, 4
      %s434 = scalar_lea.vmem %s6, %s433
      // Predicated region
      $region41: #{gravnet_with_noise_filter_forward.39} parent=39 // pred_check
        %p435 = pneg %p146
      $region42: #{gravnet_with_noise_filter_forward.39} parent=39 // pred_check_branch
        %437 = sbr.rel (%p435) target = $region44
      $region43: #{gravnet_with_noise_filter_forward.39} parent=39 // pred_region
        %s438 = smul.u32 4, %s18
      $region44: #{gravnet_with_noise_filter_forward.39} parent=39 // pred_fallthru
        _
      // Predicated region
      $region45: #{gravnet_with_noise_filter_forward.39} parent=39 // pred_check
        %p439 = pneg %p172
      $region46: #{gravnet_with_noise_filter_forward.39} parent=39 // pred_check_branch
        %441 = sbr.rel (%p439) target = $region48
      $region47: #{gravnet_with_noise_filter_forward.39} parent=39 // pred_region
        %s442 = smul.u32 4, %s18
      $region48: #{gravnet_with_noise_filter_forward.39} parent=39 // pred_fallthru
        _
    $region40: #{gravnet_with_noise_filter_forward.39} parent=5 // pred_fallthru
      _
    %p443 = scmp.le.s32.totalorder 2, %s13
    // Predicated region
    $region49: #{gravnet_with_noise_filter_forward.39} parent=5 // pred_check
      %p444 = pneg %p443
    $region50: #{gravnet_with_noise_filter_forward.39} parent=5 // pred_check_branch
      %446 = sbr.rel (%p444) target = $region52
    $region51: #{gravnet_with_noise_filter_forward.39} parent=5 // pred_region
      %s447 = ssub.s32 %s13, 2
      // Predicated region
      $region53: #{gravnet_with_noise_filter_forward.39} parent=51 // pred_check
        %p448 = pneg %p152
      $region54: #{gravnet_with_noise_filter_forward.39} parent=51 // pred_check_branch
        %450 = sbr.rel (%p448) target = $region56
      $region55: #{gravnet_with_noise_filter_forward.39} parent=51 // pred_region
        %s451 = smul.u32 4, %s19
        %p452 = scmp.lt.s32.totalorder %s451, 7
        %s453 = scalar_select %p452, %s451, 7
        %s454 = smul.addr %s453, 8
        %s455 = scalar_lea.vmem %s5, %s454
      $region56: #{gravnet_with_noise_filter_forward.39} parent=51 // pred_fallthru
        _
      // Predicated region
      $region57: #{gravnet_with_noise_filter_forward.39} parent=51 // pred_check
        %p456 = pneg %p178
      $region58: #{gravnet_with_noise_filter_forward.39} parent=51 // pred_check_branch
        %458 = sbr.rel (%p456) target = $region60
      $region59: #{gravnet_with_noise_filter_forward.39} parent=51 // pred_region
        %s459 = smul.u32 4, %s19
        %p460 = scmp.lt.s32.totalorder %s459, 7
        %s461 = scalar_select %p460, %s459, 7
        %s462 = smul.addr %s461, 4
        %s463 = scalar_lea.vmem %s6, %s462
      $region60: #{gravnet_with_noise_filter_forward.39} parent=51 // pred_fallthru
        _
    $region52: #{gravnet_with_noise_filter_forward.39} parent=5 // pred_fallthru
      _
  $region6: #{gravnet_with_noise_filter_forward.39} parent=0 // loop_footer
    %s17 = sadd.s32 1, %s13
  $region7: #{gravnet_with_noise_filter_forward.39} parent=0 // loop_footer_branch
    %12 = sbr.rel target = $region3
  $region8: #{gravnet_with_noise_filter_forward.39} parent=0 // loop_exit
    _

// kernel: gravnet_with_noise_filter_forward.41
$region0: #{gravnet_with_noise_filter_forward.41}
  #allocation0 [shape = 'u32[]', space=smem, size = 0x4, offset = 0x4, fixed_abs, tag = 'smem constant byte address 0x4 - core index']
  #allocation1 [shape = 'u32[72,128]{1,0:T(1,128)}', space=vmem, size = 0x9000, scoped, tag = 'internal scratch']
  %s0 = inlined_call_operand.vmem [shape: f32[64,128], index: 0, kind: input, shape index: {}]
  %s1 = inlined_call_operand.vmem [shape: f32[64,96], index: 1, kind: input, shape index: {}]
  %s2 = inlined_call_operand.vmem [shape: bf16[128,96], index: 2, kind: input, shape index: {}]
  %s3 = inlined_call_operand.vmem [shape: bf16[96,96], index: 3, kind: input, shape index: {}]
  %s4 = inlined_call_operand.vmem [shape: f32[1,96], index: 4, kind: input, shape index: {}]
  %s5 = inlined_call_operand.vmem [shape: f32[64,96], index: 5, kind: output, shape index: {}]
  %s6 = sld [smem:[#allocation0]]
  $region53: #{gravnet_with_noise_filter_forward.41} parent=0
    _
  %s8 = ssub.s32 1, %s6
  %s9 = scalar_select 0, %s8, %s6
  loop: start=0, step=1, limit=4
  $region2: #{gravnet_with_noise_filter_forward.41} parent=0 // loop_pre_header
    _
  $region3: #{gravnet_with_noise_filter_forward.41} parent=0 // loop_header
    %s11 = sphi 0, %s15
    %p12 = scmp.ge.s32.totalorder %s11, 4
    %s21 = sphi 0, %s23
    %s24 = sphi 0, %s21
    %s25 = sphi 0, %s24
    %s41 = sphi 0, %s25
    %s47 = sphi 0, %s49
    %s50 = sphi 0, %s47
    %s51 = sphi 0, %s50
    %s67 = sphi 0, %s51
    %s71 = sphi 0, %s71
    %s73 = sphi 0, %s71
    %s74 = sphi 0, %s73
    %s88 = sphi 0, %s74
    %s92 = sphi 0, %s92
    %s94 = sphi 0, %s92
    %s95 = sphi 0, %s94
    %s109 = sphi 0, %s95
    %s113 = sphi 0, %s113
    %s115 = sphi 0, %s113
    %s116 = sphi 0, %s115
    %s130 = sphi 0, %s116
    %s136 = sphi 0, %s138
    %s139 = sphi 0, %s136
    %s140 = sphi 0, %s139
    %s156 = sphi 0, %s140
  $region4: #{gravnet_with_noise_filter_forward.41} parent=0 // loop_header_branch
    %14 = sbr.rel (%p12) target = $region8
  $region5: #{gravnet_with_noise_filter_forward.41} parent=0 // loop_body
    %s16 = ssub.s32 %s11, 1
    %s17 = ssub.s32 %s11, 2
    %s18 = sadd.s32 %s11, 1
    %s19 = ssub.s32 %s11, %s18
    %p20 = scmp.eq.s32.totalorder %s19, 0
    %s22 = sadd.s32 %s21, 1
    %s23 = scalar_select %p20, %s21, %s22
    %p26 = pneg %p20
    %p27 = scmp.eq.s32.totalorder %s11, 1
    %p28 = por %p26, %p27
    %p29 = scmp.ne.s32.totalorder %s21, %s24
    %p30 = scmp.eq.s32.totalorder %s11, 0
    %p31 = por %p29, %p30
    %p32 = scmp.ne.s32.totalorder %s21, %s24
    %p33 = scmp.eq.s32.totalorder %s16, 1
    %p34 = por %p32, %p33
    %p35 = scmp.ne.s32.totalorder %s24, %s25
    %p36 = scmp.eq.s32.totalorder %s16, 0
    %p37 = por %p35, %p36
    %p38 = scmp.ne.s32.totalorder %s24, %s25
    %p39 = scmp.eq.s32.totalorder %s17, 1
    %p40 = por %p38, %p39
    %p42 = scmp.ne.s32.totalorder %s25, %s41
    %p43 = scmp.eq.s32.totalorder %s17, 0
    %p44 = por %p42, %p43
    %s45 = ssub.s32 %s11, %s18
    %p46 = scmp.eq.s32.totalorder %s45, 0
    %s48 = sadd.s32 %s47, 1
    %s49 = scalar_select %p46, %s47, %s48
    %p52 = pneg %p46
    %p53 = scmp.eq.s32.totalorder %s11, 1
    %p54 = por %p52, %p53
    %p55 = scmp.ne.s32.totalorder %s47, %s50
    %p56 = scmp.eq.s32.totalorder %s11, 0
    %p57 = por %p55, %p56
    %p58 = scmp.ne.s32.totalorder %s47, %s50
    %p59 = scmp.eq.s32.totalorder %s16, 1
    %p60 = por %p58, %p59
    %p61 = scmp.ne.s32.totalorder %s50, %s51
    %p62 = scmp.eq.s32.totalorder %s16, 0
    %p63 = por %p61, %p62
    %p64 = scmp.ne.s32.totalorder %s50, %s51
    %p65 = scmp.eq.s32.totalorder %s17, 1
    %p66 = por %p64, %p65
    %p68 = scmp.ne.s32.totalorder %s51, %s67
    %p69 = scmp.eq.s32.totalorder %s17, 0
    %p70 = por %p68, %p69
    %s72 = sadd.s32 %s71, 1
    %p75 = scmp.eq.s32.totalorder %s11, 1
    %p76 = scmp.ne.s32.totalorder %s71, %s73
    %p77 = scmp.eq.s32.totalorder %s11, 0
    %p78 = por %p76, %p77
    %p79 = scmp.ne.s32.totalorder %s71, %s73
    %p80 = scmp.eq.s32.totalorder %s16, 1
    %p81 = por %p79, %p80
    %p82 = scmp.ne.s32.totalorder %s73, %s74
    %p83 = scmp.eq.s32.totalorder %s16, 0
    %p84 = por %p82, %p83
    %p85 = scmp.ne.s32.totalorder %s73, %s74
    %p86 = scmp.eq.s32.totalorder %s17, 1
    %p87 = por %p85, %p86
    %p89 = scmp.ne.s32.totalorder %s74, %s88
    %p90 = scmp.eq.s32.totalorder %s17, 0
    %p91 = por %p89, %p90
    %s93 = sadd.s32 %s92, 1
    %p96 = scmp.eq.s32.totalorder %s11, 1
    %p97 = scmp.ne.s32.totalorder %s92, %s94
    %p98 = scmp.eq.s32.totalorder %s11, 0
    %p99 = por %p97, %p98
    %p100 = scmp.ne.s32.totalorder %s92, %s94
    %p101 = scmp.eq.s32.totalorder %s16, 1
    %p102 = por %p100, %p101
    %p103 = scmp.ne.s32.totalorder %s94, %s95
    %p104 = scmp.eq.s32.totalorder %s16, 0
    %p105 = por %p103, %p104
    %p106 = scmp.ne.s32.totalorder %s94, %s95
    %p107 = scmp.eq.s32.totalorder %s17, 1
    %p108 = por %p106, %p107
    %p110 = scmp.ne.s32.totalorder %s95, %s109
    %p111 = scmp.eq.s32.totalorder %s17, 0
    %p112 = por %p110, %p111
    %s114 = sadd.s32 %s113, 1
    %p117 = scmp.eq.s32.totalorder %s11, 1
    %p118 = scmp.ne.s32.totalorder %s113, %s115
    %p119 = scmp.eq.s32.totalorder %s11, 0
    %p120 = por %p118, %p119
    %p121 = scmp.ne.s32.totalorder %s113, %s115
    %p122 = scmp.eq.s32.totalorder %s16, 1
    %p123 = por %p121, %p122
    %p124 = scmp.ne.s32.totalorder %s115, %s116
    %p125 = scmp.eq.s32.totalorder %s16, 0
    %p126 = por %p124, %p125
    %p127 = scmp.ne.s32.totalorder %s115, %s116
    %p128 = scmp.eq.s32.totalorder %s17, 1
    %p129 = por %p127, %p128
    %p131 = scmp.ne.s32.totalorder %s116, %s130
    %p132 = scmp.eq.s32.totalorder %s17, 0
    %p133 = por %p131, %p132
    %s134 = ssub.s32 %s11, %s18
    %p135 = scmp.eq.s32.totalorder %s134, 0
    %s137 = sadd.s32 %s136, 1
    %s138 = scalar_select %p135, %s136, %s137
    %p141 = pneg %p135
    %p142 = scmp.eq.s32.totalorder %s11, 1
    %p143 = por %p141, %p142
    %p144 = scmp.ne.s32.totalorder %s136, %s139
    %p145 = scmp.eq.s32.totalorder %s11, 0
    %p146 = por %p144, %p145
    %p147 = scmp.ne.s32.totalorder %s136, %s139
    %p148 = scmp.eq.s32.totalorder %s16, 1
    %p149 = por %p147, %p148
    %p150 = scmp.ne.s32.totalorder %s139, %s140
    %p151 = scmp.eq.s32.totalorder %s16, 0
    %p152 = por %p150, %p151
    %p153 = scmp.ne.s32.totalorder %s139, %s140
    %p154 = scmp.eq.s32.totalorder %s17, 1
    %p155 = por %p153, %p154
    %p157 = scmp.ne.s32.totalorder %s140, %s156
    %p158 = scmp.eq.s32.totalorder %s17, 0
    %p159 = por %p157, %p158
    %p160 = scmp.le.s32.totalorder 1, %s11
    %p161 = scmp.lt.s32.totalorder %s11, 3
    %p162 = pnand %p160, %p161
    %p163 = pneg %p162
    // Predicated region
    $region9: #{gravnet_with_noise_filter_forward.41} parent=5 // pred_check
      _
    $region10: #{gravnet_with_noise_filter_forward.41} parent=5 // pred_check_branch
      %165 = sbr.rel (%p162) target = $region12
    $region11: #{gravnet_with_noise_filter_forward.41} parent=5 // pred_region
      %s166 = ssub.s32 %s11, 1
      // Predicated region
      $region13: #{gravnet_with_noise_filter_forward.41} parent=11 // pred_check
        %p167 = pneg %p84
      $region14: #{gravnet_with_noise_filter_forward.41} parent=11 // pred_check_branch
        %169 = sbr.rel (%p167) target = $region16
      $region15: #{gravnet_with_noise_filter_forward.41} parent=11 // pred_region
        _
      $region16: #{gravnet_with_noise_filter_forward.41} parent=11 // pred_fallthru
        _
      // Predicated region
      $region17: #{gravnet_with_noise_filter_forward.41} parent=11 // pred_check
        %p170 = pneg %p105
      $region18: #{gravnet_with_noise_filter_forward.41} parent=11 // pred_check_branch
        %172 = sbr.rel (%p170) target = $region20
      $region19: #{gravnet_with_noise_filter_forward.41} parent=11 // pred_region
        _
      $region20: #{gravnet_with_noise_filter_forward.41} parent=11 // pred_fallthru
        _
      // Predicated region
      $region21: #{gravnet_with_noise_filter_forward.41} parent=11 // pred_check
        %p173 = pneg %p126
      $region22: #{gravnet_with_noise_filter_forward.41} parent=11 // pred_check_branch
        %175 = sbr.rel (%p173) target = $region24
      $region23: #{gravnet_with_noise_filter_forward.41} parent=11 // pred_region
        _
      $region24: #{gravnet_with_noise_filter_forward.41} parent=11 // pred_fallthru
        _
    $region12: #{gravnet_with_noise_filter_forward.41} parent=5 // pred_fallthru
      _
    %p176 = scmp.lt.s32.totalorder %s11, 2
    // Predicated region
    $region25: #{gravnet_with_noise_filter_forward.41} parent=5 // pred_check
      %p177 = pneg %p176
    $region26: #{gravnet_with_noise_filter_forward.41} parent=5 // pred_check_branch
      %179 = sbr.rel (%p177) target = $region28
    $region27: #{gravnet_with_noise_filter_forward.41} parent=5 // pred_region
      // Predicated region
      $region29: #{gravnet_with_noise_filter_forward.41} parent=27 // pred_check
        %p180 = pneg %p31
      $region30: #{gravnet_with_noise_filter_forward.41} parent=27 // pred_check_branch
        %182 = sbr.rel (%p180) target = $region32
      $region31: #{gravnet_with_noise_filter_forward.41} parent=27 // pred_region
        %s183 = smul.u32 4, %s11
        %p184 = scmp.lt.s32.totalorder %s183, 7
        %s185 = scalar_select %p184, %s183, 7
        %s186 = smul.addr %s185, 8
        %s187 = scalar_lea.vmem %s0, %s186
        %s188 = smul.u32 4, %s11
      $region32: #{gravnet_with_noise_filter_forward.41} parent=27 // pred_fallthru
        _
      // Predicated region
      $region33: #{gravnet_with_noise_filter_forward.41} parent=27 // pred_check
        %p189 = pneg %p57
      $region34: #{gravnet_with_noise_filter_forward.41} parent=27 // pred_check_branch
        %191 = sbr.rel (%p189) target = $region36
      $region35: #{gravnet_with_noise_filter_forward.41} parent=27 // pred_region
        %s192 = smul.u32 4, %s11
        %p193 = scmp.lt.s32.totalorder %s192, 7
        %s194 = scalar_select %p193, %s192, 7
        %s195 = smul.addr %s194, 8
        %s196 = scalar_lea.vmem %s1, %s195
        %s197 = smul.u32 4, %s11
      $region36: #{gravnet_with_noise_filter_forward.41} parent=27 // pred_fallthru
        _
    $region28: #{gravnet_with_noise_filter_forward.41} parent=5 // pred_fallthru
      _
    %p198 = scmp.le.s32.totalorder 1, %s11
    %p199 = scmp.lt.s32.totalorder %s11, 3
    %p200 = pnand %p198, %p199
    %p201 = pneg %p200
    // Predicated region
    $region37: #{gravnet_with_noise_filter_forward.41} parent=5 // pred_check
      _
    $region38: #{gravnet_with_noise_filter_forward.41} parent=5 // pred_check_branch
      %203 = sbr.rel (%p200) target = $region40
    $region39: #{gravnet_with_noise_filter_forward.41} parent=5 // pred_region
      %s204 = ssub.s32 %s11, 1
      %s205 = smul.u32 4, %s16
      %p206 = scmp.lt.s32.totalorder %s205, 7
      %s207 = scalar_select %p206, %s205, 7
      %s208 = smul.addr %s207, 8
      %s209 = scalar_lea.vmem %s0, %s208
      %p210 = pneg %p37
      %p211 = pneg %p34
      %s212 = smul.u32 4, %s16
      %p213 = scmp.lt.s32.totalorder %s212, 7
      %s214 = scalar_select %p213, %s212, 7
      %s215 = smul.addr %s214, 8
      %s216 = scalar_lea.vmem %s1, %s215
      %p217 = pneg %p63
      %p218 = pneg %p60
      %p219 = pneg %p84
      %p220 = pneg %p81
      %p221 = pneg %p105
      %p222 = pneg %p102
      %p223 = pneg %p126
      %p224 = pneg %p123
      %p225 = pneg %p152
      %p226 = pneg %p149
      %s227 = smul.u32 4, %s16
      %p228 = scmp.lt.s32.totalorder %s227, 7
      %s229 = scalar_select %p228, %s227, 7
      %s230 = smul.addr %s229, 8
      %s231 = scalar_lea.vmem %s5, %s230
      %s232 = smul.u32 4, %s16
      %p233 = scmp.lt.s32.totalorder %s232, 7
      %s234 = scalar_select %p233, %s232, 7
      %s235 = smul.addr %s234, 8
      %s236 = scalar_lea.vmem %s0, %s235
      %s237 = smul.u32 4, %s16
      %s238 = smul.u32 4, %s16
      %p239 = scmp.lt.s32.totalorder %s238, 7
      %s240 = scalar_select %p239, %s238, 7
      %s241 = smul.addr %s240, 8
      %s242 = scalar_lea.vmem %s1, %s241
      %s243 = smul.u32 4, %s16
      %s244 = smul.u32 4, %s16
      %p245 = scmp.lt.s32.totalorder %s244, 7
      %s246 = scalar_select %p245, %s244, 7
      %s247 = smul.addr %s246, 8
      %s248 = scalar_lea.vmem %s5, %s247
      %s249 = smul.u32 4, %s16
      %v251 = vld [vmem:[%s236] sm:$0xff]
      %v252 = vld [vmem:[%s236 + $0x8] sm:$0xff]
      %v253 = vld [vmem:[%s236 + $0x10] sm:$0xff]
      %v254 = vld [vmem:[%s236 + $0x18] sm:$0xff]
      %v255 = vpack.c.bf16 %v252, %v251
      %v256 = vpack.c.bf16 %v254, %v253
      %v257 = vld [vmem:[%s2] sm:$0xf]
      %v258 = vld [vmem:[%s2 + $0x4] sm:$0xf]
      %v259 = vld [vmem:[%s2 + $0x8] sm:$0xf]
      %v260 = vld [vmem:[%s2 + $0xc] sm:$0xf]
      %v261 = vld [vmem:[%s2 + $0x10] sm:$0xf]
      %v262 = vld [vmem:[%s2 + $0x14] sm:$0xf]
      %v263 = vld [vmem:[%s2 + $0x18] sm:$0xf]
      %v264 = vld [vmem:[%s2 + $0x1c] sm:$0xf]
      %v265 = vld [vmem:[%s2 + $0x20] sm:$0xf]
      %v266 = vld [vmem:[%s2 + $0x24] sm:$0xf]
      %v267 = vld [vmem:[%s2 + $0x28] sm:$0xf]
      %v268 = vld [vmem:[%s2 + $0x2c] sm:$0xf]
      %v269 = vld [vmem:[%s2 + $0x30] sm:$0xf]
      %v270 = vld [vmem:[%s2 + $0x34] sm:$0xf]
      %v271 = vld [vmem:[%s2 + $0x38] sm:$0xf]
      %v272 = vld [vmem:[%s2 + $0x3c] sm:$0xf]
      %v273 = vld [vmem:[%s242] sm:$0xff]
      %v274 = vld [vmem:[%s242 + $0x8] sm:$0xff]
      %v275 = vld [vmem:[%s242 + $0x10] sm:$0xff]
      %v276 = vld [vmem:[%s242 + $0x18] sm:$0xff]
      %v277 = vpack.c.bf16 %v274, %v273
      %v278 = vpack.c.bf16 %v276, %v275
      %v279 = vld [vmem:[%s3] sm:$0xf]
      %v280 = vld [vmem:[%s3 + $0x4] sm:$0xf]
      %v281 = vld [vmem:[%s3 + $0x8] sm:$0xf]
      %v282 = vld [vmem:[%s3 + $0xc] sm:$0xf]
      %v283 = vld [vmem:[%s3 + $0x10] sm:$0xf]
      %v284 = vld [vmem:[%s3 + $0x14] sm:$0xf]
      %v285 = vld [vmem:[%s3 + $0x18] sm:$0xf]
      %v286 = vld [vmem:[%s3 + $0x1c] sm:$0xf]
      %v287 = vld [vmem:[%s3 + $0x20] sm:$0xf]
      %v288 = vld [vmem:[%s3 + $0x24] sm:$0xf]
      %v289 = vld [vmem:[%s3 + $0x28] sm:$0xf]
      %v290 = vld [vmem:[%s3 + $0x2c] sm:$0xf]
      %v303 = vunpack.c.l.b16 %v279
      %v304 = vunpack.c.l.b16 %v280
      %v305 = vunpack.c.l.b16 %v281
      %v306 = vunpack.c.l.b16 %v282
      %v307 = vunpack.c.l.b16 %v283
      %v308 = vunpack.c.l.b16 %v284
      %v309 = vunpack.c.l.b16 %v285
      %v310 = vunpack.c.l.b16 %v286
      %v311 = vunpack.c.l.b16 %v287
      %v312 = vunpack.c.l.b16 %v288
      %v313 = vunpack.c.l.b16 %v289
      %v314 = vunpack.c.l.b16 %v290
      %v315 = vpack.c.b16 %v304, %v303
      %v316 = vpack.c.b16 %v306, %v305
      %v317 = vpack.c.b16 %v308, %v307
      %v318 = vpack.c.b16 %v310, %v309
      %v319 = vpack.c.b16 %v312, %v311
      %v320 = vpack.c.b16 %v314, %v313
      %vm327 = vcmask 785408
      %v329 = vsel %vm327, %v277, 0
      %v332 = vsel %vm327, %v278, 0
      %334 = vmatpush.bf16.msra.mxu0 0
      %335 = vmatpush.bf16.msra.mxu0 0
      %336 = vmatpush.bf16.msra.mxu0 %v320
      %337 = vmatpush.bf16.msra.mxu0 %v319
      %338 = vmatpush.bf16.msra.mxu0 %v318
      %339 = vmatpush.bf16.msra.mxu0 %v317
      %340 = vmatpush.bf16.msra.mxu0 %v316
      %341 = vmatpush.bf16.msra.mxu0 %v315
      %342 = vmatmul.bf16.gmra.mxu0 %v329
      %v343 = vpop.f32.mrf.mxu0
      %v344 = vadd.f32 0.0, %v343
      %v345 = vpop.f32.mrf.mxu0
      %v346 = vadd.f32 0.0, %v345
      %347 = vmatmul.bf16.gmra.mxu0 %v332
      %v348 = vpop.f32.mrf.mxu0
      %v349 = vadd.f32 0.0, %v348
      %v350 = vpop.f32.mrf.mxu0
      %v351 = vadd.f32 0.0, %v350
      %352 = vdwg.mxu0
      %v369 = vunpack.c.l.b16 %v257
      %v370 = vunpack.c.l.b16 %v258
      %v371 = vunpack.c.l.b16 %v259
      %v372 = vunpack.c.l.b16 %v260
      %v373 = vunpack.c.l.b16 %v261
      %v374 = vunpack.c.l.b16 %v262
      %v375 = vunpack.c.l.b16 %v263
      %v376 = vunpack.c.l.b16 %v264
      %v377 = vunpack.c.l.b16 %v265
      %v378 = vunpack.c.l.b16 %v266
      %v379 = vunpack.c.l.b16 %v267
      %v380 = vunpack.c.l.b16 %v268
      %v381 = vunpack.c.l.b16 %v269
      %v382 = vunpack.c.l.b16 %v270
      %v383 = vunpack.c.l.b16 %v271
      %v384 = vunpack.c.l.b16 %v272
      %v385 = vpack.c.b16 %v370, %v369
      %v386 = vpack.c.b16 %v372, %v371
      %v387 = vpack.c.b16 %v374, %v373
      %v388 = vpack.c.b16 %v376, %v375
      %v389 = vpack.c.b16 %v378, %v377
      %v390 = vpack.c.b16 %v380, %v379
      %v391 = vpack.c.b16 %v382, %v381
      %v392 = vpack.c.b16 %v384, %v383
      %401 = vmatpush.bf16.msra.mxu0 %v392
      %402 = vmatpush.bf16.msra.mxu0 %v391
      %403 = vmatpush.bf16.msra.mxu0 %v390
      %404 = vmatpush.bf16.msra.mxu0 %v389
      %405 = vmatpush.bf16.msra.mxu0 %v388
      %406 = vmatpush.bf16.msra.mxu0 %v387
      %407 = vmatpush.bf16.msra.mxu0 %v386
      %408 = vmatpush.bf16.msra.mxu0 %v385
      %409 = vmatmul.bf16.gmra.mxu0 %v255
      %v410 = vpop.f32.mrf.mxu0
      %v411 = vadd.f32 %v344, %v410
      %v412 = vpop.f32.mrf.mxu0
      %v413 = vadd.f32 %v346, %v412
      %414 = vmatmul.bf16.gmra.mxu0 %v256
      %v415 = vpop.f32.mrf.mxu0
      %v416 = vadd.f32 %v349, %v415
      %v417 = vpop.f32.mrf.mxu0
      %v418 = vadd.f32 %v351, %v417
      %419 = vdwg.mxu0
      %v420 = vld [vmem:[%s4] sm:$0x1]
      %v422 = vperm.slane %v420, 0
      %v424 = vadd.f32 %v411, %v422
      %v425 = vadd.f32 %v413, %v422
      %v426 = vadd.f32 %v416, %v422
      %v427 = vadd.f32 %v418, %v422
      %428 = vst.msk [vmem:[%s248] sm:$0xff] %vm327, %v424
      %429 = vst.msk [vmem:[%s248 + $0x8] sm:$0xff] %vm327, %v425
      %430 = vst.msk [vmem:[%s248 + $0x10] sm:$0xff] %vm327, %v426
      %431 = vst.msk [vmem:[%s248 + $0x18] sm:$0xff] %vm327, %v427
      %s432 = smul.u32 4, %s16
      %p433 = scmp.lt.s32.totalorder %s432, 7
      %s434 = scalar_select %p433, %s432, 7
      %s435 = smul.addr %s434, 8
      %s436 = scalar_lea.vmem %s5, %s435
      // Predicated region
      $region41: #{gravnet_with_noise_filter_forward.41} parent=39 // pred_check
        %p437 = pneg %p149
      $region42: #{gravnet_with_noise_filter_forward.41} parent=39 // pred_check_branch
        %439 = sbr.rel (%p437) target = $region44
      $region43: #{gravnet_with_noise_filter_forward.41} parent=39 // pred_region
        %s440 = smul.u32 4, %s16
      $region44: #{gravnet_with_noise_filter_forward.41} parent=39 // pred_fallthru
        _
    $region40: #{gravnet_with_noise_filter_forward.41} parent=5 // pred_fallthru
      _
    %p441 = scmp.le.s32.totalorder 2, %s11
    // Predicated region
    $region45: #{gravnet_with_noise_filter_forward.41} parent=5 // pred_check
      %p442 = pneg %p441
    $region46: #{gravnet_with_noise_filter_forward.41} parent=5 // pred_check_branch
      %444 = sbr.rel (%p442) target = $region48
    $region47: #{gravnet_with_noise_filter_forward.41} parent=5 // pred_region
      %s445 = ssub.s32 %s11, 2
      // Predicated region
      $region49: #{gravnet_with_noise_filter_forward.41} parent=47 // pred_check
        %p446 = pneg %p155
      $region50: #{gravnet_with_noise_filter_forward.41} parent=47 // pred_check_branch
        %448 = sbr.rel (%p446) target = $region52
      $region51: #{gravnet_with_noise_filter_forward.41} parent=47 // pred_region
        %s449 = smul.u32 4, %s17
        %p450 = scmp.lt.s32.totalorder %s449, 7
        %s451 = scalar_select %p450, %s449, 7
        %s452 = smul.addr %s451, 8
        %s453 = scalar_lea.vmem %s5, %s452
      $region52: #{gravnet_with_noise_filter_forward.41} parent=47 // pred_fallthru
        _
    $region48: #{gravnet_with_noise_filter_forward.41} parent=5 // pred_fallthru
      _
  $region6: #{gravnet_with_noise_filter_forward.41} parent=0 // loop_footer
    %s15 = sadd.s32 1, %s11
  $region7: #{gravnet_with_noise_filter_forward.41} parent=0 // loop_footer_branch
    %10 = sbr.rel target = $region3
  $region8: #{gravnet_with_noise_filter_forward.41} parent=0 // loop_exit
    _

// kernel: gravnet_with_noise_filter_forward.57
$region0: #{gravnet_with_noise_filter_forward.57}
  #allocation0 [shape = 'u32[]', space=smem, size = 0x4, offset = 0x4, fixed_abs, tag = 'smem constant byte address 0x4 - core index']
  #allocation1 [shape = 'u32[72,128]{1,0:T(1,128)}', space=vmem, size = 0x9000, scoped, tag = 'internal scratch']
  %s0 = inlined_call_operand.vmem [shape: f32[64,384], index: 0, kind: input, shape index: {}]
  %s1 = inlined_call_operand.vmem [shape: bf16[384,128], index: 1, kind: input, shape index: {}]
  %s2 = inlined_call_operand.vmem [shape: f32[1,128], index: 2, kind: input, shape index: {}]
  %s3 = inlined_call_operand.vmem [shape: f32[64,128], index: 3, kind: output, shape index: {}]
  %s4 = sld [smem:[#allocation0]]
  $region45: #{gravnet_with_noise_filter_forward.57} parent=0
    _
  %s6 = ssub.s32 1, %s4
  %s7 = scalar_select 0, %s6, %s4
  loop: start=0, step=1, limit=4
  $region2: #{gravnet_with_noise_filter_forward.57} parent=0 // loop_pre_header
    _
  $region3: #{gravnet_with_noise_filter_forward.57} parent=0 // loop_header
    %s9 = sphi 0, %s13
    %p10 = scmp.ge.s32.totalorder %s9, 4
    %s19 = sphi 0, %s21
    %s22 = sphi 0, %s19
    %s23 = sphi 0, %s22
    %s39 = sphi 0, %s23
    %s43 = sphi 0, %s43
    %s45 = sphi 0, %s43
    %s46 = sphi 0, %s45
    %s60 = sphi 0, %s46
    %s64 = sphi 0, %s64
    %s66 = sphi 0, %s64
    %s67 = sphi 0, %s66
    %s81 = sphi 0, %s67
    %s87 = sphi 0, %s89
    %s90 = sphi 0, %s87
    %s91 = sphi 0, %s90
    %s107 = sphi 0, %s91
  $region4: #{gravnet_with_noise_filter_forward.57} parent=0 // loop_header_branch
    %12 = sbr.rel (%p10) target = $region8
  $region5: #{gravnet_with_noise_filter_forward.57} parent=0 // loop_body
    %s14 = ssub.s32 %s9, 1
    %s15 = ssub.s32 %s9, 2
    %s16 = sadd.s32 %s9, 1
    %s17 = ssub.s32 %s9, %s16
    %p18 = scmp.eq.s32.totalorder %s17, 0
    %s20 = sadd.s32 %s19, 1
    %s21 = scalar_select %p18, %s19, %s20
    %p24 = pneg %p18
    %p25 = scmp.eq.s32.totalorder %s9, 1
    %p26 = por %p24, %p25
    %p27 = scmp.ne.s32.totalorder %s19, %s22
    %p28 = scmp.eq.s32.totalorder %s9, 0
    %p29 = por %p27, %p28
    %p30 = scmp.ne.s32.totalorder %s19, %s22
    %p31 = scmp.eq.s32.totalorder %s14, 1
    %p32 = por %p30, %p31
    %p33 = scmp.ne.s32.totalorder %s22, %s23
    %p34 = scmp.eq.s32.totalorder %s14, 0
    %p35 = por %p33, %p34
    %p36 = scmp.ne.s32.totalorder %s22, %s23
    %p37 = scmp.eq.s32.totalorder %s15, 1
    %p38 = por %p36, %p37
    %p40 = scmp.ne.s32.totalorder %s23, %s39
    %p41 = scmp.eq.s32.totalorder %s15, 0
    %p42 = por %p40, %p41
    %s44 = sadd.s32 %s43, 1
    %p47 = scmp.eq.s32.totalorder %s9, 1
    %p48 = scmp.ne.s32.totalorder %s43, %s45
    %p49 = scmp.eq.s32.totalorder %s9, 0
    %p50 = por %p48, %p49
    %p51 = scmp.ne.s32.totalorder %s43, %s45
    %p52 = scmp.eq.s32.totalorder %s14, 1
    %p53 = por %p51, %p52
    %p54 = scmp.ne.s32.totalorder %s45, %s46
    %p55 = scmp.eq.s32.totalorder %s14, 0
    %p56 = por %p54, %p55
    %p57 = scmp.ne.s32.totalorder %s45, %s46
    %p58 = scmp.eq.s32.totalorder %s15, 1
    %p59 = por %p57, %p58
    %p61 = scmp.ne.s32.totalorder %s46, %s60
    %p62 = scmp.eq.s32.totalorder %s15, 0
    %p63 = por %p61, %p62
    %s65 = sadd.s32 %s64, 1
    %p68 = scmp.eq.s32.totalorder %s9, 1
    %p69 = scmp.ne.s32.totalorder %s64, %s66
    %p70 = scmp.eq.s32.totalorder %s9, 0
    %p71 = por %p69, %p70
    %p72 = scmp.ne.s32.totalorder %s64, %s66
    %p73 = scmp.eq.s32.totalorder %s14, 1
    %p74 = por %p72, %p73
    %p75 = scmp.ne.s32.totalorder %s66, %s67
    %p76 = scmp.eq.s32.totalorder %s14, 0
    %p77 = por %p75, %p76
    %p78 = scmp.ne.s32.totalorder %s66, %s67
    %p79 = scmp.eq.s32.totalorder %s15, 1
    %p80 = por %p78, %p79
    %p82 = scmp.ne.s32.totalorder %s67, %s81
    %p83 = scmp.eq.s32.totalorder %s15, 0
    %p84 = por %p82, %p83
    %s85 = ssub.s32 %s9, %s16
    %p86 = scmp.eq.s32.totalorder %s85, 0
    %s88 = sadd.s32 %s87, 1
    %s89 = scalar_select %p86, %s87, %s88
    %p92 = pneg %p86
    %p93 = scmp.eq.s32.totalorder %s9, 1
    %p94 = por %p92, %p93
    %p95 = scmp.ne.s32.totalorder %s87, %s90
    %p96 = scmp.eq.s32.totalorder %s9, 0
    %p97 = por %p95, %p96
    %p98 = scmp.ne.s32.totalorder %s87, %s90
    %p99 = scmp.eq.s32.totalorder %s14, 1
    %p100 = por %p98, %p99
    %p101 = scmp.ne.s32.totalorder %s90, %s91
    %p102 = scmp.eq.s32.totalorder %s14, 0
    %p103 = por %p101, %p102
    %p104 = scmp.ne.s32.totalorder %s90, %s91
    %p105 = scmp.eq.s32.totalorder %s15, 1
    %p106 = por %p104, %p105
    %p108 = scmp.ne.s32.totalorder %s91, %s107
    %p109 = scmp.eq.s32.totalorder %s15, 0
    %p110 = por %p108, %p109
    %p111 = scmp.le.s32.totalorder 1, %s9
    %p112 = scmp.lt.s32.totalorder %s9, 3
    %p113 = pnand %p111, %p112
    %p114 = pneg %p113
    // Predicated region
    $region9: #{gravnet_with_noise_filter_forward.57} parent=5 // pred_check
      _
    $region10: #{gravnet_with_noise_filter_forward.57} parent=5 // pred_check_branch
      %116 = sbr.rel (%p113) target = $region12
    $region11: #{gravnet_with_noise_filter_forward.57} parent=5 // pred_region
      %s117 = ssub.s32 %s9, 1
      // Predicated region
      $region13: #{gravnet_with_noise_filter_forward.57} parent=11 // pred_check
        %p118 = pneg %p56
      $region14: #{gravnet_with_noise_filter_forward.57} parent=11 // pred_check_branch
        %120 = sbr.rel (%p118) target = $region16
      $region15: #{gravnet_with_noise_filter_forward.57} parent=11 // pred_region
        _
      $region16: #{gravnet_with_noise_filter_forward.57} parent=11 // pred_fallthru
        _
      // Predicated region
      $region17: #{gravnet_with_noise_filter_forward.57} parent=11 // pred_check
        %p121 = pneg %p77
      $region18: #{gravnet_with_noise_filter_forward.57} parent=11 // pred_check_branch
        %123 = sbr.rel (%p121) target = $region20
      $region19: #{gravnet_with_noise_filter_forward.57} parent=11 // pred_region
        _
      $region20: #{gravnet_with_noise_filter_forward.57} parent=11 // pred_fallthru
        _
    $region12: #{gravnet_with_noise_filter_forward.57} parent=5 // pred_fallthru
      _
    %p124 = scmp.lt.s32.totalorder %s9, 2
    // Predicated region
    $region21: #{gravnet_with_noise_filter_forward.57} parent=5 // pred_check
      %p125 = pneg %p124
    $region22: #{gravnet_with_noise_filter_forward.57} parent=5 // pred_check_branch
      %127 = sbr.rel (%p125) target = $region24
    $region23: #{gravnet_with_noise_filter_forward.57} parent=5 // pred_region
      // Predicated region
      $region25: #{gravnet_with_noise_filter_forward.57} parent=23 // pred_check
        %p128 = pneg %p29
      $region26: #{gravnet_with_noise_filter_forward.57} parent=23 // pred_check_branch
        %130 = sbr.rel (%p128) target = $region28
      $region27: #{gravnet_with_noise_filter_forward.57} parent=23 // pred_region
        %s131 = smul.u32 4, %s9
        %p132 = scmp.lt.s32.totalorder %s131, 7
        %s133 = scalar_select %p132, %s131, 7
        %s134 = smul.addr %s133, 3
        %s135 = smul.addr %s134, 8
        %s136 = scalar_lea.vmem %s0, %s135
        %s137 = smul.u32 4, %s9
      $region28: #{gravnet_with_noise_filter_forward.57} parent=23 // pred_fallthru
        _
    $region24: #{gravnet_with_noise_filter_forward.57} parent=5 // pred_fallthru
      _
    %p138 = scmp.le.s32.totalorder 1, %s9
    %p139 = scmp.lt.s32.totalorder %s9, 3
    %p140 = pnand %p138, %p139
    %p141 = pneg %p140
    // Predicated region
    $region29: #{gravnet_with_noise_filter_forward.57} parent=5 // pred_check
      _
    $region30: #{gravnet_with_noise_filter_forward.57} parent=5 // pred_check_branch
      %143 = sbr.rel (%p140) target = $region32
    $region31: #{gravnet_with_noise_filter_forward.57} parent=5 // pred_region
      %s144 = ssub.s32 %s9, 1
      %s145 = smul.u32 4, %s14
      %p146 = scmp.lt.s32.totalorder %s145, 7
      %s147 = scalar_select %p146, %s145, 7
      %s148 = smul.addr %s147, 3
      %s149 = smul.addr %s148, 8
      %s150 = scalar_lea.vmem %s0, %s149
      %p151 = pneg %p35
      %p152 = pneg %p32
      %p153 = pneg %p56
      %p154 = pneg %p53
      %p155 = pneg %p77
      %p156 = pneg %p74
      %p157 = pneg %p103
      %p158 = pneg %p100
      %s159 = smul.u32 4, %s14
      %p160 = scmp.lt.s32.totalorder %s159, 7
      %s161 = scalar_select %p160, %s159, 7
      %s162 = smul.addr %s161, 8
      %s163 = scalar_lea.vmem %s3, %s162
      %s164 = smul.u32 4, %s14
      %p165 = scmp.lt.s32.totalorder %s164, 7
      %s166 = scalar_select %p165, %s164, 7
      %s167 = smul.addr %s166, 3
      %s168 = smul.addr %s167, 8
      %s169 = scalar_lea.vmem %s0, %s168
      %s170 = smul.u32 4, %s14
      %s171 = smul.u32 4, %s14
      %p172 = scmp.lt.s32.totalorder %s171, 7
      %s173 = scalar_select %p172, %s171, 7
      %s174 = smul.addr %s173, 8
      %s175 = scalar_lea.vmem %s3, %s174
      %s176 = smul.u32 4, %s14
      %v177 = vld [vmem:[%s169] sm:$0xff]
      %v178 = vld [vmem:[%s169 + $0x8] sm:$0xff]
      %v179 = vld [vmem:[%s169 + $0x10] sm:$0xff]
      %v180 = vld [vmem:[%s169 + $0x18] sm:$0xff]
      %v181 = vld [vmem:[%s169 + $0x20] sm:$0xff]
      %v182 = vld [vmem:[%s169 + $0x28] sm:$0xff]
      %v183 = vld [vmem:[%s169 + $0x30] sm:$0xff]
      %v184 = vld [vmem:[%s169 + $0x38] sm:$0xff]
      %v185 = vld [vmem:[%s169 + $0x40] sm:$0xff]
      %v186 = vld [vmem:[%s169 + $0x48] sm:$0xff]
      %v187 = vld [vmem:[%s169 + $0x50] sm:$0xff]
      %v188 = vld [vmem:[%s169 + $0x58] sm:$0xff]
      %v189 = vpack.c.bf16 %v180, %v177
      %v190 = vpack.c.bf16 %v181, %v178
      %v191 = vpack.c.bf16 %v182, %v179
      %v192 = vpack.c.bf16 %v186, %v183
      %v193 = vpack.c.bf16 %v187, %v184
      %v194 = vpack.c.bf16 %v188, %v185
      %v195 = vld [vmem:[%s1] sm:$0xf]
      %v196 = vld [vmem:[%s1 + $0x4] sm:$0xf]
      %v197 = vld [vmem:[%s1 + $0x8] sm:$0xf]
      %v198 = vld [vmem:[%s1 + $0xc] sm:$0xf]
      %v199 = vld [vmem:[%s1 + $0x10] sm:$0xf]
      %v200 = vld [vmem:[%s1 + $0x14] sm:$0xf]
      %v201 = vld [vmem:[%s1 + $0x18] sm:$0xf]
      %v202 = vld [vmem:[%s1 + $0x1c] sm:$0xf]
      %v203 = vld [vmem:[%s1 + $0x20] sm:$0xf]
      %v204 = vld [vmem:[%s1 + $0x24] sm:$0xf]
      %v205 = vld [vmem:[%s1 + $0x28] sm:$0xf]
      %v206 = vld [vmem:[%s1 + $0x2c] sm:$0xf]
      %v207 = vld [vmem:[%s1 + $0x30] sm:$0xf]
      %v208 = vld [vmem:[%s1 + $0x34] sm:$0xf]
      %v209 = vld [vmem:[%s1 + $0x38] sm:$0xf]
      %v210 = vld [vmem:[%s1 + $0x3c] sm:$0xf]
      %v211 = vld [vmem:[%s1 + $0x40] sm:$0xf]
      %v212 = vld [vmem:[%s1 + $0x44] sm:$0xf]
      %v213 = vld [vmem:[%s1 + $0x48] sm:$0xf]
      %v214 = vld [vmem:[%s1 + $0x4c] sm:$0xf]
      %v215 = vld [vmem:[%s1 + $0x50] sm:$0xf]
      %v216 = vld [vmem:[%s1 + $0x54] sm:$0xf]
      %v217 = vld [vmem:[%s1 + $0x58] sm:$0xf]
      %v218 = vld [vmem:[%s1 + $0x5c] sm:$0xf]
      %v219 = vld [vmem:[%s1 + $0x60] sm:$0xf]
      %v220 = vld [vmem:[%s1 + $0x64] sm:$0xf]
      %v221 = vld [vmem:[%s1 + $0x68] sm:$0xf]
      %v222 = vld [vmem:[%s1 + $0x6c] sm:$0xf]
      %v223 = vld [vmem:[%s1 + $0x70] sm:$0xf]
      %v224 = vld [vmem:[%s1 + $0x74] sm:$0xf]
      %v225 = vld [vmem:[%s1 + $0x78] sm:$0xf]
      %v226 = vld [vmem:[%s1 + $0x7c] sm:$0xf]
      %v227 = vld [vmem:[%s1 + $0x80] sm:$0xf]
      %v228 = vld [vmem:[%s1 + $0x84] sm:$0xf]
      %v229 = vld [vmem:[%s1 + $0x88] sm:$0xf]
      %v230 = vld [vmem:[%s1 + $0x8c] sm:$0xf]
      %v231 = vld [vmem:[%s1 + $0x90] sm:$0xf]
      %v232 = vld [vmem:[%s1 + $0x94] sm:$0xf]
      %v233 = vld [vmem:[%s1 + $0x98] sm:$0xf]
      %v234 = vld [vmem:[%s1 + $0x9c] sm:$0xf]
      %v235 = vld [vmem:[%s1 + $0xa0] sm:$0xf]
      %v236 = vld [vmem:[%s1 + $0xa4] sm:$0xf]
      %v237 = vld [vmem:[%s1 + $0xa8] sm:$0xf]
      %v238 = vld [vmem:[%s1 + $0xac] sm:$0xf]
      %v239 = vld [vmem:[%s1 + $0xb0] sm:$0xf]
      %v240 = vld [vmem:[%s1 + $0xb4] sm:$0xf]
      %v241 = vld [vmem:[%s1 + $0xb8] sm:$0xf]
      %v242 = vld [vmem:[%s1 + $0xbc] sm:$0xf]
      %v243 = vld [vmem:[%s2] sm:$0x1]
      %v245 = vperm.slane %v243, 0
      %v295 = vunpack.c.l.b16 %v195
      %v296 = vunpack.c.l.b16 %v196
      %v297 = vunpack.c.l.b16 %v197
      %v298 = vunpack.c.l.b16 %v198
      %v299 = vunpack.c.l.b16 %v199
      %v300 = vunpack.c.l.b16 %v200
      %v301 = vunpack.c.l.b16 %v201
      %v302 = vunpack.c.l.b16 %v202
      %v303 = vunpack.c.l.b16 %v203
      %v304 = vunpack.c.l.b16 %v204
      %v305 = vunpack.c.l.b16 %v205
      %v306 = vunpack.c.l.b16 %v206
      %v307 = vunpack.c.l.b16 %v207
      %v308 = vunpack.c.l.b16 %v208
      %v309 = vunpack.c.l.b16 %v209
      %v310 = vunpack.c.l.b16 %v210
      %v311 = vunpack.c.l.b16 %v211
      %v312 = vunpack.c.l.b16 %v212
      %v313 = vunpack.c.l.b16 %v213
      %v314 = vunpack.c.l.b16 %v214
      %v315 = vunpack.c.l.b16 %v215
      %v316 = vunpack.c.l.b16 %v216
      %v317 = vunpack.c.l.b16 %v217
      %v318 = vunpack.c.l.b16 %v218
      %v319 = vunpack.c.l.b16 %v219
      %v320 = vunpack.c.l.b16 %v220
      %v321 = vunpack.c.l.b16 %v221
      %v322 = vunpack.c.l.b16 %v222
      %v323 = vunpack.c.l.b16 %v223
      %v324 = vunpack.c.l.b16 %v224
      %v325 = vunpack.c.l.b16 %v225
      %v326 = vunpack.c.l.b16 %v226
      %v327 = vunpack.c.l.b16 %v227
      %v328 = vunpack.c.l.b16 %v228
      %v329 = vunpack.c.l.b16 %v229
      %v330 = vunpack.c.l.b16 %v230
      %v331 = vunpack.c.l.b16 %v231
      %v332 = vunpack.c.l.b16 %v232
      %v333 = vunpack.c.l.b16 %v233
      %v334 = vunpack.c.l.b16 %v234
      %v335 = vunpack.c.l.b16 %v235
      %v336 = vunpack.c.l.b16 %v236
      %v337 = vunpack.c.l.b16 %v237
      %v338 = vunpack.c.l.b16 %v238
      %v339 = vunpack.c.l.b16 %v239
      %v340 = vunpack.c.l.b16 %v240
      %v341 = vunpack.c.l.b16 %v241
      %v342 = vunpack.c.l.b16 %v242
      %v343 = vpack.c.b16 %v296, %v295
      %v344 = vpack.c.b16 %v298, %v297
      %v345 = vpack.c.b16 %v300, %v299
      %v346 = vpack.c.b16 %v302, %v301
      %v347 = vpack.c.b16 %v304, %v303
      %v348 = vpack.c.b16 %v306, %v305
      %v349 = vpack.c.b16 %v308, %v307
      %v350 = vpack.c.b16 %v310, %v309
      %v351 = vpack.c.b16 %v312, %v311
      %v352 = vpack.c.b16 %v314, %v313
      %v353 = vpack.c.b16 %v316, %v315
      %v354 = vpack.c.b16 %v318, %v317
      %v355 = vpack.c.b16 %v320, %v319
      %v356 = vpack.c.b16 %v322, %v321
      %v357 = vpack.c.b16 %v324, %v323
      %v358 = vpack.c.b16 %v326, %v325
      %v359 = vpack.c.b16 %v328, %v327
      %v360 = vpack.c.b16 %v330, %v329
      %v361 = vpack.c.b16 %v332, %v331
      %v362 = vpack.c.b16 %v334, %v333
      %v363 = vpack.c.b16 %v336, %v335
      %v364 = vpack.c.b16 %v338, %v337
      %v365 = vpack.c.b16 %v340, %v339
      %v366 = vpack.c.b16 %v342, %v341
      %391 = vmatpush.bf16.msra.mxu0 %v350
      %392 = vmatpush.bf16.msra.mxu0 %v349
      %393 = vmatpush.bf16.msra.mxu0 %v348
      %394 = vmatpush.bf16.msra.mxu0 %v347
      %395 = vmatpush.bf16.msra.mxu0 %v346
      %396 = vmatpush.bf16.msra.mxu0 %v345
      %397 = vmatpush.bf16.msra.mxu0 %v344
      %398 = vmatpush.bf16.msra.mxu0 %v343
      %399 = vmatmul.bf16.gmra.mxu0 %v189
      %v400 = vpop.f32.mrf.mxu0
      %v401 = vadd.f32 %v245, %v400
      %v402 = vpop.f32.mrf.mxu0
      %v403 = vadd.f32 %v245, %v402
      %404 = vmatmul.bf16.gmra.mxu0 %v192
      %v405 = vpop.f32.mrf.mxu0
      %v406 = vadd.f32 %v245, %v405
      %v407 = vpop.f32.mrf.mxu0
      %v408 = vadd.f32 %v245, %v407
      %409 = vdwg.mxu0
      %410 = vmatpush.bf16.msra.mxu0 %v358
      %411 = vmatpush.bf16.msra.mxu0 %v357
      %412 = vmatpush.bf16.msra.mxu0 %v356
      %413 = vmatpush.bf16.msra.mxu0 %v355
      %414 = vmatpush.bf16.msra.mxu0 %v354
      %415 = vmatpush.bf16.msra.mxu0 %v353
      %416 = vmatpush.bf16.msra.mxu0 %v352
      %417 = vmatpush.bf16.msra.mxu0 %v351
      %418 = vmatmul.bf16.gmra.mxu0 %v190
      %v419 = vpop.f32.mrf.mxu0
      %v420 = vadd.f32 %v401, %v419
      %v421 = vpop.f32.mrf.mxu0
      %v422 = vadd.f32 %v403, %v421
      %423 = vmatmul.bf16.gmra.mxu0 %v193
      %v424 = vpop.f32.mrf.mxu0
      %v425 = vadd.f32 %v406, %v424
      %v426 = vpop.f32.mrf.mxu0
      %v427 = vadd.f32 %v408, %v426
      %428 = vdwg.mxu0
      %429 = vmatpush.bf16.msra.mxu0 %v366
      %430 = vmatpush.bf16.msra.mxu0 %v365
      %431 = vmatpush.bf16.msra.mxu0 %v364
      %432 = vmatpush.bf16.msra.mxu0 %v363
      %433 = vmatpush.bf16.msra.mxu0 %v362
      %434 = vmatpush.bf16.msra.mxu0 %v361
      %435 = vmatpush.bf16.msra.mxu0 %v360
      %436 = vmatpush.bf16.msra.mxu0 %v359
      %437 = vmatmul.bf16.gmra.mxu0 %v191
      %v438 = vpop.f32.mrf.mxu0
      %v439 = vadd.f32 %v420, %v438
      %v440 = vpop.f32.mrf.mxu0
      %v441 = vadd.f32 %v422, %v440
      %442 = vmatmul.bf16.gmra.mxu0 %v194
      %v443 = vpop.f32.mrf.mxu0
      %v444 = vadd.f32 %v425, %v443
      %v445 = vpop.f32.mrf.mxu0
      %v446 = vadd.f32 %v427, %v445
      %447 = vdwg.mxu0
      %v448 = vmax.f32 %v439, 0.0
      %v449 = vmax.f32 %v441, 0.0
      %v450 = vmax.f32 %v444, 0.0
      %v451 = vmax.f32 %v446, 0.0
      %452 = vst [vmem:[%s175] sm:$0xff] %v448
      %453 = vst [vmem:[%s175 + $0x8] sm:$0xff] %v449
      %454 = vst [vmem:[%s175 + $0x10] sm:$0xff] %v450
      %455 = vst [vmem:[%s175 + $0x18] sm:$0xff] %v451
      %s456 = smul.u32 4, %s14
      %p457 = scmp.lt.s32.totalorder %s456, 7
      %s458 = scalar_select %p457, %s456, 7
      %s459 = smul.addr %s458, 8
      %s460 = scalar_lea.vmem %s3, %s459
      // Predicated region
      $region33: #{gravnet_with_noise_filter_forward.57} parent=31 // pred_check
        %p461 = pneg %p100
      $region34: #{gravnet_with_noise_filter_forward.57} parent=31 // pred_check_branch
        %463 = sbr.rel (%p461) target = $region36
      $region35: #{gravnet_with_noise_filter_forward.57} parent=31 // pred_region
        %s464 = smul.u32 4, %s14
      $region36: #{gravnet_with_noise_filter_forward.57} parent=31 // pred_fallthru
        _
    $region32: #{gravnet_with_noise_filter_forward.57} parent=5 // pred_fallthru
      _
    %p465 = scmp.le.s32.totalorder 2, %s9
    // Predicated region
    $region37: #{gravnet_with_noise_filter_forward.57} parent=5 // pred_check
      %p466 = pneg %p465
    $region38: #{gravnet_with_noise_filter_forward.57} parent=5 // pred_check_branch
      %468 = sbr.rel (%p466) target = $region40
    $region39: #{gravnet_with_noise_filter_forward.57} parent=5 // pred_region
      %s469 = ssub.s32 %s9, 2
      // Predicated region
      $region41: #{gravnet_with_noise_filter_forward.57} parent=39 // pred_check
        %p470 = pneg %p106
      $region42: #{gravnet_with_noise_filter_forward.57} parent=39 // pred_check_branch
        %472 = sbr.rel (%p470) target = $region44
      $region43: #{gravnet_with_noise_filter_forward.57} parent=39 // pred_region
        %s473 = smul.u32 4, %s15
        %p474 = scmp.lt.s32.totalorder %s473, 7
        %s475 = scalar_select %p474, %s473, 7
        %s476 = smul.addr %s475, 8
        %s477 = scalar_lea.vmem %s3, %s476
      $region44: #{gravnet_with_noise_filter_forward.57} parent=39 // pred_fallthru
        _
    $region40: #{gravnet_with_noise_filter_forward.57} parent=5 // pred_fallthru
      _
  $region6: #{gravnet_with_noise_filter_forward.57} parent=0 // loop_footer
    %s13 = sadd.s32 1, %s9
  $region7: #{gravnet_with_noise_filter_forward.57} parent=0 // loop_footer_branch
    %8 = sbr.rel target = $region3
  $region8: #{gravnet_with_noise_filter_forward.57} parent=0 // loop_exit
    _

// kernel: gravnet_with_noise_filter_forward.58
$region0: #{gravnet_with_noise_filter_forward.58}
  #allocation0 [shape = 'u32[]', space=smem, size = 0x4, offset = 0x4, fixed_abs, tag = 'smem constant byte address 0x4 - core index']
  #allocation1 [shape = 'u32[72,128]{1,0:T(1,128)}', space=vmem, size = 0x9000, scoped, tag = 'internal scratch']
  %s0 = inlined_call_operand.vmem [shape: f32[64,128], index: 0, kind: input, shape index: {}]
  %s1 = inlined_call_operand.vmem [shape: f32[1,128], index: 1, kind: input, shape index: {}]
  %s2 = inlined_call_operand.vmem [shape: f32[1,128], index: 2, kind: input, shape index: {}]
  %s3 = inlined_call_operand.vmem [shape: bf16[128,128], index: 3, kind: input, shape index: {}]
  %s4 = inlined_call_operand.vmem [shape: f32[1,128], index: 4, kind: input, shape index: {}]
  %s5 = inlined_call_operand.vmem [shape: f32[64,128], index: 5, kind: output, shape index: {}]
  %s6 = sld [smem:[#allocation0]]
  $region53: #{gravnet_with_noise_filter_forward.58} parent=0
    _
  %s8 = ssub.s32 1, %s6
  %s9 = scalar_select 0, %s8, %s6
  loop: start=0, step=1, limit=4
  $region2: #{gravnet_with_noise_filter_forward.58} parent=0 // loop_pre_header
    _
  $region3: #{gravnet_with_noise_filter_forward.58} parent=0 // loop_header
    %s11 = sphi 0, %s15
    %p12 = scmp.ge.s32.totalorder %s11, 4
    %s21 = sphi 0, %s23
    %s24 = sphi 0, %s21
    %s25 = sphi 0, %s24
    %s41 = sphi 0, %s25
    %s45 = sphi 0, %s45
    %s47 = sphi 0, %s45
    %s48 = sphi 0, %s47
    %s62 = sphi 0, %s48
    %s66 = sphi 0, %s66
    %s68 = sphi 0, %s66
    %s69 = sphi 0, %s68
    %s83 = sphi 0, %s69
    %s87 = sphi 0, %s87
    %s89 = sphi 0, %s87
    %s90 = sphi 0, %s89
    %s104 = sphi 0, %s90
    %s108 = sphi 0, %s108
    %s110 = sphi 0, %s108
    %s111 = sphi 0, %s110
    %s125 = sphi 0, %s111
    %s131 = sphi 0, %s133
    %s134 = sphi 0, %s131
    %s135 = sphi 0, %s134
    %s151 = sphi 0, %s135
  $region4: #{gravnet_with_noise_filter_forward.58} parent=0 // loop_header_branch
    %14 = sbr.rel (%p12) target = $region8
  $region5: #{gravnet_with_noise_filter_forward.58} parent=0 // loop_body
    %s16 = ssub.s32 %s11, 1
    %s17 = ssub.s32 %s11, 2
    %s18 = sadd.s32 %s11, 1
    %s19 = ssub.s32 %s11, %s18
    %p20 = scmp.eq.s32.totalorder %s19, 0
    %s22 = sadd.s32 %s21, 1
    %s23 = scalar_select %p20, %s21, %s22
    %p26 = pneg %p20
    %p27 = scmp.eq.s32.totalorder %s11, 1
    %p28 = por %p26, %p27
    %p29 = scmp.ne.s32.totalorder %s21, %s24
    %p30 = scmp.eq.s32.totalorder %s11, 0
    %p31 = por %p29, %p30
    %p32 = scmp.ne.s32.totalorder %s21, %s24
    %p33 = scmp.eq.s32.totalorder %s16, 1
    %p34 = por %p32, %p33
    %p35 = scmp.ne.s32.totalorder %s24, %s25
    %p36 = scmp.eq.s32.totalorder %s16, 0
    %p37 = por %p35, %p36
    %p38 = scmp.ne.s32.totalorder %s24, %s25
    %p39 = scmp.eq.s32.totalorder %s17, 1
    %p40 = por %p38, %p39
    %p42 = scmp.ne.s32.totalorder %s25, %s41
    %p43 = scmp.eq.s32.totalorder %s17, 0
    %p44 = por %p42, %p43
    %s46 = sadd.s32 %s45, 1
    %p49 = scmp.eq.s32.totalorder %s11, 1
    %p50 = scmp.ne.s32.totalorder %s45, %s47
    %p51 = scmp.eq.s32.totalorder %s11, 0
    %p52 = por %p50, %p51
    %p53 = scmp.ne.s32.totalorder %s45, %s47
    %p54 = scmp.eq.s32.totalorder %s16, 1
    %p55 = por %p53, %p54
    %p56 = scmp.ne.s32.totalorder %s47, %s48
    %p57 = scmp.eq.s32.totalorder %s16, 0
    %p58 = por %p56, %p57
    %p59 = scmp.ne.s32.totalorder %s47, %s48
    %p60 = scmp.eq.s32.totalorder %s17, 1
    %p61 = por %p59, %p60
    %p63 = scmp.ne.s32.totalorder %s48, %s62
    %p64 = scmp.eq.s32.totalorder %s17, 0
    %p65 = por %p63, %p64
    %s67 = sadd.s32 %s66, 1
    %p70 = scmp.eq.s32.totalorder %s11, 1
    %p71 = scmp.ne.s32.totalorder %s66, %s68
    %p72 = scmp.eq.s32.totalorder %s11, 0
    %p73 = por %p71, %p72
    %p74 = scmp.ne.s32.totalorder %s66, %s68
    %p75 = scmp.eq.s32.totalorder %s16, 1
    %p76 = por %p74, %p75
    %p77 = scmp.ne.s32.totalorder %s68, %s69
    %p78 = scmp.eq.s32.totalorder %s16, 0
    %p79 = por %p77, %p78
    %p80 = scmp.ne.s32.totalorder %s68, %s69
    %p81 = scmp.eq.s32.totalorder %s17, 1
    %p82 = por %p80, %p81
    %p84 = scmp.ne.s32.totalorder %s69, %s83
    %p85 = scmp.eq.s32.totalorder %s17, 0
    %p86 = por %p84, %p85
    %s88 = sadd.s32 %s87, 1
    %p91 = scmp.eq.s32.totalorder %s11, 1
    %p92 = scmp.ne.s32.totalorder %s87, %s89
    %p93 = scmp.eq.s32.totalorder %s11, 0
    %p94 = por %p92, %p93
    %p95 = scmp.ne.s32.totalorder %s87, %s89
    %p96 = scmp.eq.s32.totalorder %s16, 1
    %p97 = por %p95, %p96
    %p98 = scmp.ne.s32.totalorder %s89, %s90
    %p99 = scmp.eq.s32.totalorder %s16, 0
    %p100 = por %p98, %p99
    %p101 = scmp.ne.s32.totalorder %s89, %s90
    %p102 = scmp.eq.s32.totalorder %s17, 1
    %p103 = por %p101, %p102
    %p105 = scmp.ne.s32.totalorder %s90, %s104
    %p106 = scmp.eq.s32.totalorder %s17, 0
    %p107 = por %p105, %p106
    %s109 = sadd.s32 %s108, 1
    %p112 = scmp.eq.s32.totalorder %s11, 1
    %p113 = scmp.ne.s32.totalorder %s108, %s110
    %p114 = scmp.eq.s32.totalorder %s11, 0
    %p115 = por %p113, %p114
    %p116 = scmp.ne.s32.totalorder %s108, %s110
    %p117 = scmp.eq.s32.totalorder %s16, 1
    %p118 = por %p116, %p117
    %p119 = scmp.ne.s32.totalorder %s110, %s111
    %p120 = scmp.eq.s32.totalorder %s16, 0
    %p121 = por %p119, %p120
    %p122 = scmp.ne.s32.totalorder %s110, %s111
    %p123 = scmp.eq.s32.totalorder %s17, 1
    %p124 = por %p122, %p123
    %p126 = scmp.ne.s32.totalorder %s111, %s125
    %p127 = scmp.eq.s32.totalorder %s17, 0
    %p128 = por %p126, %p127
    %s129 = ssub.s32 %s11, %s18
    %p130 = scmp.eq.s32.totalorder %s129, 0
    %s132 = sadd.s32 %s131, 1
    %s133 = scalar_select %p130, %s131, %s132
    %p136 = pneg %p130
    %p137 = scmp.eq.s32.totalorder %s11, 1
    %p138 = por %p136, %p137
    %p139 = scmp.ne.s32.totalorder %s131, %s134
    %p140 = scmp.eq.s32.totalorder %s11, 0
    %p141 = por %p139, %p140
    %p142 = scmp.ne.s32.totalorder %s131, %s134
    %p143 = scmp.eq.s32.totalorder %s16, 1
    %p144 = por %p142, %p143
    %p145 = scmp.ne.s32.totalorder %s134, %s135
    %p146 = scmp.eq.s32.totalorder %s16, 0
    %p147 = por %p145, %p146
    %p148 = scmp.ne.s32.totalorder %s134, %s135
    %p149 = scmp.eq.s32.totalorder %s17, 1
    %p150 = por %p148, %p149
    %p152 = scmp.ne.s32.totalorder %s135, %s151
    %p153 = scmp.eq.s32.totalorder %s17, 0
    %p154 = por %p152, %p153
    %p155 = scmp.le.s32.totalorder 1, %s11
    %p156 = scmp.lt.s32.totalorder %s11, 3
    %p157 = pnand %p155, %p156
    %p158 = pneg %p157
    // Predicated region
    $region9: #{gravnet_with_noise_filter_forward.58} parent=5 // pred_check
      _
    $region10: #{gravnet_with_noise_filter_forward.58} parent=5 // pred_check_branch
      %160 = sbr.rel (%p157) target = $region12
    $region11: #{gravnet_with_noise_filter_forward.58} parent=5 // pred_region
      %s161 = ssub.s32 %s11, 1
      // Predicated region
      $region13: #{gravnet_with_noise_filter_forward.58} parent=11 // pred_check
        %p162 = pneg %p58
      $region14: #{gravnet_with_noise_filter_forward.58} parent=11 // pred_check_branch
        %164 = sbr.rel (%p162) target = $region16
      $region15: #{gravnet_with_noise_filter_forward.58} parent=11 // pred_region
        _
      $region16: #{gravnet_with_noise_filter_forward.58} parent=11 // pred_fallthru
        _
      // Predicated region
      $region17: #{gravnet_with_noise_filter_forward.58} parent=11 // pred_check
        %p165 = pneg %p79
      $region18: #{gravnet_with_noise_filter_forward.58} parent=11 // pred_check_branch
        %167 = sbr.rel (%p165) target = $region20
      $region19: #{gravnet_with_noise_filter_forward.58} parent=11 // pred_region
        _
      $region20: #{gravnet_with_noise_filter_forward.58} parent=11 // pred_fallthru
        _
      // Predicated region
      $region21: #{gravnet_with_noise_filter_forward.58} parent=11 // pred_check
        %p168 = pneg %p100
      $region22: #{gravnet_with_noise_filter_forward.58} parent=11 // pred_check_branch
        %170 = sbr.rel (%p168) target = $region24
      $region23: #{gravnet_with_noise_filter_forward.58} parent=11 // pred_region
        _
      $region24: #{gravnet_with_noise_filter_forward.58} parent=11 // pred_fallthru
        _
      // Predicated region
      $region25: #{gravnet_with_noise_filter_forward.58} parent=11 // pred_check
        %p171 = pneg %p121
      $region26: #{gravnet_with_noise_filter_forward.58} parent=11 // pred_check_branch
        %173 = sbr.rel (%p171) target = $region28
      $region27: #{gravnet_with_noise_filter_forward.58} parent=11 // pred_region
        _
      $region28: #{gravnet_with_noise_filter_forward.58} parent=11 // pred_fallthru
        _
    $region12: #{gravnet_with_noise_filter_forward.58} parent=5 // pred_fallthru
      _
    %p174 = scmp.lt.s32.totalorder %s11, 2
    // Predicated region
    $region29: #{gravnet_with_noise_filter_forward.58} parent=5 // pred_check
      %p175 = pneg %p174
    $region30: #{gravnet_with_noise_filter_forward.58} parent=5 // pred_check_branch
      %177 = sbr.rel (%p175) target = $region32
    $region31: #{gravnet_with_noise_filter_forward.58} parent=5 // pred_region
      // Predicated region
      $region33: #{gravnet_with_noise_filter_forward.58} parent=31 // pred_check
        %p178 = pneg %p31
      $region34: #{gravnet_with_noise_filter_forward.58} parent=31 // pred_check_branch
        %180 = sbr.rel (%p178) target = $region36
      $region35: #{gravnet_with_noise_filter_forward.58} parent=31 // pred_region
        %s181 = smul.u32 4, %s11
        %p182 = scmp.lt.s32.totalorder %s181, 7
        %s183 = scalar_select %p182, %s181, 7
        %s184 = smul.addr %s183, 8
        %s185 = scalar_lea.vmem %s0, %s184
        %s186 = smul.u32 4, %s11
      $region36: #{gravnet_with_noise_filter_forward.58} parent=31 // pred_fallthru
        _
    $region32: #{gravnet_with_noise_filter_forward.58} parent=5 // pred_fallthru
      _
    %p187 = scmp.le.s32.totalorder 1, %s11
    %p188 = scmp.lt.s32.totalorder %s11, 3
    %p189 = pnand %p187, %p188
    %p190 = pneg %p189
    // Predicated region
    $region37: #{gravnet_with_noise_filter_forward.58} parent=5 // pred_check
      _
    $region38: #{gravnet_with_noise_filter_forward.58} parent=5 // pred_check_branch
      %192 = sbr.rel (%p189) target = $region40
    $region39: #{gravnet_with_noise_filter_forward.58} parent=5 // pred_region
      %s193 = ssub.s32 %s11, 1
      %s194 = smul.u32 4, %s16
      %p195 = scmp.lt.s32.totalorder %s194, 7
      %s196 = scalar_select %p195, %s194, 7
      %s197 = smul.addr %s196, 8
      %s198 = scalar_lea.vmem %s0, %s197
      %p199 = pneg %p37
      %p200 = pneg %p34
      %p201 = pneg %p58
      %p202 = pneg %p55
      %p203 = pneg %p79
      %p204 = pneg %p76
      %p205 = pneg %p100
      %p206 = pneg %p97
      %p207 = pneg %p121
      %p208 = pneg %p118
      %p209 = pneg %p147
      %p210 = pneg %p144
      %s211 = smul.u32 4, %s16
      %p212 = scmp.lt.s32.totalorder %s211, 7
      %s213 = scalar_select %p212, %s211, 7
      %s214 = smul.addr %s213, 8
      %s215 = scalar_lea.vmem %s5, %s214
      %s216 = smul.u32 4, %s16
      %p217 = scmp.lt.s32.totalorder %s216, 7
      %s218 = scalar_select %p217, %s216, 7
      %s219 = smul.addr %s218, 8
      %s220 = scalar_lea.vmem %s0, %s219
      %s221 = smul.u32 4, %s16
      %s222 = smul.u32 4, %s16
      %p223 = scmp.lt.s32.totalorder %s222, 7
      %s224 = scalar_select %p223, %s222, 7
      %s225 = smul.addr %s224, 8
      %s226 = scalar_lea.vmem %s5, %s225
      %s227 = smul.u32 4, %s16
      %v228 = vld [vmem:[%s220] sm:$0xff]
      %v229 = vld [vmem:[%s220 + $0x8] sm:$0xff]
      %v230 = vld [vmem:[%s220 + $0x10] sm:$0xff]
      %v231 = vld [vmem:[%s220 + $0x18] sm:$0xff]
      %v232 = vld [vmem:[%s1] sm:$0x1]
      %v234 = vperm.slane %v232, 0
      %v236 = vmul.f32 %v228, %v234
      %v237 = vmul.f32 %v229, %v234
      %v238 = vmul.f32 %v230, %v234
      %v239 = vmul.f32 %v231, %v234
      %v240 = vld [vmem:[%s2] sm:$0x1]
      %v242 = vperm.slane %v240, 0
      %v244 = vadd.f32 %v236, %v242
      %v245 = vadd.f32 %v237, %v242
      %v246 = vadd.f32 %v238, %v242
      %v247 = vadd.f32 %v239, %v242
      %v248 = vpack.c.bf16 %v245, %v244
      %v249 = vpack.c.bf16 %v247, %v246
      %v250 = vld [vmem:[%s3] sm:$0xf]
      %v251 = vld [vmem:[%s3 + $0x4] sm:$0xf]
      %v252 = vld [vmem:[%s3 + $0x8] sm:$0xf]
      %v253 = vld [vmem:[%s3 + $0xc] sm:$0xf]
      %v254 = vld [vmem:[%s3 + $0x10] sm:$0xf]
      %v255 = vld [vmem:[%s3 + $0x14] sm:$0xf]
      %v256 = vld [vmem:[%s3 + $0x18] sm:$0xf]
      %v257 = vld [vmem:[%s3 + $0x1c] sm:$0xf]
      %v258 = vld [vmem:[%s3 + $0x20] sm:$0xf]
      %v259 = vld [vmem:[%s3 + $0x24] sm:$0xf]
      %v260 = vld [vmem:[%s3 + $0x28] sm:$0xf]
      %v261 = vld [vmem:[%s3 + $0x2c] sm:$0xf]
      %v262 = vld [vmem:[%s3 + $0x30] sm:$0xf]
      %v263 = vld [vmem:[%s3 + $0x34] sm:$0xf]
      %v264 = vld [vmem:[%s3 + $0x38] sm:$0xf]
      %v265 = vld [vmem:[%s3 + $0x3c] sm:$0xf]
      %v266 = vld [vmem:[%s4] sm:$0x1]
      %v268 = vperm.slane %v266, 0
      %v286 = vunpack.c.l.b16 %v250
      %v287 = vunpack.c.l.b16 %v251
      %v288 = vunpack.c.l.b16 %v252
      %v289 = vunpack.c.l.b16 %v253
      %v290 = vunpack.c.l.b16 %v254
      %v291 = vunpack.c.l.b16 %v255
      %v292 = vunpack.c.l.b16 %v256
      %v293 = vunpack.c.l.b16 %v257
      %v294 = vunpack.c.l.b16 %v258
      %v295 = vunpack.c.l.b16 %v259
      %v296 = vunpack.c.l.b16 %v260
      %v297 = vunpack.c.l.b16 %v261
      %v298 = vunpack.c.l.b16 %v262
      %v299 = vunpack.c.l.b16 %v263
      %v300 = vunpack.c.l.b16 %v264
      %v301 = vunpack.c.l.b16 %v265
      %v302 = vpack.c.b16 %v287, %v286
      %v303 = vpack.c.b16 %v289, %v288
      %v304 = vpack.c.b16 %v291, %v290
      %v305 = vpack.c.b16 %v293, %v292
      %v306 = vpack.c.b16 %v295, %v294
      %v307 = vpack.c.b16 %v297, %v296
      %v308 = vpack.c.b16 %v299, %v298
      %v309 = vpack.c.b16 %v301, %v300
      %318 = vmatpush.bf16.msra.mxu0 %v309
      %319 = vmatpush.bf16.msra.mxu0 %v308
      %320 = vmatpush.bf16.msra.mxu0 %v307
      %321 = vmatpush.bf16.msra.mxu0 %v306
      %322 = vmatpush.bf16.msra.mxu0 %v305
      %323 = vmatpush.bf16.msra.mxu0 %v304
      %324 = vmatpush.bf16.msra.mxu0 %v303
      %325 = vmatpush.bf16.msra.mxu0 %v302
      %326 = vmatmul.bf16.gmra.mxu0 %v248
      %v327 = vpop.f32.mrf.mxu0
      %v328 = vadd.f32 %v268, %v327
      %v329 = vpop.f32.mrf.mxu0
      %v330 = vadd.f32 %v268, %v329
      %331 = vmatmul.bf16.gmra.mxu0 %v249
      %v332 = vpop.f32.mrf.mxu0
      %v333 = vadd.f32 %v268, %v332
      %v334 = vpop.f32.mrf.mxu0
      %v335 = vadd.f32 %v268, %v334
      %336 = vdwg.mxu0
      %v337 = vmax.f32 %v328, 0.0
      %v338 = vmax.f32 %v330, 0.0
      %v339 = vmax.f32 %v333, 0.0
      %v340 = vmax.f32 %v335, 0.0
      %341 = vst [vmem:[%s226] sm:$0xff] %v337
      %342 = vst [vmem:[%s226 + $0x8] sm:$0xff] %v338
      %343 = vst [vmem:[%s226 + $0x10] sm:$0xff] %v339
      %344 = vst [vmem:[%s226 + $0x18] sm:$0xff] %v340
      %s345 = smul.u32 4, %s16
      %p346 = scmp.lt.s32.totalorder %s345, 7
      %s347 = scalar_select %p346, %s345, 7
      %s348 = smul.addr %s347, 8
      %s349 = scalar_lea.vmem %s5, %s348
      // Predicated region
      $region41: #{gravnet_with_noise_filter_forward.58} parent=39 // pred_check
        %p350 = pneg %p144
      $region42: #{gravnet_with_noise_filter_forward.58} parent=39 // pred_check_branch
        %352 = sbr.rel (%p350) target = $region44
      $region43: #{gravnet_with_noise_filter_forward.58} parent=39 // pred_region
        %s353 = smul.u32 4, %s16
      $region44: #{gravnet_with_noise_filter_forward.58} parent=39 // pred_fallthru
        _
    $region40: #{gravnet_with_noise_filter_forward.58} parent=5 // pred_fallthru
      _
    %p354 = scmp.le.s32.totalorder 2, %s11
    // Predicated region
    $region45: #{gravnet_with_noise_filter_forward.58} parent=5 // pred_check
      %p355 = pneg %p354
    $region46: #{gravnet_with_noise_filter_forward.58} parent=5 // pred_check_branch
      %357 = sbr.rel (%p355) target = $region48
    $region47: #{gravnet_with_noise_filter_forward.58} parent=5 // pred_region
      %s358 = ssub.s32 %s11, 2
      // Predicated region
      $region49: #{gravnet_with_noise_filter_forward.58} parent=47 // pred_check
        %p359 = pneg %p150
      $region50: #{gravnet_with_noise_filter_forward.58} parent=47 // pred_check_branch
        %361 = sbr.rel (%p359) target = $region52
      $region51: #{gravnet_with_noise_filter_forward.58} parent=47 // pred_region
        %s362 = smul.u32 4, %s17
        %p363 = scmp.lt.s32.totalorder %s362, 7
        %s364 = scalar_select %p363, %s362, 7
        %s365 = smul.addr %s364, 8
        %s366 = scalar_lea.vmem %s5, %s365
      $region52: #{gravnet_with_noise_filter_forward.58} parent=47 // pred_fallthru
        _
    $region48: #{gravnet_with_noise_filter_forward.58} parent=5 // pred_fallthru
      _
  $region6: #{gravnet_with_noise_filter_forward.58} parent=0 // loop_footer
    %s15 = sadd.s32 1, %s11
  $region7: #{gravnet_with_noise_filter_forward.58} parent=0 // loop_footer_branch
    %10 = sbr.rel target = $region3
  $region8: #{gravnet_with_noise_filter_forward.58} parent=0 // loop_exit
    _

// kernel: gravnet_with_noise_filter_forward.61
$region0: #{gravnet_with_noise_filter_forward.61}
  #allocation0 [shape = 'u32[]', space=smem, size = 0x4, offset = 0x4, fixed_abs, tag = 'smem constant byte address 0x4 - core index']
  #allocation1 [shape = 'u32[72,128]{1,0:T(1,128)}', space=vmem, size = 0x9000, scoped, tag = 'internal scratch']
  %s0 = inlined_call_operand.vmem [shape: f32[64,128], index: 0, kind: input, shape index: {}]
  %s1 = inlined_call_operand.vmem [shape: f32[1,128], index: 1, kind: input, shape index: {}]
  %s2 = inlined_call_operand.vmem [shape: f32[1,128], index: 2, kind: input, shape index: {}]
  %s3 = inlined_call_operand.vmem [shape: bf16[128,64], index: 3, kind: input, shape index: {}]
  %s4 = inlined_call_operand.vmem [shape: f32[1,64], index: 4, kind: input, shape index: {}]
  %s5 = inlined_call_operand.vmem [shape: bf16[64,64], index: 5, kind: input, shape index: {}]
  %s6 = inlined_call_operand.vmem [shape: f32[1,64], index: 6, kind: input, shape index: {}]
  %s7 = inlined_call_operand.vmem [shape: bf16[64,4], index: 7, kind: input, shape index: {}]
  %s8 = inlined_call_operand.vmem [shape: f32[1,4], index: 8, kind: input, shape index: {}]
  %s9 = inlined_call_operand.vmem [shape: f32[64,4], index: 9, kind: output, shape index: {}]
  %s10 = sld [smem:[#allocation0]]
  $region69: #{gravnet_with_noise_filter_forward.61} parent=0
    _
  %s12 = ssub.s32 1, %s10
  %s13 = scalar_select 0, %s12, %s10
  loop: start=0, step=1, limit=4
  $region2: #{gravnet_with_noise_filter_forward.61} parent=0 // loop_pre_header
    _
  $region3: #{gravnet_with_noise_filter_forward.61} parent=0 // loop_header
    %s15 = sphi 0, %s19
    %p16 = scmp.ge.s32.totalorder %s15, 4
    %s25 = sphi 0, %s27
    %s28 = sphi 0, %s25
    %s29 = sphi 0, %s28
    %s45 = sphi 0, %s29
    %s49 = sphi 0, %s49
    %s51 = sphi 0, %s49
    %s52 = sphi 0, %s51
    %s66 = sphi 0, %s52
    %s70 = sphi 0, %s70
    %s72 = sphi 0, %s70
    %s73 = sphi 0, %s72
    %s87 = sphi 0, %s73
    %s91 = sphi 0, %s91
    %s93 = sphi 0, %s91
    %s94 = sphi 0, %s93
    %s108 = sphi 0, %s94
    %s112 = sphi 0, %s112
    %s114 = sphi 0, %s112
    %s115 = sphi 0, %s114
    %s129 = sphi 0, %s115
    %s133 = sphi 0, %s133
    %s135 = sphi 0, %s133
    %s136 = sphi 0, %s135
    %s150 = sphi 0, %s136
    %s154 = sphi 0, %s154
    %s156 = sphi 0, %s154
    %s157 = sphi 0, %s156
    %s171 = sphi 0, %s157
    %s175 = sphi 0, %s175
    %s177 = sphi 0, %s175
    %s178 = sphi 0, %s177
    %s192 = sphi 0, %s178
    %s196 = sphi 0, %s196
    %s198 = sphi 0, %s196
    %s199 = sphi 0, %s198
    %s213 = sphi 0, %s199
    %s219 = sphi 0, %s221
    %s222 = sphi 0, %s219
    %s223 = sphi 0, %s222
    %s239 = sphi 0, %s223
  $region4: #{gravnet_with_noise_filter_forward.61} parent=0 // loop_header_branch
    %18 = sbr.rel (%p16) target = $region8
  $region5: #{gravnet_with_noise_filter_forward.61} parent=0 // loop_body
    %s20 = ssub.s32 %s15, 1
    %s21 = ssub.s32 %s15, 2
    %s22 = sadd.s32 %s15, 1
    %s23 = ssub.s32 %s15, %s22
    %p24 = scmp.eq.s32.totalorder %s23, 0
    %s26 = sadd.s32 %s25, 1
    %s27 = scalar_select %p24, %s25, %s26
    %p30 = pneg %p24
    %p31 = scmp.eq.s32.totalorder %s15, 1
    %p32 = por %p30, %p31
    %p33 = scmp.ne.s32.totalorder %s25, %s28
    %p34 = scmp.eq.s32.totalorder %s15, 0
    %p35 = por %p33, %p34
    %p36 = scmp.ne.s32.totalorder %s25, %s28
    %p37 = scmp.eq.s32.totalorder %s20, 1
    %p38 = por %p36, %p37
    %p39 = scmp.ne.s32.totalorder %s28, %s29
    %p40 = scmp.eq.s32.totalorder %s20, 0
    %p41 = por %p39, %p40
    %p42 = scmp.ne.s32.totalorder %s28, %s29
    %p43 = scmp.eq.s32.totalorder %s21, 1
    %p44 = por %p42, %p43
    %p46 = scmp.ne.s32.totalorder %s29, %s45
    %p47 = scmp.eq.s32.totalorder %s21, 0
    %p48 = por %p46, %p47
    %s50 = sadd.s32 %s49, 1
    %p53 = scmp.eq.s32.totalorder %s15, 1
    %p54 = scmp.ne.s32.totalorder %s49, %s51
    %p55 = scmp.eq.s32.totalorder %s15, 0
    %p56 = por %p54, %p55
    %p57 = scmp.ne.s32.totalorder %s49, %s51
    %p58 = scmp.eq.s32.totalorder %s20, 1
    %p59 = por %p57, %p58
    %p60 = scmp.ne.s32.totalorder %s51, %s52
    %p61 = scmp.eq.s32.totalorder %s20, 0
    %p62 = por %p60, %p61
    %p63 = scmp.ne.s32.totalorder %s51, %s52
    %p64 = scmp.eq.s32.totalorder %s21, 1
    %p65 = por %p63, %p64
    %p67 = scmp.ne.s32.totalorder %s52, %s66
    %p68 = scmp.eq.s32.totalorder %s21, 0
    %p69 = por %p67, %p68
    %s71 = sadd.s32 %s70, 1
    %p74 = scmp.eq.s32.totalorder %s15, 1
    %p75 = scmp.ne.s32.totalorder %s70, %s72
    %p76 = scmp.eq.s32.totalorder %s15, 0
    %p77 = por %p75, %p76
    %p78 = scmp.ne.s32.totalorder %s70, %s72
    %p79 = scmp.eq.s32.totalorder %s20, 1
    %p80 = por %p78, %p79
    %p81 = scmp.ne.s32.totalorder %s72, %s73
    %p82 = scmp.eq.s32.totalorder %s20, 0
    %p83 = por %p81, %p82
    %p84 = scmp.ne.s32.totalorder %s72, %s73
    %p85 = scmp.eq.s32.totalorder %s21, 1
    %p86 = por %p84, %p85
    %p88 = scmp.ne.s32.totalorder %s73, %s87
    %p89 = scmp.eq.s32.totalorder %s21, 0
    %p90 = por %p88, %p89
    %s92 = sadd.s32 %s91, 1
    %p95 = scmp.eq.s32.totalorder %s15, 1
    %p96 = scmp.ne.s32.totalorder %s91, %s93
    %p97 = scmp.eq.s32.totalorder %s15, 0
    %p98 = por %p96, %p97
    %p99 = scmp.ne.s32.totalorder %s91, %s93
    %p100 = scmp.eq.s32.totalorder %s20, 1
    %p101 = por %p99, %p100
    %p102 = scmp.ne.s32.totalorder %s93, %s94
    %p103 = scmp.eq.s32.totalorder %s20, 0
    %p104 = por %p102, %p103
    %p105 = scmp.ne.s32.totalorder %s93, %s94
    %p106 = scmp.eq.s32.totalorder %s21, 1
    %p107 = por %p105, %p106
    %p109 = scmp.ne.s32.totalorder %s94, %s108
    %p110 = scmp.eq.s32.totalorder %s21, 0
    %p111 = por %p109, %p110
    %s113 = sadd.s32 %s112, 1
    %p116 = scmp.eq.s32.totalorder %s15, 1
    %p117 = scmp.ne.s32.totalorder %s112, %s114
    %p118 = scmp.eq.s32.totalorder %s15, 0
    %p119 = por %p117, %p118
    %p120 = scmp.ne.s32.totalorder %s112, %s114
    %p121 = scmp.eq.s32.totalorder %s20, 1
    %p122 = por %p120, %p121
    %p123 = scmp.ne.s32.totalorder %s114, %s115
    %p124 = scmp.eq.s32.totalorder %s20, 0
    %p125 = por %p123, %p124
    %p126 = scmp.ne.s32.totalorder %s114, %s115
    %p127 = scmp.eq.s32.totalorder %s21, 1
    %p128 = por %p126, %p127
    %p130 = scmp.ne.s32.totalorder %s115, %s129
    %p131 = scmp.eq.s32.totalorder %s21, 0
    %p132 = por %p130, %p131
    %s134 = sadd.s32 %s133, 1
    %p137 = scmp.eq.s32.totalorder %s15, 1
    %p138 = scmp.ne.s32.totalorder %s133, %s135
    %p139 = scmp.eq.s32.totalorder %s15, 0
    %p140 = por %p138, %p139
    %p141 = scmp.ne.s32.totalorder %s133, %s135
    %p142 = scmp.eq.s32.totalorder %s20, 1
    %p143 = por %p141, %p142
    %p144 = scmp.ne.s32.totalorder %s135, %s136
    %p145 = scmp.eq.s32.totalorder %s20, 0
    %p146 = por %p144, %p145
    %p147 = scmp.ne.s32.totalorder %s135, %s136
    %p148 = scmp.eq.s32.totalorder %s21, 1
    %p149 = por %p147, %p148
    %p151 = scmp.ne.s32.totalorder %s136, %s150
    %p152 = scmp.eq.s32.totalorder %s21, 0
    %p153 = por %p151, %p152
    %s155 = sadd.s32 %s154, 1
    %p158 = scmp.eq.s32.totalorder %s15, 1
    %p159 = scmp.ne.s32.totalorder %s154, %s156
    %p160 = scmp.eq.s32.totalorder %s15, 0
    %p161 = por %p159, %p160
    %p162 = scmp.ne.s32.totalorder %s154, %s156
    %p163 = scmp.eq.s32.totalorder %s20, 1
    %p164 = por %p162, %p163
    %p165 = scmp.ne.s32.totalorder %s156, %s157
    %p166 = scmp.eq.s32.totalorder %s20, 0
    %p167 = por %p165, %p166
    %p168 = scmp.ne.s32.totalorder %s156, %s157
    %p169 = scmp.eq.s32.totalorder %s21, 1
    %p170 = por %p168, %p169
    %p172 = scmp.ne.s32.totalorder %s157, %s171
    %p173 = scmp.eq.s32.totalorder %s21, 0
    %p174 = por %p172, %p173
    %s176 = sadd.s32 %s175, 1
    %p179 = scmp.eq.s32.totalorder %s15, 1
    %p180 = scmp.ne.s32.totalorder %s175, %s177
    %p181 = scmp.eq.s32.totalorder %s15, 0
    %p182 = por %p180, %p181
    %p183 = scmp.ne.s32.totalorder %s175, %s177
    %p184 = scmp.eq.s32.totalorder %s20, 1
    %p185 = por %p183, %p184
    %p186 = scmp.ne.s32.totalorder %s177, %s178
    %p187 = scmp.eq.s32.totalorder %s20, 0
    %p188 = por %p186, %p187
    %p189 = scmp.ne.s32.totalorder %s177, %s178
    %p190 = scmp.eq.s32.totalorder %s21, 1
    %p191 = por %p189, %p190
    %p193 = scmp.ne.s32.totalorder %s178, %s192
    %p194 = scmp.eq.s32.totalorder %s21, 0
    %p195 = por %p193, %p194
    %s197 = sadd.s32 %s196, 1
    %p200 = scmp.eq.s32.totalorder %s15, 1
    %p201 = scmp.ne.s32.totalorder %s196, %s198
    %p202 = scmp.eq.s32.totalorder %s15, 0
    %p203 = por %p201, %p202
    %p204 = scmp.ne.s32.totalorder %s196, %s198
    %p205 = scmp.eq.s32.totalorder %s20, 1
    %p206 = por %p204, %p205
    %p207 = scmp.ne.s32.totalorder %s198, %s199
    %p208 = scmp.eq.s32.totalorder %s20, 0
    %p209 = por %p207, %p208
    %p210 = scmp.ne.s32.totalorder %s198, %s199
    %p211 = scmp.eq.s32.totalorder %s21, 1
    %p212 = por %p210, %p211
    %p214 = scmp.ne.s32.totalorder %s199, %s213
    %p215 = scmp.eq.s32.totalorder %s21, 0
    %p216 = por %p214, %p215
    %s217 = ssub.s32 %s15, %s22
    %p218 = scmp.eq.s32.totalorder %s217, 0
    %s220 = sadd.s32 %s219, 1
    %s221 = scalar_select %p218, %s219, %s220
    %p224 = pneg %p218
    %p225 = scmp.eq.s32.totalorder %s15, 1
    %p226 = por %p224, %p225
    %p227 = scmp.ne.s32.totalorder %s219, %s222
    %p228 = scmp.eq.s32.totalorder %s15, 0
    %p229 = por %p227, %p228
    %p230 = scmp.ne.s32.totalorder %s219, %s222
    %p231 = scmp.eq.s32.totalorder %s20, 1
    %p232 = por %p230, %p231
    %p233 = scmp.ne.s32.totalorder %s222, %s223
    %p234 = scmp.eq.s32.totalorder %s20, 0
    %p235 = por %p233, %p234
    %p236 = scmp.ne.s32.totalorder %s222, %s223
    %p237 = scmp.eq.s32.totalorder %s21, 1
    %p238 = por %p236, %p237
    %p240 = scmp.ne.s32.totalorder %s223, %s239
    %p241 = scmp.eq.s32.totalorder %s21, 0
    %p242 = por %p240, %p241
    %p243 = scmp.le.s32.totalorder 1, %s15
    %p244 = scmp.lt.s32.totalorder %s15, 3
    %p245 = pnand %p243, %p244
    %p246 = pneg %p245
    // Predicated region
    $region9: #{gravnet_with_noise_filter_forward.61} parent=5 // pred_check
      _
    $region10: #{gravnet_with_noise_filter_forward.61} parent=5 // pred_check_branch
      %248 = sbr.rel (%p245) target = $region12
    $region11: #{gravnet_with_noise_filter_forward.61} parent=5 // pred_region
      %s249 = ssub.s32 %s15, 1
      // Predicated region
      $region13: #{gravnet_with_noise_filter_forward.61} parent=11 // pred_check
        %p250 = pneg %p62
      $region14: #{gravnet_with_noise_filter_forward.61} parent=11 // pred_check_branch
        %252 = sbr.rel (%p250) target = $region16
      $region15: #{gravnet_with_noise_filter_forward.61} parent=11 // pred_region
        _
      $region16: #{gravnet_with_noise_filter_forward.61} parent=11 // pred_fallthru
        _
      // Predicated region
      $region17: #{gravnet_with_noise_filter_forward.61} parent=11 // pred_check
        %p253 = pneg %p83
      $region18: #{gravnet_with_noise_filter_forward.61} parent=11 // pred_check_branch
        %255 = sbr.rel (%p253) target = $region20
      $region19: #{gravnet_with_noise_filter_forward.61} parent=11 // pred_region
        _
      $region20: #{gravnet_with_noise_filter_forward.61} parent=11 // pred_fallthru
        _
      // Predicated region
      $region21: #{gravnet_with_noise_filter_forward.61} parent=11 // pred_check
        %p256 = pneg %p104
      $region22: #{gravnet_with_noise_filter_forward.61} parent=11 // pred_check_branch
        %258 = sbr.rel (%p256) target = $region24
      $region23: #{gravnet_with_noise_filter_forward.61} parent=11 // pred_region
        _
      $region24: #{gravnet_with_noise_filter_forward.61} parent=11 // pred_fallthru
        _
      // Predicated region
      $region25: #{gravnet_with_noise_filter_forward.61} parent=11 // pred_check
        %p259 = pneg %p125
      $region26: #{gravnet_with_noise_filter_forward.61} parent=11 // pred_check_branch
        %261 = sbr.rel (%p259) target = $region28
      $region27: #{gravnet_with_noise_filter_forward.61} parent=11 // pred_region
        _
      $region28: #{gravnet_with_noise_filter_forward.61} parent=11 // pred_fallthru
        _
      // Predicated region
      $region29: #{gravnet_with_noise_filter_forward.61} parent=11 // pred_check
        %p262 = pneg %p146
      $region30: #{gravnet_with_noise_filter_forward.61} parent=11 // pred_check_branch
        %264 = sbr.rel (%p262) target = $region32
      $region31: #{gravnet_with_noise_filter_forward.61} parent=11 // pred_region
        _
      $region32: #{gravnet_with_noise_filter_forward.61} parent=11 // pred_fallthru
        _
      // Predicated region
      $region33: #{gravnet_with_noise_filter_forward.61} parent=11 // pred_check
        %p265 = pneg %p167
      $region34: #{gravnet_with_noise_filter_forward.61} parent=11 // pred_check_branch
        %267 = sbr.rel (%p265) target = $region36
      $region35: #{gravnet_with_noise_filter_forward.61} parent=11 // pred_region
        _
      $region36: #{gravnet_with_noise_filter_forward.61} parent=11 // pred_fallthru
        _
      // Predicated region
      $region37: #{gravnet_with_noise_filter_forward.61} parent=11 // pred_check
        %p268 = pneg %p188
      $region38: #{gravnet_with_noise_filter_forward.61} parent=11 // pred_check_branch
        %270 = sbr.rel (%p268) target = $region40
      $region39: #{gravnet_with_noise_filter_forward.61} parent=11 // pred_region
        _
      $region40: #{gravnet_with_noise_filter_forward.61} parent=11 // pred_fallthru
        _
      // Predicated region
      $region41: #{gravnet_with_noise_filter_forward.61} parent=11 // pred_check
        %p271 = pneg %p209
      $region42: #{gravnet_with_noise_filter_forward.61} parent=11 // pred_check_branch
        %273 = sbr.rel (%p271) target = $region44
      $region43: #{gravnet_with_noise_filter_forward.61} parent=11 // pred_region
        _
      $region44: #{gravnet_with_noise_filter_forward.61} parent=11 // pred_fallthru
        _
    $region12: #{gravnet_with_noise_filter_forward.61} parent=5 // pred_fallthru
      _
    %p274 = scmp.lt.s32.totalorder %s15, 2
    // Predicated region
    $region45: #{gravnet_with_noise_filter_forward.61} parent=5 // pred_check
      %p275 = pneg %p274
    $region46: #{gravnet_with_noise_filter_forward.61} parent=5 // pred_check_branch
      %277 = sbr.rel (%p275) target = $region48
    $region47: #{gravnet_with_noise_filter_forward.61} parent=5 // pred_region
      // Predicated region
      $region49: #{gravnet_with_noise_filter_forward.61} parent=47 // pred_check
        %p278 = pneg %p35
      $region50: #{gravnet_with_noise_filter_forward.61} parent=47 // pred_check_branch
        %280 = sbr.rel (%p278) target = $region52
      $region51: #{gravnet_with_noise_filter_forward.61} parent=47 // pred_region
        %s281 = smul.u32 4, %s15
        %p282 = scmp.lt.s32.totalorder %s281, 7
        %s283 = scalar_select %p282, %s281, 7
        %s284 = smul.addr %s283, 8
        %s285 = scalar_lea.vmem %s0, %s284
        %s286 = smul.u32 4, %s15
      $region52: #{gravnet_with_noise_filter_forward.61} parent=47 // pred_fallthru
        _
    $region48: #{gravnet_with_noise_filter_forward.61} parent=5 // pred_fallthru
      _
    %p287 = scmp.le.s32.totalorder 1, %s15
    %p288 = scmp.lt.s32.totalorder %s15, 3
    %p289 = pnand %p287, %p288
    %p290 = pneg %p289
    // Predicated region
    $region53: #{gravnet_with_noise_filter_forward.61} parent=5 // pred_check
      _
    $region54: #{gravnet_with_noise_filter_forward.61} parent=5 // pred_check_branch
      %292 = sbr.rel (%p289) target = $region56
    $region55: #{gravnet_with_noise_filter_forward.61} parent=5 // pred_region
      %s293 = ssub.s32 %s15, 1
      %s294 = smul.u32 4, %s20
      %p295 = scmp.lt.s32.totalorder %s294, 7
      %s296 = scalar_select %p295, %s294, 7
      %s297 = smul.addr %s296, 8
      %s298 = scalar_lea.vmem %s0, %s297
      %p299 = pneg %p41
      %p300 = pneg %p38
      %p301 = pneg %p62
      %p302 = pneg %p59
      %p303 = pneg %p83
      %p304 = pneg %p80
      %p305 = pneg %p104
      %p306 = pneg %p101
      %p307 = pneg %p125
      %p308 = pneg %p122
      %p309 = pneg %p146
      %p310 = pneg %p143
      %p311 = pneg %p167
      %p312 = pneg %p164
      %p313 = pneg %p188
      %p314 = pneg %p185
      %p315 = pneg %p209
      %p316 = pneg %p206
      %p317 = pneg %p235
      %p318 = pneg %p232
      %s319 = smul.u32 4, %s20
      %p320 = scmp.lt.s32.totalorder %s319, 7
      %s321 = scalar_select %p320, %s319, 7
      %s322 = smul.addr %s321, 8
      %s323 = scalar_lea.vmem %s9, %s322
      %s324 = smul.u32 4, %s20
      %p325 = scmp.lt.s32.totalorder %s324, 7
      %s326 = scalar_select %p325, %s324, 7
      %s327 = smul.addr %s326, 8
      %s328 = scalar_lea.vmem %s0, %s327
      %s329 = smul.u32 4, %s20
      %s330 = smul.u32 4, %s20
      %p331 = scmp.lt.s32.totalorder %s330, 7
      %s332 = scalar_select %p331, %s330, 7
      %s333 = smul.addr %s332, 8
      %s334 = scalar_lea.vmem %s9, %s333
      %s335 = smul.u32 4, %s20
      %v337 = vld [vmem:[%s328] sm:$0xff]
      %v338 = vld [vmem:[%s328 + $0x8] sm:$0xff]
      %v339 = vld [vmem:[%s328 + $0x10] sm:$0xff]
      %v340 = vld [vmem:[%s328 + $0x18] sm:$0xff]
      %v341 = vld [vmem:[%s1] sm:$0x1]
      %v343 = vperm.slane %v341, 0
      %v345 = vmul.f32 %v337, %v343
      %v346 = vmul.f32 %v338, %v343
      %v347 = vmul.f32 %v339, %v343
      %v348 = vmul.f32 %v340, %v343
      %v349 = vld [vmem:[%s2] sm:$0x1]
      %v351 = vperm.slane %v349, 0
      %v353 = vadd.f32 %v345, %v351
      %v354 = vadd.f32 %v346, %v351
      %v355 = vadd.f32 %v347, %v351
      %v356 = vadd.f32 %v348, %v351
      %v357 = vpack.c.bf16 %v354, %v353
      %v358 = vpack.c.bf16 %v356, %v355
      %v359 = vld [vmem:[%s3] sm:$0xf]
      %v360 = vld [vmem:[%s3 + $0x4] sm:$0xf]
      %v361 = vld [vmem:[%s3 + $0x8] sm:$0xf]
      %v362 = vld [vmem:[%s3 + $0xc] sm:$0xf]
      %v363 = vld [vmem:[%s3 + $0x10] sm:$0xf]
      %v364 = vld [vmem:[%s3 + $0x14] sm:$0xf]
      %v365 = vld [vmem:[%s3 + $0x18] sm:$0xf]
      %v366 = vld [vmem:[%s3 + $0x1c] sm:$0xf]
      %v367 = vld [vmem:[%s3 + $0x20] sm:$0xf]
      %v368 = vld [vmem:[%s3 + $0x24] sm:$0xf]
      %v369 = vld [vmem:[%s3 + $0x28] sm:$0xf]
      %v370 = vld [vmem:[%s3 + $0x2c] sm:$0xf]
      %v371 = vld [vmem:[%s3 + $0x30] sm:$0xf]
      %v372 = vld [vmem:[%s3 + $0x34] sm:$0xf]
      %v373 = vld [vmem:[%s3 + $0x38] sm:$0xf]
      %v374 = vld [vmem:[%s3 + $0x3c] sm:$0xf]
      %v375 = vld [vmem:[%s4] sm:$0x1]
      %v377 = vperm.slane %v375, 0
      %v395 = vunpack.c.l.b16 %v359
      %v396 = vunpack.c.l.b16 %v360
      %v397 = vunpack.c.l.b16 %v361
      %v398 = vunpack.c.l.b16 %v362
      %v399 = vunpack.c.l.b16 %v363
      %v400 = vunpack.c.l.b16 %v364
      %v401 = vunpack.c.l.b16 %v365
      %v402 = vunpack.c.l.b16 %v366
      %v403 = vunpack.c.l.b16 %v367
      %v404 = vunpack.c.l.b16 %v368
      %v405 = vunpack.c.l.b16 %v369
      %v406 = vunpack.c.l.b16 %v370
      %v407 = vunpack.c.l.b16 %v371
      %v408 = vunpack.c.l.b16 %v372
      %v409 = vunpack.c.l.b16 %v373
      %v410 = vunpack.c.l.b16 %v374
      %v411 = vpack.c.b16 %v396, %v395
      %v412 = vpack.c.b16 %v398, %v397
      %v413 = vpack.c.b16 %v400, %v399
      %v414 = vpack.c.b16 %v402, %v401
      %v415 = vpack.c.b16 %v404, %v403
      %v416 = vpack.c.b16 %v406, %v405
      %v417 = vpack.c.b16 %v408, %v407
      %v418 = vpack.c.b16 %v410, %v409
      %427 = vmatpush.bf16.msra.mxu0 %v418
      %428 = vmatpush.bf16.msra.mxu0 %v417
      %429 = vmatpush.bf16.msra.mxu0 %v416
      %430 = vmatpush.bf16.msra.mxu0 %v415
      %431 = vmatpush.bf16.msra.mxu0 %v414
      %432 = vmatpush.bf16.msra.mxu0 %v413
      %433 = vmatpush.bf16.msra.mxu0 %v412
      %434 = vmatpush.bf16.msra.mxu0 %v411
      %435 = vmatmul.bf16.gmra.mxu0 %v357
      %v436 = vpop.f32.mrf.mxu0
      %v437 = vadd.f32 %v377, %v436
      %v438 = vpop.f32.mrf.mxu0
      %v439 = vadd.f32 %v377, %v438
      %440 = vmatmul.bf16.gmra.mxu0 %v358
      %v441 = vpop.f32.mrf.mxu0
      %v442 = vadd.f32 %v377, %v441
      %v443 = vpop.f32.mrf.mxu0
      %v444 = vadd.f32 %v377, %v443
      %445 = vdwg.mxu0
      %v446 = vmax.f32 %v437, 0.0
      %v447 = vmax.f32 %v439, 0.0
      %v448 = vmax.f32 %v442, 0.0
      %v449 = vmax.f32 %v444, 0.0
      %v450 = vpack.c.bf16 %v447, %v446
      %v451 = vpack.c.bf16 %v449, %v448
      %v452 = vld [vmem:[%s5] sm:$0xf]
      %v453 = vld [vmem:[%s5 + $0x4] sm:$0xf]
      %v454 = vld [vmem:[%s5 + $0x8] sm:$0xf]
      %v455 = vld [vmem:[%s5 + $0xc] sm:$0xf]
      %v456 = vld [vmem:[%s5 + $0x10] sm:$0xf]
      %v457 = vld [vmem:[%s5 + $0x14] sm:$0xf]
      %v458 = vld [vmem:[%s5 + $0x18] sm:$0xf]
      %v459 = vld [vmem:[%s5 + $0x1c] sm:$0xf]
      %v460 = vld [vmem:[%s6] sm:$0x1]
      %v462 = vperm.slane %v460, 0
      %v472 = vunpack.c.l.b16 %v452
      %v473 = vunpack.c.l.b16 %v453
      %v474 = vunpack.c.l.b16 %v454
      %v475 = vunpack.c.l.b16 %v455
      %v476 = vunpack.c.l.b16 %v456
      %v477 = vunpack.c.l.b16 %v457
      %v478 = vunpack.c.l.b16 %v458
      %v479 = vunpack.c.l.b16 %v459
      %v480 = vpack.c.b16 %v473, %v472
      %v481 = vpack.c.b16 %v475, %v474
      %v482 = vpack.c.b16 %v477, %v476
      %v483 = vpack.c.b16 %v479, %v478
      %vm488 = vcmask 523264
      %v490 = vsel %vm488, %v450, 0
      %v493 = vsel %vm488, %v451, 0
      %495 = vmatpush.bf16.msra.mxu0 0
      %496 = vmatpush.bf16.msra.mxu0 0
      %497 = vmatpush.bf16.msra.mxu0 0
      %498 = vmatpush.bf16.msra.mxu0 0
      %499 = vmatpush.bf16.msra.mxu0 %v483
      %500 = vmatpush.bf16.msra.mxu0 %v482
      %501 = vmatpush.bf16.msra.mxu0 %v481
      %502 = vmatpush.bf16.msra.mxu0 %v480
      %503 = vmatmul.bf16.gmra.mxu0 %v490
      %v504 = vpop.f32.mrf.mxu0
      %v505 = vadd.f32 %v462, %v504
      %v506 = vpop.f32.mrf.mxu0
      %v507 = vadd.f32 %v462, %v506
      %508 = vmatmul.bf16.gmra.mxu0 %v493
      %v509 = vpop.f32.mrf.mxu0
      %v510 = vadd.f32 %v462, %v509
      %v511 = vpop.f32.mrf.mxu0
      %v512 = vadd.f32 %v462, %v511
      %513 = vdwg.mxu0
      %v514 = vmax.f32 %v505, 0.0
      %v515 = vmax.f32 %v507, 0.0
      %v516 = vmax.f32 %v510, 0.0
      %v517 = vmax.f32 %v512, 0.0
      %v518 = vpack.c.bf16 %v515, %v514
      %v519 = vpack.c.bf16 %v517, %v516
      %v520 = vld [vmem:[%s7] sm:$0xf]
      %v521 = vld [vmem:[%s7 + $0x4] sm:$0xf]
      %v522 = vld [vmem:[%s7 + $0x8] sm:$0xf]
      %v523 = vld [vmem:[%s7 + $0xc] sm:$0xf]
      %v524 = vld [vmem:[%s7 + $0x10] sm:$0xf]
      %v525 = vld [vmem:[%s7 + $0x14] sm:$0xf]
      %v526 = vld [vmem:[%s7 + $0x18] sm:$0xf]
      %v527 = vld [vmem:[%s7 + $0x1c] sm:$0xf]
      %v528 = vld [vmem:[%s8] sm:$0x1]
      %v530 = vperm.slane %v528, 0
      %v540 = vunpack.c.l.b16 %v520
      %v541 = vunpack.c.l.b16 %v521
      %v542 = vunpack.c.l.b16 %v522
      %v543 = vunpack.c.l.b16 %v523
      %v544 = vunpack.c.l.b16 %v524
      %v545 = vunpack.c.l.b16 %v525
      %v546 = vunpack.c.l.b16 %v526
      %v547 = vunpack.c.l.b16 %v527
      %v548 = vpack.c.b16 %v541, %v540
      %v549 = vpack.c.b16 %v543, %v542
      %v550 = vpack.c.b16 %v545, %v544
      %v551 = vpack.c.b16 %v547, %v546
      %v557 = vsel %vm488, %v518, 0
      %v560 = vsel %vm488, %v519, 0
      %562 = vmatpush.bf16.msra.mxu0 0
      %563 = vmatpush.bf16.msra.mxu0 0
      %564 = vmatpush.bf16.msra.mxu0 0
      %565 = vmatpush.bf16.msra.mxu0 0
      %566 = vmatpush.bf16.msra.mxu0 %v551
      %567 = vmatpush.bf16.msra.mxu0 %v550
      %568 = vmatpush.bf16.msra.mxu0 %v549
      %569 = vmatpush.bf16.msra.mxu0 %v548
      %570 = vmatmul.bf16.gmra.mxu0 %v557
      %v571 = vpop.f32.mrf.mxu0
      %v572 = vadd.f32 %v530, %v571
      %v573 = vpop.f32.mrf.mxu0
      %v574 = vadd.f32 %v530, %v573
      %575 = vmatmul.bf16.gmra.mxu0 %v560
      %v576 = vpop.f32.mrf.mxu0
      %v577 = vadd.f32 %v530, %v576
      %v578 = vpop.f32.mrf.mxu0
      %v579 = vadd.f32 %v530, %v578
      %580 = vdwg.mxu0
      %vm581 = vcmask 31744
      %582 = vst.msk [vmem:[%s334] sm:$0xff] %vm581, %v572
      %583 = vst.msk [vmem:[%s334 + $0x8] sm:$0xff] %vm581, %v574
      %584 = vst.msk [vmem:[%s334 + $0x10] sm:$0xff] %vm581, %v577
      %585 = vst.msk [vmem:[%s334 + $0x18] sm:$0xff] %vm581, %v579
      %s586 = smul.u32 4, %s20
      %p587 = scmp.lt.s32.totalorder %s586, 7
      %s588 = scalar_select %p587, %s586, 7
      %s589 = smul.addr %s588, 8
      %s590 = scalar_lea.vmem %s9, %s589
      // Predicated region
      $region57: #{gravnet_with_noise_filter_forward.61} parent=55 // pred_check
        %p591 = pneg %p232
      $region58: #{gravnet_with_noise_filter_forward.61} parent=55 // pred_check_branch
        %593 = sbr.rel (%p591) target = $region60
      $region59: #{gravnet_with_noise_filter_forward.61} parent=55 // pred_region
        %s594 = smul.u32 4, %s20
      $region60: #{gravnet_with_noise_filter_forward.61} parent=55 // pred_fallthru
        _
    $region56: #{gravnet_with_noise_filter_forward.61} parent=5 // pred_fallthru
      _
    %p595 = scmp.le.s32.totalorder 2, %s15
    // Predicated region
    $region61: #{gravnet_with_noise_filter_forward.61} parent=5 // pred_check
      %p596 = pneg %p595
    $region62: #{gravnet_with_noise_filter_forward.61} parent=5 // pred_check_branch
      %598 = sbr.rel (%p596) target = $region64
    $region63: #{gravnet_with_noise_filter_forward.61} parent=5 // pred_region
      %s599 = ssub.s32 %s15, 2
      // Predicated region
      $region65: #{gravnet_with_noise_filter_forward.61} parent=63 // pred_check
        %p600 = pneg %p238
      $region66: #{gravnet_with_noise_filter_forward.61} parent=63 // pred_check_branch
        %602 = sbr.rel (%p600) target = $region68
      $region67: #{gravnet_with_noise_filter_forward.61} parent=63 // pred_region
        %s603 = smul.u32 4, %s21
        %p604 = scmp.lt.s32.totalorder %s603, 7
        %s605 = scalar_select %p604, %s603, 7
        %s606 = smul.addr %s605, 8
        %s607 = scalar_lea.vmem %s9, %s606
      $region68: #{gravnet_with_noise_filter_forward.61} parent=63 // pred_fallthru
        _
    $region64: #{gravnet_with_noise_filter_forward.61} parent=5 // pred_fallthru
      _
  $region6: #{gravnet_with_noise_filter_forward.61} parent=0 // loop_footer
    %s19 = sadd.s32 1, %s15
  $region7: #{gravnet_with_noise_filter_forward.61} parent=0 // loop_footer_branch
    %14 = sbr.rel target = $region3
  $region8: #{gravnet_with_noise_filter_forward.61} parent=0 // loop_exit
    _

</llo_original>
